<compile_context>
chip_gen: v7x
topology: tpu7x:2x2x1
jax: 0.10.0
libtpu: 0.0.40
codegen_flags: <defaults>
</compile_context>

<pallas_src>
import functools

import jax
import jax.numpy as jnp
from jax import lax
from jax.experimental import pallas as pl
from jax.experimental.pallas import tpu as pltpu

EPS = 1e-5            # nn.InstanceNorm2d default eps (affine=False)
NEG_SLOPE = 0.01      # nn.LeakyReLU default negative_slope


def _round_up(x, m):
    return (x + m - 1) // m * m


def _chip_budgets():
    """(row-tile cap, scoped-VMEM limit) tuned per TPU generation."""
    try:
        vmem_cap = int(pltpu.get_tpu_info().vmem_capacity_bytes)
    except Exception:                       # conservative fallback (works everywhere)
        vmem_cap = 64 * 1024 * 1024
    if vmem_cap >= 100 * 1024 * 1024:       # v5e / v6e: 128 MiB physical VMEM
        return 2048, 80 * 1024 * 1024
    return 1024, 48 * 1024 * 1024           # v7x: 64 MiB physical VMEM


TILE_M_CAP, VMEM_LIMIT = _chip_budgets()


def _tiles(m):
    """Row tiling: even tile count (two per-core stats halves), tile multiple of 16."""
    nt = 2 * max(1, -(-_round_up(m, 16) // (2 * TILE_M_CAP)))
    tile = _round_up(-(-m // nt), 16)
    return tile, tile * nt, nt


# ---------------------------------------------------------------------------
# Pallas kernels
# ---------------------------------------------------------------------------
def _matmul_stats_kernel(p_ref, w_ref, y_ref, ssum_ref, ssq_ref):
    """Pass 1: conv-as-matmul (bf16 operands, f32 acc, bf16 store) + stats accumulation."""
    j = pl.program_id(2)                               # row-tile index (reduction axis)
    y = jnp.dot(p_ref[...], w_ref[...], preferred_element_type=jnp.float32)
    # Padded rows / channels are exact zeros in f32 and stay exact zeros in bf16.
    y_ref[...] = y.astype(y_ref.dtype)

    @pl.when(j == 0)
    def _():
        ssum_ref[...] = jnp.zeros_like(ssum_ref)
        ssq_ref[...] = jnp.zeros_like(ssq_ref)

    ssum_ref[...] += jnp.sum(y, axis=0, keepdims=True)[None]
    ssq_ref[...] += jnp.sum(y * y, axis=0, keepdims=True)[None]


def _make_norm_act_kernel(inv_count, has_residual, apply_tanh):
    """Pass 2: in-kernel stat finalization + InstanceNorm + LeakyReLU (+res) (+tanh)."""
    def kernel(*refs):
        if has_residual:
            y_ref, ssum_ref, ssq_ref, r_ref, o_ref = refs
        else:
            y_ref, ssum_ref, ssq_ref, o_ref = refs
        mu = ssum_ref[0] * inv_count                          # (1, Cp)
        var = jnp.maximum(ssq_ref[0] * inv_count - mu * mu, 0.0)
        inv = lax.rsqrt(var + EPS)                            # EUP slot (free)
        yn = (y_ref[...].astype(jnp.float32) - mu) * inv
        act = jnp.where(yn >= 0.0, yn, NEG_SLOPE * yn)        # LeakyReLU
        if has_residual:
            act = act + r_ref[...].astype(jnp.float32)
        if apply_tanh:
            act = jnp.tanh(act)
        o_ref[...] = act.astype(o_ref.dtype)
    return kernel


# ---------------------------------------------------------------------------
# JAX glue: im2col (pure data movement)
# ---------------------------------------------------------------------------
def _im2col(xp, kh, kw, stride):
    """(N,Hp,Wp,C) -> (N,Ho,Wo,kh*kw*C); tap order (kh,kw,c) matches HWIO flattening."""
    n, hp, wp, c = xp.shape
    ho = (hp - kh) // stride + 1
    wo = (wp - kw) // stride + 1
    cols = []
    for ih in range(kh):
        for iw in range(kw):
            cols.append(xp[:, ih:ih + stride * (ho - 1) + 1:stride,
                              iw:iw + stride * (wo - 1) + 1:stride, :])
    return jnp.concatenate(cols, axis=-1), ho, wo


# ---------------------------------------------------------------------------
# Pass 1: tiled matmul + stats
# ---------------------------------------------------------------------------
def _conv_pass1(x_nhwc, w_hwio, stride):
    """Returns (y_flat bf16 (N*M_pad,Cp), ssum (N,1,Cp), ssq (N,1,Cp), geometry)."""
    n = x_nhwc.shape[0]
    kh, kw, cin, cout = w_hwio.shape
    patches, ho, wo = _im2col(x_nhwc.astype(jnp.bfloat16), kh, kw, stride)
    m = ho * wo
    k_full = kh * kw * cin
    kp = _round_up(k_full, 128)          # lane-dense LHS depth / clean bf16 RHS sublanes
    cp = _round_up(cout, 128)            # lane-dense output channels
    tile_m, m_pad, nt = _tiles(m)
    nt_half = nt // 2

    p = patches.reshape(n, m, k_full)
    p = jnp.pad(p, ((0, 0), (0, m_pad - m), (0, kp - k_full)))
    p = p.reshape(n * m_pad, kp)

    w2 = jnp.pad(w_hwio.reshape(k_full, cout).astype(jnp.bfloat16),
                 ((0, kp - k_full), (0, cp - cout)))

    def row_map(i, h, j):
        return (i * nt + h * nt_half + j, 0)

    def stat_map(i, h, j):
        return (i * 2 + h, 0, 0)

    y, ssum, ssq = pl.pallas_call(
        _matmul_stats_kernel,
        grid=(n, 2, nt_half),
        in_specs=[pl.BlockSpec((tile_m, kp), row_map),
                  pl.BlockSpec((kp, cp), lambda i, h, j: (0, 0))],
        out_specs=(pl.BlockSpec((tile_m, cp), row_map),
                   pl.BlockSpec((1, 1, cp), stat_map),
                   pl.BlockSpec((1, 1, cp), stat_map)),
        out_shape=(jax.ShapeDtypeStruct((n * m_pad, cp), jnp.bfloat16),
                   jax.ShapeDtypeStruct((n * 2, 1, cp), jnp.float32),
                   jax.ShapeDtypeStruct((n * 2, 1, cp), jnp.float32)),
        compiler_params=pltpu.CompilerParams(
            dimension_semantics=("parallel", "parallel", "arbitrary"),
            vmem_limit_bytes=VMEM_LIMIT),
    )(p, w2)

    # Combine the two per-core halves (tiny).
    ssum = ssum.reshape(n, 2, cp).sum(axis=1, keepdims=True)
    ssq = ssq.reshape(n, 2, cp).sum(axis=1, keepdims=True)

    geom = dict(n=n, m=m, m_pad=m_pad, tile_m=tile_m, nt=nt,
                cp=cp, cout=cout, ho=ho, wo=wo)
    return y, ssum, ssq, geom


# ---------------------------------------------------------------------------
# Pass 2: InstanceNorm apply + LeakyReLU (+ residual) (+ tanh)
# ---------------------------------------------------------------------------
def _norm_act_pass2(y_flat, ssum, ssq, count, geom, *,
                    residual_flat=None, apply_tanh=False, out_dtype=jnp.bfloat16):
    n, m_pad, tile_m, nt, cp = (geom["n"], geom["m_pad"], geom["tile_m"],
                                geom["nt"], geom["cp"])
    has_res = residual_flat is not None

    def row_map(i, j):
        return (i * nt + j, 0)

    def stat_map(i, j):
        return (i, 0, 0)

    inputs = [y_flat, ssum, ssq]
    in_specs = [pl.BlockSpec((tile_m, cp), row_map),
                pl.BlockSpec((1, 1, cp), stat_map),
                pl.BlockSpec((1, 1, cp), stat_map)]
    if has_res:
        assert residual_flat.shape == (n * m_pad, cp), \
            (residual_flat.shape, (n * m_pad, cp))
        inputs.append(residual_flat)
        in_specs.append(pl.BlockSpec((tile_m, cp), row_map))

    return pl.pallas_call(
        _make_norm_act_kernel(1.0 / float(count), has_res, apply_tanh),
        grid=(n, nt),
        in_specs=in_specs,
        out_specs=pl.BlockSpec((tile_m, cp), row_map),
        out_shape=jax.ShapeDtypeStruct((n * m_pad, cp), out_dtype),
        compiler_params=pltpu.CompilerParams(
            dimension_semantics=("parallel", "parallel"),
            vmem_limit_bytes=VMEM_LIMIT),
    )(*inputs)


def _unflatten(out_flat, geom):
    n, m, m_pad, cp, cout, ho, wo = (geom["n"], geom["m"], geom["m_pad"],
                                     geom["cp"], geom["cout"], geom["ho"], geom["wo"])
    out = out_flat.reshape(n, m_pad, cp)[:, :m, :cout]
    return out.reshape(n, ho, wo, cout)


# ---------------------------------------------------------------------------
# Layer wrappers
# ---------------------------------------------------------------------------
def _fused_conv(x_nhwc, w_hwio, *, stride=1, residual_flat=None, apply_tanh=False):
    y, ssum, ssq, geom = _conv_pass1(x_nhwc, w_hwio, stride)
    out_dtype = jnp.float32 if apply_tanh else jnp.bfloat16
    out_flat = _norm_act_pass2(y, ssum, ssq, geom["m"], geom,
                               residual_flat=residual_flat,
                               apply_tanh=apply_tanh, out_dtype=out_dtype)
    return _unflatten(out_flat, geom), out_flat


def _conv_layer(x, w, *, stride=1, pad=0, reflect=False,
                residual_flat=None, apply_tanh=False):
    x = x.astype(jnp.bfloat16)
    if pad > 0:
        mode = "reflect" if reflect else "constant"
        x = jnp.pad(x, ((0, 0), (pad, pad), (pad, pad), (0, 0)), mode=mode)
    return _fused_conv(x, w, stride=stride, residual_flat=residual_flat,
                       apply_tanh=apply_tanh)


def _deconv_layer(x, w):
    """ConvTranspose2d(k=3, s=2, p=1) == dilate-by-2 + pad-1 + 3x3 conv, computed as a
    4-phase subpixel decomposition (no zero-dilated input: ~4x fewer MACs / HBM bytes).
    InstanceNorm stats are combined across the 4 phases before normalization."""
    x = x.astype(jnp.bfloat16)
    n, h, wd, _ = x.shape
    cout = w.shape[-1]
    ho, wo = 2 * h - 1, 2 * wd - 1

    # Output phase (oh%2, ow%2) only touches the sub-kernel below (other taps hit the
    # inserted zeros of the dilated input).
    phases = {(0, 0): w[1:2, 1:2],     # 1x1
              (0, 1): w[1:2, 0::2],    # 1x2
              (1, 0): w[0::2, 1:2],    # 2x1
              (1, 1): w[0::2, 0::2]}   # 2x2

    partial = {}
    ssum_t = None
    ssq_t = None
    for ph, w_ph in phases.items():
        y, ssum, ssq, geom = _conv_pass1(x, w_ph, 1)
        partial[ph] = (y, geom)
        ssum_t = ssum if ssum_t is None else ssum_t + ssum
        ssq_t = ssq if ssq_t is None else ssq_t + ssq

    count = ho * wo                      # InstanceNorm runs over the full upsampled map
    out = jnp.zeros((n, ho, wo, cout), jnp.bfloat16)
    for (ph, pw), (y, geom) in partial.items():
        of = _norm_act_pass2(y, ssum_t, ssq_t, count, geom)
        out = out.at[:, ph::2, pw::2, :].set(_unflatten(of, geom))
    return out


# ---------------------------------------------------------------------------
# generative.forward
# ---------------------------------------------------------------------------
def generative_forward(x_nchw, params, bn):
    x = jnp.transpose(x_nchw, (0, 2, 3, 1))                           # NCHW -> NHWC
    x, _ = _conv_layer(x, params["w_in"], pad=3, reflect=True)        # conv_in (rfpad k7)
    x, _ = _conv_layer(x, params["w_d1"], stride=2, pad=1)            # conv_down1
    x, x_flat = _conv_layer(x, params["w_d2"], stride=2, pad=1)       # conv_down2
    for i in range(bn):                                               # resblocks
        h, _ = _conv_layer(x, params[f"w_rb{i}_2"], pad=1)            # conv2 first
        x, x_flat = _conv_layer(h, params[f"w_rb{i}_1"], pad=1,
                                residual_flat=x_flat)                 # conv1 + x (flat res)
    x = _deconv_layer(x, params["w_u1"])                              # deconv_1 (subpixel)
    x = _deconv_layer(x, params["w_u2"])                              # deconv_2 (subpixel)
    x, _ = _conv_layer(x, params["w_out"], pad=3, reflect=True,
                       apply_tanh=True)                               # conv_out + tanh
    return jnp.transpose(x, (0, 3, 1, 2)).astype(jnp.float32)         # NHWC -> NCHW


# ---------------------------------------------------------------------------
# Pure-JAX reference (matched precision: bf16 matmuls, bf16 stored activations)
# ---------------------------------------------------------------------------
def _ref_forward(x_nchw, params, bn):
    x = jnp.transpose(x_nchw, (0, 2, 3, 1)).astype(jnp.float32)

    def conv(a, w, stride=1, pad=0, reflect=False, lhs_dil=1):
        if reflect:
            a = jnp.pad(a, ((0, 0), (pad, pad), (pad, pad), (0, 0)), mode="reflect")
            pad = 0
        return lax.conv_general_dilated(
            a.astype(jnp.bfloat16), w.astype(jnp.bfloat16),
            (stride, stride), ((pad, pad), (pad, pad)),
            lhs_dilation=(lhs_dil, lhs_dil),
            dimension_numbers=("NHWC", "HWIO", "NHWC"),
            preferred_element_type=jnp.float32)

    def inorm(y):
        yb = y.astype(jnp.bfloat16).astype(jnp.float32)   # mimic bf16 store of conv out
        mu = jnp.mean(y, axis=(1, 2), keepdims=True)      # stats from f32 accumulator
        var = jnp.mean(y * y, axis=(1, 2), keepdims=True) - mu * mu
        return (yb - mu) * lax.rsqrt(jnp.maximum(var, 0.0) + EPS)

    def lrelu(y):
        return jnp.where(y >= 0.0, y, NEG_SLOPE * y)

    def block(a, w, **kw):
        return lrelu(inorm(conv(a, w, **kw)))

    x = block(x, params["w_in"], pad=3, reflect=True).astype(jnp.bfloat16)
    x = block(x, params["w_d1"], stride=2, pad=1).astype(jnp.bfloat16)
    x = block(x, params["w_d2"], stride=2, pad=1).astype(jnp.bfloat16)
    for i in range(bn):
        h = block(x, params[f"w_rb{i}_2"], pad=1).astype(jnp.bfloat16)
        x = (x.astype(jnp.float32)
             + block(h, params[f"w_rb{i}_1"], pad=1)).astype(jnp.bfloat16)
    x = block(x, params["w_u1"], pad=1, lhs_dil=2).astype(jnp.bfloat16)
    x = block(x, params["w_u2"], pad=1, lhs_dil=2).astype(jnp.bfloat16)
    x = jnp.tanh(block(x, params["w_out"], pad=3, reflect=True))
    return jnp.transpose(x, (0, 3, 1, 2))


# ---------------------------------------------------------------------------
def init_params(key, fn, bn):
    keys = jax.random.split(key, 6 + bn)

    def mk(rng, k, ci, co):
        return jax.random.normal(rng, (k, k, ci, co), jnp.float32) * 0.1

    p = {
        "w_in":  mk(keys[0], 7, 3, fn // 4),
        "w_d1":  mk(keys[1], 3, fn // 4, fn // 2),
        "w_d2":  mk(keys[2], 3, fn // 2, fn),
        # TODO(synk): transposed-conv weights are parameterised directly as the
        # equivalent HWIO dilated-conv kernel (loading real PyTorch ConvTranspose2d
        # weights would require a spatial flip + in/out channel transpose).
        "w_u1":  mk(keys[3], 3, fn, fn // 2),
        "w_u2":  mk(keys[4], 3, fn // 2, fn // 4),
        "w_out": mk(keys[5], 7, fn // 4, 3),
    }
    for i in range(bn):
        k1, k2 = jax.random.split(keys[6 + i], 2)
        p[f"w_rb{i}_1"] = mk(k1, 3, fn, fn)
        p[f"w_rb{i}_2"] = mk(k2, 3, fn, fn)
    return p


if __name__ == "__main__":
    N, FN, NUM_RES, H, W = 2, 32, 2, 16, 16
    key = jax.random.PRNGKey(0)
    kx, kp = jax.random.split(key)
    x = jax.random.normal(kx, (N, 3, H, W), jnp.float32)
    params = init_params(kp, FN, NUM_RES)

    fwd = jax.jit(functools.partial(generative_forward, bn=NUM_RES))
    out = jax.block_until_ready(fwd(x, params))

    ref = jax.block_until_ready(_ref_forward(x, params, NUM_RES))
    assert out.shape == ref.shape == (N, 3, 13, 13), (out.shape, ref.shape)
    err = float(jnp.max(jnp.abs(out - ref)))
    assert err < 2e-2, err
    print("KERNEL_OK")
</pallas_src>

<mosaic_0001>
module attributes {stable_mosaic.version = 11 : i64} {
  func.func @_matmul_stats_kernel(%arg0: i32, %arg1: i32, %arg2: i32, %arg3: memref<128x256xbf16, #tpu.memory_space<vmem>>, %arg4: memref<256x128xbf16, #tpu.memory_space<vmem>>, %arg5: memref<128x128xbf16, #tpu.memory_space<vmem>>, %arg6: memref<1x1x128xf32, #tpu.memory_space<vmem>>, %arg7: memref<1x1x128xf32, #tpu.memory_space<vmem>>) attributes {dimension_semantics = [#tpu.dimension_semantics<parallel>, #tpu.dimension_semantics<parallel>, #tpu.dimension_semantics<arbitrary>], iteration_bounds = array<i64: 2, 2, 1>, scalar_prefetch = 0 : i64, scratch_operands = 0 : i64, tpu.core_type = #tpu.core_type<tc>, window_params = [{transform_indices = @transform_0, window_bounds = array<i64: 128, 256>}, {pipeline_mode = #tpu.pipeline_mode<synchronous>, transform_indices = @transform_1, window_bounds = array<i64: 256, 128>}, {transform_indices = @transform_2, window_bounds = array<i64: 128, 128>}, {transform_indices = @transform_3, window_bounds = array<i64: 1, 1, 128>}, {transform_indices = @transform_4, window_bounds = array<i64: 1, 1, 128>}]} {
    %c0 = arith.constant 0 : index
    %c0_0 = arith.constant 0 : index
    %0 = vector.load %arg3[%c0, %c0_0] : memref<128x256xbf16, #tpu.memory_space<vmem>>, vector<128x256xbf16>
    %c0_1 = arith.constant 0 : index
    %c0_2 = arith.constant 0 : index
    %1 = vector.load %arg4[%c0_1, %c0_2] : memref<256x128xbf16, #tpu.memory_space<vmem>>, vector<256x128xbf16>
    %cst = arith.constant dense<0.000000e+00> : vector<128x128xf32>
    %2 = tpu.matmul %0, %1, %cst {dimension_numbers = #tpu.dot_dimension_numbers<[1], [0], [0], [1], [0, 0, 1, 1], [], []>} : vector<128x256xbf16>, vector<256x128xbf16>, vector<128x128xf32> -> vector<128x128xf32>
    %3 = arith.truncf %2 : vector<128x128xf32> to vector<128x128xbf16>
    %c0_3 = arith.constant 0 : index
    %c0_4 = arith.constant 0 : index
    %4 = vector.load %arg5[%c0_3, %c0_4] : memref<128x128xbf16, #tpu.memory_space<vmem>>, vector<128x128xbf16>
    tpu.vector_store %arg5[%c0_3, %c0_4], %3 {strides = array<i32>} : memref<128x128xbf16, #tpu.memory_space<vmem>>, vector<128x128xbf16>,
    %c0_i32 = arith.constant 0 : i32
    %5 = arith.cmpi eq, %arg2, %c0_i32 : i32
    %6 = arith.extui %5 : i1 to i32
    %c0_i32_5 = arith.constant 0 : i32
    %7 = arith.cmpi ne, %6, %c0_i32_5 : i32
    scf.if %7 {
      %cst_20 = arith.constant 0.000000e+00 : f32
      %21 = vector.broadcast %cst_20 : f32 to vector<1x1x128xf32>
      %c0_21 = arith.constant 0 : index
      %c0_22 = arith.constant 0 : index
      %c0_23 = arith.constant 0 : index
      %22 = vector.load %arg6[%c0_21, %c0_22, %c0_23] : memref<1x1x128xf32, #tpu.memory_space<vmem>>, vector<1x1x128xf32>
      tpu.vector_store %arg6[%c0_21, %c0_22, %c0_23], %21 {strides = array<i32>} : memref<1x1x128xf32, #tpu.memory_space<vmem>>, vector<1x1x128xf32>,
      %cst_24 = arith.constant 0.000000e+00 : f32
      %23 = vector.broadcast %cst_24 : f32 to vector<1x1x128xf32>
      %c0_25 = arith.constant 0 : index
      %c0_26 = arith.constant 0 : index
      %c0_27 = arith.constant 0 : index
      %24 = vector.load %arg7[%c0_25, %c0_26, %c0_27] : memref<1x1x128xf32, #tpu.memory_space<vmem>>, vector<1x1x128xf32>
      tpu.vector_store %arg7[%c0_25, %c0_26, %c0_27], %23 {strides = array<i32>} : memref<1x1x128xf32, #tpu.memory_space<vmem>>, vector<1x1x128xf32>,
    } else {
    }
    %c0_6 = arith.constant 0 : index
    %c0_7 = arith.constant 0 : index
    %c0_8 = arith.constant 0 : index
    %8 = vector.load %arg6[%c0_6, %c0_7, %c0_8] : memref<1x1x128xf32, #tpu.memory_space<vmem>>, vector<1x1x128xf32>
    %cst_9 = arith.constant dense<0.000000e+00> : vector<128xf32>
    %9 = vector.multi_reduction <add>, %2, %cst_9 [0] : vector<128x128xf32> to vector<128xf32>
    %10 = vector.shape_cast %9 : vector<128xf32> to vector<1x128xf32>
    %11 = vector.shape_cast %10 : vector<1x128xf32> to vector<1x1x128xf32>
    %12 = arith.addf %8, %11 : vector<1x1x128xf32>
    %c0_10 = arith.constant 0 : index
    %c0_11 = arith.constant 0 : index
    %c0_12 = arith.constant 0 : index
    %13 = vector.load %arg6[%c0_10, %c0_11, %c0_12] : memref<1x1x128xf32, #tpu.memory_space<vmem>>, vector<1x1x128xf32>
    tpu.vector_store %arg6[%c0_10, %c0_11, %c0_12], %12 {strides = array<i32>} : memref<1x1x128xf32, #tpu.memory_space<vmem>>, vector<1x1x128xf32>,
    %c0_13 = arith.constant 0 : index
    %c0_14 = arith.constant 0 : index
    %c0_15 = arith.constant 0 : index
    %14 = vector.load %arg7[%c0_13, %c0_14, %c0_15] : memref<1x1x128xf32, #tpu.memory_space<vmem>>, vector<1x1x128xf32>
    %15 = arith.mulf %2, %2 : vector<128x128xf32>
    %cst_16 = arith.constant dense<0.000000e+00> : vector<128xf32>
    %16 = vector.multi_reduction <add>, %15, %cst_16 [0] : vector<128x128xf32> to vector<128xf32>
    %17 = vector.shape_cast %16 : vector<128xf32> to vector<1x128xf32>
    %18 = vector.shape_cast %17 : vector<1x128xf32> to vector<1x1x128xf32>
    %19 = arith.addf %14, %18 : vector<1x1x128xf32>
    %c0_17 = arith.constant 0 : index
    %c0_18 = arith.constant 0 : index
    %c0_19 = arith.constant 0 : index
    %20 = vector.load %arg7[%c0_17, %c0_18, %c0_19] : memref<1x1x128xf32, #tpu.memory_space<vmem>>, vector<1x1x128xf32>
    tpu.vector_store %arg7[%c0_17, %c0_18, %c0_19], %19 {strides = array<i32>} : memref<1x1x128xf32, #tpu.memory_space<vmem>>, vector<1x1x128xf32>,
    return
  }
  func.func @transform_0(%arg0: i32, %arg1: i32, %arg2: i32) -> (i32, i32) {
    %c2_i32 = arith.constant 2 : i32
    %0 = arith.muli %arg0, %c2_i32 : i32
    %c1_i32 = arith.constant 1 : i32
    %1 = arith.muli %arg1, %c1_i32 : i32
    %2 = arith.addi %0, %1 : i32
    %3 = arith.addi %2, %arg2 : i32
    %c0_i32 = arith.constant 0 : i32
    %c0_i32_0 = arith.constant 0 : i32
    return %3, %c0_i32 : i32, i32
  }
  func.func @transform_1(%arg0: i32, %arg1: i32, %arg2: i32) -> (i32, i32) {
    %c0_i32 = arith.constant 0 : i32
    %c0_i32_0 = arith.constant 0 : i32
    %c0_i32_1 = arith.constant 0 : i32
    return %c0_i32, %c0_i32_0 : i32, i32
  }
  func.func @transform_2(%arg0: i32, %arg1: i32, %arg2: i32) -> (i32, i32) {
    %c2_i32 = arith.constant 2 : i32
    %0 = arith.muli %arg0, %c2_i32 : i32
    %c1_i32 = arith.constant 1 : i32
    %1 = arith.muli %arg1, %c1_i32 : i32
    %2 = arith.addi %0, %1 : i32
    %3 = arith.addi %2, %arg2 : i32
    %c0_i32 = arith.constant 0 : i32
    %c0_i32_0 = arith.constant 0 : i32
    return %3, %c0_i32 : i32, i32
  }
  func.func @transform_3(%arg0: i32, %arg1: i32, %arg2: i32) -> (i32, i32, i32) {
    %c2_i32 = arith.constant 2 : i32
    %0 = arith.muli %arg0, %c2_i32 : i32
    %1 = arith.addi %0, %arg1 : i32
    %c0_i32 = arith.constant 0 : i32
    %c0_i32_0 = arith.constant 0 : i32
    %c0_i32_1 = arith.constant 0 : i32
    return %1, %c0_i32, %c0_i32_0 : i32, i32, i32
  }
  func.func @transform_4(%arg0: i32, %arg1: i32, %arg2: i32) -> (i32, i32, i32) {
    %c2_i32 = arith.constant 2 : i32
    %0 = arith.muli %arg0, %c2_i32 : i32
    %1 = arith.addi %0, %arg1 : i32
    %c0_i32 = arith.constant 0 : i32
    %c0_i32_0 = arith.constant 0 : i32
    %c0_i32_1 = arith.constant 0 : i32
    return %1, %c0_i32, %c0_i32_0 : i32, i32, i32
  }
}

module attributes {stable_mosaic.version = 11 : i64} {
  func.func @kernel(%arg0: i32, %arg1: i32, %arg2: memref<128x128xbf16, #tpu.memory_space<vmem>>, %arg3: memref<1x1x128xf32, #tpu.memory_space<vmem>>, %arg4: memref<1x1x128xf32, #tpu.memory_space<vmem>>, %arg5: memref<128x128xbf16, #tpu.memory_space<vmem>>) attributes {dimension_semantics = [#tpu.dimension_semantics<parallel>, #tpu.dimension_semantics<parallel>], iteration_bounds = array<i64: 2, 2>, scalar_prefetch = 0 : i64, scratch_operands = 0 : i64, tpu.core_type = #tpu.core_type<tc>, window_params = [{transform_indices = @transform_0, window_bounds = array<i64: 128, 128>}, {transform_indices = @transform_1, window_bounds = array<i64: 1, 1, 128>}, {transform_indices = @transform_2, window_bounds = array<i64: 1, 1, 128>}, {transform_indices = @transform_3, window_bounds = array<i64: 128, 128>}]} {
    %c0 = arith.constant 0 : index
    %c0_0 = arith.constant 0 : index
    %c0_1 = arith.constant 0 : index
    %0 = vector.load %arg3[%c0, %c0_0, %c0_1] : memref<1x1x128xf32, #tpu.memory_space<vmem>>, vector<1x1x128xf32>
    %1 = vector.shape_cast %0 : vector<1x1x128xf32> to vector<1x128xf32>
    %cst = arith.constant 3.906250e-03 : f32
    %2 = vector.broadcast %cst : f32 to vector<1x128xf32>
    %3 = arith.mulf %1, %2 : vector<1x128xf32>
    %c0_2 = arith.constant 0 : index
    %c0_3 = arith.constant 0 : index
    %c0_4 = arith.constant 0 : index
    %4 = vector.load %arg4[%c0_2, %c0_3, %c0_4] : memref<1x1x128xf32, #tpu.memory_space<vmem>>, vector<1x1x128xf32>
    %5 = vector.shape_cast %4 : vector<1x1x128xf32> to vector<1x128xf32>
    %cst_5 = arith.constant 3.906250e-03 : f32
    %6 = vector.broadcast %cst_5 : f32 to vector<1x128xf32>
    %7 = arith.mulf %5, %6 : vector<1x128xf32>
    %8 = arith.mulf %3, %3 : vector<1x128xf32>
    %9 = arith.subf %7, %8 : vector<1x128xf32>
    %cst_6 = arith.constant 0.000000e+00 : f32
    %10 = vector.broadcast %cst_6 : f32 to vector<1x128xf32>
    %11 = arith.maximumf %9, %10 : vector<1x128xf32>
    %cst_7 = arith.constant 9.99999974E-6 : f32
    %12 = vector.broadcast %cst_7 : f32 to vector<1x128xf32>
    %13 = arith.addf %11, %12 : vector<1x128xf32>
    %14 = math.rsqrt %13 : vector<1x128xf32>
    %c0_8 = arith.constant 0 : index
    %c0_9 = arith.constant 0 : index
    %15 = vector.load %arg2[%c0_8, %c0_9] : memref<128x128xbf16, #tpu.memory_space<vmem>>, vector<128x128xbf16>
    %16 = arith.extf %15 : vector<128x128xbf16> to vector<128x128xf32>
    %17 = vector.broadcast %3 : vector<1x128xf32> to vector<128x128xf32>
    %18 = arith.subf %16, %17 : vector<128x128xf32>
    %19 = vector.broadcast %14 : vector<1x128xf32> to vector<128x128xf32>
    %20 = arith.mulf %18, %19 : vector<128x128xf32>
    %cst_10 = arith.constant 0.000000e+00 : f32
    %21 = vector.broadcast %cst_10 : f32 to vector<128x128xf32>
    %22 = arith.cmpf oge, %20, %21 : vector<128x128xf32>
    %cst_11 = arith.constant 0.00999999977 : f32
    %23 = vector.broadcast %cst_11 : f32 to vector<128x128xf32>
    %24 = arith.mulf %23, %20 : vector<128x128xf32>
    %25 = arith.select %22, %20, %24 : vector<128x128xi1>, vector<128x128xf32>
    %26 = arith.truncf %25 : vector<128x128xf32> to vector<128x128xbf16>
    %c0_12 = arith.constant 0 : index
    %c0_13 = arith.constant 0 : index
    %27 = vector.load %arg5[%c0_12, %c0_13] : memref<128x128xbf16, #tpu.memory_space<vmem>>, vector<128x128xbf16>
    tpu.vector_store %arg5[%c0_12, %c0_13], %26 {strides = array<i32>} : memref<128x128xbf16, #tpu.memory_space<vmem>>, vector<128x128xbf16>,
    return
  }
  func.func @transform_0(%arg0: i32, %arg1: i32) -> (i32, i32) {
    %c2_i32 = arith.constant 2 : i32
    %0 = arith.muli %arg0, %c2_i32 : i32
    %1 = arith.addi %0, %arg1 : i32
    %c0_i32 = arith.constant 0 : i32
    %c0_i32_0 = arith.constant 0 : i32
    return %1, %c0_i32 : i32, i32
  }
  func.func @transform_1(%arg0: i32, %arg1: i32) -> (i32, i32, i32) {
    %c0_i32 = arith.constant 0 : i32
    %c0_i32_0 = arith.constant 0 : i32
    %c0_i32_1 = arith.constant 0 : i32
    return %arg0, %c0_i32, %c0_i32_0 : i32, i32, i32
  }
  func.func @transform_2(%arg0: i32, %arg1: i32) -> (i32, i32, i32) {
    %c0_i32 = arith.constant 0 : i32
    %c0_i32_0 = arith.constant 0 : i32
    %c0_i32_1 = arith.constant 0 : i32
    return %arg0, %c0_i32, %c0_i32_0 : i32, i32, i32
  }
  func.func @transform_3(%arg0: i32, %arg1: i32) -> (i32, i32) {
    %c2_i32 = arith.constant 2 : i32
    %0 = arith.muli %arg0, %c2_i32 : i32
    %1 = arith.addi %0, %arg1 : i32
    %c0_i32 = arith.constant 0 : i32
    %c0_i32_0 = arith.constant 0 : i32
    return %1, %c0_i32 : i32, i32
  }
}

module attributes {stable_mosaic.version = 11 : i64} {
  func.func @kernel(%arg0: i32, %arg1: i32, %arg2: memref<32x128xbf16, #tpu.memory_space<vmem>>, %arg3: memref<1x1x128xf32, #tpu.memory_space<vmem>>, %arg4: memref<1x1x128xf32, #tpu.memory_space<vmem>>, %arg5: memref<32x128xbf16, #tpu.memory_space<vmem>>) attributes {dimension_semantics = [#tpu.dimension_semantics<parallel>, #tpu.dimension_semantics<parallel>], iteration_bounds = array<i64: 2, 2>, scalar_prefetch = 0 : i64, scratch_operands = 0 : i64, tpu.core_type = #tpu.core_type<tc>, window_params = [{transform_indices = @transform_0, window_bounds = array<i64: 32, 128>}, {transform_indices = @transform_1, window_bounds = array<i64: 1, 1, 128>}, {transform_indices = @transform_2, window_bounds = array<i64: 1, 1, 128>}, {transform_indices = @transform_3, window_bounds = array<i64: 32, 128>}]} {
    %c0 = arith.constant 0 : index
    %c0_0 = arith.constant 0 : index
    %c0_1 = arith.constant 0 : index
    %0 = vector.load %arg3[%c0, %c0_0, %c0_1] : memref<1x1x128xf32, #tpu.memory_space<vmem>>, vector<1x1x128xf32>
    %1 = vector.shape_cast %0 : vector<1x1x128xf32> to vector<1x128xf32>
    %cst = arith.constant 1.562500e-02 : f32
    %2 = vector.broadcast %cst : f32 to vector<1x128xf32>
    %3 = arith.mulf %1, %2 : vector<1x128xf32>
    %c0_2 = arith.constant 0 : index
    %c0_3 = arith.constant 0 : index
    %c0_4 = arith.constant 0 : index
    %4 = vector.load %arg4[%c0_2, %c0_3, %c0_4] : memref<1x1x128xf32, #tpu.memory_space<vmem>>, vector<1x1x128xf32>
    %5 = vector.shape_cast %4 : vector<1x1x128xf32> to vector<1x128xf32>
    %cst_5 = arith.constant 1.562500e-02 : f32
    %6 = vector.broadcast %cst_5 : f32 to vector<1x128xf32>
    %7 = arith.mulf %5, %6 : vector<1x128xf32>
    %8 = arith.mulf %3, %3 : vector<1x128xf32>
    %9 = arith.subf %7, %8 : vector<1x128xf32>
    %cst_6 = arith.constant 0.000000e+00 : f32
    %10 = vector.broadcast %cst_6 : f32 to vector<1x128xf32>
    %11 = arith.maximumf %9, %10 : vector<1x128xf32>
    %cst_7 = arith.constant 9.99999974E-6 : f32
    %12 = vector.broadcast %cst_7 : f32 to vector<1x128xf32>
    %13 = arith.addf %11, %12 : vector<1x128xf32>
    %14 = math.rsqrt %13 : vector<1x128xf32>
    %c0_8 = arith.constant 0 : index
    %c0_9 = arith.constant 0 : index
    %15 = vector.load %arg2[%c0_8, %c0_9] : memref<32x128xbf16, #tpu.memory_space<vmem>>, vector<32x128xbf16>
    %16 = arith.extf %15 : vector<32x128xbf16> to vector<32x128xf32>
    %17 = vector.broadcast %3 : vector<1x128xf32> to vector<32x128xf32>
    %18 = arith.subf %16, %17 : vector<32x128xf32>
    %19 = vector.broadcast %14 : vector<1x128xf32> to vector<32x128xf32>
    %20 = arith.mulf %18, %19 : vector<32x128xf32>
    %cst_10 = arith.constant 0.000000e+00 : f32
    %21 = vector.broadcast %cst_10 : f32 to vector<32x128xf32>
    %22 = arith.cmpf oge, %20, %21 : vector<32x128xf32>
    %cst_11 = arith.constant 0.00999999977 : f32
    %23 = vector.broadcast %cst_11 : f32 to vector<32x128xf32>
    %24 = arith.mulf %23, %20 : vector<32x128xf32>
    %25 = arith.select %22, %20, %24 : vector<32x128xi1>, vector<32x128xf32>
    %26 = arith.truncf %25 : vector<32x128xf32> to vector<32x128xbf16>
    %c0_12 = arith.constant 0 : index
    %c0_13 = arith.constant 0 : index
    %27 = vector.load %arg5[%c0_12, %c0_13] : memref<32x128xbf16, #tpu.memory_space<vmem>>, vector<32x128xbf16>
    tpu.vector_store %arg5[%c0_12, %c0_13], %26 {strides = array<i32>} : memref<32x128xbf16, #tpu.memory_space<vmem>>, vector<32x128xbf16>,
    return
  }
  func.func @transform_0(%arg0: i32, %arg1: i32) -> (i32, i32) {
    %c2_i32 = arith.constant 2 : i32
    %0 = arith.muli %arg0, %c2_i32 : i32
    %1 = arith.addi %0, %arg1 : i32
    %c0_i32 = arith.constant 0 : i32
    %c0_i32_0 = arith.constant 0 : i32
    return %1, %c0_i32 : i32, i32
  }
  func.func @transform_1(%arg0: i32, %arg1: i32) -> (i32, i32, i32) {
    %c0_i32 = arith.constant 0 : i32
    %c0_i32_0 = arith.constant 0 : i32
    %c0_i32_1 = arith.constant 0 : i32
    return %arg0, %c0_i32, %c0_i32_0 : i32, i32, i32
  }
  func.func @transform_2(%arg0: i32, %arg1: i32) -> (i32, i32, i32) {
    %c0_i32 = arith.constant 0 : i32
    %c0_i32_0 = arith.constant 0 : i32
    %c0_i32_1 = arith.constant 0 : i32
    return %arg0, %c0_i32, %c0_i32_0 : i32, i32, i32
  }
  func.func @transform_3(%arg0: i32, %arg1: i32) -> (i32, i32) {
    %c2_i32 = arith.constant 2 : i32
    %0 = arith.muli %arg0, %c2_i32 : i32
    %1 = arith.addi %0, %arg1 : i32
    %c0_i32 = arith.constant 0 : i32
    %c0_i32_0 = arith.constant 0 : i32
    return %1, %c0_i32 : i32, i32
  }
}

module attributes {stable_mosaic.version = 11 : i64} {
  func.func @_matmul_stats_kernel(%arg0: i32, %arg1: i32, %arg2: i32, %arg3: memref<32x128xbf16, #tpu.memory_space<vmem>>, %arg4: memref<128x128xbf16, #tpu.memory_space<vmem>>, %arg5: memref<32x128xbf16, #tpu.memory_space<vmem>>, %arg6: memref<1x1x128xf32, #tpu.memory_space<vmem>>, %arg7: memref<1x1x128xf32, #tpu.memory_space<vmem>>) attributes {dimension_semantics = [#tpu.dimension_semantics<parallel>, #tpu.dimension_semantics<parallel>, #tpu.dimension_semantics<arbitrary>], iteration_bounds = array<i64: 2, 2, 1>, scalar_prefetch = 0 : i64, scratch_operands = 0 : i64, tpu.core_type = #tpu.core_type<tc>, window_params = [{transform_indices = @transform_0, window_bounds = array<i64: 32, 128>}, {pipeline_mode = #tpu.pipeline_mode<synchronous>, transform_indices = @transform_1, window_bounds = array<i64: 128, 128>}, {transform_indices = @transform_2, window_bounds = array<i64: 32, 128>}, {transform_indices = @transform_3, window_bounds = array<i64: 1, 1, 128>}, {transform_indices = @transform_4, window_bounds = array<i64: 1, 1, 128>}]} {
    %c0 = arith.constant 0 : index
    %c0_0 = arith.constant 0 : index
    %0 = vector.load %arg3[%c0, %c0_0] : memref<32x128xbf16, #tpu.memory_space<vmem>>, vector<32x128xbf16>
    %c0_1 = arith.constant 0 : index
    %c0_2 = arith.constant 0 : index
    %1 = vector.load %arg4[%c0_1, %c0_2] : memref<128x128xbf16, #tpu.memory_space<vmem>>, vector<128x128xbf16>
    %cst = arith.constant dense<0.000000e+00> : vector<32x128xf32>
    %2 = tpu.matmul %0, %1, %cst {dimension_numbers = #tpu.dot_dimension_numbers<[1], [0], [0], [1], [0, 0, 1, 1], [], []>} : vector<32x128xbf16>, vector<128x128xbf16>, vector<32x128xf32> -> vector<32x128xf32>
    %3 = arith.truncf %2 : vector<32x128xf32> to vector<32x128xbf16>
    %c0_3 = arith.constant 0 : index
    %c0_4 = arith.constant 0 : index
    %4 = vector.load %arg5[%c0_3, %c0_4] : memref<32x128xbf16, #tpu.memory_space<vmem>>, vector<32x128xbf16>
    tpu.vector_store %arg5[%c0_3, %c0_4], %3 {strides = array<i32>} : memref<32x128xbf16, #tpu.memory_space<vmem>>, vector<32x128xbf16>,
    %c0_i32 = arith.constant 0 : i32
    %5 = arith.cmpi eq, %arg2, %c0_i32 : i32
    %6 = arith.extui %5 : i1 to i32
    %c0_i32_5 = arith.constant 0 : i32
    %7 = arith.cmpi ne, %6, %c0_i32_5 : i32
    scf.if %7 {
      %cst_20 = arith.constant 0.000000e+00 : f32
      %21 = vector.broadcast %cst_20 : f32 to vector<1x1x128xf32>
      %c0_21 = arith.constant 0 : index
      %c0_22 = arith.constant 0 : index
      %c0_23 = arith.constant 0 : index
      %22 = vector.load %arg6[%c0_21, %c0_22, %c0_23] : memref<1x1x128xf32, #tpu.memory_space<vmem>>, vector<1x1x128xf32>
      tpu.vector_store %arg6[%c0_21, %c0_22, %c0_23], %21 {strides = array<i32>} : memref<1x1x128xf32, #tpu.memory_space<vmem>>, vector<1x1x128xf32>,
      %cst_24 = arith.constant 0.000000e+00 : f32
      %23 = vector.broadcast %cst_24 : f32 to vector<1x1x128xf32>
      %c0_25 = arith.constant 0 : index
      %c0_26 = arith.constant 0 : index
      %c0_27 = arith.constant 0 : index
      %24 = vector.load %arg7[%c0_25, %c0_26, %c0_27] : memref<1x1x128xf32, #tpu.memory_space<vmem>>, vector<1x1x128xf32>
      tpu.vector_store %arg7[%c0_25, %c0_26, %c0_27], %23 {strides = array<i32>} : memref<1x1x128xf32, #tpu.memory_space<vmem>>, vector<1x1x128xf32>,
    } else {
    }
    %c0_6 = arith.constant 0 : index
    %c0_7 = arith.constant 0 : index
    %c0_8 = arith.constant 0 : index
    %8 = vector.load %arg6[%c0_6, %c0_7, %c0_8] : memref<1x1x128xf32, #tpu.memory_space<vmem>>, vector<1x1x128xf32>
    %cst_9 = arith.constant dense<0.000000e+00> : vector<128xf32>
    %9 = vector.multi_reduction <add>, %2, %cst_9 [0] : vector<32x128xf32> to vector<128xf32>
    %10 = vector.shape_cast %9 : vector<128xf32> to vector<1x128xf32>
    %11 = vector.shape_cast %10 : vector<1x128xf32> to vector<1x1x128xf32>
    %12 = arith.addf %8, %11 : vector<1x1x128xf32>
    %c0_10 = arith.constant 0 : index
    %c0_11 = arith.constant 0 : index
    %c0_12 = arith.constant 0 : index
    %13 = vector.load %arg6[%c0_10, %c0_11, %c0_12] : memref<1x1x128xf32, #tpu.memory_space<vmem>>, vector<1x1x128xf32>
    tpu.vector_store %arg6[%c0_10, %c0_11, %c0_12], %12 {strides = array<i32>} : memref<1x1x128xf32, #tpu.memory_space<vmem>>, vector<1x1x128xf32>,
    %c0_13 = arith.constant 0 : index
    %c0_14 = arith.constant 0 : index
    %c0_15 = arith.constant 0 : index
    %14 = vector.load %arg7[%c0_13, %c0_14, %c0_15] : memref<1x1x128xf32, #tpu.memory_space<vmem>>, vector<1x1x128xf32>
    %15 = arith.mulf %2, %2 : vector<32x128xf32>
    %cst_16 = arith.constant dense<0.000000e+00> : vector<128xf32>
    %16 = vector.multi_reduction <add>, %15, %cst_16 [0] : vector<32x128xf32> to vector<128xf32>
    %17 = vector.shape_cast %16 : vector<128xf32> to vector<1x128xf32>
    %18 = vector.shape_cast %17 : vector<1x128xf32> to vector<1x1x128xf32>
    %19 = arith.addf %14, %18 : vector<1x1x128xf32>
    %c0_17 = arith.constant 0 : index
    %c0_18 = arith.constant 0 : index
    %c0_19 = arith.constant 0 : index
    %20 = vector.load %arg7[%c0_17, %c0_18, %c0_19] : memref<1x1x128xf32, #tpu.memory_space<vmem>>, vector<1x1x128xf32>
    tpu.vector_store %arg7[%c0_17, %c0_18, %c0_19], %19 {strides = array<i32>} : memref<1x1x128xf32, #tpu.memory_space<vmem>>, vector<1x1x128xf32>,
    return
  }
  func.func @transform_0(%arg0: i32, %arg1: i32, %arg2: i32) -> (i32, i32) {
    %c2_i32 = arith.constant 2 : i32
    %0 = arith.muli %arg0, %c2_i32 : i32
    %c1_i32 = arith.constant 1 : i32
    %1 = arith.muli %arg1, %c1_i32 : i32
    %2 = arith.addi %0, %1 : i32
    %3 = arith.addi %2, %arg2 : i32
    %c0_i32 = arith.constant 0 : i32
    %c0_i32_0 = arith.constant 0 : i32
    return %3, %c0_i32 : i32, i32
  }
  func.func @transform_1(%arg0: i32, %arg1: i32, %arg2: i32) -> (i32, i32) {
    %c0_i32 = arith.constant 0 : i32
    %c0_i32_0 = arith.constant 0 : i32
    %c0_i32_1 = arith.constant 0 : i32
    return %c0_i32, %c0_i32_0 : i32, i32
  }
  func.func @transform_2(%arg0: i32, %arg1: i32, %arg2: i32) -> (i32, i32) {
    %c2_i32 = arith.constant 2 : i32
    %0 = arith.muli %arg0, %c2_i32 : i32
    %c1_i32 = arith.constant 1 : i32
    %1 = arith.muli %arg1, %c1_i32 : i32
    %2 = arith.addi %0, %1 : i32
    %3 = arith.addi %2, %arg2 : i32
    %c0_i32 = arith.constant 0 : i32
    %c0_i32_0 = arith.constant 0 : i32
    return %3, %c0_i32 : i32, i32
  }
  func.func @transform_3(%arg0: i32, %arg1: i32, %arg2: i32) -> (i32, i32, i32) {
    %c2_i32 = arith.constant 2 : i32
    %0 = arith.muli %arg0, %c2_i32 : i32
    %1 = arith.addi %0, %arg1 : i32
    %c0_i32 = arith.constant 0 : i32
    %c0_i32_0 = arith.constant 0 : i32
    %c0_i32_1 = arith.constant 0 : i32
    return %1, %c0_i32, %c0_i32_0 : i32, i32, i32
  }
  func.func @transform_4(%arg0: i32, %arg1: i32, %arg2: i32) -> (i32, i32, i32) {
    %c2_i32 = arith.constant 2 : i32
    %0 = arith.muli %arg0, %c2_i32 : i32
    %1 = arith.addi %0, %arg1 : i32
    %c0_i32 = arith.constant 0 : i32
    %c0_i32_0 = arith.constant 0 : i32
    %c0_i32_1 = arith.constant 0 : i32
    return %1, %c0_i32, %c0_i32_0 : i32, i32, i32
  }
}

module attributes {stable_mosaic.version = 11 : i64} {
  func.func @kernel(%arg0: i32, %arg1: i32, %arg2: memref<16x128xbf16, #tpu.memory_space<vmem>>, %arg3: memref<1x1x128xf32, #tpu.memory_space<vmem>>, %arg4: memref<1x1x128xf32, #tpu.memory_space<vmem>>, %arg5: memref<16x128xbf16, #tpu.memory_space<vmem>>) attributes {dimension_semantics = [#tpu.dimension_semantics<parallel>, #tpu.dimension_semantics<parallel>], iteration_bounds = array<i64: 2, 2>, scalar_prefetch = 0 : i64, scratch_operands = 0 : i64, tpu.core_type = #tpu.core_type<tc>, window_params = [{transform_indices = @transform_0, window_bounds = array<i64: 16, 128>}, {transform_indices = @transform_1, window_bounds = array<i64: 1, 1, 128>}, {transform_indices = @transform_2, window_bounds = array<i64: 1, 1, 128>}, {transform_indices = @transform_3, window_bounds = array<i64: 16, 128>}]} {
    %c0 = arith.constant 0 : index
    %c0_0 = arith.constant 0 : index
    %c0_1 = arith.constant 0 : index
    %0 = vector.load %arg3[%c0, %c0_0, %c0_1] : memref<1x1x128xf32, #tpu.memory_space<vmem>>, vector<1x1x128xf32>
    %1 = vector.shape_cast %0 : vector<1x1x128xf32> to vector<1x128xf32>
    %cst = arith.constant 6.250000e-02 : f32
    %2 = vector.broadcast %cst : f32 to vector<1x128xf32>
    %3 = arith.mulf %1, %2 : vector<1x128xf32>
    %c0_2 = arith.constant 0 : index
    %c0_3 = arith.constant 0 : index
    %c0_4 = arith.constant 0 : index
    %4 = vector.load %arg4[%c0_2, %c0_3, %c0_4] : memref<1x1x128xf32, #tpu.memory_space<vmem>>, vector<1x1x128xf32>
    %5 = vector.shape_cast %4 : vector<1x1x128xf32> to vector<1x128xf32>
    %cst_5 = arith.constant 6.250000e-02 : f32
    %6 = vector.broadcast %cst_5 : f32 to vector<1x128xf32>
    %7 = arith.mulf %5, %6 : vector<1x128xf32>
    %8 = arith.mulf %3, %3 : vector<1x128xf32>
    %9 = arith.subf %7, %8 : vector<1x128xf32>
    %cst_6 = arith.constant 0.000000e+00 : f32
    %10 = vector.broadcast %cst_6 : f32 to vector<1x128xf32>
    %11 = arith.maximumf %9, %10 : vector<1x128xf32>
    %cst_7 = arith.constant 9.99999974E-6 : f32
    %12 = vector.broadcast %cst_7 : f32 to vector<1x128xf32>
    %13 = arith.addf %11, %12 : vector<1x128xf32>
    %14 = math.rsqrt %13 : vector<1x128xf32>
    %c0_8 = arith.constant 0 : index
    %c0_9 = arith.constant 0 : index
    %15 = vector.load %arg2[%c0_8, %c0_9] : memref<16x128xbf16, #tpu.memory_space<vmem>>, vector<16x128xbf16>
    %16 = arith.extf %15 : vector<16x128xbf16> to vector<16x128xf32>
    %17 = vector.broadcast %3 : vector<1x128xf32> to vector<16x128xf32>
    %18 = arith.subf %16, %17 : vector<16x128xf32>
    %19 = vector.broadcast %14 : vector<1x128xf32> to vector<16x128xf32>
    %20 = arith.mulf %18, %19 : vector<16x128xf32>
    %cst_10 = arith.constant 0.000000e+00 : f32
    %21 = vector.broadcast %cst_10 : f32 to vector<16x128xf32>
    %22 = arith.cmpf oge, %20, %21 : vector<16x128xf32>
    %cst_11 = arith.constant 0.00999999977 : f32
    %23 = vector.broadcast %cst_11 : f32 to vector<16x128xf32>
    %24 = arith.mulf %23, %20 : vector<16x128xf32>
    %25 = arith.select %22, %20, %24 : vector<16x128xi1>, vector<16x128xf32>
    %26 = arith.truncf %25 : vector<16x128xf32> to vector<16x128xbf16>
    %c0_12 = arith.constant 0 : index
    %c0_13 = arith.constant 0 : index
    %27 = vector.load %arg5[%c0_12, %c0_13] : memref<16x128xbf16, #tpu.memory_space<vmem>>, vector<16x128xbf16>
    tpu.vector_store %arg5[%c0_12, %c0_13], %26 {strides = array<i32>} : memref<16x128xbf16, #tpu.memory_space<vmem>>, vector<16x128xbf16>,
    return
  }
  func.func @transform_0(%arg0: i32, %arg1: i32) -> (i32, i32) {
    %c2_i32 = arith.constant 2 : i32
    %0 = arith.muli %arg0, %c2_i32 : i32
    %1 = arith.addi %0, %arg1 : i32
    %c0_i32 = arith.constant 0 : i32
    %c0_i32_0 = arith.constant 0 : i32
    return %1, %c0_i32 : i32, i32
  }
  func.func @transform_1(%arg0: i32, %arg1: i32) -> (i32, i32, i32) {
    %c0_i32 = arith.constant 0 : i32
    %c0_i32_0 = arith.constant 0 : i32
    %c0_i32_1 = arith.constant 0 : i32
    return %arg0, %c0_i32, %c0_i32_0 : i32, i32, i32
  }
  func.func @transform_2(%arg0: i32, %arg1: i32) -> (i32, i32, i32) {
    %c0_i32 = arith.constant 0 : i32
    %c0_i32_0 = arith.constant 0 : i32
    %c0_i32_1 = arith.constant 0 : i32
    return %arg0, %c0_i32, %c0_i32_0 : i32, i32, i32
  }
  func.func @transform_3(%arg0: i32, %arg1: i32) -> (i32, i32) {
    %c2_i32 = arith.constant 2 : i32
    %0 = arith.muli %arg0, %c2_i32 : i32
    %1 = arith.addi %0, %arg1 : i32
    %c0_i32 = arith.constant 0 : i32
    %c0_i32_0 = arith.constant 0 : i32
    return %1, %c0_i32 : i32, i32
  }
}

module attributes {stable_mosaic.version = 11 : i64} {
  func.func @_matmul_stats_kernel(%arg0: i32, %arg1: i32, %arg2: i32, %arg3: memref<16x256xbf16, #tpu.memory_space<vmem>>, %arg4: memref<256x128xbf16, #tpu.memory_space<vmem>>, %arg5: memref<16x128xbf16, #tpu.memory_space<vmem>>, %arg6: memref<1x1x128xf32, #tpu.memory_space<vmem>>, %arg7: memref<1x1x128xf32, #tpu.memory_space<vmem>>) attributes {dimension_semantics = [#tpu.dimension_semantics<parallel>, #tpu.dimension_semantics<parallel>, #tpu.dimension_semantics<arbitrary>], iteration_bounds = array<i64: 2, 2, 1>, scalar_prefetch = 0 : i64, scratch_operands = 0 : i64, tpu.core_type = #tpu.core_type<tc>, window_params = [{transform_indices = @transform_0, window_bounds = array<i64: 16, 256>}, {pipeline_mode = #tpu.pipeline_mode<synchronous>, transform_indices = @transform_1, window_bounds = array<i64: 256, 128>}, {transform_indices = @transform_2, window_bounds = array<i64: 16, 128>}, {transform_indices = @transform_3, window_bounds = array<i64: 1, 1, 128>}, {transform_indices = @transform_4, window_bounds = array<i64: 1, 1, 128>}]} {
    %c0 = arith.constant 0 : index
    %c0_0 = arith.constant 0 : index
    %0 = vector.load %arg3[%c0, %c0_0] : memref<16x256xbf16, #tpu.memory_space<vmem>>, vector<16x256xbf16>
    %c0_1 = arith.constant 0 : index
    %c0_2 = arith.constant 0 : index
    %1 = vector.load %arg4[%c0_1, %c0_2] : memref<256x128xbf16, #tpu.memory_space<vmem>>, vector<256x128xbf16>
    %cst = arith.constant dense<0.000000e+00> : vector<16x128xf32>
    %2 = tpu.matmul %0, %1, %cst {dimension_numbers = #tpu.dot_dimension_numbers<[1], [0], [0], [1], [0, 0, 1, 1], [], []>} : vector<16x256xbf16>, vector<256x128xbf16>, vector<16x128xf32> -> vector<16x128xf32>
    %3 = arith.truncf %2 : vector<16x128xf32> to vector<16x128xbf16>
    %c0_3 = arith.constant 0 : index
    %c0_4 = arith.constant 0 : index
    %4 = vector.load %arg5[%c0_3, %c0_4] : memref<16x128xbf16, #tpu.memory_space<vmem>>, vector<16x128xbf16>
    tpu.vector_store %arg5[%c0_3, %c0_4], %3 {strides = array<i32>} : memref<16x128xbf16, #tpu.memory_space<vmem>>, vector<16x128xbf16>,
    %c0_i32 = arith.constant 0 : i32
    %5 = arith.cmpi eq, %arg2, %c0_i32 : i32
    %6 = arith.extui %5 : i1 to i32
    %c0_i32_5 = arith.constant 0 : i32
    %7 = arith.cmpi ne, %6, %c0_i32_5 : i32
    scf.if %7 {
      %cst_20 = arith.constant 0.000000e+00 : f32
      %21 = vector.broadcast %cst_20 : f32 to vector<1x1x128xf32>
      %c0_21 = arith.constant 0 : index
      %c0_22 = arith.constant 0 : index
      %c0_23 = arith.constant 0 : index
      %22 = vector.load %arg6[%c0_21, %c0_22, %c0_23] : memref<1x1x128xf32, #tpu.memory_space<vmem>>, vector<1x1x128xf32>
      tpu.vector_store %arg6[%c0_21, %c0_22, %c0_23], %21 {strides = array<i32>} : memref<1x1x128xf32, #tpu.memory_space<vmem>>, vector<1x1x128xf32>,
      %cst_24 = arith.constant 0.000000e+00 : f32
      %23 = vector.broadcast %cst_24 : f32 to vector<1x1x128xf32>
      %c0_25 = arith.constant 0 : index
      %c0_26 = arith.constant 0 : index
      %c0_27 = arith.constant 0 : index
      %24 = vector.load %arg7[%c0_25, %c0_26, %c0_27] : memref<1x1x128xf32, #tpu.memory_space<vmem>>, vector<1x1x128xf32>
      tpu.vector_store %arg7[%c0_25, %c0_26, %c0_27], %23 {strides = array<i32>} : memref<1x1x128xf32, #tpu.memory_space<vmem>>, vector<1x1x128xf32>,
    } else {
    }
    %c0_6 = arith.constant 0 : index
    %c0_7 = arith.constant 0 : index
    %c0_8 = arith.constant 0 : index
    %8 = vector.load %arg6[%c0_6, %c0_7, %c0_8] : memref<1x1x128xf32, #tpu.memory_space<vmem>>, vector<1x1x128xf32>
    %cst_9 = arith.constant dense<0.000000e+00> : vector<128xf32>
    %9 = vector.multi_reduction <add>, %2, %cst_9 [0] : vector<16x128xf32> to vector<128xf32>
    %10 = vector.shape_cast %9 : vector<128xf32> to vector<1x128xf32>
    %11 = vector.shape_cast %10 : vector<1x128xf32> to vector<1x1x128xf32>
    %12 = arith.addf %8, %11 : vector<1x1x128xf32>
    %c0_10 = arith.constant 0 : index
    %c0_11 = arith.constant 0 : index
    %c0_12 = arith.constant 0 : index
    %13 = vector.load %arg6[%c0_10, %c0_11, %c0_12] : memref<1x1x128xf32, #tpu.memory_space<vmem>>, vector<1x1x128xf32>
    tpu.vector_store %arg6[%c0_10, %c0_11, %c0_12], %12 {strides = array<i32>} : memref<1x1x128xf32, #tpu.memory_space<vmem>>, vector<1x1x128xf32>,
    %c0_13 = arith.constant 0 : index
    %c0_14 = arith.constant 0 : index
    %c0_15 = arith.constant 0 : index
    %14 = vector.load %arg7[%c0_13, %c0_14, %c0_15] : memref<1x1x128xf32, #tpu.memory_space<vmem>>, vector<1x1x128xf32>
    %15 = arith.mulf %2, %2 : vector<16x128xf32>
    %cst_16 = arith.constant dense<0.000000e+00> : vector<128xf32>
    %16 = vector.multi_reduction <add>, %15, %cst_16 [0] : vector<16x128xf32> to vector<128xf32>
    %17 = vector.shape_cast %16 : vector<128xf32> to vector<1x128xf32>
    %18 = vector.shape_cast %17 : vector<1x128xf32> to vector<1x1x128xf32>
    %19 = arith.addf %14, %18 : vector<1x1x128xf32>
    %c0_17 = arith.constant 0 : index
    %c0_18 = arith.constant 0 : index
    %c0_19 = arith.constant 0 : index
    %20 = vector.load %arg7[%c0_17, %c0_18, %c0_19] : memref<1x1x128xf32, #tpu.memory_space<vmem>>, vector<1x1x128xf32>
    tpu.vector_store %arg7[%c0_17, %c0_18, %c0_19], %19 {strides = array<i32>} : memref<1x1x128xf32, #tpu.memory_space<vmem>>, vector<1x1x128xf32>,
    return
  }
  func.func @transform_0(%arg0: i32, %arg1: i32, %arg2: i32) -> (i32, i32) {
    %c2_i32 = arith.constant 2 : i32
    %0 = arith.muli %arg0, %c2_i32 : i32
    %c1_i32 = arith.constant 1 : i32
    %1 = arith.muli %arg1, %c1_i32 : i32
    %2 = arith.addi %0, %1 : i32
    %3 = arith.addi %2, %arg2 : i32
    %c0_i32 = arith.constant 0 : i32
    %c0_i32_0 = arith.constant 0 : i32
    return %3, %c0_i32 : i32, i32
  }
  func.func @transform_1(%arg0: i32, %arg1: i32, %arg2: i32) -> (i32, i32) {
    %c0_i32 = arith.constant 0 : i32
    %c0_i32_0 = arith.constant 0 : i32
    %c0_i32_1 = arith.constant 0 : i32
    return %c0_i32, %c0_i32_0 : i32, i32
  }
  func.func @transform_2(%arg0: i32, %arg1: i32, %arg2: i32) -> (i32, i32) {
    %c2_i32 = arith.constant 2 : i32
    %0 = arith.muli %arg0, %c2_i32 : i32
    %c1_i32 = arith.constant 1 : i32
    %1 = arith.muli %arg1, %c1_i32 : i32
    %2 = arith.addi %0, %1 : i32
    %3 = arith.addi %2, %arg2 : i32
    %c0_i32 = arith.constant 0 : i32
    %c0_i32_0 = arith.constant 0 : i32
    return %3, %c0_i32 : i32, i32
  }
  func.func @transform_3(%arg0: i32, %arg1: i32, %arg2: i32) -> (i32, i32, i32) {
    %c2_i32 = arith.constant 2 : i32
    %0 = arith.muli %arg0, %c2_i32 : i32
    %1 = arith.addi %0, %arg1 : i32
    %c0_i32 = arith.constant 0 : i32
    %c0_i32_0 = arith.constant 0 : i32
    %c0_i32_1 = arith.constant 0 : i32
    return %1, %c0_i32, %c0_i32_0 : i32, i32, i32
  }
  func.func @transform_4(%arg0: i32, %arg1: i32, %arg2: i32) -> (i32, i32, i32) {
    %c2_i32 = arith.constant 2 : i32
    %0 = arith.muli %arg0, %c2_i32 : i32
    %1 = arith.addi %0, %arg1 : i32
    %c0_i32 = arith.constant 0 : i32
    %c0_i32_0 = arith.constant 0 : i32
    %c0_i32_1 = arith.constant 0 : i32
    return %1, %c0_i32, %c0_i32_0 : i32, i32, i32
  }
}

module attributes {stable_mosaic.version = 11 : i64} {
  func.func @_matmul_stats_kernel(%arg0: i32, %arg1: i32, %arg2: i32, %arg3: memref<16x384xbf16, #tpu.memory_space<vmem>>, %arg4: memref<384x128xbf16, #tpu.memory_space<vmem>>, %arg5: memref<16x128xbf16, #tpu.memory_space<vmem>>, %arg6: memref<1x1x128xf32, #tpu.memory_space<vmem>>, %arg7: memref<1x1x128xf32, #tpu.memory_space<vmem>>) attributes {dimension_semantics = [#tpu.dimension_semantics<parallel>, #tpu.dimension_semantics<parallel>, #tpu.dimension_semantics<arbitrary>], iteration_bounds = array<i64: 2, 2, 1>, scalar_prefetch = 0 : i64, scratch_operands = 0 : i64, tpu.core_type = #tpu.core_type<tc>, window_params = [{transform_indices = @transform_0, window_bounds = array<i64: 16, 384>}, {pipeline_mode = #tpu.pipeline_mode<synchronous>, transform_indices = @transform_1, window_bounds = array<i64: 384, 128>}, {transform_indices = @transform_2, window_bounds = array<i64: 16, 128>}, {transform_indices = @transform_3, window_bounds = array<i64: 1, 1, 128>}, {transform_indices = @transform_4, window_bounds = array<i64: 1, 1, 128>}]} {
    %c0 = arith.constant 0 : index
    %c0_0 = arith.constant 0 : index
    %0 = vector.load %arg3[%c0, %c0_0] : memref<16x384xbf16, #tpu.memory_space<vmem>>, vector<16x384xbf16>
    %c0_1 = arith.constant 0 : index
    %c0_2 = arith.constant 0 : index
    %1 = vector.load %arg4[%c0_1, %c0_2] : memref<384x128xbf16, #tpu.memory_space<vmem>>, vector<384x128xbf16>
    %cst = arith.constant dense<0.000000e+00> : vector<16x128xf32>
    %2 = tpu.matmul %0, %1, %cst {dimension_numbers = #tpu.dot_dimension_numbers<[1], [0], [0], [1], [0, 0, 1, 1], [], []>} : vector<16x384xbf16>, vector<384x128xbf16>, vector<16x128xf32> -> vector<16x128xf32>
    %3 = arith.truncf %2 : vector<16x128xf32> to vector<16x128xbf16>
    %c0_3 = arith.constant 0 : index
    %c0_4 = arith.constant 0 : index
    %4 = vector.load %arg5[%c0_3, %c0_4] : memref<16x128xbf16, #tpu.memory_space<vmem>>, vector<16x128xbf16>
    tpu.vector_store %arg5[%c0_3, %c0_4], %3 {strides = array<i32>} : memref<16x128xbf16, #tpu.memory_space<vmem>>, vector<16x128xbf16>,
    %c0_i32 = arith.constant 0 : i32
    %5 = arith.cmpi eq, %arg2, %c0_i32 : i32
    %6 = arith.extui %5 : i1 to i32
    %c0_i32_5 = arith.constant 0 : i32
    %7 = arith.cmpi ne, %6, %c0_i32_5 : i32
    scf.if %7 {
      %cst_20 = arith.constant 0.000000e+00 : f32
      %21 = vector.broadcast %cst_20 : f32 to vector<1x1x128xf32>
      %c0_21 = arith.constant 0 : index
      %c0_22 = arith.constant 0 : index
      %c0_23 = arith.constant 0 : index
      %22 = vector.load %arg6[%c0_21, %c0_22, %c0_23] : memref<1x1x128xf32, #tpu.memory_space<vmem>>, vector<1x1x128xf32>
      tpu.vector_store %arg6[%c0_21, %c0_22, %c0_23], %21 {strides = array<i32>} : memref<1x1x128xf32, #tpu.memory_space<vmem>>, vector<1x1x128xf32>,
      %cst_24 = arith.constant 0.000000e+00 : f32
      %23 = vector.broadcast %cst_24 : f32 to vector<1x1x128xf32>
      %c0_25 = arith.constant 0 : index
      %c0_26 = arith.constant 0 : index
      %c0_27 = arith.constant 0 : index
      %24 = vector.load %arg7[%c0_25, %c0_26, %c0_27] : memref<1x1x128xf32, #tpu.memory_space<vmem>>, vector<1x1x128xf32>
      tpu.vector_store %arg7[%c0_25, %c0_26, %c0_27], %23 {strides = array<i32>} : memref<1x1x128xf32, #tpu.memory_space<vmem>>, vector<1x1x128xf32>,
    } else {
    }
    %c0_6 = arith.constant 0 : index
    %c0_7 = arith.constant 0 : index
    %c0_8 = arith.constant 0 : index
    %8 = vector.load %arg6[%c0_6, %c0_7, %c0_8] : memref<1x1x128xf32, #tpu.memory_space<vmem>>, vector<1x1x128xf32>
    %cst_9 = arith.constant dense<0.000000e+00> : vector<128xf32>
    %9 = vector.multi_reduction <add>, %2, %cst_9 [0] : vector<16x128xf32> to vector<128xf32>
    %10 = vector.shape_cast %9 : vector<128xf32> to vector<1x128xf32>
    %11 = vector.shape_cast %10 : vector<1x128xf32> to vector<1x1x128xf32>
    %12 = arith.addf %8, %11 : vector<1x1x128xf32>
    %c0_10 = arith.constant 0 : index
    %c0_11 = arith.constant 0 : index
    %c0_12 = arith.constant 0 : index
    %13 = vector.load %arg6[%c0_10, %c0_11, %c0_12] : memref<1x1x128xf32, #tpu.memory_space<vmem>>, vector<1x1x128xf32>
    tpu.vector_store %arg6[%c0_10, %c0_11, %c0_12], %12 {strides = array<i32>} : memref<1x1x128xf32, #tpu.memory_space<vmem>>, vector<1x1x128xf32>,
    %c0_13 = arith.constant 0 : index
    %c0_14 = arith.constant 0 : index
    %c0_15 = arith.constant 0 : index
    %14 = vector.load %arg7[%c0_13, %c0_14, %c0_15] : memref<1x1x128xf32, #tpu.memory_space<vmem>>, vector<1x1x128xf32>
    %15 = arith.mulf %2, %2 : vector<16x128xf32>
    %cst_16 = arith.constant dense<0.000000e+00> : vector<128xf32>
    %16 = vector.multi_reduction <add>, %15, %cst_16 [0] : vector<16x128xf32> to vector<128xf32>
    %17 = vector.shape_cast %16 : vector<128xf32> to vector<1x128xf32>
    %18 = vector.shape_cast %17 : vector<1x128xf32> to vector<1x1x128xf32>
    %19 = arith.addf %14, %18 : vector<1x1x128xf32>
    %c0_17 = arith.constant 0 : index
    %c0_18 = arith.constant 0 : index
    %c0_19 = arith.constant 0 : index
    %20 = vector.load %arg7[%c0_17, %c0_18, %c0_19] : memref<1x1x128xf32, #tpu.memory_space<vmem>>, vector<1x1x128xf32>
    tpu.vector_store %arg7[%c0_17, %c0_18, %c0_19], %19 {strides = array<i32>} : memref<1x1x128xf32, #tpu.memory_space<vmem>>, vector<1x1x128xf32>,
    return
  }
  func.func @transform_0(%arg0: i32, %arg1: i32, %arg2: i32) -> (i32, i32) {
    %c2_i32 = arith.constant 2 : i32
    %0 = arith.muli %arg0, %c2_i32 : i32
    %c1_i32 = arith.constant 1 : i32
    %1 = arith.muli %arg1, %c1_i32 : i32
    %2 = arith.addi %0, %1 : i32
    %3 = arith.addi %2, %arg2 : i32
    %c0_i32 = arith.constant 0 : i32
    %c0_i32_0 = arith.constant 0 : i32
    return %3, %c0_i32 : i32, i32
  }
  func.func @transform_1(%arg0: i32, %arg1: i32, %arg2: i32) -> (i32, i32) {
    %c0_i32 = arith.constant 0 : i32
    %c0_i32_0 = arith.constant 0 : i32
    %c0_i32_1 = arith.constant 0 : i32
    return %c0_i32, %c0_i32_0 : i32, i32
  }
  func.func @transform_2(%arg0: i32, %arg1: i32, %arg2: i32) -> (i32, i32) {
    %c2_i32 = arith.constant 2 : i32
    %0 = arith.muli %arg0, %c2_i32 : i32
    %c1_i32 = arith.constant 1 : i32
    %1 = arith.muli %arg1, %c1_i32 : i32
    %2 = arith.addi %0, %1 : i32
    %3 = arith.addi %2, %arg2 : i32
    %c0_i32 = arith.constant 0 : i32
    %c0_i32_0 = arith.constant 0 : i32
    return %3, %c0_i32 : i32, i32
  }
  func.func @transform_3(%arg0: i32, %arg1: i32, %arg2: i32) -> (i32, i32, i32) {
    %c2_i32 = arith.constant 2 : i32
    %0 = arith.muli %arg0, %c2_i32 : i32
    %1 = arith.addi %0, %arg1 : i32
    %c0_i32 = arith.constant 0 : i32
    %c0_i32_0 = arith.constant 0 : i32
    %c0_i32_1 = arith.constant 0 : i32
    return %1, %c0_i32, %c0_i32_0 : i32, i32, i32
  }
  func.func @transform_4(%arg0: i32, %arg1: i32, %arg2: i32) -> (i32, i32, i32) {
    %c2_i32 = arith.constant 2 : i32
    %0 = arith.muli %arg0, %c2_i32 : i32
    %1 = arith.addi %0, %arg1 : i32
    %c0_i32 = arith.constant 0 : i32
    %c0_i32_0 = arith.constant 0 : i32
    %c0_i32_1 = arith.constant 0 : i32
    return %1, %c0_i32, %c0_i32_0 : i32, i32, i32
  }
}

module attributes {stable_mosaic.version = 11 : i64} {
  func.func @kernel(%arg0: i32, %arg1: i32, %arg2: memref<16x128xbf16, #tpu.memory_space<vmem>>, %arg3: memref<1x1x128xf32, #tpu.memory_space<vmem>>, %arg4: memref<1x1x128xf32, #tpu.memory_space<vmem>>, %arg5: memref<16x128xbf16, #tpu.memory_space<vmem>>, %arg6: memref<16x128xbf16, #tpu.memory_space<vmem>>) attributes {dimension_semantics = [#tpu.dimension_semantics<parallel>, #tpu.dimension_semantics<parallel>], iteration_bounds = array<i64: 2, 2>, scalar_prefetch = 0 : i64, scratch_operands = 0 : i64, tpu.core_type = #tpu.core_type<tc>, window_params = [{transform_indices = @transform_0, window_bounds = array<i64: 16, 128>}, {transform_indices = @transform_1, window_bounds = array<i64: 1, 1, 128>}, {transform_indices = @transform_2, window_bounds = array<i64: 1, 1, 128>}, {transform_indices = @transform_3, window_bounds = array<i64: 16, 128>}, {transform_indices = @transform_4, window_bounds = array<i64: 16, 128>}]} {
    %c0 = arith.constant 0 : index
    %c0_0 = arith.constant 0 : index
    %c0_1 = arith.constant 0 : index
    %0 = vector.load %arg3[%c0, %c0_0, %c0_1] : memref<1x1x128xf32, #tpu.memory_space<vmem>>, vector<1x1x128xf32>
    %1 = vector.shape_cast %0 : vector<1x1x128xf32> to vector<1x128xf32>
    %cst = arith.constant 6.250000e-02 : f32
    %2 = vector.broadcast %cst : f32 to vector<1x128xf32>
    %3 = arith.mulf %1, %2 : vector<1x128xf32>
    %c0_2 = arith.constant 0 : index
    %c0_3 = arith.constant 0 : index
    %c0_4 = arith.constant 0 : index
    %4 = vector.load %arg4[%c0_2, %c0_3, %c0_4] : memref<1x1x128xf32, #tpu.memory_space<vmem>>, vector<1x1x128xf32>
    %5 = vector.shape_cast %4 : vector<1x1x128xf32> to vector<1x128xf32>
    %cst_5 = arith.constant 6.250000e-02 : f32
    %6 = vector.broadcast %cst_5 : f32 to vector<1x128xf32>
    %7 = arith.mulf %5, %6 : vector<1x128xf32>
    %8 = arith.mulf %3, %3 : vector<1x128xf32>
    %9 = arith.subf %7, %8 : vector<1x128xf32>
    %cst_6 = arith.constant 0.000000e+00 : f32
    %10 = vector.broadcast %cst_6 : f32 to vector<1x128xf32>
    %11 = arith.maximumf %9, %10 : vector<1x128xf32>
    %cst_7 = arith.constant 9.99999974E-6 : f32
    %12 = vector.broadcast %cst_7 : f32 to vector<1x128xf32>
    %13 = arith.addf %11, %12 : vector<1x128xf32>
    %14 = math.rsqrt %13 : vector<1x128xf32>
    %c0_8 = arith.constant 0 : index
    %c0_9 = arith.constant 0 : index
    %15 = vector.load %arg2[%c0_8, %c0_9] : memref<16x128xbf16, #tpu.memory_space<vmem>>, vector<16x128xbf16>
    %16 = arith.extf %15 : vector<16x128xbf16> to vector<16x128xf32>
    %17 = vector.broadcast %3 : vector<1x128xf32> to vector<16x128xf32>
    %18 = arith.subf %16, %17 : vector<16x128xf32>
    %19 = vector.broadcast %14 : vector<1x128xf32> to vector<16x128xf32>
    %20 = arith.mulf %18, %19 : vector<16x128xf32>
    %cst_10 = arith.constant 0.000000e+00 : f32
    %21 = vector.broadcast %cst_10 : f32 to vector<16x128xf32>
    %22 = arith.cmpf oge, %20, %21 : vector<16x128xf32>
    %cst_11 = arith.constant 0.00999999977 : f32
    %23 = vector.broadcast %cst_11 : f32 to vector<16x128xf32>
    %24 = arith.mulf %23, %20 : vector<16x128xf32>
    %25 = arith.select %22, %20, %24 : vector<16x128xi1>, vector<16x128xf32>
    %c0_12 = arith.constant 0 : index
    %c0_13 = arith.constant 0 : index
    %26 = vector.load %arg5[%c0_12, %c0_13] : memref<16x128xbf16, #tpu.memory_space<vmem>>, vector<16x128xbf16>
    %27 = arith.extf %26 : vector<16x128xbf16> to vector<16x128xf32>
    %28 = arith.addf %25, %27 : vector<16x128xf32>
    %29 = arith.truncf %28 : vector<16x128xf32> to vector<16x128xbf16>
    %c0_14 = arith.constant 0 : index
    %c0_15 = arith.constant 0 : index
    %30 = vector.load %arg6[%c0_14, %c0_15] : memref<16x128xbf16, #tpu.memory_space<vmem>>, vector<16x128xbf16>
    tpu.vector_store %arg6[%c0_14, %c0_15], %29 {strides = array<i32>} : memref<16x128xbf16, #tpu.memory_space<vmem>>, vector<16x128xbf16>,
    return
  }
  func.func @transform_0(%arg0: i32, %arg1: i32) -> (i32, i32) {
    %c2_i32 = arith.constant 2 : i32
    %0 = arith.muli %arg0, %c2_i32 : i32
    %1 = arith.addi %0, %arg1 : i32
    %c0_i32 = arith.constant 0 : i32
    %c0_i32_0 = arith.constant 0 : i32
    return %1, %c0_i32 : i32, i32
  }
  func.func @transform_1(%arg0: i32, %arg1: i32) -> (i32, i32, i32) {
    %c0_i32 = arith.constant 0 : i32
    %c0_i32_0 = arith.constant 0 : i32
    %c0_i32_1 = arith.constant 0 : i32
    return %arg0, %c0_i32, %c0_i32_0 : i32, i32, i32
  }
  func.func @transform_2(%arg0: i32, %arg1: i32) -> (i32, i32, i32) {
    %c0_i32 = arith.constant 0 : i32
    %c0_i32_0 = arith.constant 0 : i32
    %c0_i32_1 = arith.constant 0 : i32
    return %arg0, %c0_i32, %c0_i32_0 : i32, i32, i32
  }
  func.func @transform_3(%arg0: i32, %arg1: i32) -> (i32, i32) {
    %c2_i32 = arith.constant 2 : i32
    %0 = arith.muli %arg0, %c2_i32 : i32
    %1 = arith.addi %0, %arg1 : i32
    %c0_i32 = arith.constant 0 : i32
    %c0_i32_0 = arith.constant 0 : i32
    return %1, %c0_i32 : i32, i32
  }
  func.func @transform_4(%arg0: i32, %arg1: i32) -> (i32, i32) {
    %c2_i32 = arith.constant 2 : i32
    %0 = arith.muli %arg0, %c2_i32 : i32
    %1 = arith.addi %0, %arg1 : i32
    %c0_i32 = arith.constant 0 : i32
    %c0_i32_0 = arith.constant 0 : i32
    return %1, %c0_i32 : i32, i32
  }
}

module attributes {stable_mosaic.version = 11 : i64} {
  func.func @_matmul_stats_kernel(%arg0: i32, %arg1: i32, %arg2: i32, %arg3: memref<16x128xbf16, #tpu.memory_space<vmem>>, %arg4: memref<128x128xbf16, #tpu.memory_space<vmem>>, %arg5: memref<16x128xbf16, #tpu.memory_space<vmem>>, %arg6: memref<1x1x128xf32, #tpu.memory_space<vmem>>, %arg7: memref<1x1x128xf32, #tpu.memory_space<vmem>>) attributes {dimension_semantics = [#tpu.dimension_semantics<parallel>, #tpu.dimension_semantics<parallel>, #tpu.dimension_semantics<arbitrary>], iteration_bounds = array<i64: 2, 2, 1>, scalar_prefetch = 0 : i64, scratch_operands = 0 : i64, tpu.core_type = #tpu.core_type<tc>, window_params = [{transform_indices = @transform_0, window_bounds = array<i64: 16, 128>}, {pipeline_mode = #tpu.pipeline_mode<synchronous>, transform_indices = @transform_1, window_bounds = array<i64: 128, 128>}, {transform_indices = @transform_2, window_bounds = array<i64: 16, 128>}, {transform_indices = @transform_3, window_bounds = array<i64: 1, 1, 128>}, {transform_indices = @transform_4, window_bounds = array<i64: 1, 1, 128>}]} {
    %c0 = arith.constant 0 : index
    %c0_0 = arith.constant 0 : index
    %0 = vector.load %arg3[%c0, %c0_0] : memref<16x128xbf16, #tpu.memory_space<vmem>>, vector<16x128xbf16>
    %c0_1 = arith.constant 0 : index
    %c0_2 = arith.constant 0 : index
    %1 = vector.load %arg4[%c0_1, %c0_2] : memref<128x128xbf16, #tpu.memory_space<vmem>>, vector<128x128xbf16>
    %cst = arith.constant dense<0.000000e+00> : vector<16x128xf32>
    %2 = tpu.matmul %0, %1, %cst {dimension_numbers = #tpu.dot_dimension_numbers<[1], [0], [0], [1], [0, 0, 1, 1], [], []>} : vector<16x128xbf16>, vector<128x128xbf16>, vector<16x128xf32> -> vector<16x128xf32>
    %3 = arith.truncf %2 : vector<16x128xf32> to vector<16x128xbf16>
    %c0_3 = arith.constant 0 : index
    %c0_4 = arith.constant 0 : index
    %4 = vector.load %arg5[%c0_3, %c0_4] : memref<16x128xbf16, #tpu.memory_space<vmem>>, vector<16x128xbf16>
    tpu.vector_store %arg5[%c0_3, %c0_4], %3 {strides = array<i32>} : memref<16x128xbf16, #tpu.memory_space<vmem>>, vector<16x128xbf16>,
    %c0_i32 = arith.constant 0 : i32
    %5 = arith.cmpi eq, %arg2, %c0_i32 : i32
    %6 = arith.extui %5 : i1 to i32
    %c0_i32_5 = arith.constant 0 : i32
    %7 = arith.cmpi ne, %6, %c0_i32_5 : i32
    scf.if %7 {
      %cst_20 = arith.constant 0.000000e+00 : f32
      %21 = vector.broadcast %cst_20 : f32 to vector<1x1x128xf32>
      %c0_21 = arith.constant 0 : index
      %c0_22 = arith.constant 0 : index
      %c0_23 = arith.constant 0 : index
      %22 = vector.load %arg6[%c0_21, %c0_22, %c0_23] : memref<1x1x128xf32, #tpu.memory_space<vmem>>, vector<1x1x128xf32>
      tpu.vector_store %arg6[%c0_21, %c0_22, %c0_23], %21 {strides = array<i32>} : memref<1x1x128xf32, #tpu.memory_space<vmem>>, vector<1x1x128xf32>,
      %cst_24 = arith.constant 0.000000e+00 : f32
      %23 = vector.broadcast %cst_24 : f32 to vector<1x1x128xf32>
      %c0_25 = arith.constant 0 : index
      %c0_26 = arith.constant 0 : index
      %c0_27 = arith.constant 0 : index
      %24 = vector.load %arg7[%c0_25, %c0_26, %c0_27] : memref<1x1x128xf32, #tpu.memory_space<vmem>>, vector<1x1x128xf32>
      tpu.vector_store %arg7[%c0_25, %c0_26, %c0_27], %23 {strides = array<i32>} : memref<1x1x128xf32, #tpu.memory_space<vmem>>, vector<1x1x128xf32>,
    } else {
    }
    %c0_6 = arith.constant 0 : index
    %c0_7 = arith.constant 0 : index
    %c0_8 = arith.constant 0 : index
    %8 = vector.load %arg6[%c0_6, %c0_7, %c0_8] : memref<1x1x128xf32, #tpu.memory_space<vmem>>, vector<1x1x128xf32>
    %cst_9 = arith.constant dense<0.000000e+00> : vector<128xf32>
    %9 = vector.multi_reduction <add>, %2, %cst_9 [0] : vector<16x128xf32> to vector<128xf32>
    %10 = vector.shape_cast %9 : vector<128xf32> to vector<1x128xf32>
    %11 = vector.shape_cast %10 : vector<1x128xf32> to vector<1x1x128xf32>
    %12 = arith.addf %8, %11 : vector<1x1x128xf32>
    %c0_10 = arith.constant 0 : index
    %c0_11 = arith.constant 0 : index
    %c0_12 = arith.constant 0 : index
    %13 = vector.load %arg6[%c0_10, %c0_11, %c0_12] : memref<1x1x128xf32, #tpu.memory_space<vmem>>, vector<1x1x128xf32>
    tpu.vector_store %arg6[%c0_10, %c0_11, %c0_12], %12 {strides = array<i32>} : memref<1x1x128xf32, #tpu.memory_space<vmem>>, vector<1x1x128xf32>,
    %c0_13 = arith.constant 0 : index
    %c0_14 = arith.constant 0 : index
    %c0_15 = arith.constant 0 : index
    %14 = vector.load %arg7[%c0_13, %c0_14, %c0_15] : memref<1x1x128xf32, #tpu.memory_space<vmem>>, vector<1x1x128xf32>
    %15 = arith.mulf %2, %2 : vector<16x128xf32>
    %cst_16 = arith.constant dense<0.000000e+00> : vector<128xf32>
    %16 = vector.multi_reduction <add>, %15, %cst_16 [0] : vector<16x128xf32> to vector<128xf32>
    %17 = vector.shape_cast %16 : vector<128xf32> to vector<1x128xf32>
    %18 = vector.shape_cast %17 : vector<1x128xf32> to vector<1x1x128xf32>
    %19 = arith.addf %14, %18 : vector<1x1x128xf32>
    %c0_17 = arith.constant 0 : index
    %c0_18 = arith.constant 0 : index
    %c0_19 = arith.constant 0 : index
    %20 = vector.load %arg7[%c0_17, %c0_18, %c0_19] : memref<1x1x128xf32, #tpu.memory_space<vmem>>, vector<1x1x128xf32>
    tpu.vector_store %arg7[%c0_17, %c0_18, %c0_19], %19 {strides = array<i32>} : memref<1x1x128xf32, #tpu.memory_space<vmem>>, vector<1x1x128xf32>,
    return
  }
  func.func @transform_0(%arg0: i32, %arg1: i32, %arg2: i32) -> (i32, i32) {
    %c2_i32 = arith.constant 2 : i32
    %0 = arith.muli %arg0, %c2_i32 : i32
    %c1_i32 = arith.constant 1 : i32
    %1 = arith.muli %arg1, %c1_i32 : i32
    %2 = arith.addi %0, %1 : i32
    %3 = arith.addi %2, %arg2 : i32
    %c0_i32 = arith.constant 0 : i32
    %c0_i32_0 = arith.constant 0 : i32
    return %3, %c0_i32 : i32, i32
  }
  func.func @transform_1(%arg0: i32, %arg1: i32, %arg2: i32) -> (i32, i32) {
    %c0_i32 = arith.constant 0 : i32
    %c0_i32_0 = arith.constant 0 : i32
    %c0_i32_1 = arith.constant 0 : i32
    return %c0_i32, %c0_i32_0 : i32, i32
  }
  func.func @transform_2(%arg0: i32, %arg1: i32, %arg2: i32) -> (i32, i32) {
    %c2_i32 = arith.constant 2 : i32
    %0 = arith.muli %arg0, %c2_i32 : i32
    %c1_i32 = arith.constant 1 : i32
    %1 = arith.muli %arg1, %c1_i32 : i32
    %2 = arith.addi %0, %1 : i32
    %3 = arith.addi %2, %arg2 : i32
    %c0_i32 = arith.constant 0 : i32
    %c0_i32_0 = arith.constant 0 : i32
    return %3, %c0_i32 : i32, i32
  }
  func.func @transform_3(%arg0: i32, %arg1: i32, %arg2: i32) -> (i32, i32, i32) {
    %c2_i32 = arith.constant 2 : i32
    %0 = arith.muli %arg0, %c2_i32 : i32
    %1 = arith.addi %0, %arg1 : i32
    %c0_i32 = arith.constant 0 : i32
    %c0_i32_0 = arith.constant 0 : i32
    %c0_i32_1 = arith.constant 0 : i32
    return %1, %c0_i32, %c0_i32_0 : i32, i32, i32
  }
  func.func @transform_4(%arg0: i32, %arg1: i32, %arg2: i32) -> (i32, i32, i32) {
    %c2_i32 = arith.constant 2 : i32
    %0 = arith.muli %arg0, %c2_i32 : i32
    %1 = arith.addi %0, %arg1 : i32
    %c0_i32 = arith.constant 0 : i32
    %c0_i32_0 = arith.constant 0 : i32
    %c0_i32_1 = arith.constant 0 : i32
    return %1, %c0_i32, %c0_i32_0 : i32, i32, i32
  }
}

module attributes {stable_mosaic.version = 11 : i64} {
  func.func @kernel(%arg0: i32, %arg1: i32, %arg2: memref<16x128xbf16, #tpu.memory_space<vmem>>, %arg3: memref<1x1x128xf32, #tpu.memory_space<vmem>>, %arg4: memref<1x1x128xf32, #tpu.memory_space<vmem>>, %arg5: memref<16x128xbf16, #tpu.memory_space<vmem>>) attributes {dimension_semantics = [#tpu.dimension_semantics<parallel>, #tpu.dimension_semantics<parallel>], iteration_bounds = array<i64: 2, 2>, scalar_prefetch = 0 : i64, scratch_operands = 0 : i64, tpu.core_type = #tpu.core_type<tc>, window_params = [{transform_indices = @transform_0, window_bounds = array<i64: 16, 128>}, {transform_indices = @transform_1, window_bounds = array<i64: 1, 1, 128>}, {transform_indices = @transform_2, window_bounds = array<i64: 1, 1, 128>}, {transform_indices = @transform_3, window_bounds = array<i64: 16, 128>}]} {
    %c0 = arith.constant 0 : index
    %c0_0 = arith.constant 0 : index
    %c0_1 = arith.constant 0 : index
    %0 = vector.load %arg3[%c0, %c0_0, %c0_1] : memref<1x1x128xf32, #tpu.memory_space<vmem>>, vector<1x1x128xf32>
    %1 = vector.shape_cast %0 : vector<1x1x128xf32> to vector<1x128xf32>
    %cst = arith.constant 0.0204081628 : f32
    %2 = vector.broadcast %cst : f32 to vector<1x128xf32>
    %3 = arith.mulf %1, %2 : vector<1x128xf32>
    %c0_2 = arith.constant 0 : index
    %c0_3 = arith.constant 0 : index
    %c0_4 = arith.constant 0 : index
    %4 = vector.load %arg4[%c0_2, %c0_3, %c0_4] : memref<1x1x128xf32, #tpu.memory_space<vmem>>, vector<1x1x128xf32>
    %5 = vector.shape_cast %4 : vector<1x1x128xf32> to vector<1x128xf32>
    %cst_5 = arith.constant 0.0204081628 : f32
    %6 = vector.broadcast %cst_5 : f32 to vector<1x128xf32>
    %7 = arith.mulf %5, %6 : vector<1x128xf32>
    %8 = arith.mulf %3, %3 : vector<1x128xf32>
    %9 = arith.subf %7, %8 : vector<1x128xf32>
    %cst_6 = arith.constant 0.000000e+00 : f32
    %10 = vector.broadcast %cst_6 : f32 to vector<1x128xf32>
    %11 = arith.maximumf %9, %10 : vector<1x128xf32>
    %cst_7 = arith.constant 9.99999974E-6 : f32
    %12 = vector.broadcast %cst_7 : f32 to vector<1x128xf32>
    %13 = arith.addf %11, %12 : vector<1x128xf32>
    %14 = math.rsqrt %13 : vector<1x128xf32>
    %c0_8 = arith.constant 0 : index
    %c0_9 = arith.constant 0 : index
    %15 = vector.load %arg2[%c0_8, %c0_9] : memref<16x128xbf16, #tpu.memory_space<vmem>>, vector<16x128xbf16>
    %16 = arith.extf %15 : vector<16x128xbf16> to vector<16x128xf32>
    %17 = vector.broadcast %3 : vector<1x128xf32> to vector<16x128xf32>
    %18 = arith.subf %16, %17 : vector<16x128xf32>
    %19 = vector.broadcast %14 : vector<1x128xf32> to vector<16x128xf32>
    %20 = arith.mulf %18, %19 : vector<16x128xf32>
    %cst_10 = arith.constant 0.000000e+00 : f32
    %21 = vector.broadcast %cst_10 : f32 to vector<16x128xf32>
    %22 = arith.cmpf oge, %20, %21 : vector<16x128xf32>
    %cst_11 = arith.constant 0.00999999977 : f32
    %23 = vector.broadcast %cst_11 : f32 to vector<16x128xf32>
    %24 = arith.mulf %23, %20 : vector<16x128xf32>
    %25 = arith.select %22, %20, %24 : vector<16x128xi1>, vector<16x128xf32>
    %26 = arith.truncf %25 : vector<16x128xf32> to vector<16x128xbf16>
    %c0_12 = arith.constant 0 : index
    %c0_13 = arith.constant 0 : index
    %27 = vector.load %arg5[%c0_12, %c0_13] : memref<16x128xbf16, #tpu.memory_space<vmem>>, vector<16x128xbf16>
    tpu.vector_store %arg5[%c0_12, %c0_13], %26 {strides = array<i32>} : memref<16x128xbf16, #tpu.memory_space<vmem>>, vector<16x128xbf16>,
    return
  }
  func.func @transform_0(%arg0: i32, %arg1: i32) -> (i32, i32) {
    %c2_i32 = arith.constant 2 : i32
    %0 = arith.muli %arg0, %c2_i32 : i32
    %1 = arith.addi %0, %arg1 : i32
    %c0_i32 = arith.constant 0 : i32
    %c0_i32_0 = arith.constant 0 : i32
    return %1, %c0_i32 : i32, i32
  }
  func.func @transform_1(%arg0: i32, %arg1: i32) -> (i32, i32, i32) {
    %c0_i32 = arith.constant 0 : i32
    %c0_i32_0 = arith.constant 0 : i32
    %c0_i32_1 = arith.constant 0 : i32
    return %arg0, %c0_i32, %c0_i32_0 : i32, i32, i32
  }
  func.func @transform_2(%arg0: i32, %arg1: i32) -> (i32, i32, i32) {
    %c0_i32 = arith.constant 0 : i32
    %c0_i32_0 = arith.constant 0 : i32
    %c0_i32_1 = arith.constant 0 : i32
    return %arg0, %c0_i32, %c0_i32_0 : i32, i32, i32
  }
  func.func @transform_3(%arg0: i32, %arg1: i32) -> (i32, i32) {
    %c2_i32 = arith.constant 2 : i32
    %0 = arith.muli %arg0, %c2_i32 : i32
    %1 = arith.addi %0, %arg1 : i32
    %c0_i32 = arith.constant 0 : i32
    %c0_i32_0 = arith.constant 0 : i32
    return %1, %c0_i32 : i32, i32
  }
}

module attributes {stable_mosaic.version = 11 : i64} {
  func.func @kernel(%arg0: i32, %arg1: i32, %arg2: memref<32x128xbf16, #tpu.memory_space<vmem>>, %arg3: memref<1x1x128xf32, #tpu.memory_space<vmem>>, %arg4: memref<1x1x128xf32, #tpu.memory_space<vmem>>, %arg5: memref<32x128xbf16, #tpu.memory_space<vmem>>) attributes {dimension_semantics = [#tpu.dimension_semantics<parallel>, #tpu.dimension_semantics<parallel>], iteration_bounds = array<i64: 2, 2>, scalar_prefetch = 0 : i64, scratch_operands = 0 : i64, tpu.core_type = #tpu.core_type<tc>, window_params = [{transform_indices = @transform_0, window_bounds = array<i64: 32, 128>}, {transform_indices = @transform_1, window_bounds = array<i64: 1, 1, 128>}, {transform_indices = @transform_2, window_bounds = array<i64: 1, 1, 128>}, {transform_indices = @transform_3, window_bounds = array<i64: 32, 128>}]} {
    %c0 = arith.constant 0 : index
    %c0_0 = arith.constant 0 : index
    %c0_1 = arith.constant 0 : index
    %0 = vector.load %arg3[%c0, %c0_0, %c0_1] : memref<1x1x128xf32, #tpu.memory_space<vmem>>, vector<1x1x128xf32>
    %1 = vector.shape_cast %0 : vector<1x1x128xf32> to vector<1x128xf32>
    %cst = arith.constant 5.917160e-03 : f32
    %2 = vector.broadcast %cst : f32 to vector<1x128xf32>
    %3 = arith.mulf %1, %2 : vector<1x128xf32>
    %c0_2 = arith.constant 0 : index
    %c0_3 = arith.constant 0 : index
    %c0_4 = arith.constant 0 : index
    %4 = vector.load %arg4[%c0_2, %c0_3, %c0_4] : memref<1x1x128xf32, #tpu.memory_space<vmem>>, vector<1x1x128xf32>
    %5 = vector.shape_cast %4 : vector<1x1x128xf32> to vector<1x128xf32>
    %cst_5 = arith.constant 5.917160e-03 : f32
    %6 = vector.broadcast %cst_5 : f32 to vector<1x128xf32>
    %7 = arith.mulf %5, %6 : vector<1x128xf32>
    %8 = arith.mulf %3, %3 : vector<1x128xf32>
    %9 = arith.subf %7, %8 : vector<1x128xf32>
    %cst_6 = arith.constant 0.000000e+00 : f32
    %10 = vector.broadcast %cst_6 : f32 to vector<1x128xf32>
    %11 = arith.maximumf %9, %10 : vector<1x128xf32>
    %cst_7 = arith.constant 9.99999974E-6 : f32
    %12 = vector.broadcast %cst_7 : f32 to vector<1x128xf32>
    %13 = arith.addf %11, %12 : vector<1x128xf32>
    %14 = math.rsqrt %13 : vector<1x128xf32>
    %c0_8 = arith.constant 0 : index
    %c0_9 = arith.constant 0 : index
    %15 = vector.load %arg2[%c0_8, %c0_9] : memref<32x128xbf16, #tpu.memory_space<vmem>>, vector<32x128xbf16>
    %16 = arith.extf %15 : vector<32x128xbf16> to vector<32x128xf32>
    %17 = vector.broadcast %3 : vector<1x128xf32> to vector<32x128xf32>
    %18 = arith.subf %16, %17 : vector<32x128xf32>
    %19 = vector.broadcast %14 : vector<1x128xf32> to vector<32x128xf32>
    %20 = arith.mulf %18, %19 : vector<32x128xf32>
    %cst_10 = arith.constant 0.000000e+00 : f32
    %21 = vector.broadcast %cst_10 : f32 to vector<32x128xf32>
    %22 = arith.cmpf oge, %20, %21 : vector<32x128xf32>
    %cst_11 = arith.constant 0.00999999977 : f32
    %23 = vector.broadcast %cst_11 : f32 to vector<32x128xf32>
    %24 = arith.mulf %23, %20 : vector<32x128xf32>
    %25 = arith.select %22, %20, %24 : vector<32x128xi1>, vector<32x128xf32>
    %26 = arith.truncf %25 : vector<32x128xf32> to vector<32x128xbf16>
    %c0_12 = arith.constant 0 : index
    %c0_13 = arith.constant 0 : index
    %27 = vector.load %arg5[%c0_12, %c0_13] : memref<32x128xbf16, #tpu.memory_space<vmem>>, vector<32x128xbf16>
    tpu.vector_store %arg5[%c0_12, %c0_13], %26 {strides = array<i32>} : memref<32x128xbf16, #tpu.memory_space<vmem>>, vector<32x128xbf16>,
    return
  }
  func.func @transform_0(%arg0: i32, %arg1: i32) -> (i32, i32) {
    %c2_i32 = arith.constant 2 : i32
    %0 = arith.muli %arg0, %c2_i32 : i32
    %1 = arith.addi %0, %arg1 : i32
    %c0_i32 = arith.constant 0 : i32
    %c0_i32_0 = arith.constant 0 : i32
    return %1, %c0_i32 : i32, i32
  }
  func.func @transform_1(%arg0: i32, %arg1: i32) -> (i32, i32, i32) {
    %c0_i32 = arith.constant 0 : i32
    %c0_i32_0 = arith.constant 0 : i32
    %c0_i32_1 = arith.constant 0 : i32
    return %arg0, %c0_i32, %c0_i32_0 : i32, i32, i32
  }
  func.func @transform_2(%arg0: i32, %arg1: i32) -> (i32, i32, i32) {
    %c0_i32 = arith.constant 0 : i32
    %c0_i32_0 = arith.constant 0 : i32
    %c0_i32_1 = arith.constant 0 : i32
    return %arg0, %c0_i32, %c0_i32_0 : i32, i32, i32
  }
  func.func @transform_3(%arg0: i32, %arg1: i32) -> (i32, i32) {
    %c2_i32 = arith.constant 2 : i32
    %0 = arith.muli %arg0, %c2_i32 : i32
    %1 = arith.addi %0, %arg1 : i32
    %c0_i32 = arith.constant 0 : i32
    %c0_i32_0 = arith.constant 0 : i32
    return %1, %c0_i32 : i32, i32
  }
}

module attributes {stable_mosaic.version = 11 : i64} {
  func.func @kernel(%arg0: i32, %arg1: i32, %arg2: memref<96x128xbf16, #tpu.memory_space<vmem>>, %arg3: memref<1x1x128xf32, #tpu.memory_space<vmem>>, %arg4: memref<1x1x128xf32, #tpu.memory_space<vmem>>, %arg5: memref<96x128xf32, #tpu.memory_space<vmem>>) attributes {dimension_semantics = [#tpu.dimension_semantics<parallel>, #tpu.dimension_semantics<parallel>], iteration_bounds = array<i64: 2, 2>, scalar_prefetch = 0 : i64, scratch_operands = 0 : i64, tpu.core_type = #tpu.core_type<tc>, window_params = [{transform_indices = @transform_0, window_bounds = array<i64: 96, 128>}, {transform_indices = @transform_1, window_bounds = array<i64: 1, 1, 128>}, {transform_indices = @transform_2, window_bounds = array<i64: 1, 1, 128>}, {transform_indices = @transform_3, window_bounds = array<i64: 96, 128>}]} {
    %c0 = arith.constant 0 : index
    %c0_0 = arith.constant 0 : index
    %c0_1 = arith.constant 0 : index
    %0 = vector.load %arg3[%c0, %c0_0, %c0_1] : memref<1x1x128xf32, #tpu.memory_space<vmem>>, vector<1x1x128xf32>
    %1 = vector.shape_cast %0 : vector<1x1x128xf32> to vector<1x128xf32>
    %cst = arith.constant 5.917160e-03 : f32
    %2 = vector.broadcast %cst : f32 to vector<1x128xf32>
    %3 = arith.mulf %1, %2 : vector<1x128xf32>
    %c0_2 = arith.constant 0 : index
    %c0_3 = arith.constant 0 : index
    %c0_4 = arith.constant 0 : index
    %4 = vector.load %arg4[%c0_2, %c0_3, %c0_4] : memref<1x1x128xf32, #tpu.memory_space<vmem>>, vector<1x1x128xf32>
    %5 = vector.shape_cast %4 : vector<1x1x128xf32> to vector<1x128xf32>
    %cst_5 = arith.constant 5.917160e-03 : f32
    %6 = vector.broadcast %cst_5 : f32 to vector<1x128xf32>
    %7 = arith.mulf %5, %6 : vector<1x128xf32>
    %8 = arith.mulf %3, %3 : vector<1x128xf32>
    %9 = arith.subf %7, %8 : vector<1x128xf32>
    %cst_6 = arith.constant 0.000000e+00 : f32
    %10 = vector.broadcast %cst_6 : f32 to vector<1x128xf32>
    %11 = arith.maximumf %9, %10 : vector<1x128xf32>
    %cst_7 = arith.constant 9.99999974E-6 : f32
    %12 = vector.broadcast %cst_7 : f32 to vector<1x128xf32>
    %13 = arith.addf %11, %12 : vector<1x128xf32>
    %14 = math.rsqrt %13 : vector<1x128xf32>
    %c0_8 = arith.constant 0 : index
    %c0_9 = arith.constant 0 : index
    %15 = vector.load %arg2[%c0_8, %c0_9] : memref<96x128xbf16, #tpu.memory_space<vmem>>, vector<96x128xbf16>
    %16 = arith.extf %15 : vector<96x128xbf16> to vector<96x128xf32>
    %17 = vector.broadcast %3 : vector<1x128xf32> to vector<96x128xf32>
    %18 = arith.subf %16, %17 : vector<96x128xf32>
    %19 = vector.broadcast %14 : vector<1x128xf32> to vector<96x128xf32>
    %20 = arith.mulf %18, %19 : vector<96x128xf32>
    %cst_10 = arith.constant 0.000000e+00 : f32
    %21 = vector.broadcast %cst_10 : f32 to vector<96x128xf32>
    %22 = arith.cmpf oge, %20, %21 : vector<96x128xf32>
    %cst_11 = arith.constant 0.00999999977 : f32
    %23 = vector.broadcast %cst_11 : f32 to vector<96x128xf32>
    %24 = arith.mulf %23, %20 : vector<96x128xf32>
    %25 = arith.select %22, %20, %24 : vector<96x128xi1>, vector<96x128xf32>
    %26 = math.tanh %25 : vector<96x128xf32>
    %c0_12 = arith.constant 0 : index
    %c0_13 = arith.constant 0 : index
    %27 = vector.load %arg5[%c0_12, %c0_13] : memref<96x128xf32, #tpu.memory_space<vmem>>, vector<96x128xf32>
    tpu.vector_store %arg5[%c0_12, %c0_13], %26 {strides = array<i32>} : memref<96x128xf32, #tpu.memory_space<vmem>>, vector<96x128xf32>,
    return
  }
  func.func @transform_0(%arg0: i32, %arg1: i32) -> (i32, i32) {
    %c2_i32 = arith.constant 2 : i32
    %0 = arith.muli %arg0, %c2_i32 : i32
    %1 = arith.addi %0, %arg1 : i32
    %c0_i32 = arith.constant 0 : i32
    %c0_i32_0 = arith.constant 0 : i32
    return %1, %c0_i32 : i32, i32
  }
  func.func @transform_1(%arg0: i32, %arg1: i32) -> (i32, i32, i32) {
    %c0_i32 = arith.constant 0 : i32
    %c0_i32_0 = arith.constant 0 : i32
    %c0_i32_1 = arith.constant 0 : i32
    return %arg0, %c0_i32, %c0_i32_0 : i32, i32, i32
  }
  func.func @transform_2(%arg0: i32, %arg1: i32) -> (i32, i32, i32) {
    %c0_i32 = arith.constant 0 : i32
    %c0_i32_0 = arith.constant 0 : i32
    %c0_i32_1 = arith.constant 0 : i32
    return %arg0, %c0_i32, %c0_i32_0 : i32, i32, i32
  }
  func.func @transform_3(%arg0: i32, %arg1: i32) -> (i32, i32) {
    %c2_i32 = arith.constant 2 : i32
    %0 = arith.muli %arg0, %c2_i32 : i32
    %1 = arith.addi %0, %arg1 : i32
    %c0_i32 = arith.constant 0 : i32
    %c0_i32_0 = arith.constant 0 : i32
    return %1, %c0_i32 : i32, i32
  }
}

module attributes {stable_mosaic.version = 11 : i64} {
  func.func @_matmul_stats_kernel(%arg0: i32, %arg1: i32, %arg2: i32, %arg3: memref<96x512xbf16, #tpu.memory_space<vmem>>, %arg4: memref<512x128xbf16, #tpu.memory_space<vmem>>, %arg5: memref<96x128xbf16, #tpu.memory_space<vmem>>, %arg6: memref<1x1x128xf32, #tpu.memory_space<vmem>>, %arg7: memref<1x1x128xf32, #tpu.memory_space<vmem>>) attributes {dimension_semantics = [#tpu.dimension_semantics<parallel>, #tpu.dimension_semantics<parallel>, #tpu.dimension_semantics<arbitrary>], iteration_bounds = array<i64: 2, 2, 1>, scalar_prefetch = 0 : i64, scratch_operands = 0 : i64, tpu.core_type = #tpu.core_type<tc>, window_params = [{transform_indices = @transform_0, window_bounds = array<i64: 96, 512>}, {pipeline_mode = #tpu.pipeline_mode<synchronous>, transform_indices = @transform_1, window_bounds = array<i64: 512, 128>}, {transform_indices = @transform_2, window_bounds = array<i64: 96, 128>}, {transform_indices = @transform_3, window_bounds = array<i64: 1, 1, 128>}, {transform_indices = @transform_4, window_bounds = array<i64: 1, 1, 128>}]} {
    %c0 = arith.constant 0 : index
    %c0_0 = arith.constant 0 : index
    %0 = vector.load %arg3[%c0, %c0_0] : memref<96x512xbf16, #tpu.memory_space<vmem>>, vector<96x512xbf16>
    %c0_1 = arith.constant 0 : index
    %c0_2 = arith.constant 0 : index
    %1 = vector.load %arg4[%c0_1, %c0_2] : memref<512x128xbf16, #tpu.memory_space<vmem>>, vector<512x128xbf16>
    %cst = arith.constant dense<0.000000e+00> : vector<96x128xf32>
    %2 = tpu.matmul %0, %1, %cst {dimension_numbers = #tpu.dot_dimension_numbers<[1], [0], [0], [1], [0, 0, 1, 1], [], []>} : vector<96x512xbf16>, vector<512x128xbf16>, vector<96x128xf32> -> vector<96x128xf32>
    %3 = arith.truncf %2 : vector<96x128xf32> to vector<96x128xbf16>
    %c0_3 = arith.constant 0 : index
    %c0_4 = arith.constant 0 : index
    %4 = vector.load %arg5[%c0_3, %c0_4] : memref<96x128xbf16, #tpu.memory_space<vmem>>, vector<96x128xbf16>
    tpu.vector_store %arg5[%c0_3, %c0_4], %3 {strides = array<i32>} : memref<96x128xbf16, #tpu.memory_space<vmem>>, vector<96x128xbf16>,
    %c0_i32 = arith.constant 0 : i32
    %5 = arith.cmpi eq, %arg2, %c0_i32 : i32
    %6 = arith.extui %5 : i1 to i32
    %c0_i32_5 = arith.constant 0 : i32
    %7 = arith.cmpi ne, %6, %c0_i32_5 : i32
    scf.if %7 {
      %cst_20 = arith.constant 0.000000e+00 : f32
      %21 = vector.broadcast %cst_20 : f32 to vector<1x1x128xf32>
      %c0_21 = arith.constant 0 : index
      %c0_22 = arith.constant 0 : index
      %c0_23 = arith.constant 0 : index
      %22 = vector.load %arg6[%c0_21, %c0_22, %c0_23] : memref<1x1x128xf32, #tpu.memory_space<vmem>>, vector<1x1x128xf32>
      tpu.vector_store %arg6[%c0_21, %c0_22, %c0_23], %21 {strides = array<i32>} : memref<1x1x128xf32, #tpu.memory_space<vmem>>, vector<1x1x128xf32>,
      %cst_24 = arith.constant 0.000000e+00 : f32
      %23 = vector.broadcast %cst_24 : f32 to vector<1x1x128xf32>
      %c0_25 = arith.constant 0 : index
      %c0_26 = arith.constant 0 : index
      %c0_27 = arith.constant 0 : index
      %24 = vector.load %arg7[%c0_25, %c0_26, %c0_27] : memref<1x1x128xf32, #tpu.memory_space<vmem>>, vector<1x1x128xf32>
      tpu.vector_store %arg7[%c0_25, %c0_26, %c0_27], %23 {strides = array<i32>} : memref<1x1x128xf32, #tpu.memory_space<vmem>>, vector<1x1x128xf32>,
    } else {
    }
    %c0_6 = arith.constant 0 : index
    %c0_7 = arith.constant 0 : index
    %c0_8 = arith.constant 0 : index
    %8 = vector.load %arg6[%c0_6, %c0_7, %c0_8] : memref<1x1x128xf32, #tpu.memory_space<vmem>>, vector<1x1x128xf32>
    %cst_9 = arith.constant dense<0.000000e+00> : vector<128xf32>
    %9 = vector.multi_reduction <add>, %2, %cst_9 [0] : vector<96x128xf32> to vector<128xf32>
    %10 = vector.shape_cast %9 : vector<128xf32> to vector<1x128xf32>
    %11 = vector.shape_cast %10 : vector<1x128xf32> to vector<1x1x128xf32>
    %12 = arith.addf %8, %11 : vector<1x1x128xf32>
    %c0_10 = arith.constant 0 : index
    %c0_11 = arith.constant 0 : index
    %c0_12 = arith.constant 0 : index
    %13 = vector.load %arg6[%c0_10, %c0_11, %c0_12] : memref<1x1x128xf32, #tpu.memory_space<vmem>>, vector<1x1x128xf32>
    tpu.vector_store %arg6[%c0_10, %c0_11, %c0_12], %12 {strides = array<i32>} : memref<1x1x128xf32, #tpu.memory_space<vmem>>, vector<1x1x128xf32>,
    %c0_13 = arith.constant 0 : index
    %c0_14 = arith.constant 0 : index
    %c0_15 = arith.constant 0 : index
    %14 = vector.load %arg7[%c0_13, %c0_14, %c0_15] : memref<1x1x128xf32, #tpu.memory_space<vmem>>, vector<1x1x128xf32>
    %15 = arith.mulf %2, %2 : vector<96x128xf32>
    %cst_16 = arith.constant dense<0.000000e+00> : vector<128xf32>
    %16 = vector.multi_reduction <add>, %15, %cst_16 [0] : vector<96x128xf32> to vector<128xf32>
    %17 = vector.shape_cast %16 : vector<128xf32> to vector<1x128xf32>
    %18 = vector.shape_cast %17 : vector<1x128xf32> to vector<1x1x128xf32>
    %19 = arith.addf %14, %18 : vector<1x1x128xf32>
    %c0_17 = arith.constant 0 : index
    %c0_18 = arith.constant 0 : index
    %c0_19 = arith.constant 0 : index
    %20 = vector.load %arg7[%c0_17, %c0_18, %c0_19] : memref<1x1x128xf32, #tpu.memory_space<vmem>>, vector<1x1x128xf32>
    tpu.vector_store %arg7[%c0_17, %c0_18, %c0_19], %19 {strides = array<i32>} : memref<1x1x128xf32, #tpu.memory_space<vmem>>, vector<1x1x128xf32>,
    return
  }
  func.func @transform_0(%arg0: i32, %arg1: i32, %arg2: i32) -> (i32, i32) {
    %c2_i32 = arith.constant 2 : i32
    %0 = arith.muli %arg0, %c2_i32 : i32
    %c1_i32 = arith.constant 1 : i32
    %1 = arith.muli %arg1, %c1_i32 : i32
    %2 = arith.addi %0, %1 : i32
    %3 = arith.addi %2, %arg2 : i32
    %c0_i32 = arith.constant 0 : i32
    %c0_i32_0 = arith.constant 0 : i32
    return %3, %c0_i32 : i32, i32
  }
  func.func @transform_1(%arg0: i32, %arg1: i32, %arg2: i32) -> (i32, i32) {
    %c0_i32 = arith.constant 0 : i32
    %c0_i32_0 = arith.constant 0 : i32
    %c0_i32_1 = arith.constant 0 : i32
    return %c0_i32, %c0_i32_0 : i32, i32
  }
  func.func @transform_2(%arg0: i32, %arg1: i32, %arg2: i32) -> (i32, i32) {
    %c2_i32 = arith.constant 2 : i32
    %0 = arith.muli %arg0, %c2_i32 : i32
    %c1_i32 = arith.constant 1 : i32
    %1 = arith.muli %arg1, %c1_i32 : i32
    %2 = arith.addi %0, %1 : i32
    %3 = arith.addi %2, %arg2 : i32
    %c0_i32 = arith.constant 0 : i32
    %c0_i32_0 = arith.constant 0 : i32
    return %3, %c0_i32 : i32, i32
  }
  func.func @transform_3(%arg0: i32, %arg1: i32, %arg2: i32) -> (i32, i32, i32) {
    %c2_i32 = arith.constant 2 : i32
    %0 = arith.muli %arg0, %c2_i32 : i32
    %1 = arith.addi %0, %arg1 : i32
    %c0_i32 = arith.constant 0 : i32
    %c0_i32_0 = arith.constant 0 : i32
    %c0_i32_1 = arith.constant 0 : i32
    return %1, %c0_i32, %c0_i32_0 : i32, i32, i32
  }
  func.func @transform_4(%arg0: i32, %arg1: i32, %arg2: i32) -> (i32, i32, i32) {
    %c2_i32 = arith.constant 2 : i32
    %0 = arith.muli %arg0, %c2_i32 : i32
    %1 = arith.addi %0, %arg1 : i32
    %c0_i32 = arith.constant 0 : i32
    %c0_i32_0 = arith.constant 0 : i32
    %c0_i32_1 = arith.constant 0 : i32
    return %1, %c0_i32, %c0_i32_0 : i32, i32, i32
  }
}

</mosaic_0001>

<llo_original>
// kernel: generative_forward.33
$region0: #{generative_forward.33}
  #allocation0 [shape = 'u32[]', space=smem, size = 0x4, offset = 0x4, fixed_abs, tag = 'smem constant byte address 0x4 - core index']
  #allocation1 [shape = 'u32[144,128]{1,0:T(1,128)}', space=vmem, size = 0x12000, scoped, tag = 'internal scratch']
  %s0 = inlined_call_operand.vmem [shape: bf16[512,128], index: 0, kind: input, shape index: {}]
  %s1 = inlined_call_operand.vmem [shape: f32[2,1,128], index: 1, kind: input, shape index: {}]
  %s2 = inlined_call_operand.vmem [shape: f32[2,1,128], index: 2, kind: input, shape index: {}]
  %s3 = inlined_call_operand.vmem [shape: bf16[512,128], index: 3, kind: output, shape index: {}]
  %s4 = sld [smem:[#allocation0]]
  $region45: #{generative_forward.33} parent=0
    _
  %s6 = ssub.s32 1, %s4
  %s7 = scalar_select 0, %s6, %s4
  loop: start=0, step=1, limit=6
  $region2: #{generative_forward.33} parent=0 // loop_pre_header
    _
  $region3: #{generative_forward.33} parent=0 // loop_header
    %s9 = sphi 0, %s13
    %p10 = scmp.ge.s32.totalorder %s9, 6
    %s16 = sphi 0, %s28
    %s17 = sphi 0, %s24
    %s18 = sphi 0, %s16
    %s19 = sphi 0, %s17
    %s20 = sphi 0, %s18
    %s21 = sphi 0, %s19
    %s35 = sphi 0, %s37
    %s38 = sphi 0, %s35
    %s39 = sphi 0, %s38
    %s55 = sphi 0, %s39
    %s61 = sphi 0, %s63
    %s64 = sphi 0, %s61
    %s65 = sphi 0, %s64
    %s81 = sphi 0, %s65
    %s87 = sphi 0, %s89
    %s90 = sphi 0, %s87
    %s91 = sphi 0, %s90
    %s107 = sphi 0, %s91
    %s117 = sphi 0, %s119
    %s120 = sphi 0, %s117
    %s121 = sphi 0, %s120
    %s137 = sphi 0, %s121
  $region4: #{generative_forward.33} parent=0 // loop_header_branch
    %12 = sbr.rel (%p10) target = $region8
  $region5: #{generative_forward.33} parent=0 // loop_body
    %s14 = ssub.s32 %s9, 1
    %s15 = ssub.s32 %s9, 2
    %s22 = sadd.s32 1, %s17
    %p23 = scmp.ge.s32.totalorder %s22, 2
    %s24 = scalar_select %p23, 0, %s22
    %s25 = sadd.s32 1, %s16
    %s26 = scalar_select %p23, %s25, %s16
    %p27 = scmp.ge.s32.totalorder %s26, 2
    %s28 = scalar_select %p27, 0, %s26
    %s29 = smul.u32 %s16, 2
    %s30 = sadd.s32 %s29, %s17
    %s31 = smul.u32 %s28, 2
    %s32 = sadd.s32 %s31, %s24
    %s33 = ssub.s32 %s30, %s32
    %p34 = scmp.eq.s32.totalorder %s33, 0
    %s36 = sadd.s32 %s35, 1
    %s37 = scalar_select %p34, %s35, %s36
    %p40 = pneg %p34
    %p41 = scmp.eq.s32.totalorder %s9, 3
    %p42 = por %p40, %p41
    %p43 = scmp.ne.s32.totalorder %s35, %s38
    %p44 = scmp.eq.s32.totalorder %s9, 0
    %p45 = por %p43, %p44
    %p46 = scmp.ne.s32.totalorder %s35, %s38
    %p47 = scmp.eq.s32.totalorder %s14, 3
    %p48 = por %p46, %p47
    %p49 = scmp.ne.s32.totalorder %s38, %s39
    %p50 = scmp.eq.s32.totalorder %s14, 0
    %p51 = por %p49, %p50
    %p52 = scmp.ne.s32.totalorder %s38, %s39
    %p53 = scmp.eq.s32.totalorder %s15, 3
    %p54 = por %p52, %p53
    %p56 = scmp.ne.s32.totalorder %s39, %s55
    %p57 = scmp.eq.s32.totalorder %s15, 0
    %p58 = por %p56, %p57
    %s59 = ssub.s32 %s16, %s28
    %p60 = scmp.eq.s32.totalorder %s59, 0
    %s62 = sadd.s32 %s61, 1
    %s63 = scalar_select %p60, %s61, %s62
    %p66 = pneg %p60
    %p67 = scmp.eq.s32.totalorder %s9, 3
    %p68 = por %p66, %p67
    %p69 = scmp.ne.s32.totalorder %s61, %s64
    %p70 = scmp.eq.s32.totalorder %s9, 0
    %p71 = por %p69, %p70
    %p72 = scmp.ne.s32.totalorder %s61, %s64
    %p73 = scmp.eq.s32.totalorder %s14, 3
    %p74 = por %p72, %p73
    %p75 = scmp.ne.s32.totalorder %s64, %s65
    %p76 = scmp.eq.s32.totalorder %s14, 0
    %p77 = por %p75, %p76
    %p78 = scmp.ne.s32.totalorder %s64, %s65
    %p79 = scmp.eq.s32.totalorder %s15, 3
    %p80 = por %p78, %p79
    %p82 = scmp.ne.s32.totalorder %s65, %s81
    %p83 = scmp.eq.s32.totalorder %s15, 0
    %p84 = por %p82, %p83
    %s85 = ssub.s32 %s16, %s28
    %p86 = scmp.eq.s32.totalorder %s85, 0
    %s88 = sadd.s32 %s87, 1
    %s89 = scalar_select %p86, %s87, %s88
    %p92 = pneg %p86
    %p93 = scmp.eq.s32.totalorder %s9, 3
    %p94 = por %p92, %p93
    %p95 = scmp.ne.s32.totalorder %s87, %s90
    %p96 = scmp.eq.s32.totalorder %s9, 0
    %p97 = por %p95, %p96
    %p98 = scmp.ne.s32.totalorder %s87, %s90
    %p99 = scmp.eq.s32.totalorder %s14, 3
    %p100 = por %p98, %p99
    %p101 = scmp.ne.s32.totalorder %s90, %s91
    %p102 = scmp.eq.s32.totalorder %s14, 0
    %p103 = por %p101, %p102
    %p104 = scmp.ne.s32.totalorder %s90, %s91
    %p105 = scmp.eq.s32.totalorder %s15, 3
    %p106 = por %p104, %p105
    %p108 = scmp.ne.s32.totalorder %s91, %s107
    %p109 = scmp.eq.s32.totalorder %s15, 0
    %p110 = por %p108, %p109
    %s111 = smul.u32 %s16, 2
    %s112 = sadd.s32 %s111, %s17
    %s113 = smul.u32 %s28, 2
    %s114 = sadd.s32 %s113, %s24
    %s115 = ssub.s32 %s112, %s114
    %p116 = scmp.eq.s32.totalorder %s115, 0
    %s118 = sadd.s32 %s117, 1
    %s119 = scalar_select %p116, %s117, %s118
    %p122 = pneg %p116
    %p123 = scmp.eq.s32.totalorder %s9, 3
    %p124 = por %p122, %p123
    %p125 = scmp.ne.s32.totalorder %s117, %s120
    %p126 = scmp.eq.s32.totalorder %s9, 0
    %p127 = por %p125, %p126
    %p128 = scmp.ne.s32.totalorder %s117, %s120
    %p129 = scmp.eq.s32.totalorder %s14, 3
    %p130 = por %p128, %p129
    %p131 = scmp.ne.s32.totalorder %s120, %s121
    %p132 = scmp.eq.s32.totalorder %s14, 0
    %p133 = por %p131, %p132
    %p134 = scmp.ne.s32.totalorder %s120, %s121
    %p135 = scmp.eq.s32.totalorder %s15, 3
    %p136 = por %p134, %p135
    %p138 = scmp.ne.s32.totalorder %s121, %s137
    %p139 = scmp.eq.s32.totalorder %s15, 0
    %p140 = por %p138, %p139
    %p141 = scmp.le.s32.totalorder 1, %s9
    %p142 = scmp.lt.s32.totalorder %s9, 5
    %p143 = pnand %p141, %p142
    %p144 = pneg %p143
    // Predicated region
    $region9: #{generative_forward.33} parent=5 // pred_check
      _
    $region10: #{generative_forward.33} parent=5 // pred_check_branch
      %146 = sbr.rel (%p143) target = $region12
    $region11: #{generative_forward.33} parent=5 // pred_region
      %s147 = ssub.s32 %s9, 1
    $region12: #{generative_forward.33} parent=5 // pred_fallthru
      _
    %p148 = scmp.lt.s32.totalorder %s9, 4
    // Predicated region
    $region13: #{generative_forward.33} parent=5 // pred_check
      %p149 = pneg %p148
    $region14: #{generative_forward.33} parent=5 // pred_check_branch
      %151 = sbr.rel (%p149) target = $region16
    $region15: #{generative_forward.33} parent=5 // pred_region
      // Predicated region
      $region17: #{generative_forward.33} parent=15 // pred_check
        %p152 = pneg %p45
      $region18: #{generative_forward.33} parent=15 // pred_check_branch
        %154 = sbr.rel (%p152) target = $region20
      $region19: #{generative_forward.33} parent=15 // pred_region
        %s155 = smul.u32 %s16, 2
        %s156 = sadd.s32 %s155, %s17
        %s157 = smul.u32 16, %s156
        %p158 = scmp.lt.s32.totalorder %s157, 63
        %s159 = scalar_select %p158, %s157, 63
        %s160 = smul.addr %s159, 4
        %s161 = scalar_lea.vmem %s0, %s160
        %s162 = smul.u32 %s16, 2
        %s163 = sadd.s32 %s162, %s17
        %s164 = smul.u32 16, %s163
      $region20: #{generative_forward.33} parent=15 // pred_fallthru
        _
      // Predicated region
      $region21: #{generative_forward.33} parent=15 // pred_check
        %p165 = pneg %p71
      $region22: #{generative_forward.33} parent=15 // pred_check_branch
        %167 = sbr.rel (%p165) target = $region24
      $region23: #{generative_forward.33} parent=15 // pred_region
        %p168 = scmp.lt.s32.totalorder %s16, 1
        %s169 = scalar_select %p168, %s16, 1
        %s170 = scalar_lea.vmem %s1, %s169
      $region24: #{generative_forward.33} parent=15 // pred_fallthru
        _
      // Predicated region
      $region25: #{generative_forward.33} parent=15 // pred_check
        %p171 = pneg %p97
      $region26: #{generative_forward.33} parent=15 // pred_check_branch
        %173 = sbr.rel (%p171) target = $region28
      $region27: #{generative_forward.33} parent=15 // pred_region
        %p174 = scmp.lt.s32.totalorder %s16, 1
        %s175 = scalar_select %p174, %s16, 1
        %s176 = scalar_lea.vmem %s2, %s175
      $region28: #{generative_forward.33} parent=15 // pred_fallthru
        _
    $region16: #{generative_forward.33} parent=5 // pred_fallthru
      _
    %p177 = scmp.le.s32.totalorder 1, %s9
    %p178 = scmp.lt.s32.totalorder %s9, 5
    %p179 = pnand %p177, %p178
    %p180 = pneg %p179
    // Predicated region
    $region29: #{generative_forward.33} parent=5 // pred_check
      _
    $region30: #{generative_forward.33} parent=5 // pred_check_branch
      %182 = sbr.rel (%p179) target = $region32
    $region31: #{generative_forward.33} parent=5 // pred_region
      %s183 = ssub.s32 %s9, 1
      %s184 = smul.u32 %s18, 2
      %s185 = sadd.s32 %s184, %s19
      %s186 = smul.u32 16, %s185
      %p187 = scmp.lt.s32.totalorder %s186, 63
      %s188 = scalar_select %p187, %s186, 63
      %s189 = smul.addr %s188, 4
      %s190 = scalar_lea.vmem %s0, %s189
      %p191 = pneg %p51
      %p192 = pneg %p48
      %p193 = scmp.lt.s32.totalorder %s18, 1
      %s194 = scalar_select %p193, %s18, 1
      %s195 = scalar_lea.vmem %s1, %s194
      %p196 = pneg %p77
      %p197 = pneg %p74
      %p198 = scmp.lt.s32.totalorder %s18, 1
      %s199 = scalar_select %p198, %s18, 1
      %s200 = scalar_lea.vmem %s2, %s199
      %p201 = pneg %p103
      %p202 = pneg %p100
      %p203 = pneg %p133
      %p204 = pneg %p130
      %s205 = smul.u32 %s18, 2
      %s206 = sadd.s32 %s205, %s19
      %s207 = smul.u32 16, %s206
      %p208 = scmp.lt.s32.totalorder %s207, 63
      %s209 = scalar_select %p208, %s207, 63
      %s210 = smul.addr %s209, 4
      %s211 = scalar_lea.vmem %s3, %s210
      %s212 = smul.u32 %s18, 2
      %s213 = sadd.s32 %s212, %s19
      %s214 = smul.u32 16, %s213
      %p215 = scmp.lt.s32.totalorder %s214, 63
      %s216 = scalar_select %p215, %s214, 63
      %s217 = smul.addr %s216, 4
      %s218 = scalar_lea.vmem %s0, %s217
      %s219 = smul.u32 %s18, 2
      %s220 = sadd.s32 %s219, %s19
      %s221 = smul.u32 16, %s220
      %p222 = scmp.lt.s32.totalorder %s18, 1
      %s223 = scalar_select %p222, %s18, 1
      %s224 = scalar_lea.vmem %s1, %s223
      %p225 = scmp.lt.s32.totalorder %s18, 1
      %s226 = scalar_select %p225, %s18, 1
      %s227 = scalar_lea.vmem %s2, %s226
      %s228 = smul.u32 %s18, 2
      %s229 = sadd.s32 %s228, %s19
      %s230 = smul.u32 16, %s229
      %p231 = scmp.lt.s32.totalorder %s230, 63
      %s232 = scalar_select %p231, %s230, 63
      %s233 = smul.addr %s232, 4
      %s234 = scalar_lea.vmem %s3, %s233
      %s235 = smul.u32 %s18, 2
      %s236 = sadd.s32 %s235, %s19
      %s237 = smul.u32 16, %s236
      %v238 = vld [vmem:[%s224] sm:$0x1]
      %v239 = vmul.f32 %v238, 0.00390625
      %v240 = vld [vmem:[%s227] sm:$0x1]
      %v241 = vmul.f32 %v240, 0.00390625
      %v242 = vmul.f32 %v239, %v239
      %v243 = vsub.f32 %v241, %v242
      %v244 = vmax.f32 %v243, 0.0
      %v245 = vadd.f32 %v244, 1e-05
      %v246 = vrsqrt.pop %v245
      %v247 = vld [vmem:[%s218] sm:$0xf]
      %v248 = vld [vmem:[%s218 + $0x4] sm:$0xf]
      %v249 = vld [vmem:[%s218 + $0x8] sm:$0xf]
      %v250 = vld [vmem:[%s218 + $0xc] sm:$0xf]
      %v251 = vld [vmem:[%s218 + $0x10] sm:$0xf]
      %v252 = vld [vmem:[%s218 + $0x14] sm:$0xf]
      %v253 = vld [vmem:[%s218 + $0x18] sm:$0xf]
      %v254 = vld [vmem:[%s218 + $0x1c] sm:$0xf]
      %v255 = vld [vmem:[%s218 + $0x20] sm:$0xf]
      %v256 = vld [vmem:[%s218 + $0x24] sm:$0xf]
      %v257 = vld [vmem:[%s218 + $0x28] sm:$0xf]
      %v258 = vld [vmem:[%s218 + $0x2c] sm:$0xf]
      %v259 = vld [vmem:[%s218 + $0x30] sm:$0xf]
      %v260 = vld [vmem:[%s218 + $0x34] sm:$0xf]
      %v261 = vld [vmem:[%s218 + $0x38] sm:$0xf]
      %v262 = vld [vmem:[%s218 + $0x3c] sm:$0xf]
      %v263 = vunpack.c.l.bf16 %v247
      %v264 = vunpack.c.l.bf16 %v248
      %v265 = vunpack.c.l.bf16 %v249
      %v266 = vunpack.c.l.bf16 %v250
      %v267 = vunpack.c.l.bf16 %v251
      %v268 = vunpack.c.l.bf16 %v252
      %v269 = vunpack.c.l.bf16 %v253
      %v270 = vunpack.c.l.bf16 %v254
      %v271 = vunpack.c.l.bf16 %v255
      %v272 = vunpack.c.l.bf16 %v256
      %v273 = vunpack.c.l.bf16 %v257
      %v274 = vunpack.c.l.bf16 %v258
      %v275 = vunpack.c.l.bf16 %v259
      %v276 = vunpack.c.l.bf16 %v260
      %v277 = vunpack.c.l.bf16 %v261
      %v278 = vunpack.c.l.bf16 %v262
      %v280 = vlaneseq
      %v281 = vshrl.u32 %v280, 7
      %v282 = vsub.s32 0, %v281
      %v283 = vrot.slane %v239, %v282
      %v285 = vsub.f32 %v263, %v283
      %v286 = vsub.f32 %v264, %v283
      %v287 = vsub.f32 %v265, %v283
      %v288 = vsub.f32 %v266, %v283
      %v289 = vsub.f32 %v267, %v283
      %v290 = vsub.f32 %v268, %v283
      %v291 = vsub.f32 %v269, %v283
      %v292 = vsub.f32 %v270, %v283
      %v293 = vsub.f32 %v271, %v283
      %v294 = vsub.f32 %v272, %v283
      %v295 = vsub.f32 %v273, %v283
      %v296 = vsub.f32 %v274, %v283
      %v297 = vsub.f32 %v275, %v283
      %v298 = vsub.f32 %v276, %v283
      %v299 = vsub.f32 %v277, %v283
      %v300 = vsub.f32 %v278, %v283
      %v302 = vlaneseq
      %v303 = vshrl.u32 %v302, 7
      %v304 = vsub.s32 0, %v303
      %v305 = vrot.slane %v246, %v304
      %v307 = vmul.f32 %v285, %v305
      %v308 = vmul.f32 %v286, %v305
      %v309 = vmul.f32 %v287, %v305
      %v310 = vmul.f32 %v288, %v305
      %v311 = vmul.f32 %v289, %v305
      %v312 = vmul.f32 %v290, %v305
      %v313 = vmul.f32 %v291, %v305
      %v314 = vmul.f32 %v292, %v305
      %v315 = vmul.f32 %v293, %v305
      %v316 = vmul.f32 %v294, %v305
      %v317 = vmul.f32 %v295, %v305
      %v318 = vmul.f32 %v296, %v305
      %v319 = vmul.f32 %v297, %v305
      %v320 = vmul.f32 %v298, %v305
      %v321 = vmul.f32 %v299, %v305
      %v322 = vmul.f32 %v300, %v305
      %vm323 = vcmp.ge.f32.partialorder %v307, 0.0
      %vm324 = vcmp.ge.f32.partialorder %v308, 0.0
      %vm325 = vcmp.ge.f32.partialorder %v309, 0.0
      %vm326 = vcmp.ge.f32.partialorder %v310, 0.0
      %vm327 = vcmp.ge.f32.partialorder %v311, 0.0
      %vm328 = vcmp.ge.f32.partialorder %v312, 0.0
      %vm329 = vcmp.ge.f32.partialorder %v313, 0.0
      %vm330 = vcmp.ge.f32.partialorder %v314, 0.0
      %vm331 = vcmp.ge.f32.partialorder %v315, 0.0
      %vm332 = vcmp.ge.f32.partialorder %v316, 0.0
      %vm333 = vcmp.ge.f32.partialorder %v317, 0.0
      %vm334 = vcmp.ge.f32.partialorder %v318, 0.0
      %vm335 = vcmp.ge.f32.partialorder %v319, 0.0
      %vm336 = vcmp.ge.f32.partialorder %v320, 0.0
      %vm337 = vcmp.ge.f32.partialorder %v321, 0.0
      %vm338 = vcmp.ge.f32.partialorder %v322, 0.0
      %v339 = vmul.f32 %v307, 0.01
      %v340 = vmul.f32 %v308, 0.01
      %v341 = vmul.f32 %v309, 0.01
      %v342 = vmul.f32 %v310, 0.01
      %v343 = vmul.f32 %v311, 0.01
      %v344 = vmul.f32 %v312, 0.01
      %v345 = vmul.f32 %v313, 0.01
      %v346 = vmul.f32 %v314, 0.01
      %v347 = vmul.f32 %v315, 0.01
      %v348 = vmul.f32 %v316, 0.01
      %v349 = vmul.f32 %v317, 0.01
      %v350 = vmul.f32 %v318, 0.01
      %v351 = vmul.f32 %v319, 0.01
      %v352 = vmul.f32 %v320, 0.01
      %v353 = vmul.f32 %v321, 0.01
      %v354 = vmul.f32 %v322, 0.01
      %v355 = vsel %vm323, %v307, %v339
      %v356 = vsel %vm324, %v308, %v340
      %v357 = vsel %vm325, %v309, %v341
      %v358 = vsel %vm326, %v310, %v342
      %v359 = vsel %vm327, %v311, %v343
      %v360 = vsel %vm328, %v312, %v344
      %v361 = vsel %vm329, %v313, %v345
      %v362 = vsel %vm330, %v314, %v346
      %v363 = vsel %vm331, %v315, %v347
      %v364 = vsel %vm332, %v316, %v348
      %v365 = vsel %vm333, %v317, %v349
      %v366 = vsel %vm334, %v318, %v350
      %v367 = vsel %vm335, %v319, %v351
      %v368 = vsel %vm336, %v320, %v352
      %v369 = vsel %vm337, %v321, %v353
      %v370 = vsel %vm338, %v322, %v354
      %v371 = vpack.c.bf16 %v356, %v355
      %v372 = vpack.c.bf16 %v358, %v357
      %v373 = vpack.c.bf16 %v360, %v359
      %v374 = vpack.c.bf16 %v362, %v361
      %v375 = vpack.c.bf16 %v364, %v363
      %v376 = vpack.c.bf16 %v366, %v365
      %v377 = vpack.c.bf16 %v368, %v367
      %v378 = vpack.c.bf16 %v370, %v369
      %v387 = vunpack.c.l.b16 %v371
      %v388 = vunpack.c.h.b16 %v371
      %v389 = vunpack.c.l.b16 %v372
      %v390 = vunpack.c.h.b16 %v372
      %v391 = vunpack.c.l.b16 %v373
      %v392 = vunpack.c.h.b16 %v373
      %v393 = vunpack.c.l.b16 %v374
      %v394 = vunpack.c.h.b16 %v374
      %v395 = vunpack.c.l.b16 %v375
      %v396 = vunpack.c.h.b16 %v375
      %v397 = vunpack.c.l.b16 %v376
      %v398 = vunpack.c.h.b16 %v376
      %v399 = vunpack.c.l.b16 %v377
      %v400 = vunpack.c.h.b16 %v377
      %v401 = vunpack.c.l.b16 %v378
      %v402 = vunpack.c.h.b16 %v378
      %v403 = vpack.c.b16 %v387, %v387
      %v404 = vpack.c.b16 %v388, %v388
      %v405 = vpack.c.b16 %v389, %v389
      %v406 = vpack.c.b16 %v390, %v390
      %v407 = vpack.c.b16 %v391, %v391
      %v408 = vpack.c.b16 %v392, %v392
      %v409 = vpack.c.b16 %v393, %v393
      %v410 = vpack.c.b16 %v394, %v394
      %v411 = vpack.c.b16 %v395, %v395
      %v412 = vpack.c.b16 %v396, %v396
      %v413 = vpack.c.b16 %v397, %v397
      %v414 = vpack.c.b16 %v398, %v398
      %v415 = vpack.c.b16 %v399, %v399
      %v416 = vpack.c.b16 %v400, %v400
      %v417 = vpack.c.b16 %v401, %v401
      %v418 = vpack.c.b16 %v402, %v402
      %435 = vst [vmem:[%s234] sm:$0xf] %v403
      %436 = vst [vmem:[%s234 + $0x4] sm:$0xf] %v404
      %437 = vst [vmem:[%s234 + $0x8] sm:$0xf] %v405
      %438 = vst [vmem:[%s234 + $0xc] sm:$0xf] %v406
      %439 = vst [vmem:[%s234 + $0x10] sm:$0xf] %v407
      %440 = vst [vmem:[%s234 + $0x14] sm:$0xf] %v408
      %441 = vst [vmem:[%s234 + $0x18] sm:$0xf] %v409
      %442 = vst [vmem:[%s234 + $0x1c] sm:$0xf] %v410
      %443 = vst [vmem:[%s234 + $0x20] sm:$0xf] %v411
      %444 = vst [vmem:[%s234 + $0x24] sm:$0xf] %v412
      %445 = vst [vmem:[%s234 + $0x28] sm:$0xf] %v413
      %446 = vst [vmem:[%s234 + $0x2c] sm:$0xf] %v414
      %447 = vst [vmem:[%s234 + $0x30] sm:$0xf] %v415
      %448 = vst [vmem:[%s234 + $0x34] sm:$0xf] %v416
      %449 = vst [vmem:[%s234 + $0x38] sm:$0xf] %v417
      %450 = vst [vmem:[%s234 + $0x3c] sm:$0xf] %v418
      %s451 = smul.u32 %s18, 2
      %s452 = sadd.s32 %s451, %s19
      %s453 = smul.u32 16, %s452
      %p454 = scmp.lt.s32.totalorder %s453, 63
      %s455 = scalar_select %p454, %s453, 63
      %s456 = smul.addr %s455, 4
      %s457 = scalar_lea.vmem %s3, %s456
      // Predicated region
      $region33: #{generative_forward.33} parent=31 // pred_check
        %p458 = pneg %p130
      $region34: #{generative_forward.33} parent=31 // pred_check_branch
        %460 = sbr.rel (%p458) target = $region36
      $region35: #{generative_forward.33} parent=31 // pred_region
        %s461 = smul.u32 %s18, 2
        %s462 = sadd.s32 %s461, %s19
        %s463 = smul.u32 16, %s462
      $region36: #{generative_forward.33} parent=31 // pred_fallthru
        _
    $region32: #{generative_forward.33} parent=5 // pred_fallthru
      _
    %p464 = scmp.le.s32.totalorder 2, %s9
    // Predicated region
    $region37: #{generative_forward.33} parent=5 // pred_check
      %p465 = pneg %p464
    $region38: #{generative_forward.33} parent=5 // pred_check_branch
      %467 = sbr.rel (%p465) target = $region40
    $region39: #{generative_forward.33} parent=5 // pred_region
      %s468 = ssub.s32 %s9, 2
      // Predicated region
      $region41: #{generative_forward.33} parent=39 // pred_check
        %p469 = pneg %p136
      $region42: #{generative_forward.33} parent=39 // pred_check_branch
        %471 = sbr.rel (%p469) target = $region44
      $region43: #{generative_forward.33} parent=39 // pred_region
        %s472 = smul.u32 %s20, 2
        %s473 = sadd.s32 %s472, %s21
        %s474 = smul.u32 16, %s473
        %p475 = scmp.lt.s32.totalorder %s474, 63
        %s476 = scalar_select %p475, %s474, 63
        %s477 = smul.addr %s476, 4
        %s478 = scalar_lea.vmem %s3, %s477
      $region44: #{generative_forward.33} parent=39 // pred_fallthru
        _
    $region40: #{generative_forward.33} parent=5 // pred_fallthru
      _
  $region6: #{generative_forward.33} parent=0 // loop_footer
    %s13 = sadd.s32 1, %s9
  $region7: #{generative_forward.33} parent=0 // loop_footer_branch
    %8 = sbr.rel target = $region3
  $region8: #{generative_forward.33} parent=0 // loop_exit
    _

// kernel: generative_forward.32
$region0: #{generative_forward.32}
  #allocation0 [shape = 'u32[]', space=smem, size = 0x4, offset = 0x4, fixed_abs, tag = 'smem constant byte address 0x4 - core index']
  #allocation1 [shape = 'u32[144,128]{1,0:T(1,128)}', space=vmem, size = 0x12000, scoped, tag = 'internal scratch']
  %s0 = inlined_call_operand.vmem [shape: bf16[512,256], index: 0, kind: input, shape index: {}]
  %s1 = inlined_call_operand.vmem [shape: bf16[256,128], index: 1, kind: input, shape index: {}]
  %s2 = inlined_call_operand.vmem [shape: bf16[512,128], index: 2, kind: output, shape index: {0}]
  %s3 = inlined_call_operand.vmem [shape: f32[4,1,128], index: 3, kind: output, shape index: {1}]
  %s4 = inlined_call_operand.vmem [shape: f32[4,1,128], index: 4, kind: output, shape index: {2}]
  %5 = xla_tuple %s2, %s3, %s4
  %s6 = sld [smem:[#allocation0]]
  $region61: #{generative_forward.32} parent=0
    _
  %s8 = ssub.s32 1, %s6
  %s9 = scalar_select 0, %s8, %s6
  loop: start=0, step=1, limit=6
  $region2: #{generative_forward.32} parent=0 // loop_pre_header
    _
  $region3: #{generative_forward.32} parent=0 // loop_header
    %s11 = sphi 0, %s15
    %p12 = scmp.ge.s32.totalorder %s11, 6
    %s18 = sphi 0, %s37
    %s19 = sphi 0, %s33
    %s20 = sphi 0, %s29
    %s21 = sphi 0, %s18
    %s22 = sphi 0, %s19
    %s23 = sphi 0, %s20
    %s24 = sphi 0, %s21
    %s25 = sphi 0, %s22
    %s26 = sphi 0, %s23
    %s46 = sphi 0, %s48
    %s49 = sphi 0, %s46
    %s50 = sphi 0, %s49
    %s66 = sphi 0, %s50
    %s70 = sphi 0, %s70
    %s72 = sphi 0, %s70
    %s73 = sphi 0, %s72
    %s87 = sphi 0, %s73
    %s99 = sphi 0, %s101
    %s102 = sphi 0, %s99
    %s103 = sphi 0, %s102
    %s119 = sphi 0, %s103
    %s129 = sphi 0, %s131
    %s132 = sphi 0, %s129
    %s133 = sphi 0, %s132
    %s149 = sphi 0, %s133
    %s159 = sphi 0, %s161
    %s162 = sphi 0, %s159
    %s163 = sphi 0, %s162
    %s179 = sphi 0, %s163
  $region4: #{generative_forward.32} parent=0 // loop_header_branch
    %14 = sbr.rel (%p12) target = $region8
  $region5: #{generative_forward.32} parent=0 // loop_body
    %s16 = ssub.s32 %s11, 1
    %s17 = ssub.s32 %s11, 2
    %s27 = sadd.s32 1, %s20
    %p28 = scmp.ge.s32.totalorder %s27, 1
    %s29 = scalar_select %p28, 0, %s27
    %s30 = sadd.s32 1, %s19
    %s31 = scalar_select %p28, %s30, %s19
    %p32 = scmp.ge.s32.totalorder %s31, 2
    %s33 = scalar_select %p32, 0, %s31
    %s34 = sadd.s32 1, %s18
    %s35 = scalar_select %p32, %s34, %s18
    %p36 = scmp.ge.s32.totalorder %s35, 2
    %s37 = scalar_select %p36, 0, %s35
    %s38 = smul.u32 %s18, 2
    %s39 = sadd.s32 %s38, %s19
    %s40 = sadd.s32 %s39, %s20
    %s41 = smul.u32 %s37, 2
    %s42 = sadd.s32 %s41, %s33
    %s43 = sadd.s32 %s42, %s29
    %s44 = ssub.s32 %s40, %s43
    %p45 = scmp.eq.s32.totalorder %s44, 0
    %s47 = sadd.s32 %s46, 1
    %s48 = scalar_select %p45, %s46, %s47
    %p51 = pneg %p45
    %p52 = scmp.eq.s32.totalorder %s11, 3
    %p53 = por %p51, %p52
    %p54 = scmp.ne.s32.totalorder %s46, %s49
    %p55 = scmp.eq.s32.totalorder %s11, 0
    %p56 = por %p54, %p55
    %p57 = scmp.ne.s32.totalorder %s46, %s49
    %p58 = scmp.eq.s32.totalorder %s16, 3
    %p59 = por %p57, %p58
    %p60 = scmp.ne.s32.totalorder %s49, %s50
    %p61 = scmp.eq.s32.totalorder %s16, 0
    %p62 = por %p60, %p61
    %p63 = scmp.ne.s32.totalorder %s49, %s50
    %p64 = scmp.eq.s32.totalorder %s17, 3
    %p65 = por %p63, %p64
    %p67 = scmp.ne.s32.totalorder %s50, %s66
    %p68 = scmp.eq.s32.totalorder %s17, 0
    %p69 = por %p67, %p68
    %s71 = sadd.s32 %s70, 1
    %p74 = scmp.eq.s32.totalorder %s11, 3
    %p75 = scmp.ne.s32.totalorder %s70, %s72
    %p76 = scmp.eq.s32.totalorder %s11, 0
    %p77 = por %p75, %p76
    %p78 = scmp.ne.s32.totalorder %s70, %s72
    %p79 = scmp.eq.s32.totalorder %s16, 3
    %p80 = por %p78, %p79
    %p81 = scmp.ne.s32.totalorder %s72, %s73
    %p82 = scmp.eq.s32.totalorder %s16, 0
    %p83 = por %p81, %p82
    %p84 = scmp.ne.s32.totalorder %s72, %s73
    %p85 = scmp.eq.s32.totalorder %s17, 3
    %p86 = por %p84, %p85
    %p88 = scmp.ne.s32.totalorder %s73, %s87
    %p89 = scmp.eq.s32.totalorder %s17, 0
    %p90 = por %p88, %p89
    %s91 = smul.u32 %s18, 2
    %s92 = sadd.s32 %s91, %s19
    %s93 = sadd.s32 %s92, %s20
    %s94 = smul.u32 %s37, 2
    %s95 = sadd.s32 %s94, %s33
    %s96 = sadd.s32 %s95, %s29
    %s97 = ssub.s32 %s93, %s96
    %p98 = scmp.eq.s32.totalorder %s97, 0
    %s100 = sadd.s32 %s99, 1
    %s101 = scalar_select %p98, %s99, %s100
    %p104 = pneg %p98
    %p105 = scmp.eq.s32.totalorder %s11, 3
    %p106 = por %p104, %p105
    %p107 = scmp.ne.s32.totalorder %s99, %s102
    %p108 = scmp.eq.s32.totalorder %s11, 0
    %p109 = por %p107, %p108
    %p110 = scmp.ne.s32.totalorder %s99, %s102
    %p111 = scmp.eq.s32.totalorder %s16, 3
    %p112 = por %p110, %p111
    %p113 = scmp.ne.s32.totalorder %s102, %s103
    %p114 = scmp.eq.s32.totalorder %s16, 0
    %p115 = por %p113, %p114
    %p116 = scmp.ne.s32.totalorder %s102, %s103
    %p117 = scmp.eq.s32.totalorder %s17, 3
    %p118 = por %p116, %p117
    %p120 = scmp.ne.s32.totalorder %s103, %s119
    %p121 = scmp.eq.s32.totalorder %s17, 0
    %p122 = por %p120, %p121
    %s123 = smul.u32 %s18, 2
    %s124 = sadd.s32 %s123, %s19
    %s125 = smul.u32 %s37, 2
    %s126 = sadd.s32 %s125, %s33
    %s127 = ssub.s32 %s124, %s126
    %p128 = scmp.eq.s32.totalorder %s127, 0
    %s130 = sadd.s32 %s129, 1
    %s131 = scalar_select %p128, %s129, %s130
    %p134 = pneg %p128
    %p135 = scmp.eq.s32.totalorder %s11, 3
    %p136 = por %p134, %p135
    %p137 = scmp.ne.s32.totalorder %s129, %s132
    %p138 = scmp.eq.s32.totalorder %s11, 0
    %p139 = por %p137, %p138
    %p140 = scmp.ne.s32.totalorder %s129, %s132
    %p141 = scmp.eq.s32.totalorder %s16, 3
    %p142 = por %p140, %p141
    %p143 = scmp.ne.s32.totalorder %s132, %s133
    %p144 = scmp.eq.s32.totalorder %s16, 0
    %p145 = por %p143, %p144
    %p146 = scmp.ne.s32.totalorder %s132, %s133
    %p147 = scmp.eq.s32.totalorder %s17, 3
    %p148 = por %p146, %p147
    %p150 = scmp.ne.s32.totalorder %s133, %s149
    %p151 = scmp.eq.s32.totalorder %s17, 0
    %p152 = por %p150, %p151
    %s153 = smul.u32 %s18, 2
    %s154 = sadd.s32 %s153, %s19
    %s155 = smul.u32 %s37, 2
    %s156 = sadd.s32 %s155, %s33
    %s157 = ssub.s32 %s154, %s156
    %p158 = scmp.eq.s32.totalorder %s157, 0
    %s160 = sadd.s32 %s159, 1
    %s161 = scalar_select %p158, %s159, %s160
    %p164 = pneg %p158
    %p165 = scmp.eq.s32.totalorder %s11, 3
    %p166 = por %p164, %p165
    %p167 = scmp.ne.s32.totalorder %s159, %s162
    %p168 = scmp.eq.s32.totalorder %s11, 0
    %p169 = por %p167, %p168
    %p170 = scmp.ne.s32.totalorder %s159, %s162
    %p171 = scmp.eq.s32.totalorder %s16, 3
    %p172 = por %p170, %p171
    %p173 = scmp.ne.s32.totalorder %s162, %s163
    %p174 = scmp.eq.s32.totalorder %s16, 0
    %p175 = por %p173, %p174
    %p176 = scmp.ne.s32.totalorder %s162, %s163
    %p177 = scmp.eq.s32.totalorder %s17, 3
    %p178 = por %p176, %p177
    %p180 = scmp.ne.s32.totalorder %s163, %s179
    %p181 = scmp.eq.s32.totalorder %s17, 0
    %p182 = por %p180, %p181
    %p183 = scmp.le.s32.totalorder 1, %s11
    %p184 = scmp.lt.s32.totalorder %s11, 5
    %p185 = pnand %p183, %p184
    %p186 = pneg %p185
    // Predicated region
    $region9: #{generative_forward.32} parent=5 // pred_check
      _
    $region10: #{generative_forward.32} parent=5 // pred_check_branch
      %188 = sbr.rel (%p185) target = $region12
    $region11: #{generative_forward.32} parent=5 // pred_region
      %s189 = ssub.s32 %s11, 1
      // Predicated region
      $region13: #{generative_forward.32} parent=11 // pred_check
        %p190 = pneg %p83
      $region14: #{generative_forward.32} parent=11 // pred_check_branch
        %192 = sbr.rel (%p190) target = $region16
      $region15: #{generative_forward.32} parent=11 // pred_region
        _
      $region16: #{generative_forward.32} parent=11 // pred_fallthru
        _
    $region12: #{generative_forward.32} parent=5 // pred_fallthru
      _
    %p193 = scmp.lt.s32.totalorder %s11, 4
    // Predicated region
    $region17: #{generative_forward.32} parent=5 // pred_check
      %p194 = pneg %p193
    $region18: #{generative_forward.32} parent=5 // pred_check_branch
      %196 = sbr.rel (%p194) target = $region20
    $region19: #{generative_forward.32} parent=5 // pred_region
      // Predicated region
      $region21: #{generative_forward.32} parent=19 // pred_check
        %p197 = pneg %p56
      $region22: #{generative_forward.32} parent=19 // pred_check_branch
        %199 = sbr.rel (%p197) target = $region24
      $region23: #{generative_forward.32} parent=19 // pred_region
        %s200 = smul.u32 %s18, 2
        %s201 = sadd.s32 %s200, %s19
        %s202 = sadd.s32 %s201, %s20
        %s203 = smul.u32 16, %s202
        %p204 = scmp.lt.s32.totalorder %s203, 63
        %s205 = scalar_select %p204, %s203, 63
        %s206 = smul.addr %s205, 2
        %s207 = smul.addr %s206, 4
        %s208 = scalar_lea.vmem %s0, %s207
        %s209 = smul.u32 %s18, 2
        %s210 = sadd.s32 %s209, %s19
        %s211 = sadd.s32 %s210, %s20
        %s212 = smul.u32 16, %s211
      $region24: #{generative_forward.32} parent=19 // pred_fallthru
        _
    $region20: #{generative_forward.32} parent=5 // pred_fallthru
      _
    %p213 = scmp.le.s32.totalorder 1, %s11
    %p214 = scmp.lt.s32.totalorder %s11, 5
    %p215 = pnand %p213, %p214
    %p216 = pneg %p215
    // Predicated region
    $region25: #{generative_forward.32} parent=5 // pred_check
      _
    $region26: #{generative_forward.32} parent=5 // pred_check_branch
      %218 = sbr.rel (%p215) target = $region28
    $region27: #{generative_forward.32} parent=5 // pred_region
      %s219 = ssub.s32 %s11, 1
      %s220 = smul.u32 %s21, 2
      %s221 = sadd.s32 %s220, %s22
      %s222 = sadd.s32 %s221, %s23
      %s223 = smul.u32 16, %s222
      %p224 = scmp.lt.s32.totalorder %s223, 63
      %s225 = scalar_select %p224, %s223, 63
      %s226 = smul.addr %s225, 2
      %s227 = smul.addr %s226, 4
      %s228 = scalar_lea.vmem %s0, %s227
      %p229 = pneg %p62
      %p230 = pneg %p59
      %p231 = pneg %p83
      %p232 = pneg %p80
      %p233 = pneg %p115
      %p234 = pneg %p112
      %s235 = smul.u32 %s21, 2
      %s236 = sadd.s32 %s235, %s22
      %s237 = sadd.s32 %s236, %s23
      %s238 = smul.u32 16, %s237
      %p239 = scmp.lt.s32.totalorder %s238, 63
      %s240 = scalar_select %p239, %s238, 63
      %s241 = smul.addr %s240, 4
      %s242 = scalar_lea.vmem %s2, %s241
      %p243 = pneg %p145
      %p244 = pneg %p142
      %s245 = smul.u32 %s21, 2
      %s246 = sadd.s32 %s245, %s22
      %p247 = scmp.lt.s32.totalorder %s246, 3
      %s248 = scalar_select %p247, %s246, 3
      %s249 = scalar_lea.vmem %s3, %s248
      %p250 = pneg %p175
      %p251 = pneg %p172
      %s252 = smul.u32 %s21, 2
      %s253 = sadd.s32 %s252, %s22
      %p254 = scmp.lt.s32.totalorder %s253, 3
      %s255 = scalar_select %p254, %s253, 3
      %s256 = scalar_lea.vmem %s4, %s255
      %s257 = smul.u32 %s21, 2
      %s258 = sadd.s32 %s257, %s22
      %s259 = sadd.s32 %s258, %s23
      %s260 = smul.u32 16, %s259
      %p261 = scmp.lt.s32.totalorder %s260, 63
      %s262 = scalar_select %p261, %s260, 63
      %s263 = smul.addr %s262, 2
      %s264 = smul.addr %s263, 4
      %s265 = scalar_lea.vmem %s0, %s264
      %s266 = smul.u32 %s21, 2
      %s267 = sadd.s32 %s266, %s22
      %s268 = sadd.s32 %s267, %s23
      %s269 = smul.u32 16, %s268
      %s270 = smul.u32 %s21, 2
      %s271 = sadd.s32 %s270, %s22
      %s272 = sadd.s32 %s271, %s23
      %s273 = smul.u32 16, %s272
      %p274 = scmp.lt.s32.totalorder %s273, 63
      %s275 = scalar_select %p274, %s273, 63
      %s276 = smul.addr %s275, 4
      %s277 = scalar_lea.vmem %s2, %s276
      %s278 = smul.u32 %s21, 2
      %s279 = sadd.s32 %s278, %s22
      %s280 = sadd.s32 %s279, %s23
      %s281 = smul.u32 16, %s280
      %s282 = smul.u32 %s21, 2
      %s283 = sadd.s32 %s282, %s22
      %p284 = scmp.lt.s32.totalorder %s283, 3
      %s285 = scalar_select %p284, %s283, 3
      %s286 = scalar_lea.vmem %s3, %s285
      %s287 = smul.u32 %s21, 2
      %s288 = sadd.s32 %s287, %s22
      %s289 = smul.u32 %s21, 2
      %s290 = sadd.s32 %s289, %s22
      %p291 = scmp.lt.s32.totalorder %s290, 3
      %s292 = scalar_select %p291, %s290, 3
      %s293 = scalar_lea.vmem %s4, %s292
      %s294 = smul.u32 %s21, 2
      %s295 = sadd.s32 %s294, %s22
      %v297 = vld [vmem:[%s265] sm:$0xff]
      %v298 = vld [vmem:[%s265 + $0x8] sm:$0xff]
      %v299 = vld [vmem:[%s265 + $0x10] sm:$0xff]
      %v300 = vld [vmem:[%s265 + $0x18] sm:$0xff]
      %v301 = vld [vmem:[%s265 + $0x20] sm:$0xff]
      %v302 = vld [vmem:[%s265 + $0x28] sm:$0xff]
      %v303 = vld [vmem:[%s265 + $0x30] sm:$0xff]
      %v304 = vld [vmem:[%s265 + $0x38] sm:$0xff]
      %v305 = vld [vmem:[%s265 + $0x40] sm:$0xff]
      %v306 = vld [vmem:[%s265 + $0x48] sm:$0xff]
      %v307 = vld [vmem:[%s265 + $0x50] sm:$0xff]
      %v308 = vld [vmem:[%s265 + $0x58] sm:$0xff]
      %v309 = vld [vmem:[%s265 + $0x60] sm:$0xff]
      %v310 = vld [vmem:[%s265 + $0x68] sm:$0xff]
      %v311 = vld [vmem:[%s265 + $0x70] sm:$0xff]
      %v312 = vld [vmem:[%s265 + $0x78] sm:$0xff]
      %v313 = vld [vmem:[%s1] sm:$0xf]
      %v314 = vld [vmem:[%s1 + $0x4] sm:$0xf]
      %v315 = vld [vmem:[%s1 + $0x8] sm:$0xf]
      %v316 = vld [vmem:[%s1 + $0xc] sm:$0xf]
      %v317 = vld [vmem:[%s1 + $0x10] sm:$0xf]
      %v318 = vld [vmem:[%s1 + $0x14] sm:$0xf]
      %v319 = vld [vmem:[%s1 + $0x18] sm:$0xf]
      %v320 = vld [vmem:[%s1 + $0x1c] sm:$0xf]
      %v321 = vld [vmem:[%s1 + $0x20] sm:$0xf]
      %v322 = vld [vmem:[%s1 + $0x24] sm:$0xf]
      %v323 = vld [vmem:[%s1 + $0x28] sm:$0xf]
      %v324 = vld [vmem:[%s1 + $0x2c] sm:$0xf]
      %v325 = vld [vmem:[%s1 + $0x30] sm:$0xf]
      %v326 = vld [vmem:[%s1 + $0x34] sm:$0xf]
      %v327 = vld [vmem:[%s1 + $0x38] sm:$0xf]
      %v328 = vld [vmem:[%s1 + $0x3c] sm:$0xf]
      %v329 = vld [vmem:[%s1 + $0x40] sm:$0xf]
      %v330 = vld [vmem:[%s1 + $0x44] sm:$0xf]
      %v331 = vld [vmem:[%s1 + $0x48] sm:$0xf]
      %v332 = vld [vmem:[%s1 + $0x4c] sm:$0xf]
      %v333 = vld [vmem:[%s1 + $0x50] sm:$0xf]
      %v334 = vld [vmem:[%s1 + $0x54] sm:$0xf]
      %v335 = vld [vmem:[%s1 + $0x58] sm:$0xf]
      %v336 = vld [vmem:[%s1 + $0x5c] sm:$0xf]
      %v337 = vld [vmem:[%s1 + $0x60] sm:$0xf]
      %v338 = vld [vmem:[%s1 + $0x64] sm:$0xf]
      %v339 = vld [vmem:[%s1 + $0x68] sm:$0xf]
      %v340 = vld [vmem:[%s1 + $0x6c] sm:$0xf]
      %v341 = vld [vmem:[%s1 + $0x70] sm:$0xf]
      %v342 = vld [vmem:[%s1 + $0x74] sm:$0xf]
      %v343 = vld [vmem:[%s1 + $0x78] sm:$0xf]
      %v344 = vld [vmem:[%s1 + $0x7c] sm:$0xf]
      %v361 = vunpack.c.l.b16 %v297
      %v362 = vunpack.c.h.b16 %v297
      %v363 = vunpack.c.l.b16 %v298
      %v364 = vunpack.c.h.b16 %v298
      %v365 = vunpack.c.l.b16 %v299
      %v366 = vunpack.c.h.b16 %v299
      %v367 = vunpack.c.l.b16 %v300
      %v368 = vunpack.c.h.b16 %v300
      %v369 = vunpack.c.l.b16 %v301
      %v370 = vunpack.c.h.b16 %v301
      %v371 = vunpack.c.l.b16 %v302
      %v372 = vunpack.c.h.b16 %v302
      %v373 = vunpack.c.l.b16 %v303
      %v374 = vunpack.c.h.b16 %v303
      %v375 = vunpack.c.l.b16 %v304
      %v376 = vunpack.c.h.b16 %v304
      %v377 = vunpack.c.l.b16 %v305
      %v378 = vunpack.c.h.b16 %v305
      %v379 = vunpack.c.l.b16 %v306
      %v380 = vunpack.c.h.b16 %v306
      %v381 = vunpack.c.l.b16 %v307
      %v382 = vunpack.c.h.b16 %v307
      %v383 = vunpack.c.l.b16 %v308
      %v384 = vunpack.c.h.b16 %v308
      %v385 = vunpack.c.l.b16 %v309
      %v386 = vunpack.c.h.b16 %v309
      %v387 = vunpack.c.l.b16 %v310
      %v388 = vunpack.c.h.b16 %v310
      %v389 = vunpack.c.l.b16 %v311
      %v390 = vunpack.c.h.b16 %v311
      %v391 = vunpack.c.l.b16 %v312
      %v392 = vunpack.c.h.b16 %v312
      %v393 = vpack.c.b16 %v363, %v361
      %v394 = vpack.c.b16 %v364, %v362
      %v395 = vpack.c.b16 %v367, %v365
      %v396 = vpack.c.b16 %v368, %v366
      %v397 = vpack.c.b16 %v371, %v369
      %v398 = vpack.c.b16 %v372, %v370
      %v399 = vpack.c.b16 %v375, %v373
      %v400 = vpack.c.b16 %v376, %v374
      %v401 = vpack.c.b16 %v379, %v377
      %v402 = vpack.c.b16 %v380, %v378
      %v403 = vpack.c.b16 %v383, %v381
      %v404 = vpack.c.b16 %v384, %v382
      %v405 = vpack.c.b16 %v387, %v385
      %v406 = vpack.c.b16 %v388, %v386
      %v407 = vpack.c.b16 %v391, %v389
      %v408 = vpack.c.b16 %v392, %v390
      %v457 = vunpack.c.l.b16 %v313
      %v458 = vunpack.c.l.b16 %v314
      %v459 = vunpack.c.l.b16 %v315
      %v460 = vunpack.c.l.b16 %v316
      %v461 = vunpack.c.l.b16 %v317
      %v462 = vunpack.c.l.b16 %v318
      %v463 = vunpack.c.l.b16 %v319
      %v464 = vunpack.c.l.b16 %v320
      %v465 = vunpack.c.l.b16 %v321
      %v466 = vunpack.c.l.b16 %v322
      %v467 = vunpack.c.l.b16 %v323
      %v468 = vunpack.c.l.b16 %v324
      %v469 = vunpack.c.l.b16 %v325
      %v470 = vunpack.c.l.b16 %v326
      %v471 = vunpack.c.l.b16 %v327
      %v472 = vunpack.c.l.b16 %v328
      %v473 = vunpack.c.l.b16 %v329
      %v474 = vunpack.c.l.b16 %v330
      %v475 = vunpack.c.l.b16 %v331
      %v476 = vunpack.c.l.b16 %v332
      %v477 = vunpack.c.l.b16 %v333
      %v478 = vunpack.c.l.b16 %v334
      %v479 = vunpack.c.l.b16 %v335
      %v480 = vunpack.c.l.b16 %v336
      %v481 = vunpack.c.l.b16 %v337
      %v482 = vunpack.c.l.b16 %v338
      %v483 = vunpack.c.l.b16 %v339
      %v484 = vunpack.c.l.b16 %v340
      %v485 = vunpack.c.l.b16 %v341
      %v486 = vunpack.c.l.b16 %v342
      %v487 = vunpack.c.l.b16 %v343
      %v488 = vunpack.c.l.b16 %v344
      %v489 = vpack.c.b16 %v458, %v457
      %v490 = vpack.c.b16 %v460, %v459
      %v491 = vpack.c.b16 %v462, %v461
      %v492 = vpack.c.b16 %v464, %v463
      %v493 = vpack.c.b16 %v466, %v465
      %v494 = vpack.c.b16 %v468, %v467
      %v495 = vpack.c.b16 %v470, %v469
      %v496 = vpack.c.b16 %v472, %v471
      %v497 = vpack.c.b16 %v474, %v473
      %v498 = vpack.c.b16 %v476, %v475
      %v499 = vpack.c.b16 %v478, %v477
      %v500 = vpack.c.b16 %v480, %v479
      %v501 = vpack.c.b16 %v482, %v481
      %v502 = vpack.c.b16 %v484, %v483
      %v503 = vpack.c.b16 %v486, %v485
      %v504 = vpack.c.b16 %v488, %v487
      %521 = vmatprep.subr.bf16.mxu0 0
      %522 = vmatpush1.bf16.msra.mxu0 %v489
      %523 = vmatprep.subr.bf16.mxu0 0
      %524 = vmatpush1.bf16.msra.mxu0 %v490
      %525 = vmatprep.subr.bf16.mxu0 0
      %526 = vmatpush1.bf16.msra.mxu0 %v491
      %527 = vmatprep.subr.bf16.mxu0 0
      %528 = vmatpush1.bf16.msra.mxu0 %v492
      %529 = vmatprep.subr.bf16.mxu0 0
      %530 = vmatpush1.bf16.msra.mxu0 %v493
      %531 = vmatprep.subr.bf16.mxu0 0
      %532 = vmatpush1.bf16.msra.mxu0 %v494
      %533 = vmatprep.subr.bf16.mxu0 0
      %534 = vmatpush1.bf16.msra.mxu0 %v495
      %535 = vmatprep.subr.bf16.mxu0 0
      %536 = vmatpush1.bf16.msra.mxu0 %v496
      %537 = vmatprep.subr.bf16.mxu0 0
      %538 = vmatpush1.bf16.msra.mxu0 %v497
      %539 = vmatprep.subr.bf16.mxu0 0
      %540 = vmatpush1.bf16.msra.mxu0 %v498
      %541 = vmatprep.subr.bf16.mxu0 0
      %542 = vmatpush1.bf16.msra.mxu0 %v499
      %543 = vmatprep.subr.bf16.mxu0 0
      %544 = vmatpush1.bf16.msra.mxu0 %v500
      %545 = vmatprep.subr.bf16.mxu0 0
      %546 = vmatpush1.bf16.msra.mxu0 %v501
      %547 = vmatprep.subr.bf16.mxu0 0
      %548 = vmatpush1.bf16.msra.mxu0 %v502
      %549 = vmatprep.subr.bf16.mxu0 0
      %550 = vmatpush1.bf16.msra.mxu0 %v503
      %551 = vmatprep.subr.bf16.mxu0 0
      %552 = vmatpush1.bf16.msra.mxu0 %v504
      %553 = vmatprep.mubr.bf16.mxu0 %v394
      %554 = vmatmul.mubr.bf16.gmra.mrb[0].mxu0 %v393
      %v555 = vpop.f32.mrb[0].mxu0
      %v556 = vadd.f32 0.0, %v555
      %v557 = vpop.f32.mrb[0].mxu0
      %v558 = vpop.f32.mrb[0].mxu0
      %v559 = vadd.f32 0.0, %v558
      %v560 = vpop.f32.mrb[0].mxu0
      %561 = vmatprep.mubr.bf16.mxu0 %v396
      %562 = vmatmul.mubr.bf16.gmra.mrb[0].mxu0 %v395
      %v563 = vpop.f32.mrb[0].mxu0
      %v564 = vadd.f32 0.0, %v563
      %v565 = vpop.f32.mrb[0].mxu0
      %v566 = vpop.f32.mrb[0].mxu0
      %v567 = vadd.f32 0.0, %v566
      %v568 = vpop.f32.mrb[0].mxu0
      %569 = vmatprep.mubr.bf16.mxu0 %v398
      %570 = vmatmul.mubr.bf16.gmra.mrb[0].mxu0 %v397
      %v571 = vpop.f32.mrb[0].mxu0
      %v572 = vadd.f32 0.0, %v571
      %v573 = vpop.f32.mrb[0].mxu0
      %v574 = vpop.f32.mrb[0].mxu0
      %v575 = vadd.f32 0.0, %v574
      %v576 = vpop.f32.mrb[0].mxu0
      %577 = vmatprep.mubr.bf16.mxu0 %v400
      %578 = vmatmul.mubr.bf16.gmra.mrb[0].mxu0 %v399
      %v579 = vpop.f32.mrb[0].mxu0
      %v580 = vadd.f32 0.0, %v579
      %v581 = vpop.f32.mrb[0].mxu0
      %v582 = vpop.f32.mrb[0].mxu0
      %v583 = vadd.f32 0.0, %v582
      %v584 = vpop.f32.mrb[0].mxu0
      %585 = vmatprep.mubr.bf16.mxu0 %v402
      %586 = vmatmul.mubr.bf16.gmra.mrb[0].mxu0 %v401
      %v587 = vpop.f32.mrb[0].mxu0
      %v588 = vadd.f32 0.0, %v587
      %v589 = vpop.f32.mrb[0].mxu0
      %v590 = vpop.f32.mrb[0].mxu0
      %v591 = vadd.f32 0.0, %v590
      %v592 = vpop.f32.mrb[0].mxu0
      %593 = vmatprep.mubr.bf16.mxu0 %v404
      %594 = vmatmul.mubr.bf16.gmra.mrb[0].mxu0 %v403
      %v595 = vpop.f32.mrb[0].mxu0
      %v596 = vadd.f32 0.0, %v595
      %v597 = vpop.f32.mrb[0].mxu0
      %v598 = vpop.f32.mrb[0].mxu0
      %v599 = vadd.f32 0.0, %v598
      %v600 = vpop.f32.mrb[0].mxu0
      %601 = vmatprep.mubr.bf16.mxu0 %v406
      %602 = vmatmul.mubr.bf16.gmra.mrb[0].mxu0 %v405
      %v603 = vpop.f32.mrb[0].mxu0
      %v604 = vadd.f32 0.0, %v603
      %v605 = vpop.f32.mrb[0].mxu0
      %v606 = vpop.f32.mrb[0].mxu0
      %v607 = vadd.f32 0.0, %v606
      %v608 = vpop.f32.mrb[0].mxu0
      %609 = vmatprep.mubr.bf16.mxu0 %v408
      %610 = vmatmul.mubr.bf16.gmra.mrb[0].mxu0 %v407
      %v611 = vpop.f32.mrb[0].mxu0
      %v612 = vadd.f32 0.0, %v611
      %v613 = vpop.f32.mrb[0].mxu0
      %v614 = vpop.f32.mrb[0].mxu0
      %v615 = vadd.f32 0.0, %v614
      %v616 = vpop.f32.mrb[0].mxu0
      %617 = vdwg.mxu0
      %v618 = vpack.c.bf16 %v559, %v556
      %v619 = vpack.c.bf16 %v567, %v564
      %v620 = vpack.c.bf16 %v575, %v572
      %v621 = vpack.c.bf16 %v583, %v580
      %v622 = vpack.c.bf16 %v591, %v588
      %v623 = vpack.c.bf16 %v599, %v596
      %v624 = vpack.c.bf16 %v607, %v604
      %v625 = vpack.c.bf16 %v615, %v612
      %v634 = vunpack.c.l.b16 %v618
      %v635 = vunpack.c.h.b16 %v618
      %v636 = vunpack.c.l.b16 %v619
      %v637 = vunpack.c.h.b16 %v619
      %v638 = vunpack.c.l.b16 %v620
      %v639 = vunpack.c.h.b16 %v620
      %v640 = vunpack.c.l.b16 %v621
      %v641 = vunpack.c.h.b16 %v621
      %v642 = vunpack.c.l.b16 %v622
      %v643 = vunpack.c.h.b16 %v622
      %v644 = vunpack.c.l.b16 %v623
      %v645 = vunpack.c.h.b16 %v623
      %v646 = vunpack.c.l.b16 %v624
      %v647 = vunpack.c.h.b16 %v624
      %v648 = vunpack.c.l.b16 %v625
      %v649 = vunpack.c.h.b16 %v625
      %v650 = vpack.c.b16 %v634, %v634
      %v651 = vpack.c.b16 %v635, %v635
      %v652 = vpack.c.b16 %v636, %v636
      %v653 = vpack.c.b16 %v637, %v637
      %v654 = vpack.c.b16 %v638, %v638
      %v655 = vpack.c.b16 %v639, %v639
      %v656 = vpack.c.b16 %v640, %v640
      %v657 = vpack.c.b16 %v641, %v641
      %v658 = vpack.c.b16 %v642, %v642
      %v659 = vpack.c.b16 %v643, %v643
      %v660 = vpack.c.b16 %v644, %v644
      %v661 = vpack.c.b16 %v645, %v645
      %v662 = vpack.c.b16 %v646, %v646
      %v663 = vpack.c.b16 %v647, %v647
      %v664 = vpack.c.b16 %v648, %v648
      %v665 = vpack.c.b16 %v649, %v649
      %682 = vst [vmem:[%s277] sm:$0xf] %v650
      %683 = vst [vmem:[%s277 + $0x4] sm:$0xf] %v651
      %684 = vst [vmem:[%s277 + $0x8] sm:$0xf] %v652
      %685 = vst [vmem:[%s277 + $0xc] sm:$0xf] %v653
      %686 = vst [vmem:[%s277 + $0x10] sm:$0xf] %v654
      %687 = vst [vmem:[%s277 + $0x14] sm:$0xf] %v655
      %688 = vst [vmem:[%s277 + $0x18] sm:$0xf] %v656
      %689 = vst [vmem:[%s277 + $0x1c] sm:$0xf] %v657
      %690 = vst [vmem:[%s277 + $0x20] sm:$0xf] %v658
      %691 = vst [vmem:[%s277 + $0x24] sm:$0xf] %v659
      %692 = vst [vmem:[%s277 + $0x28] sm:$0xf] %v660
      %693 = vst [vmem:[%s277 + $0x2c] sm:$0xf] %v661
      %694 = vst [vmem:[%s277 + $0x30] sm:$0xf] %v662
      %695 = vst [vmem:[%s277 + $0x34] sm:$0xf] %v663
      %696 = vst [vmem:[%s277 + $0x38] sm:$0xf] %v664
      %697 = vst [vmem:[%s277 + $0x3c] sm:$0xf] %v665
      %p698 = scmp.eq.s32.totalorder %s23, 0
      // Predicated region
      $region29: #{generative_forward.32} parent=27 // pred_check
        %p699 = pneg %p698
      $region30: #{generative_forward.32} parent=27 // pred_check_branch
        %701 = sbr.rel (%p699) target = $region32
      $region31: #{generative_forward.32} parent=27 // pred_region
        %702 = vst [vmem:[%s286] sm:$0x1] 0.0
        %703 = vst [vmem:[%s293] sm:$0x1] 0.0
      $region32: #{generative_forward.32} parent=27 // pred_fallthru
        _
      %v704 = vld [vmem:[%s286] sm:$0x1]
      %v705 = vadd.f32 %v556, %v559
      %v706 = vadd.f32 %v705, %v564
      %v707 = vadd.f32 %v706, %v567
      %v708 = vadd.f32 %v707, %v572
      %v709 = vadd.f32 %v708, %v575
      %v710 = vadd.f32 %v709, %v580
      %v711 = vadd.f32 %v710, %v583
      %v712 = vadd.f32 %v711, %v588
      %v713 = vadd.f32 %v712, %v591
      %v714 = vadd.f32 %v713, %v596
      %v715 = vadd.f32 %v714, %v599
      %v716 = vadd.f32 %v715, %v604
      %v717 = vadd.f32 %v716, %v607
      %v718 = vadd.f32 %v717, %v612
      %v719 = vadd.f32 %v718, %v615
      %v720 = vrot.slane %v719, 4
      %v721 = vadd.f32 %v719, %v720
      %v722 = vrot.slane %v721, 2
      %v723 = vadd.f32 %v721, %v722
      %v724 = vrot.slane %v723, 1
      %v725 = vadd.f32 %v723, %v724
      %v726 = vadd.f32 %v704, %v725
      %727 = vst [vmem:[%s286] sm:$0x1] %v726
      %v728 = vld [vmem:[%s293] sm:$0x1]
      %v729 = vmul.f32 %v556, %v556
      %v730 = vmul.f32 %v559, %v559
      %v731 = vmul.f32 %v564, %v564
      %v732 = vmul.f32 %v567, %v567
      %v733 = vmul.f32 %v572, %v572
      %v734 = vmul.f32 %v575, %v575
      %v735 = vmul.f32 %v580, %v580
      %v736 = vmul.f32 %v583, %v583
      %v737 = vmul.f32 %v588, %v588
      %v738 = vmul.f32 %v591, %v591
      %v739 = vmul.f32 %v596, %v596
      %v740 = vmul.f32 %v599, %v599
      %v741 = vmul.f32 %v604, %v604
      %v742 = vmul.f32 %v607, %v607
      %v743 = vmul.f32 %v612, %v612
      %v744 = vmul.f32 %v615, %v615
      %v745 = vadd.f32 %v729, %v730
      %v746 = vadd.f32 %v745, %v731
      %v747 = vadd.f32 %v746, %v732
      %v748 = vadd.f32 %v747, %v733
      %v749 = vadd.f32 %v748, %v734
      %v750 = vadd.f32 %v749, %v735
      %v751 = vadd.f32 %v750, %v736
      %v752 = vadd.f32 %v751, %v737
      %v753 = vadd.f32 %v752, %v738
      %v754 = vadd.f32 %v753, %v739
      %v755 = vadd.f32 %v754, %v740
      %v756 = vadd.f32 %v755, %v741
      %v757 = vadd.f32 %v756, %v742
      %v758 = vadd.f32 %v757, %v743
      %v759 = vadd.f32 %v758, %v744
      %v760 = vrot.slane %v759, 4
      %v761 = vadd.f32 %v759, %v760
      %v762 = vrot.slane %v761, 2
      %v763 = vadd.f32 %v761, %v762
      %v764 = vrot.slane %v763, 1
      %v765 = vadd.f32 %v763, %v764
      %v766 = vadd.f32 %v728, %v765
      %767 = vst [vmem:[%s293] sm:$0x1] %v766
      %s768 = smul.u32 %s21, 2
      %s769 = sadd.s32 %s768, %s22
      %s770 = sadd.s32 %s769, %s23
      %s771 = smul.u32 16, %s770
      %p772 = scmp.lt.s32.totalorder %s771, 63
      %s773 = scalar_select %p772, %s771, 63
      %s774 = smul.addr %s773, 4
      %s775 = scalar_lea.vmem %s2, %s774
      %s776 = smul.u32 %s21, 2
      %s777 = sadd.s32 %s776, %s22
      %p778 = scmp.lt.s32.totalorder %s777, 3
      %s779 = scalar_select %p778, %s777, 3
      %s780 = scalar_lea.vmem %s3, %s779
      %s781 = smul.u32 %s21, 2
      %s782 = sadd.s32 %s781, %s22
      %p783 = scmp.lt.s32.totalorder %s782, 3
      %s784 = scalar_select %p783, %s782, 3
      %s785 = scalar_lea.vmem %s4, %s784
      // Predicated region
      $region33: #{generative_forward.32} parent=27 // pred_check
        %p786 = pneg %p112
      $region34: #{generative_forward.32} parent=27 // pred_check_branch
        %788 = sbr.rel (%p786) target = $region36
      $region35: #{generative_forward.32} parent=27 // pred_region
        %s789 = smul.u32 %s21, 2
        %s790 = sadd.s32 %s789, %s22
        %s791 = sadd.s32 %s790, %s23
        %s792 = smul.u32 16, %s791
      $region36: #{generative_forward.32} parent=27 // pred_fallthru
        _
      // Predicated region
      $region37: #{generative_forward.32} parent=27 // pred_check
        %p793 = pneg %p142
      $region38: #{generative_forward.32} parent=27 // pred_check_branch
        %795 = sbr.rel (%p793) target = $region40
      $region39: #{generative_forward.32} parent=27 // pred_region
        %s796 = smul.u32 %s21, 2
        %s797 = sadd.s32 %s796, %s22
      $region40: #{generative_forward.32} parent=27 // pred_fallthru
        _
      // Predicated region
      $region41: #{generative_forward.32} parent=27 // pred_check
        %p798 = pneg %p172
      $region42: #{generative_forward.32} parent=27 // pred_check_branch
        %800 = sbr.rel (%p798) target = $region44
      $region43: #{generative_forward.32} parent=27 // pred_region
        %s801 = smul.u32 %s21, 2
        %s802 = sadd.s32 %s801, %s22
      $region44: #{generative_forward.32} parent=27 // pred_fallthru
        _
    $region28: #{generative_forward.32} parent=5 // pred_fallthru
      _
    %p803 = scmp.le.s32.totalorder 2, %s11
    // Predicated region
    $region45: #{generative_forward.32} parent=5 // pred_check
      %p804 = pneg %p803
    $region46: #{generative_forward.32} parent=5 // pred_check_branch
      %806 = sbr.rel (%p804) target = $region48
    $region47: #{generative_forward.32} parent=5 // pred_region
      %s807 = ssub.s32 %s11, 2
      // Predicated region
      $region49: #{generative_forward.32} parent=47 // pred_check
        %p808 = pneg %p118
      $region50: #{generative_forward.32} parent=47 // pred_check_branch
        %810 = sbr.rel (%p808) target = $region52
      $region51: #{generative_forward.32} parent=47 // pred_region
        %s811 = smul.u32 %s24, 2
        %s812 = sadd.s32 %s811, %s25
        %s813 = sadd.s32 %s812, %s26
        %s814 = smul.u32 16, %s813
        %p815 = scmp.lt.s32.totalorder %s814, 63
        %s816 = scalar_select %p815, %s814, 63
        %s817 = smul.addr %s816, 4
        %s818 = scalar_lea.vmem %s2, %s817
      $region52: #{generative_forward.32} parent=47 // pred_fallthru
        _
      // Predicated region
      $region53: #{generative_forward.32} parent=47 // pred_check
        %p819 = pneg %p148
      $region54: #{generative_forward.32} parent=47 // pred_check_branch
        %821 = sbr.rel (%p819) target = $region56
      $region55: #{generative_forward.32} parent=47 // pred_region
        %s822 = smul.u32 %s24, 2
        %s823 = sadd.s32 %s822, %s25
        %p824 = scmp.lt.s32.totalorder %s823, 3
        %s825 = scalar_select %p824, %s823, 3
        %s826 = scalar_lea.vmem %s3, %s825
      $region56: #{generative_forward.32} parent=47 // pred_fallthru
        _
      // Predicated region
      $region57: #{generative_forward.32} parent=47 // pred_check
        %p827 = pneg %p178
      $region58: #{generative_forward.32} parent=47 // pred_check_branch
        %829 = sbr.rel (%p827) target = $region60
      $region59: #{generative_forward.32} parent=47 // pred_region
        %s830 = smul.u32 %s24, 2
        %s831 = sadd.s32 %s830, %s25
        %p832 = scmp.lt.s32.totalorder %s831, 3
        %s833 = scalar_select %p832, %s831, 3
        %s834 = scalar_lea.vmem %s4, %s833
      $region60: #{generative_forward.32} parent=47 // pred_fallthru
        _
    $region48: #{generative_forward.32} parent=5 // pred_fallthru
      _
  $region6: #{generative_forward.32} parent=0 // loop_footer
    %s15 = sadd.s32 1, %s11
  $region7: #{generative_forward.32} parent=0 // loop_footer_branch
    %10 = sbr.rel target = $region3
  $region8: #{generative_forward.32} parent=0 // loop_exit
    _

// kernel: generative_forward.35
$region0: #{generative_forward.35}
  #allocation0 [shape = 'u32[]', space=smem, size = 0x4, offset = 0x4, fixed_abs, tag = 'smem constant byte address 0x4 - core index']
  #allocation1 [shape = 'u32[144,128]{1,0:T(1,128)}', space=vmem, size = 0x12000, scoped, tag = 'internal scratch']
  %s0 = inlined_call_operand.vmem [shape: bf16[128,128], index: 0, kind: input, shape index: {}]
  %s1 = inlined_call_operand.vmem [shape: f32[2,1,128], index: 1, kind: input, shape index: {}]
  %s2 = inlined_call_operand.vmem [shape: f32[2,1,128], index: 2, kind: input, shape index: {}]
  %s3 = inlined_call_operand.vmem [shape: bf16[128,128], index: 3, kind: output, shape index: {}]
  %s4 = sld [smem:[#allocation0]]
  $region45: #{generative_forward.35} parent=0
    _
  %s6 = ssub.s32 1, %s4
  %s7 = scalar_select 0, %s6, %s4
  loop: start=0, step=1, limit=6
  $region2: #{generative_forward.35} parent=0 // loop_pre_header
    _
  $region3: #{generative_forward.35} parent=0 // loop_header
    %s9 = sphi 0, %s13
    %p10 = scmp.ge.s32.totalorder %s9, 6
    %s16 = sphi 0, %s28
    %s17 = sphi 0, %s24
    %s18 = sphi 0, %s16
    %s19 = sphi 0, %s17
    %s20 = sphi 0, %s18
    %s21 = sphi 0, %s19
    %s35 = sphi 0, %s37
    %s38 = sphi 0, %s35
    %s39 = sphi 0, %s38
    %s55 = sphi 0, %s39
    %s61 = sphi 0, %s63
    %s64 = sphi 0, %s61
    %s65 = sphi 0, %s64
    %s81 = sphi 0, %s65
    %s87 = sphi 0, %s89
    %s90 = sphi 0, %s87
    %s91 = sphi 0, %s90
    %s107 = sphi 0, %s91
    %s117 = sphi 0, %s119
    %s120 = sphi 0, %s117
    %s121 = sphi 0, %s120
    %s137 = sphi 0, %s121
  $region4: #{generative_forward.35} parent=0 // loop_header_branch
    %12 = sbr.rel (%p10) target = $region8
  $region5: #{generative_forward.35} parent=0 // loop_body
    %s14 = ssub.s32 %s9, 1
    %s15 = ssub.s32 %s9, 2
    %s22 = sadd.s32 1, %s17
    %p23 = scmp.ge.s32.totalorder %s22, 2
    %s24 = scalar_select %p23, 0, %s22
    %s25 = sadd.s32 1, %s16
    %s26 = scalar_select %p23, %s25, %s16
    %p27 = scmp.ge.s32.totalorder %s26, 2
    %s28 = scalar_select %p27, 0, %s26
    %s29 = smul.u32 %s16, 2
    %s30 = sadd.s32 %s29, %s17
    %s31 = smul.u32 %s28, 2
    %s32 = sadd.s32 %s31, %s24
    %s33 = ssub.s32 %s30, %s32
    %p34 = scmp.eq.s32.totalorder %s33, 0
    %s36 = sadd.s32 %s35, 1
    %s37 = scalar_select %p34, %s35, %s36
    %p40 = pneg %p34
    %p41 = scmp.eq.s32.totalorder %s9, 3
    %p42 = por %p40, %p41
    %p43 = scmp.ne.s32.totalorder %s35, %s38
    %p44 = scmp.eq.s32.totalorder %s9, 0
    %p45 = por %p43, %p44
    %p46 = scmp.ne.s32.totalorder %s35, %s38
    %p47 = scmp.eq.s32.totalorder %s14, 3
    %p48 = por %p46, %p47
    %p49 = scmp.ne.s32.totalorder %s38, %s39
    %p50 = scmp.eq.s32.totalorder %s14, 0
    %p51 = por %p49, %p50
    %p52 = scmp.ne.s32.totalorder %s38, %s39
    %p53 = scmp.eq.s32.totalorder %s15, 3
    %p54 = por %p52, %p53
    %p56 = scmp.ne.s32.totalorder %s39, %s55
    %p57 = scmp.eq.s32.totalorder %s15, 0
    %p58 = por %p56, %p57
    %s59 = ssub.s32 %s16, %s28
    %p60 = scmp.eq.s32.totalorder %s59, 0
    %s62 = sadd.s32 %s61, 1
    %s63 = scalar_select %p60, %s61, %s62
    %p66 = pneg %p60
    %p67 = scmp.eq.s32.totalorder %s9, 3
    %p68 = por %p66, %p67
    %p69 = scmp.ne.s32.totalorder %s61, %s64
    %p70 = scmp.eq.s32.totalorder %s9, 0
    %p71 = por %p69, %p70
    %p72 = scmp.ne.s32.totalorder %s61, %s64
    %p73 = scmp.eq.s32.totalorder %s14, 3
    %p74 = por %p72, %p73
    %p75 = scmp.ne.s32.totalorder %s64, %s65
    %p76 = scmp.eq.s32.totalorder %s14, 0
    %p77 = por %p75, %p76
    %p78 = scmp.ne.s32.totalorder %s64, %s65
    %p79 = scmp.eq.s32.totalorder %s15, 3
    %p80 = por %p78, %p79
    %p82 = scmp.ne.s32.totalorder %s65, %s81
    %p83 = scmp.eq.s32.totalorder %s15, 0
    %p84 = por %p82, %p83
    %s85 = ssub.s32 %s16, %s28
    %p86 = scmp.eq.s32.totalorder %s85, 0
    %s88 = sadd.s32 %s87, 1
    %s89 = scalar_select %p86, %s87, %s88
    %p92 = pneg %p86
    %p93 = scmp.eq.s32.totalorder %s9, 3
    %p94 = por %p92, %p93
    %p95 = scmp.ne.s32.totalorder %s87, %s90
    %p96 = scmp.eq.s32.totalorder %s9, 0
    %p97 = por %p95, %p96
    %p98 = scmp.ne.s32.totalorder %s87, %s90
    %p99 = scmp.eq.s32.totalorder %s14, 3
    %p100 = por %p98, %p99
    %p101 = scmp.ne.s32.totalorder %s90, %s91
    %p102 = scmp.eq.s32.totalorder %s14, 0
    %p103 = por %p101, %p102
    %p104 = scmp.ne.s32.totalorder %s90, %s91
    %p105 = scmp.eq.s32.totalorder %s15, 3
    %p106 = por %p104, %p105
    %p108 = scmp.ne.s32.totalorder %s91, %s107
    %p109 = scmp.eq.s32.totalorder %s15, 0
    %p110 = por %p108, %p109
    %s111 = smul.u32 %s16, 2
    %s112 = sadd.s32 %s111, %s17
    %s113 = smul.u32 %s28, 2
    %s114 = sadd.s32 %s113, %s24
    %s115 = ssub.s32 %s112, %s114
    %p116 = scmp.eq.s32.totalorder %s115, 0
    %s118 = sadd.s32 %s117, 1
    %s119 = scalar_select %p116, %s117, %s118
    %p122 = pneg %p116
    %p123 = scmp.eq.s32.totalorder %s9, 3
    %p124 = por %p122, %p123
    %p125 = scmp.ne.s32.totalorder %s117, %s120
    %p126 = scmp.eq.s32.totalorder %s9, 0
    %p127 = por %p125, %p126
    %p128 = scmp.ne.s32.totalorder %s117, %s120
    %p129 = scmp.eq.s32.totalorder %s14, 3
    %p130 = por %p128, %p129
    %p131 = scmp.ne.s32.totalorder %s120, %s121
    %p132 = scmp.eq.s32.totalorder %s14, 0
    %p133 = por %p131, %p132
    %p134 = scmp.ne.s32.totalorder %s120, %s121
    %p135 = scmp.eq.s32.totalorder %s15, 3
    %p136 = por %p134, %p135
    %p138 = scmp.ne.s32.totalorder %s121, %s137
    %p139 = scmp.eq.s32.totalorder %s15, 0
    %p140 = por %p138, %p139
    %p141 = scmp.le.s32.totalorder 1, %s9
    %p142 = scmp.lt.s32.totalorder %s9, 5
    %p143 = pnand %p141, %p142
    %p144 = pneg %p143
    // Predicated region
    $region9: #{generative_forward.35} parent=5 // pred_check
      _
    $region10: #{generative_forward.35} parent=5 // pred_check_branch
      %146 = sbr.rel (%p143) target = $region12
    $region11: #{generative_forward.35} parent=5 // pred_region
      %s147 = ssub.s32 %s9, 1
    $region12: #{generative_forward.35} parent=5 // pred_fallthru
      _
    %p148 = scmp.lt.s32.totalorder %s9, 4
    // Predicated region
    $region13: #{generative_forward.35} parent=5 // pred_check
      %p149 = pneg %p148
    $region14: #{generative_forward.35} parent=5 // pred_check_branch
      %151 = sbr.rel (%p149) target = $region16
    $region15: #{generative_forward.35} parent=5 // pred_region
      // Predicated region
      $region17: #{generative_forward.35} parent=15 // pred_check
        %p152 = pneg %p45
      $region18: #{generative_forward.35} parent=15 // pred_check_branch
        %154 = sbr.rel (%p152) target = $region20
      $region19: #{generative_forward.35} parent=15 // pred_region
        %s155 = smul.u32 %s16, 2
        %s156 = sadd.s32 %s155, %s17
        %s157 = smul.u32 4, %s156
        %p158 = scmp.lt.s32.totalorder %s157, 15
        %s159 = scalar_select %p158, %s157, 15
        %s160 = smul.addr %s159, 4
        %s161 = scalar_lea.vmem %s0, %s160
        %s162 = smul.u32 %s16, 2
        %s163 = sadd.s32 %s162, %s17
        %s164 = smul.u32 4, %s163
      $region20: #{generative_forward.35} parent=15 // pred_fallthru
        _
      // Predicated region
      $region21: #{generative_forward.35} parent=15 // pred_check
        %p165 = pneg %p71
      $region22: #{generative_forward.35} parent=15 // pred_check_branch
        %167 = sbr.rel (%p165) target = $region24
      $region23: #{generative_forward.35} parent=15 // pred_region
        %p168 = scmp.lt.s32.totalorder %s16, 1
        %s169 = scalar_select %p168, %s16, 1
        %s170 = scalar_lea.vmem %s1, %s169
      $region24: #{generative_forward.35} parent=15 // pred_fallthru
        _
      // Predicated region
      $region25: #{generative_forward.35} parent=15 // pred_check
        %p171 = pneg %p97
      $region26: #{generative_forward.35} parent=15 // pred_check_branch
        %173 = sbr.rel (%p171) target = $region28
      $region27: #{generative_forward.35} parent=15 // pred_region
        %p174 = scmp.lt.s32.totalorder %s16, 1
        %s175 = scalar_select %p174, %s16, 1
        %s176 = scalar_lea.vmem %s2, %s175
      $region28: #{generative_forward.35} parent=15 // pred_fallthru
        _
    $region16: #{generative_forward.35} parent=5 // pred_fallthru
      _
    %p177 = scmp.le.s32.totalorder 1, %s9
    %p178 = scmp.lt.s32.totalorder %s9, 5
    %p179 = pnand %p177, %p178
    %p180 = pneg %p179
    // Predicated region
    $region29: #{generative_forward.35} parent=5 // pred_check
      _
    $region30: #{generative_forward.35} parent=5 // pred_check_branch
      %182 = sbr.rel (%p179) target = $region32
    $region31: #{generative_forward.35} parent=5 // pred_region
      %s183 = ssub.s32 %s9, 1
      %s184 = smul.u32 %s18, 2
      %s185 = sadd.s32 %s184, %s19
      %s186 = smul.u32 4, %s185
      %p187 = scmp.lt.s32.totalorder %s186, 15
      %s188 = scalar_select %p187, %s186, 15
      %s189 = smul.addr %s188, 4
      %s190 = scalar_lea.vmem %s0, %s189
      %p191 = pneg %p51
      %p192 = pneg %p48
      %p193 = scmp.lt.s32.totalorder %s18, 1
      %s194 = scalar_select %p193, %s18, 1
      %s195 = scalar_lea.vmem %s1, %s194
      %p196 = pneg %p77
      %p197 = pneg %p74
      %p198 = scmp.lt.s32.totalorder %s18, 1
      %s199 = scalar_select %p198, %s18, 1
      %s200 = scalar_lea.vmem %s2, %s199
      %p201 = pneg %p103
      %p202 = pneg %p100
      %p203 = pneg %p133
      %p204 = pneg %p130
      %s205 = smul.u32 %s18, 2
      %s206 = sadd.s32 %s205, %s19
      %s207 = smul.u32 4, %s206
      %p208 = scmp.lt.s32.totalorder %s207, 15
      %s209 = scalar_select %p208, %s207, 15
      %s210 = smul.addr %s209, 4
      %s211 = scalar_lea.vmem %s3, %s210
      %s212 = smul.u32 %s18, 2
      %s213 = sadd.s32 %s212, %s19
      %s214 = smul.u32 4, %s213
      %p215 = scmp.lt.s32.totalorder %s214, 15
      %s216 = scalar_select %p215, %s214, 15
      %s217 = smul.addr %s216, 4
      %s218 = scalar_lea.vmem %s0, %s217
      %s219 = smul.u32 %s18, 2
      %s220 = sadd.s32 %s219, %s19
      %s221 = smul.u32 4, %s220
      %p222 = scmp.lt.s32.totalorder %s18, 1
      %s223 = scalar_select %p222, %s18, 1
      %s224 = scalar_lea.vmem %s1, %s223
      %p225 = scmp.lt.s32.totalorder %s18, 1
      %s226 = scalar_select %p225, %s18, 1
      %s227 = scalar_lea.vmem %s2, %s226
      %s228 = smul.u32 %s18, 2
      %s229 = sadd.s32 %s228, %s19
      %s230 = smul.u32 4, %s229
      %p231 = scmp.lt.s32.totalorder %s230, 15
      %s232 = scalar_select %p231, %s230, 15
      %s233 = smul.addr %s232, 4
      %s234 = scalar_lea.vmem %s3, %s233
      %s235 = smul.u32 %s18, 2
      %s236 = sadd.s32 %s235, %s19
      %s237 = smul.u32 4, %s236
      %v238 = vld [vmem:[%s224] sm:$0x1]
      %v239 = vmul.f32 %v238, 0.015625
      %v240 = vld [vmem:[%s227] sm:$0x1]
      %v241 = vmul.f32 %v240, 0.015625
      %v242 = vmul.f32 %v239, %v239
      %v243 = vsub.f32 %v241, %v242
      %v244 = vmax.f32 %v243, 0.0
      %v245 = vadd.f32 %v244, 1e-05
      %v246 = vrsqrt.pop %v245
      %v247 = vld [vmem:[%s218] sm:$0xf]
      %v248 = vld [vmem:[%s218 + $0x4] sm:$0xf]
      %v249 = vld [vmem:[%s218 + $0x8] sm:$0xf]
      %v250 = vld [vmem:[%s218 + $0xc] sm:$0xf]
      %v251 = vunpack.c.l.bf16 %v247
      %v252 = vunpack.c.l.bf16 %v248
      %v253 = vunpack.c.l.bf16 %v249
      %v254 = vunpack.c.l.bf16 %v250
      %v256 = vlaneseq
      %v257 = vshrl.u32 %v256, 7
      %v258 = vsub.s32 0, %v257
      %v259 = vrot.slane %v239, %v258
      %v261 = vsub.f32 %v251, %v259
      %v262 = vsub.f32 %v252, %v259
      %v263 = vsub.f32 %v253, %v259
      %v264 = vsub.f32 %v254, %v259
      %v266 = vlaneseq
      %v267 = vshrl.u32 %v266, 7
      %v268 = vsub.s32 0, %v267
      %v269 = vrot.slane %v246, %v268
      %v271 = vmul.f32 %v261, %v269
      %v272 = vmul.f32 %v262, %v269
      %v273 = vmul.f32 %v263, %v269
      %v274 = vmul.f32 %v264, %v269
      %vm275 = vcmp.ge.f32.partialorder %v271, 0.0
      %vm276 = vcmp.ge.f32.partialorder %v272, 0.0
      %vm277 = vcmp.ge.f32.partialorder %v273, 0.0
      %vm278 = vcmp.ge.f32.partialorder %v274, 0.0
      %v279 = vmul.f32 %v271, 0.01
      %v280 = vmul.f32 %v272, 0.01
      %v281 = vmul.f32 %v273, 0.01
      %v282 = vmul.f32 %v274, 0.01
      %v283 = vsel %vm275, %v271, %v279
      %v284 = vsel %vm276, %v272, %v280
      %v285 = vsel %vm277, %v273, %v281
      %v286 = vsel %vm278, %v274, %v282
      %v287 = vpack.c.bf16 %v284, %v283
      %v288 = vpack.c.bf16 %v286, %v285
      %v291 = vunpack.c.l.b16 %v287
      %v292 = vunpack.c.h.b16 %v287
      %v293 = vunpack.c.l.b16 %v288
      %v294 = vunpack.c.h.b16 %v288
      %v295 = vpack.c.b16 %v291, %v291
      %v296 = vpack.c.b16 %v292, %v292
      %v297 = vpack.c.b16 %v293, %v293
      %v298 = vpack.c.b16 %v294, %v294
      %303 = vst [vmem:[%s234] sm:$0xf] %v295
      %304 = vst [vmem:[%s234 + $0x4] sm:$0xf] %v296
      %305 = vst [vmem:[%s234 + $0x8] sm:$0xf] %v297
      %306 = vst [vmem:[%s234 + $0xc] sm:$0xf] %v298
      %s307 = smul.u32 %s18, 2
      %s308 = sadd.s32 %s307, %s19
      %s309 = smul.u32 4, %s308
      %p310 = scmp.lt.s32.totalorder %s309, 15
      %s311 = scalar_select %p310, %s309, 15
      %s312 = smul.addr %s311, 4
      %s313 = scalar_lea.vmem %s3, %s312
      // Predicated region
      $region33: #{generative_forward.35} parent=31 // pred_check
        %p314 = pneg %p130
      $region34: #{generative_forward.35} parent=31 // pred_check_branch
        %316 = sbr.rel (%p314) target = $region36
      $region35: #{generative_forward.35} parent=31 // pred_region
        %s317 = smul.u32 %s18, 2
        %s318 = sadd.s32 %s317, %s19
        %s319 = smul.u32 4, %s318
      $region36: #{generative_forward.35} parent=31 // pred_fallthru
        _
    $region32: #{generative_forward.35} parent=5 // pred_fallthru
      _
    %p320 = scmp.le.s32.totalorder 2, %s9
    // Predicated region
    $region37: #{generative_forward.35} parent=5 // pred_check
      %p321 = pneg %p320
    $region38: #{generative_forward.35} parent=5 // pred_check_branch
      %323 = sbr.rel (%p321) target = $region40
    $region39: #{generative_forward.35} parent=5 // pred_region
      %s324 = ssub.s32 %s9, 2
      // Predicated region
      $region41: #{generative_forward.35} parent=39 // pred_check
        %p325 = pneg %p136
      $region42: #{generative_forward.35} parent=39 // pred_check_branch
        %327 = sbr.rel (%p325) target = $region44
      $region43: #{generative_forward.35} parent=39 // pred_region
        %s328 = smul.u32 %s20, 2
        %s329 = sadd.s32 %s328, %s21
        %s330 = smul.u32 4, %s329
        %p331 = scmp.lt.s32.totalorder %s330, 15
        %s332 = scalar_select %p331, %s330, 15
        %s333 = smul.addr %s332, 4
        %s334 = scalar_lea.vmem %s3, %s333
      $region44: #{generative_forward.35} parent=39 // pred_fallthru
        _
    $region40: #{generative_forward.35} parent=5 // pred_fallthru
      _
  $region6: #{generative_forward.35} parent=0 // loop_footer
    %s13 = sadd.s32 1, %s9
  $region7: #{generative_forward.35} parent=0 // loop_footer_branch
    %8 = sbr.rel target = $region3
  $region8: #{generative_forward.35} parent=0 // loop_exit
    _

// kernel: generative_forward.34
$region0: #{generative_forward.34}
  #allocation0 [shape = 'u32[]', space=smem, size = 0x4, offset = 0x4, fixed_abs, tag = 'smem constant byte address 0x4 - core index']
  #allocation1 [shape = 'u32[144,128]{1,0:T(1,128)}', space=vmem, size = 0x12000, scoped, tag = 'internal scratch']
  %s0 = inlined_call_operand.vmem [shape: bf16[128,128], index: 0, kind: input, shape index: {}]
  %s1 = inlined_call_operand.vmem [shape: bf16[128,128], index: 1, kind: input, shape index: {}]
  %s2 = inlined_call_operand.vmem [shape: bf16[128,128], index: 2, kind: output, shape index: {0}]
  %s3 = inlined_call_operand.vmem [shape: f32[4,1,128], index: 3, kind: output, shape index: {1}]
  %s4 = inlined_call_operand.vmem [shape: f32[4,1,128], index: 4, kind: output, shape index: {2}]
  %5 = xla_tuple %s2, %s3, %s4
  %s6 = sld [smem:[#allocation0]]
  $region61: #{generative_forward.34} parent=0
    _
  %s8 = ssub.s32 1, %s6
  %s9 = scalar_select 0, %s8, %s6
  loop: start=0, step=1, limit=6
  $region2: #{generative_forward.34} parent=0 // loop_pre_header
    _
  $region3: #{generative_forward.34} parent=0 // loop_header
    %s11 = sphi 0, %s15
    %p12 = scmp.ge.s32.totalorder %s11, 6
    %s18 = sphi 0, %s37
    %s19 = sphi 0, %s33
    %s20 = sphi 0, %s29
    %s21 = sphi 0, %s18
    %s22 = sphi 0, %s19
    %s23 = sphi 0, %s20
    %s24 = sphi 0, %s21
    %s25 = sphi 0, %s22
    %s26 = sphi 0, %s23
    %s46 = sphi 0, %s48
    %s49 = sphi 0, %s46
    %s50 = sphi 0, %s49
    %s66 = sphi 0, %s50
    %s70 = sphi 0, %s70
    %s72 = sphi 0, %s70
    %s73 = sphi 0, %s72
    %s87 = sphi 0, %s73
    %s99 = sphi 0, %s101
    %s102 = sphi 0, %s99
    %s103 = sphi 0, %s102
    %s119 = sphi 0, %s103
    %s129 = sphi 0, %s131
    %s132 = sphi 0, %s129
    %s133 = sphi 0, %s132
    %s149 = sphi 0, %s133
    %s159 = sphi 0, %s161
    %s162 = sphi 0, %s159
    %s163 = sphi 0, %s162
    %s179 = sphi 0, %s163
  $region4: #{generative_forward.34} parent=0 // loop_header_branch
    %14 = sbr.rel (%p12) target = $region8
  $region5: #{generative_forward.34} parent=0 // loop_body
    %s16 = ssub.s32 %s11, 1
    %s17 = ssub.s32 %s11, 2
    %s27 = sadd.s32 1, %s20
    %p28 = scmp.ge.s32.totalorder %s27, 1
    %s29 = scalar_select %p28, 0, %s27
    %s30 = sadd.s32 1, %s19
    %s31 = scalar_select %p28, %s30, %s19
    %p32 = scmp.ge.s32.totalorder %s31, 2
    %s33 = scalar_select %p32, 0, %s31
    %s34 = sadd.s32 1, %s18
    %s35 = scalar_select %p32, %s34, %s18
    %p36 = scmp.ge.s32.totalorder %s35, 2
    %s37 = scalar_select %p36, 0, %s35
    %s38 = smul.u32 %s18, 2
    %s39 = sadd.s32 %s38, %s19
    %s40 = sadd.s32 %s39, %s20
    %s41 = smul.u32 %s37, 2
    %s42 = sadd.s32 %s41, %s33
    %s43 = sadd.s32 %s42, %s29
    %s44 = ssub.s32 %s40, %s43
    %p45 = scmp.eq.s32.totalorder %s44, 0
    %s47 = sadd.s32 %s46, 1
    %s48 = scalar_select %p45, %s46, %s47
    %p51 = pneg %p45
    %p52 = scmp.eq.s32.totalorder %s11, 3
    %p53 = por %p51, %p52
    %p54 = scmp.ne.s32.totalorder %s46, %s49
    %p55 = scmp.eq.s32.totalorder %s11, 0
    %p56 = por %p54, %p55
    %p57 = scmp.ne.s32.totalorder %s46, %s49
    %p58 = scmp.eq.s32.totalorder %s16, 3
    %p59 = por %p57, %p58
    %p60 = scmp.ne.s32.totalorder %s49, %s50
    %p61 = scmp.eq.s32.totalorder %s16, 0
    %p62 = por %p60, %p61
    %p63 = scmp.ne.s32.totalorder %s49, %s50
    %p64 = scmp.eq.s32.totalorder %s17, 3
    %p65 = por %p63, %p64
    %p67 = scmp.ne.s32.totalorder %s50, %s66
    %p68 = scmp.eq.s32.totalorder %s17, 0
    %p69 = por %p67, %p68
    %s71 = sadd.s32 %s70, 1
    %p74 = scmp.eq.s32.totalorder %s11, 3
    %p75 = scmp.ne.s32.totalorder %s70, %s72
    %p76 = scmp.eq.s32.totalorder %s11, 0
    %p77 = por %p75, %p76
    %p78 = scmp.ne.s32.totalorder %s70, %s72
    %p79 = scmp.eq.s32.totalorder %s16, 3
    %p80 = por %p78, %p79
    %p81 = scmp.ne.s32.totalorder %s72, %s73
    %p82 = scmp.eq.s32.totalorder %s16, 0
    %p83 = por %p81, %p82
    %p84 = scmp.ne.s32.totalorder %s72, %s73
    %p85 = scmp.eq.s32.totalorder %s17, 3
    %p86 = por %p84, %p85
    %p88 = scmp.ne.s32.totalorder %s73, %s87
    %p89 = scmp.eq.s32.totalorder %s17, 0
    %p90 = por %p88, %p89
    %s91 = smul.u32 %s18, 2
    %s92 = sadd.s32 %s91, %s19
    %s93 = sadd.s32 %s92, %s20
    %s94 = smul.u32 %s37, 2
    %s95 = sadd.s32 %s94, %s33
    %s96 = sadd.s32 %s95, %s29
    %s97 = ssub.s32 %s93, %s96
    %p98 = scmp.eq.s32.totalorder %s97, 0
    %s100 = sadd.s32 %s99, 1
    %s101 = scalar_select %p98, %s99, %s100
    %p104 = pneg %p98
    %p105 = scmp.eq.s32.totalorder %s11, 3
    %p106 = por %p104, %p105
    %p107 = scmp.ne.s32.totalorder %s99, %s102
    %p108 = scmp.eq.s32.totalorder %s11, 0
    %p109 = por %p107, %p108
    %p110 = scmp.ne.s32.totalorder %s99, %s102
    %p111 = scmp.eq.s32.totalorder %s16, 3
    %p112 = por %p110, %p111
    %p113 = scmp.ne.s32.totalorder %s102, %s103
    %p114 = scmp.eq.s32.totalorder %s16, 0
    %p115 = por %p113, %p114
    %p116 = scmp.ne.s32.totalorder %s102, %s103
    %p117 = scmp.eq.s32.totalorder %s17, 3
    %p118 = por %p116, %p117
    %p120 = scmp.ne.s32.totalorder %s103, %s119
    %p121 = scmp.eq.s32.totalorder %s17, 0
    %p122 = por %p120, %p121
    %s123 = smul.u32 %s18, 2
    %s124 = sadd.s32 %s123, %s19
    %s125 = smul.u32 %s37, 2
    %s126 = sadd.s32 %s125, %s33
    %s127 = ssub.s32 %s124, %s126
    %p128 = scmp.eq.s32.totalorder %s127, 0
    %s130 = sadd.s32 %s129, 1
    %s131 = scalar_select %p128, %s129, %s130
    %p134 = pneg %p128
    %p135 = scmp.eq.s32.totalorder %s11, 3
    %p136 = por %p134, %p135
    %p137 = scmp.ne.s32.totalorder %s129, %s132
    %p138 = scmp.eq.s32.totalorder %s11, 0
    %p139 = por %p137, %p138
    %p140 = scmp.ne.s32.totalorder %s129, %s132
    %p141 = scmp.eq.s32.totalorder %s16, 3
    %p142 = por %p140, %p141
    %p143 = scmp.ne.s32.totalorder %s132, %s133
    %p144 = scmp.eq.s32.totalorder %s16, 0
    %p145 = por %p143, %p144
    %p146 = scmp.ne.s32.totalorder %s132, %s133
    %p147 = scmp.eq.s32.totalorder %s17, 3
    %p148 = por %p146, %p147
    %p150 = scmp.ne.s32.totalorder %s133, %s149
    %p151 = scmp.eq.s32.totalorder %s17, 0
    %p152 = por %p150, %p151
    %s153 = smul.u32 %s18, 2
    %s154 = sadd.s32 %s153, %s19
    %s155 = smul.u32 %s37, 2
    %s156 = sadd.s32 %s155, %s33
    %s157 = ssub.s32 %s154, %s156
    %p158 = scmp.eq.s32.totalorder %s157, 0
    %s160 = sadd.s32 %s159, 1
    %s161 = scalar_select %p158, %s159, %s160
    %p164 = pneg %p158
    %p165 = scmp.eq.s32.totalorder %s11, 3
    %p166 = por %p164, %p165
    %p167 = scmp.ne.s32.totalorder %s159, %s162
    %p168 = scmp.eq.s32.totalorder %s11, 0
    %p169 = por %p167, %p168
    %p170 = scmp.ne.s32.totalorder %s159, %s162
    %p171 = scmp.eq.s32.totalorder %s16, 3
    %p172 = por %p170, %p171
    %p173 = scmp.ne.s32.totalorder %s162, %s163
    %p174 = scmp.eq.s32.totalorder %s16, 0
    %p175 = por %p173, %p174
    %p176 = scmp.ne.s32.totalorder %s162, %s163
    %p177 = scmp.eq.s32.totalorder %s17, 3
    %p178 = por %p176, %p177
    %p180 = scmp.ne.s32.totalorder %s163, %s179
    %p181 = scmp.eq.s32.totalorder %s17, 0
    %p182 = por %p180, %p181
    %p183 = scmp.le.s32.totalorder 1, %s11
    %p184 = scmp.lt.s32.totalorder %s11, 5
    %p185 = pnand %p183, %p184
    %p186 = pneg %p185
    // Predicated region
    $region9: #{generative_forward.34} parent=5 // pred_check
      _
    $region10: #{generative_forward.34} parent=5 // pred_check_branch
      %188 = sbr.rel (%p185) target = $region12
    $region11: #{generative_forward.34} parent=5 // pred_region
      %s189 = ssub.s32 %s11, 1
      // Predicated region
      $region13: #{generative_forward.34} parent=11 // pred_check
        %p190 = pneg %p83
      $region14: #{generative_forward.34} parent=11 // pred_check_branch
        %192 = sbr.rel (%p190) target = $region16
      $region15: #{generative_forward.34} parent=11 // pred_region
        _
      $region16: #{generative_forward.34} parent=11 // pred_fallthru
        _
    $region12: #{generative_forward.34} parent=5 // pred_fallthru
      _
    %p193 = scmp.lt.s32.totalorder %s11, 4
    // Predicated region
    $region17: #{generative_forward.34} parent=5 // pred_check
      %p194 = pneg %p193
    $region18: #{generative_forward.34} parent=5 // pred_check_branch
      %196 = sbr.rel (%p194) target = $region20
    $region19: #{generative_forward.34} parent=5 // pred_region
      // Predicated region
      $region21: #{generative_forward.34} parent=19 // pred_check
        %p197 = pneg %p56
      $region22: #{generative_forward.34} parent=19 // pred_check_branch
        %199 = sbr.rel (%p197) target = $region24
      $region23: #{generative_forward.34} parent=19 // pred_region
        %s200 = smul.u32 %s18, 2
        %s201 = sadd.s32 %s200, %s19
        %s202 = sadd.s32 %s201, %s20
        %s203 = smul.u32 4, %s202
        %p204 = scmp.lt.s32.totalorder %s203, 15
        %s205 = scalar_select %p204, %s203, 15
        %s206 = smul.addr %s205, 4
        %s207 = scalar_lea.vmem %s0, %s206
        %s208 = smul.u32 %s18, 2
        %s209 = sadd.s32 %s208, %s19
        %s210 = sadd.s32 %s209, %s20
        %s211 = smul.u32 4, %s210
      $region24: #{generative_forward.34} parent=19 // pred_fallthru
        _
    $region20: #{generative_forward.34} parent=5 // pred_fallthru
      _
    %p212 = scmp.le.s32.totalorder 1, %s11
    %p213 = scmp.lt.s32.totalorder %s11, 5
    %p214 = pnand %p212, %p213
    %p215 = pneg %p214
    // Predicated region
    $region25: #{generative_forward.34} parent=5 // pred_check
      _
    $region26: #{generative_forward.34} parent=5 // pred_check_branch
      %217 = sbr.rel (%p214) target = $region28
    $region27: #{generative_forward.34} parent=5 // pred_region
      %s218 = ssub.s32 %s11, 1
      %s219 = smul.u32 %s21, 2
      %s220 = sadd.s32 %s219, %s22
      %s221 = sadd.s32 %s220, %s23
      %s222 = smul.u32 4, %s221
      %p223 = scmp.lt.s32.totalorder %s222, 15
      %s224 = scalar_select %p223, %s222, 15
      %s225 = smul.addr %s224, 4
      %s226 = scalar_lea.vmem %s0, %s225
      %p227 = pneg %p62
      %p228 = pneg %p59
      %p229 = pneg %p83
      %p230 = pneg %p80
      %p231 = pneg %p115
      %p232 = pneg %p112
      %s233 = smul.u32 %s21, 2
      %s234 = sadd.s32 %s233, %s22
      %s235 = sadd.s32 %s234, %s23
      %s236 = smul.u32 4, %s235
      %p237 = scmp.lt.s32.totalorder %s236, 15
      %s238 = scalar_select %p237, %s236, 15
      %s239 = smul.addr %s238, 4
      %s240 = scalar_lea.vmem %s2, %s239
      %p241 = pneg %p145
      %p242 = pneg %p142
      %s243 = smul.u32 %s21, 2
      %s244 = sadd.s32 %s243, %s22
      %p245 = scmp.lt.s32.totalorder %s244, 3
      %s246 = scalar_select %p245, %s244, 3
      %s247 = scalar_lea.vmem %s3, %s246
      %p248 = pneg %p175
      %p249 = pneg %p172
      %s250 = smul.u32 %s21, 2
      %s251 = sadd.s32 %s250, %s22
      %p252 = scmp.lt.s32.totalorder %s251, 3
      %s253 = scalar_select %p252, %s251, 3
      %s254 = scalar_lea.vmem %s4, %s253
      %s255 = smul.u32 %s21, 2
      %s256 = sadd.s32 %s255, %s22
      %s257 = sadd.s32 %s256, %s23
      %s258 = smul.u32 4, %s257
      %p259 = scmp.lt.s32.totalorder %s258, 15
      %s260 = scalar_select %p259, %s258, 15
      %s261 = smul.addr %s260, 4
      %s262 = scalar_lea.vmem %s0, %s261
      %s263 = smul.u32 %s21, 2
      %s264 = sadd.s32 %s263, %s22
      %s265 = sadd.s32 %s264, %s23
      %s266 = smul.u32 4, %s265
      %s267 = smul.u32 %s21, 2
      %s268 = sadd.s32 %s267, %s22
      %s269 = sadd.s32 %s268, %s23
      %s270 = smul.u32 4, %s269
      %p271 = scmp.lt.s32.totalorder %s270, 15
      %s272 = scalar_select %p271, %s270, 15
      %s273 = smul.addr %s272, 4
      %s274 = scalar_lea.vmem %s2, %s273
      %s275 = smul.u32 %s21, 2
      %s276 = sadd.s32 %s275, %s22
      %s277 = sadd.s32 %s276, %s23
      %s278 = smul.u32 4, %s277
      %s279 = smul.u32 %s21, 2
      %s280 = sadd.s32 %s279, %s22
      %p281 = scmp.lt.s32.totalorder %s280, 3
      %s282 = scalar_select %p281, %s280, 3
      %s283 = scalar_lea.vmem %s3, %s282
      %s284 = smul.u32 %s21, 2
      %s285 = sadd.s32 %s284, %s22
      %s286 = smul.u32 %s21, 2
      %s287 = sadd.s32 %s286, %s22
      %p288 = scmp.lt.s32.totalorder %s287, 3
      %s289 = scalar_select %p288, %s287, 3
      %s290 = scalar_lea.vmem %s4, %s289
      %s291 = smul.u32 %s21, 2
      %s292 = sadd.s32 %s291, %s22
      %v294 = vld [vmem:[%s262] sm:$0xf]
      %v295 = vld [vmem:[%s262 + $0x4] sm:$0xf]
      %v296 = vld [vmem:[%s262 + $0x8] sm:$0xf]
      %v297 = vld [vmem:[%s262 + $0xc] sm:$0xf]
      %v298 = vld [vmem:[%s1] sm:$0xf]
      %v299 = vld [vmem:[%s1 + $0x4] sm:$0xf]
      %v300 = vld [vmem:[%s1 + $0x8] sm:$0xf]
      %v301 = vld [vmem:[%s1 + $0xc] sm:$0xf]
      %v302 = vld [vmem:[%s1 + $0x10] sm:$0xf]
      %v303 = vld [vmem:[%s1 + $0x14] sm:$0xf]
      %v304 = vld [vmem:[%s1 + $0x18] sm:$0xf]
      %v305 = vld [vmem:[%s1 + $0x1c] sm:$0xf]
      %v306 = vld [vmem:[%s1 + $0x20] sm:$0xf]
      %v307 = vld [vmem:[%s1 + $0x24] sm:$0xf]
      %v308 = vld [vmem:[%s1 + $0x28] sm:$0xf]
      %v309 = vld [vmem:[%s1 + $0x2c] sm:$0xf]
      %v310 = vld [vmem:[%s1 + $0x30] sm:$0xf]
      %v311 = vld [vmem:[%s1 + $0x34] sm:$0xf]
      %v312 = vld [vmem:[%s1 + $0x38] sm:$0xf]
      %v313 = vld [vmem:[%s1 + $0x3c] sm:$0xf]
      %v318 = vunpack.c.l.b16 %v294
      %v319 = vunpack.c.l.b16 %v295
      %v320 = vunpack.c.l.b16 %v296
      %v321 = vunpack.c.l.b16 %v297
      %v322 = vpack.c.b16 %v319, %v318
      %v323 = vpack.c.b16 %v321, %v320
      %v342 = vunpack.c.l.b16 %v298
      %v343 = vunpack.c.l.b16 %v299
      %v344 = vunpack.c.l.b16 %v300
      %v345 = vunpack.c.l.b16 %v301
      %v346 = vunpack.c.l.b16 %v302
      %v347 = vunpack.c.l.b16 %v303
      %v348 = vunpack.c.l.b16 %v304
      %v349 = vunpack.c.l.b16 %v305
      %v350 = vunpack.c.l.b16 %v306
      %v351 = vunpack.c.l.b16 %v307
      %v352 = vunpack.c.l.b16 %v308
      %v353 = vunpack.c.l.b16 %v309
      %v354 = vunpack.c.l.b16 %v310
      %v355 = vunpack.c.l.b16 %v311
      %v356 = vunpack.c.l.b16 %v312
      %v357 = vunpack.c.l.b16 %v313
      %v358 = vpack.c.b16 %v343, %v342
      %v359 = vpack.c.b16 %v345, %v344
      %v360 = vpack.c.b16 %v347, %v346
      %v361 = vpack.c.b16 %v349, %v348
      %v362 = vpack.c.b16 %v351, %v350
      %v363 = vpack.c.b16 %v353, %v352
      %v364 = vpack.c.b16 %v355, %v354
      %v365 = vpack.c.b16 %v357, %v356
      %374 = vmatprep.subr.bf16.mxu0 0
      %375 = vmatpush1.bf16.msra.mxu0 %v358
      %376 = vmatprep.subr.bf16.mxu0 0
      %377 = vmatpush1.bf16.msra.mxu0 %v359
      %378 = vmatprep.subr.bf16.mxu0 0
      %379 = vmatpush1.bf16.msra.mxu0 %v360
      %380 = vmatprep.subr.bf16.mxu0 0
      %381 = vmatpush1.bf16.msra.mxu0 %v361
      %382 = vmatprep.subr.bf16.mxu0 0
      %383 = vmatpush1.bf16.msra.mxu0 %v362
      %384 = vmatprep.subr.bf16.mxu0 0
      %385 = vmatpush1.bf16.msra.mxu0 %v363
      %386 = vmatprep.subr.bf16.mxu0 0
      %387 = vmatpush1.bf16.msra.mxu0 %v364
      %388 = vmatprep.subr.bf16.mxu0 0
      %389 = vmatpush1.bf16.msra.mxu0 %v365
      %390 = vmatprep.subr.bf16.mxu0 0
      %391 = vmatpush1.bf16.msra.mxu0 0
      %392 = vmatprep.subr.bf16.mxu0 0
      %393 = vmatpush1.bf16.msra.mxu0 0
      %394 = vmatprep.subr.bf16.mxu0 0
      %395 = vmatpush1.bf16.msra.mxu0 0
      %396 = vmatprep.subr.bf16.mxu0 0
      %397 = vmatpush1.bf16.msra.mxu0 0
      %398 = vmatprep.subr.bf16.mxu0 0
      %399 = vmatpush1.bf16.msra.mxu0 0
      %400 = vmatprep.subr.bf16.mxu0 0
      %401 = vmatpush1.bf16.msra.mxu0 0
      %402 = vmatprep.subr.bf16.mxu0 0
      %403 = vmatpush1.bf16.msra.mxu0 0
      %404 = vmatprep.subr.bf16.mxu0 0
      %405 = vmatpush1.bf16.msra.mxu0 0
      %406 = vmatprep.mubr.bf16.mxu0 0
      %407 = vmatmul.mubr.bf16.gmra.mrb[0].mxu0 %v322
      %v408 = vpop.f32.mrb[0].mxu0
      %v409 = vadd.f32 0.0, %v408
      %v410 = vpop.f32.mrb[0].mxu0
      %v411 = vpop.f32.mrb[0].mxu0
      %v412 = vadd.f32 0.0, %v411
      %v413 = vpop.f32.mrb[0].mxu0
      %414 = vmatprep.mubr.bf16.mxu0 0
      %415 = vmatmul.mubr.bf16.gmra.mrb[0].mxu0 %v323
      %v416 = vpop.f32.mrb[0].mxu0
      %v417 = vadd.f32 0.0, %v416
      %v418 = vpop.f32.mrb[0].mxu0
      %v419 = vpop.f32.mrb[0].mxu0
      %v420 = vadd.f32 0.0, %v419
      %v421 = vpop.f32.mrb[0].mxu0
      %422 = vdwg.mxu0
      %v423 = vpack.c.bf16 %v412, %v409
      %v424 = vpack.c.bf16 %v420, %v417
      %v427 = vunpack.c.l.b16 %v423
      %v428 = vunpack.c.h.b16 %v423
      %v429 = vunpack.c.l.b16 %v424
      %v430 = vunpack.c.h.b16 %v424
      %v431 = vpack.c.b16 %v427, %v427
      %v432 = vpack.c.b16 %v428, %v428
      %v433 = vpack.c.b16 %v429, %v429
      %v434 = vpack.c.b16 %v430, %v430
      %439 = vst [vmem:[%s274] sm:$0xf] %v431
      %440 = vst [vmem:[%s274 + $0x4] sm:$0xf] %v432
      %441 = vst [vmem:[%s274 + $0x8] sm:$0xf] %v433
      %442 = vst [vmem:[%s274 + $0xc] sm:$0xf] %v434
      %p443 = scmp.eq.s32.totalorder %s23, 0
      // Predicated region
      $region29: #{generative_forward.34} parent=27 // pred_check
        %p444 = pneg %p443
      $region30: #{generative_forward.34} parent=27 // pred_check_branch
        %446 = sbr.rel (%p444) target = $region32
      $region31: #{generative_forward.34} parent=27 // pred_region
        %447 = vst [vmem:[%s283] sm:$0x1] 0.0
        %448 = vst [vmem:[%s290] sm:$0x1] 0.0
      $region32: #{generative_forward.34} parent=27 // pred_fallthru
        _
      %v449 = vld [vmem:[%s283] sm:$0x1]
      %v450 = vadd.f32 %v409, %v412
      %v451 = vadd.f32 %v450, %v417
      %v452 = vadd.f32 %v451, %v420
      %v453 = vrot.slane %v452, 4
      %v454 = vadd.f32 %v452, %v453
      %v455 = vrot.slane %v454, 2
      %v456 = vadd.f32 %v454, %v455
      %v457 = vrot.slane %v456, 1
      %v458 = vadd.f32 %v456, %v457
      %v459 = vadd.f32 %v449, %v458
      %460 = vst [vmem:[%s283] sm:$0x1] %v459
      %v461 = vld [vmem:[%s290] sm:$0x1]
      %v462 = vmul.f32 %v409, %v409
      %v463 = vmul.f32 %v412, %v412
      %v464 = vmul.f32 %v417, %v417
      %v465 = vmul.f32 %v420, %v420
      %v466 = vadd.f32 %v462, %v463
      %v467 = vadd.f32 %v466, %v464
      %v468 = vadd.f32 %v467, %v465
      %v469 = vrot.slane %v468, 4
      %v470 = vadd.f32 %v468, %v469
      %v471 = vrot.slane %v470, 2
      %v472 = vadd.f32 %v470, %v471
      %v473 = vrot.slane %v472, 1
      %v474 = vadd.f32 %v472, %v473
      %v475 = vadd.f32 %v461, %v474
      %476 = vst [vmem:[%s290] sm:$0x1] %v475
      %s477 = smul.u32 %s21, 2
      %s478 = sadd.s32 %s477, %s22
      %s479 = sadd.s32 %s478, %s23
      %s480 = smul.u32 4, %s479
      %p481 = scmp.lt.s32.totalorder %s480, 15
      %s482 = scalar_select %p481, %s480, 15
      %s483 = smul.addr %s482, 4
      %s484 = scalar_lea.vmem %s2, %s483
      %s485 = smul.u32 %s21, 2
      %s486 = sadd.s32 %s485, %s22
      %p487 = scmp.lt.s32.totalorder %s486, 3
      %s488 = scalar_select %p487, %s486, 3
      %s489 = scalar_lea.vmem %s3, %s488
      %s490 = smul.u32 %s21, 2
      %s491 = sadd.s32 %s490, %s22
      %p492 = scmp.lt.s32.totalorder %s491, 3
      %s493 = scalar_select %p492, %s491, 3
      %s494 = scalar_lea.vmem %s4, %s493
      // Predicated region
      $region33: #{generative_forward.34} parent=27 // pred_check
        %p495 = pneg %p112
      $region34: #{generative_forward.34} parent=27 // pred_check_branch
        %497 = sbr.rel (%p495) target = $region36
      $region35: #{generative_forward.34} parent=27 // pred_region
        %s498 = smul.u32 %s21, 2
        %s499 = sadd.s32 %s498, %s22
        %s500 = sadd.s32 %s499, %s23
        %s501 = smul.u32 4, %s500
      $region36: #{generative_forward.34} parent=27 // pred_fallthru
        _
      // Predicated region
      $region37: #{generative_forward.34} parent=27 // pred_check
        %p502 = pneg %p142
      $region38: #{generative_forward.34} parent=27 // pred_check_branch
        %504 = sbr.rel (%p502) target = $region40
      $region39: #{generative_forward.34} parent=27 // pred_region
        %s505 = smul.u32 %s21, 2
        %s506 = sadd.s32 %s505, %s22
      $region40: #{generative_forward.34} parent=27 // pred_fallthru
        _
      // Predicated region
      $region41: #{generative_forward.34} parent=27 // pred_check
        %p507 = pneg %p172
      $region42: #{generative_forward.34} parent=27 // pred_check_branch
        %509 = sbr.rel (%p507) target = $region44
      $region43: #{generative_forward.34} parent=27 // pred_region
        %s510 = smul.u32 %s21, 2
        %s511 = sadd.s32 %s510, %s22
      $region44: #{generative_forward.34} parent=27 // pred_fallthru
        _
    $region28: #{generative_forward.34} parent=5 // pred_fallthru
      _
    %p512 = scmp.le.s32.totalorder 2, %s11
    // Predicated region
    $region45: #{generative_forward.34} parent=5 // pred_check
      %p513 = pneg %p512
    $region46: #{generative_forward.34} parent=5 // pred_check_branch
      %515 = sbr.rel (%p513) target = $region48
    $region47: #{generative_forward.34} parent=5 // pred_region
      %s516 = ssub.s32 %s11, 2
      // Predicated region
      $region49: #{generative_forward.34} parent=47 // pred_check
        %p517 = pneg %p118
      $region50: #{generative_forward.34} parent=47 // pred_check_branch
        %519 = sbr.rel (%p517) target = $region52
      $region51: #{generative_forward.34} parent=47 // pred_region
        %s520 = smul.u32 %s24, 2
        %s521 = sadd.s32 %s520, %s25
        %s522 = sadd.s32 %s521, %s26
        %s523 = smul.u32 4, %s522
        %p524 = scmp.lt.s32.totalorder %s523, 15
        %s525 = scalar_select %p524, %s523, 15
        %s526 = smul.addr %s525, 4
        %s527 = scalar_lea.vmem %s2, %s526
      $region52: #{generative_forward.34} parent=47 // pred_fallthru
        _
      // Predicated region
      $region53: #{generative_forward.34} parent=47 // pred_check
        %p528 = pneg %p148
      $region54: #{generative_forward.34} parent=47 // pred_check_branch
        %530 = sbr.rel (%p528) target = $region56
      $region55: #{generative_forward.34} parent=47 // pred_region
        %s531 = smul.u32 %s24, 2
        %s532 = sadd.s32 %s531, %s25
        %p533 = scmp.lt.s32.totalorder %s532, 3
        %s534 = scalar_select %p533, %s532, 3
        %s535 = scalar_lea.vmem %s3, %s534
      $region56: #{generative_forward.34} parent=47 // pred_fallthru
        _
      // Predicated region
      $region57: #{generative_forward.34} parent=47 // pred_check
        %p536 = pneg %p178
      $region58: #{generative_forward.34} parent=47 // pred_check_branch
        %538 = sbr.rel (%p536) target = $region60
      $region59: #{generative_forward.34} parent=47 // pred_region
        %s539 = smul.u32 %s24, 2
        %s540 = sadd.s32 %s539, %s25
        %p541 = scmp.lt.s32.totalorder %s540, 3
        %s542 = scalar_select %p541, %s540, 3
        %s543 = scalar_lea.vmem %s4, %s542
      $region60: #{generative_forward.34} parent=47 // pred_fallthru
        _
    $region48: #{generative_forward.34} parent=5 // pred_fallthru
      _
  $region6: #{generative_forward.34} parent=0 // loop_footer
    %s15 = sadd.s32 1, %s11
  $region7: #{generative_forward.34} parent=0 // loop_footer_branch
    %10 = sbr.rel target = $region3
  $region8: #{generative_forward.34} parent=0 // loop_exit
    _

// kernel: generative_forward.37
$region0: #{generative_forward.37}
  #allocation0 [shape = 'u32[]', space=smem, size = 0x4, offset = 0x4, fixed_abs, tag = 'smem constant byte address 0x4 - core index']
  #allocation1 [shape = 'u32[144,128]{1,0:T(1,128)}', space=vmem, size = 0x12000, scoped, tag = 'internal scratch']
  %s0 = inlined_call_operand.vmem [shape: bf16[64,128], index: 0, kind: input, shape index: {}]
  %s1 = inlined_call_operand.vmem [shape: f32[2,1,128], index: 1, kind: input, shape index: {}]
  %s2 = inlined_call_operand.vmem [shape: f32[2,1,128], index: 2, kind: input, shape index: {}]
  %s3 = inlined_call_operand.vmem [shape: bf16[64,128], index: 3, kind: output, shape index: {}]
  %s4 = sld [smem:[#allocation0]]
  $region45: #{generative_forward.37} parent=0
    _
  %s6 = ssub.s32 1, %s4
  %s7 = scalar_select 0, %s6, %s4
  loop: start=0, step=1, limit=6
  $region2: #{generative_forward.37} parent=0 // loop_pre_header
    _
  $region3: #{generative_forward.37} parent=0 // loop_header
    %s9 = sphi 0, %s13
    %p10 = scmp.ge.s32.totalorder %s9, 6
    %s16 = sphi 0, %s28
    %s17 = sphi 0, %s24
    %s18 = sphi 0, %s16
    %s19 = sphi 0, %s17
    %s20 = sphi 0, %s18
    %s21 = sphi 0, %s19
    %s35 = sphi 0, %s37
    %s38 = sphi 0, %s35
    %s39 = sphi 0, %s38
    %s55 = sphi 0, %s39
    %s61 = sphi 0, %s63
    %s64 = sphi 0, %s61
    %s65 = sphi 0, %s64
    %s81 = sphi 0, %s65
    %s87 = sphi 0, %s89
    %s90 = sphi 0, %s87
    %s91 = sphi 0, %s90
    %s107 = sphi 0, %s91
    %s117 = sphi 0, %s119
    %s120 = sphi 0, %s117
    %s121 = sphi 0, %s120
    %s137 = sphi 0, %s121
  $region4: #{generative_forward.37} parent=0 // loop_header_branch
    %12 = sbr.rel (%p10) target = $region8
  $region5: #{generative_forward.37} parent=0 // loop_body
    %s14 = ssub.s32 %s9, 1
    %s15 = ssub.s32 %s9, 2
    %s22 = sadd.s32 1, %s17
    %p23 = scmp.ge.s32.totalorder %s22, 2
    %s24 = scalar_select %p23, 0, %s22
    %s25 = sadd.s32 1, %s16
    %s26 = scalar_select %p23, %s25, %s16
    %p27 = scmp.ge.s32.totalorder %s26, 2
    %s28 = scalar_select %p27, 0, %s26
    %s29 = smul.u32 %s16, 2
    %s30 = sadd.s32 %s29, %s17
    %s31 = smul.u32 %s28, 2
    %s32 = sadd.s32 %s31, %s24
    %s33 = ssub.s32 %s30, %s32
    %p34 = scmp.eq.s32.totalorder %s33, 0
    %s36 = sadd.s32 %s35, 1
    %s37 = scalar_select %p34, %s35, %s36
    %p40 = pneg %p34
    %p41 = scmp.eq.s32.totalorder %s9, 3
    %p42 = por %p40, %p41
    %p43 = scmp.ne.s32.totalorder %s35, %s38
    %p44 = scmp.eq.s32.totalorder %s9, 0
    %p45 = por %p43, %p44
    %p46 = scmp.ne.s32.totalorder %s35, %s38
    %p47 = scmp.eq.s32.totalorder %s14, 3
    %p48 = por %p46, %p47
    %p49 = scmp.ne.s32.totalorder %s38, %s39
    %p50 = scmp.eq.s32.totalorder %s14, 0
    %p51 = por %p49, %p50
    %p52 = scmp.ne.s32.totalorder %s38, %s39
    %p53 = scmp.eq.s32.totalorder %s15, 3
    %p54 = por %p52, %p53
    %p56 = scmp.ne.s32.totalorder %s39, %s55
    %p57 = scmp.eq.s32.totalorder %s15, 0
    %p58 = por %p56, %p57
    %s59 = ssub.s32 %s16, %s28
    %p60 = scmp.eq.s32.totalorder %s59, 0
    %s62 = sadd.s32 %s61, 1
    %s63 = scalar_select %p60, %s61, %s62
    %p66 = pneg %p60
    %p67 = scmp.eq.s32.totalorder %s9, 3
    %p68 = por %p66, %p67
    %p69 = scmp.ne.s32.totalorder %s61, %s64
    %p70 = scmp.eq.s32.totalorder %s9, 0
    %p71 = por %p69, %p70
    %p72 = scmp.ne.s32.totalorder %s61, %s64
    %p73 = scmp.eq.s32.totalorder %s14, 3
    %p74 = por %p72, %p73
    %p75 = scmp.ne.s32.totalorder %s64, %s65
    %p76 = scmp.eq.s32.totalorder %s14, 0
    %p77 = por %p75, %p76
    %p78 = scmp.ne.s32.totalorder %s64, %s65
    %p79 = scmp.eq.s32.totalorder %s15, 3
    %p80 = por %p78, %p79
    %p82 = scmp.ne.s32.totalorder %s65, %s81
    %p83 = scmp.eq.s32.totalorder %s15, 0
    %p84 = por %p82, %p83
    %s85 = ssub.s32 %s16, %s28
    %p86 = scmp.eq.s32.totalorder %s85, 0
    %s88 = sadd.s32 %s87, 1
    %s89 = scalar_select %p86, %s87, %s88
    %p92 = pneg %p86
    %p93 = scmp.eq.s32.totalorder %s9, 3
    %p94 = por %p92, %p93
    %p95 = scmp.ne.s32.totalorder %s87, %s90
    %p96 = scmp.eq.s32.totalorder %s9, 0
    %p97 = por %p95, %p96
    %p98 = scmp.ne.s32.totalorder %s87, %s90
    %p99 = scmp.eq.s32.totalorder %s14, 3
    %p100 = por %p98, %p99
    %p101 = scmp.ne.s32.totalorder %s90, %s91
    %p102 = scmp.eq.s32.totalorder %s14, 0
    %p103 = por %p101, %p102
    %p104 = scmp.ne.s32.totalorder %s90, %s91
    %p105 = scmp.eq.s32.totalorder %s15, 3
    %p106 = por %p104, %p105
    %p108 = scmp.ne.s32.totalorder %s91, %s107
    %p109 = scmp.eq.s32.totalorder %s15, 0
    %p110 = por %p108, %p109
    %s111 = smul.u32 %s16, 2
    %s112 = sadd.s32 %s111, %s17
    %s113 = smul.u32 %s28, 2
    %s114 = sadd.s32 %s113, %s24
    %s115 = ssub.s32 %s112, %s114
    %p116 = scmp.eq.s32.totalorder %s115, 0
    %s118 = sadd.s32 %s117, 1
    %s119 = scalar_select %p116, %s117, %s118
    %p122 = pneg %p116
    %p123 = scmp.eq.s32.totalorder %s9, 3
    %p124 = por %p122, %p123
    %p125 = scmp.ne.s32.totalorder %s117, %s120
    %p126 = scmp.eq.s32.totalorder %s9, 0
    %p127 = por %p125, %p126
    %p128 = scmp.ne.s32.totalorder %s117, %s120
    %p129 = scmp.eq.s32.totalorder %s14, 3
    %p130 = por %p128, %p129
    %p131 = scmp.ne.s32.totalorder %s120, %s121
    %p132 = scmp.eq.s32.totalorder %s14, 0
    %p133 = por %p131, %p132
    %p134 = scmp.ne.s32.totalorder %s120, %s121
    %p135 = scmp.eq.s32.totalorder %s15, 3
    %p136 = por %p134, %p135
    %p138 = scmp.ne.s32.totalorder %s121, %s137
    %p139 = scmp.eq.s32.totalorder %s15, 0
    %p140 = por %p138, %p139
    %p141 = scmp.le.s32.totalorder 1, %s9
    %p142 = scmp.lt.s32.totalorder %s9, 5
    %p143 = pnand %p141, %p142
    %p144 = pneg %p143
    // Predicated region
    $region9: #{generative_forward.37} parent=5 // pred_check
      _
    $region10: #{generative_forward.37} parent=5 // pred_check_branch
      %146 = sbr.rel (%p143) target = $region12
    $region11: #{generative_forward.37} parent=5 // pred_region
      %s147 = ssub.s32 %s9, 1
    $region12: #{generative_forward.37} parent=5 // pred_fallthru
      _
    %p148 = scmp.lt.s32.totalorder %s9, 4
    // Predicated region
    $region13: #{generative_forward.37} parent=5 // pred_check
      %p149 = pneg %p148
    $region14: #{generative_forward.37} parent=5 // pred_check_branch
      %151 = sbr.rel (%p149) target = $region16
    $region15: #{generative_forward.37} parent=5 // pred_region
      // Predicated region
      $region17: #{generative_forward.37} parent=15 // pred_check
        %p152 = pneg %p45
      $region18: #{generative_forward.37} parent=15 // pred_check_branch
        %154 = sbr.rel (%p152) target = $region20
      $region19: #{generative_forward.37} parent=15 // pred_region
        %s155 = smul.u32 %s16, 2
        %s156 = sadd.s32 %s155, %s17
        %s157 = smul.u32 2, %s156
        %p158 = scmp.lt.s32.totalorder %s157, 7
        %s159 = scalar_select %p158, %s157, 7
        %s160 = smul.addr %s159, 4
        %s161 = scalar_lea.vmem %s0, %s160
        %s162 = smul.u32 %s16, 2
        %s163 = sadd.s32 %s162, %s17
        %s164 = smul.u32 2, %s163
      $region20: #{generative_forward.37} parent=15 // pred_fallthru
        _
      // Predicated region
      $region21: #{generative_forward.37} parent=15 // pred_check
        %p165 = pneg %p71
      $region22: #{generative_forward.37} parent=15 // pred_check_branch
        %167 = sbr.rel (%p165) target = $region24
      $region23: #{generative_forward.37} parent=15 // pred_region
        %p168 = scmp.lt.s32.totalorder %s16, 1
        %s169 = scalar_select %p168, %s16, 1
        %s170 = scalar_lea.vmem %s1, %s169
      $region24: #{generative_forward.37} parent=15 // pred_fallthru
        _
      // Predicated region
      $region25: #{generative_forward.37} parent=15 // pred_check
        %p171 = pneg %p97
      $region26: #{generative_forward.37} parent=15 // pred_check_branch
        %173 = sbr.rel (%p171) target = $region28
      $region27: #{generative_forward.37} parent=15 // pred_region
        %p174 = scmp.lt.s32.totalorder %s16, 1
        %s175 = scalar_select %p174, %s16, 1
        %s176 = scalar_lea.vmem %s2, %s175
      $region28: #{generative_forward.37} parent=15 // pred_fallthru
        _
    $region16: #{generative_forward.37} parent=5 // pred_fallthru
      _
    %p177 = scmp.le.s32.totalorder 1, %s9
    %p178 = scmp.lt.s32.totalorder %s9, 5
    %p179 = pnand %p177, %p178
    %p180 = pneg %p179
    // Predicated region
    $region29: #{generative_forward.37} parent=5 // pred_check
      _
    $region30: #{generative_forward.37} parent=5 // pred_check_branch
      %182 = sbr.rel (%p179) target = $region32
    $region31: #{generative_forward.37} parent=5 // pred_region
      %s183 = ssub.s32 %s9, 1
      %s184 = smul.u32 %s18, 2
      %s185 = sadd.s32 %s184, %s19
      %s186 = smul.u32 2, %s185
      %p187 = scmp.lt.s32.totalorder %s186, 7
      %s188 = scalar_select %p187, %s186, 7
      %s189 = smul.addr %s188, 4
      %s190 = scalar_lea.vmem %s0, %s189
      %p191 = pneg %p51
      %p192 = pneg %p48
      %p193 = scmp.lt.s32.totalorder %s18, 1
      %s194 = scalar_select %p193, %s18, 1
      %s195 = scalar_lea.vmem %s1, %s194
      %p196 = pneg %p77
      %p197 = pneg %p74
      %p198 = scmp.lt.s32.totalorder %s18, 1
      %s199 = scalar_select %p198, %s18, 1
      %s200 = scalar_lea.vmem %s2, %s199
      %p201 = pneg %p103
      %p202 = pneg %p100
      %p203 = pneg %p133
      %p204 = pneg %p130
      %s205 = smul.u32 %s18, 2
      %s206 = sadd.s32 %s205, %s19
      %s207 = smul.u32 2, %s206
      %p208 = scmp.lt.s32.totalorder %s207, 7
      %s209 = scalar_select %p208, %s207, 7
      %s210 = smul.addr %s209, 4
      %s211 = scalar_lea.vmem %s3, %s210
      %s212 = smul.u32 %s18, 2
      %s213 = sadd.s32 %s212, %s19
      %s214 = smul.u32 2, %s213
      %p215 = scmp.lt.s32.totalorder %s214, 7
      %s216 = scalar_select %p215, %s214, 7
      %s217 = smul.addr %s216, 4
      %s218 = scalar_lea.vmem %s0, %s217
      %s219 = smul.u32 %s18, 2
      %s220 = sadd.s32 %s219, %s19
      %s221 = smul.u32 2, %s220
      %p222 = scmp.lt.s32.totalorder %s18, 1
      %s223 = scalar_select %p222, %s18, 1
      %s224 = scalar_lea.vmem %s1, %s223
      %p225 = scmp.lt.s32.totalorder %s18, 1
      %s226 = scalar_select %p225, %s18, 1
      %s227 = scalar_lea.vmem %s2, %s226
      %s228 = smul.u32 %s18, 2
      %s229 = sadd.s32 %s228, %s19
      %s230 = smul.u32 2, %s229
      %p231 = scmp.lt.s32.totalorder %s230, 7
      %s232 = scalar_select %p231, %s230, 7
      %s233 = smul.addr %s232, 4
      %s234 = scalar_lea.vmem %s3, %s233
      %s235 = smul.u32 %s18, 2
      %s236 = sadd.s32 %s235, %s19
      %s237 = smul.u32 2, %s236
      %v238 = vld [vmem:[%s224] sm:$0x1]
      %v239 = vmul.f32 %v238, 0.0625
      %v240 = vld [vmem:[%s227] sm:$0x1]
      %v241 = vmul.f32 %v240, 0.0625
      %v242 = vmul.f32 %v239, %v239
      %v243 = vsub.f32 %v241, %v242
      %v244 = vmax.f32 %v243, 0.0
      %v245 = vadd.f32 %v244, 1e-05
      %v246 = vrsqrt.pop %v245
      %v247 = vld [vmem:[%s218] sm:$0xf]
      %v248 = vld [vmem:[%s218 + $0x4] sm:$0xf]
      %v249 = vunpack.c.l.bf16 %v247
      %v250 = vunpack.c.l.bf16 %v248
      %v252 = vlaneseq
      %v253 = vshrl.u32 %v252, 7
      %v254 = vsub.s32 0, %v253
      %v255 = vrot.slane %v239, %v254
      %v257 = vsub.f32 %v249, %v255
      %v258 = vsub.f32 %v250, %v255
      %v260 = vlaneseq
      %v261 = vshrl.u32 %v260, 7
      %v262 = vsub.s32 0, %v261
      %v263 = vrot.slane %v246, %v262
      %v265 = vmul.f32 %v257, %v263
      %v266 = vmul.f32 %v258, %v263
      %vm267 = vcmp.ge.f32.partialorder %v265, 0.0
      %vm268 = vcmp.ge.f32.partialorder %v266, 0.0
      %v269 = vmul.f32 %v265, 0.01
      %v270 = vmul.f32 %v266, 0.01
      %v271 = vsel %vm267, %v265, %v269
      %v272 = vsel %vm268, %v266, %v270
      %v273 = vpack.c.bf16 %v272, %v271
      %v275 = vunpack.c.l.b16 %v273
      %v276 = vunpack.c.h.b16 %v273
      %v277 = vpack.c.b16 %v275, %v275
      %v278 = vpack.c.b16 %v276, %v276
      %281 = vst [vmem:[%s234] sm:$0xf] %v277
      %282 = vst [vmem:[%s234 + $0x4] sm:$0xf] %v278
      %s283 = smul.u32 %s18, 2
      %s284 = sadd.s32 %s283, %s19
      %s285 = smul.u32 2, %s284
      %p286 = scmp.lt.s32.totalorder %s285, 7
      %s287 = scalar_select %p286, %s285, 7
      %s288 = smul.addr %s287, 4
      %s289 = scalar_lea.vmem %s3, %s288
      // Predicated region
      $region33: #{generative_forward.37} parent=31 // pred_check
        %p290 = pneg %p130
      $region34: #{generative_forward.37} parent=31 // pred_check_branch
        %292 = sbr.rel (%p290) target = $region36
      $region35: #{generative_forward.37} parent=31 // pred_region
        %s293 = smul.u32 %s18, 2
        %s294 = sadd.s32 %s293, %s19
        %s295 = smul.u32 2, %s294
      $region36: #{generative_forward.37} parent=31 // pred_fallthru
        _
    $region32: #{generative_forward.37} parent=5 // pred_fallthru
      _
    %p296 = scmp.le.s32.totalorder 2, %s9
    // Predicated region
    $region37: #{generative_forward.37} parent=5 // pred_check
      %p297 = pneg %p296
    $region38: #{generative_forward.37} parent=5 // pred_check_branch
      %299 = sbr.rel (%p297) target = $region40
    $region39: #{generative_forward.37} parent=5 // pred_region
      %s300 = ssub.s32 %s9, 2
      // Predicated region
      $region41: #{generative_forward.37} parent=39 // pred_check
        %p301 = pneg %p136
      $region42: #{generative_forward.37} parent=39 // pred_check_branch
        %303 = sbr.rel (%p301) target = $region44
      $region43: #{generative_forward.37} parent=39 // pred_region
        %s304 = smul.u32 %s20, 2
        %s305 = sadd.s32 %s304, %s21
        %s306 = smul.u32 2, %s305
        %p307 = scmp.lt.s32.totalorder %s306, 7
        %s308 = scalar_select %p307, %s306, 7
        %s309 = smul.addr %s308, 4
        %s310 = scalar_lea.vmem %s3, %s309
      $region44: #{generative_forward.37} parent=39 // pred_fallthru
        _
    $region40: #{generative_forward.37} parent=5 // pred_fallthru
      _
  $region6: #{generative_forward.37} parent=0 // loop_footer
    %s13 = sadd.s32 1, %s9
  $region7: #{generative_forward.37} parent=0 // loop_footer_branch
    %8 = sbr.rel target = $region3
  $region8: #{generative_forward.37} parent=0 // loop_exit
    _

// kernel: generative_forward.36
$region0: #{generative_forward.36}
  #allocation0 [shape = 'u32[]', space=smem, size = 0x4, offset = 0x4, fixed_abs, tag = 'smem constant byte address 0x4 - core index']
  #allocation1 [shape = 'u32[144,128]{1,0:T(1,128)}', space=vmem, size = 0x12000, scoped, tag = 'internal scratch']
  %s0 = inlined_call_operand.vmem [shape: bf16[64,256], index: 0, kind: input, shape index: {}]
  %s1 = inlined_call_operand.vmem [shape: bf16[256,128], index: 1, kind: input, shape index: {}]
  %s2 = inlined_call_operand.vmem [shape: bf16[64,128], index: 2, kind: output, shape index: {0}]
  %s3 = inlined_call_operand.vmem [shape: f32[4,1,128], index: 3, kind: output, shape index: {1}]
  %s4 = inlined_call_operand.vmem [shape: f32[4,1,128], index: 4, kind: output, shape index: {2}]
  %5 = xla_tuple %s2, %s3, %s4
  %s6 = sld [smem:[#allocation0]]
  $region61: #{generative_forward.36} parent=0
    _
  %s8 = ssub.s32 1, %s6
  %s9 = scalar_select 0, %s8, %s6
  loop: start=0, step=1, limit=6
  $region2: #{generative_forward.36} parent=0 // loop_pre_header
    _
  $region3: #{generative_forward.36} parent=0 // loop_header
    %s11 = sphi 0, %s15
    %p12 = scmp.ge.s32.totalorder %s11, 6
    %s18 = sphi 0, %s37
    %s19 = sphi 0, %s33
    %s20 = sphi 0, %s29
    %s21 = sphi 0, %s18
    %s22 = sphi 0, %s19
    %s23 = sphi 0, %s20
    %s24 = sphi 0, %s21
    %s25 = sphi 0, %s22
    %s26 = sphi 0, %s23
    %s46 = sphi 0, %s48
    %s49 = sphi 0, %s46
    %s50 = sphi 0, %s49
    %s66 = sphi 0, %s50
    %s70 = sphi 0, %s70
    %s72 = sphi 0, %s70
    %s73 = sphi 0, %s72
    %s87 = sphi 0, %s73
    %s99 = sphi 0, %s101
    %s102 = sphi 0, %s99
    %s103 = sphi 0, %s102
    %s119 = sphi 0, %s103
    %s129 = sphi 0, %s131
    %s132 = sphi 0, %s129
    %s133 = sphi 0, %s132
    %s149 = sphi 0, %s133
    %s159 = sphi 0, %s161
    %s162 = sphi 0, %s159
    %s163 = sphi 0, %s162
    %s179 = sphi 0, %s163
  $region4: #{generative_forward.36} parent=0 // loop_header_branch
    %14 = sbr.rel (%p12) target = $region8
  $region5: #{generative_forward.36} parent=0 // loop_body
    %s16 = ssub.s32 %s11, 1
    %s17 = ssub.s32 %s11, 2
    %s27 = sadd.s32 1, %s20
    %p28 = scmp.ge.s32.totalorder %s27, 1
    %s29 = scalar_select %p28, 0, %s27
    %s30 = sadd.s32 1, %s19
    %s31 = scalar_select %p28, %s30, %s19
    %p32 = scmp.ge.s32.totalorder %s31, 2
    %s33 = scalar_select %p32, 0, %s31
    %s34 = sadd.s32 1, %s18
    %s35 = scalar_select %p32, %s34, %s18
    %p36 = scmp.ge.s32.totalorder %s35, 2
    %s37 = scalar_select %p36, 0, %s35
    %s38 = smul.u32 %s18, 2
    %s39 = sadd.s32 %s38, %s19
    %s40 = sadd.s32 %s39, %s20
    %s41 = smul.u32 %s37, 2
    %s42 = sadd.s32 %s41, %s33
    %s43 = sadd.s32 %s42, %s29
    %s44 = ssub.s32 %s40, %s43
    %p45 = scmp.eq.s32.totalorder %s44, 0
    %s47 = sadd.s32 %s46, 1
    %s48 = scalar_select %p45, %s46, %s47
    %p51 = pneg %p45
    %p52 = scmp.eq.s32.totalorder %s11, 3
    %p53 = por %p51, %p52
    %p54 = scmp.ne.s32.totalorder %s46, %s49
    %p55 = scmp.eq.s32.totalorder %s11, 0
    %p56 = por %p54, %p55
    %p57 = scmp.ne.s32.totalorder %s46, %s49
    %p58 = scmp.eq.s32.totalorder %s16, 3
    %p59 = por %p57, %p58
    %p60 = scmp.ne.s32.totalorder %s49, %s50
    %p61 = scmp.eq.s32.totalorder %s16, 0
    %p62 = por %p60, %p61
    %p63 = scmp.ne.s32.totalorder %s49, %s50
    %p64 = scmp.eq.s32.totalorder %s17, 3
    %p65 = por %p63, %p64
    %p67 = scmp.ne.s32.totalorder %s50, %s66
    %p68 = scmp.eq.s32.totalorder %s17, 0
    %p69 = por %p67, %p68
    %s71 = sadd.s32 %s70, 1
    %p74 = scmp.eq.s32.totalorder %s11, 3
    %p75 = scmp.ne.s32.totalorder %s70, %s72
    %p76 = scmp.eq.s32.totalorder %s11, 0
    %p77 = por %p75, %p76
    %p78 = scmp.ne.s32.totalorder %s70, %s72
    %p79 = scmp.eq.s32.totalorder %s16, 3
    %p80 = por %p78, %p79
    %p81 = scmp.ne.s32.totalorder %s72, %s73
    %p82 = scmp.eq.s32.totalorder %s16, 0
    %p83 = por %p81, %p82
    %p84 = scmp.ne.s32.totalorder %s72, %s73
    %p85 = scmp.eq.s32.totalorder %s17, 3
    %p86 = por %p84, %p85
    %p88 = scmp.ne.s32.totalorder %s73, %s87
    %p89 = scmp.eq.s32.totalorder %s17, 0
    %p90 = por %p88, %p89
    %s91 = smul.u32 %s18, 2
    %s92 = sadd.s32 %s91, %s19
    %s93 = sadd.s32 %s92, %s20
    %s94 = smul.u32 %s37, 2
    %s95 = sadd.s32 %s94, %s33
    %s96 = sadd.s32 %s95, %s29
    %s97 = ssub.s32 %s93, %s96
    %p98 = scmp.eq.s32.totalorder %s97, 0
    %s100 = sadd.s32 %s99, 1
    %s101 = scalar_select %p98, %s99, %s100
    %p104 = pneg %p98
    %p105 = scmp.eq.s32.totalorder %s11, 3
    %p106 = por %p104, %p105
    %p107 = scmp.ne.s32.totalorder %s99, %s102
    %p108 = scmp.eq.s32.totalorder %s11, 0
    %p109 = por %p107, %p108
    %p110 = scmp.ne.s32.totalorder %s99, %s102
    %p111 = scmp.eq.s32.totalorder %s16, 3
    %p112 = por %p110, %p111
    %p113 = scmp.ne.s32.totalorder %s102, %s103
    %p114 = scmp.eq.s32.totalorder %s16, 0
    %p115 = por %p113, %p114
    %p116 = scmp.ne.s32.totalorder %s102, %s103
    %p117 = scmp.eq.s32.totalorder %s17, 3
    %p118 = por %p116, %p117
    %p120 = scmp.ne.s32.totalorder %s103, %s119
    %p121 = scmp.eq.s32.totalorder %s17, 0
    %p122 = por %p120, %p121
    %s123 = smul.u32 %s18, 2
    %s124 = sadd.s32 %s123, %s19
    %s125 = smul.u32 %s37, 2
    %s126 = sadd.s32 %s125, %s33
    %s127 = ssub.s32 %s124, %s126
    %p128 = scmp.eq.s32.totalorder %s127, 0
    %s130 = sadd.s32 %s129, 1
    %s131 = scalar_select %p128, %s129, %s130
    %p134 = pneg %p128
    %p135 = scmp.eq.s32.totalorder %s11, 3
    %p136 = por %p134, %p135
    %p137 = scmp.ne.s32.totalorder %s129, %s132
    %p138 = scmp.eq.s32.totalorder %s11, 0
    %p139 = por %p137, %p138
    %p140 = scmp.ne.s32.totalorder %s129, %s132
    %p141 = scmp.eq.s32.totalorder %s16, 3
    %p142 = por %p140, %p141
    %p143 = scmp.ne.s32.totalorder %s132, %s133
    %p144 = scmp.eq.s32.totalorder %s16, 0
    %p145 = por %p143, %p144
    %p146 = scmp.ne.s32.totalorder %s132, %s133
    %p147 = scmp.eq.s32.totalorder %s17, 3
    %p148 = por %p146, %p147
    %p150 = scmp.ne.s32.totalorder %s133, %s149
    %p151 = scmp.eq.s32.totalorder %s17, 0
    %p152 = por %p150, %p151
    %s153 = smul.u32 %s18, 2
    %s154 = sadd.s32 %s153, %s19
    %s155 = smul.u32 %s37, 2
    %s156 = sadd.s32 %s155, %s33
    %s157 = ssub.s32 %s154, %s156
    %p158 = scmp.eq.s32.totalorder %s157, 0
    %s160 = sadd.s32 %s159, 1
    %s161 = scalar_select %p158, %s159, %s160
    %p164 = pneg %p158
    %p165 = scmp.eq.s32.totalorder %s11, 3
    %p166 = por %p164, %p165
    %p167 = scmp.ne.s32.totalorder %s159, %s162
    %p168 = scmp.eq.s32.totalorder %s11, 0
    %p169 = por %p167, %p168
    %p170 = scmp.ne.s32.totalorder %s159, %s162
    %p171 = scmp.eq.s32.totalorder %s16, 3
    %p172 = por %p170, %p171
    %p173 = scmp.ne.s32.totalorder %s162, %s163
    %p174 = scmp.eq.s32.totalorder %s16, 0
    %p175 = por %p173, %p174
    %p176 = scmp.ne.s32.totalorder %s162, %s163
    %p177 = scmp.eq.s32.totalorder %s17, 3
    %p178 = por %p176, %p177
    %p180 = scmp.ne.s32.totalorder %s163, %s179
    %p181 = scmp.eq.s32.totalorder %s17, 0
    %p182 = por %p180, %p181
    %p183 = scmp.le.s32.totalorder 1, %s11
    %p184 = scmp.lt.s32.totalorder %s11, 5
    %p185 = pnand %p183, %p184
    %p186 = pneg %p185
    // Predicated region
    $region9: #{generative_forward.36} parent=5 // pred_check
      _
    $region10: #{generative_forward.36} parent=5 // pred_check_branch
      %188 = sbr.rel (%p185) target = $region12
    $region11: #{generative_forward.36} parent=5 // pred_region
      %s189 = ssub.s32 %s11, 1
      // Predicated region
      $region13: #{generative_forward.36} parent=11 // pred_check
        %p190 = pneg %p83
      $region14: #{generative_forward.36} parent=11 // pred_check_branch
        %192 = sbr.rel (%p190) target = $region16
      $region15: #{generative_forward.36} parent=11 // pred_region
        _
      $region16: #{generative_forward.36} parent=11 // pred_fallthru
        _
    $region12: #{generative_forward.36} parent=5 // pred_fallthru
      _
    %p193 = scmp.lt.s32.totalorder %s11, 4
    // Predicated region
    $region17: #{generative_forward.36} parent=5 // pred_check
      %p194 = pneg %p193
    $region18: #{generative_forward.36} parent=5 // pred_check_branch
      %196 = sbr.rel (%p194) target = $region20
    $region19: #{generative_forward.36} parent=5 // pred_region
      // Predicated region
      $region21: #{generative_forward.36} parent=19 // pred_check
        %p197 = pneg %p56
      $region22: #{generative_forward.36} parent=19 // pred_check_branch
        %199 = sbr.rel (%p197) target = $region24
      $region23: #{generative_forward.36} parent=19 // pred_region
        %s200 = smul.u32 %s18, 2
        %s201 = sadd.s32 %s200, %s19
        %s202 = sadd.s32 %s201, %s20
        %s203 = smul.u32 2, %s202
        %p204 = scmp.lt.s32.totalorder %s203, 7
        %s205 = scalar_select %p204, %s203, 7
        %s206 = smul.addr %s205, 2
        %s207 = smul.addr %s206, 4
        %s208 = scalar_lea.vmem %s0, %s207
        %s209 = smul.u32 %s18, 2
        %s210 = sadd.s32 %s209, %s19
        %s211 = sadd.s32 %s210, %s20
        %s212 = smul.u32 2, %s211
      $region24: #{generative_forward.36} parent=19 // pred_fallthru
        _
    $region20: #{generative_forward.36} parent=5 // pred_fallthru
      _
    %p213 = scmp.le.s32.totalorder 1, %s11
    %p214 = scmp.lt.s32.totalorder %s11, 5
    %p215 = pnand %p213, %p214
    %p216 = pneg %p215
    // Predicated region
    $region25: #{generative_forward.36} parent=5 // pred_check
      _
    $region26: #{generative_forward.36} parent=5 // pred_check_branch
      %218 = sbr.rel (%p215) target = $region28
    $region27: #{generative_forward.36} parent=5 // pred_region
      %s219 = ssub.s32 %s11, 1
      %s220 = smul.u32 %s21, 2
      %s221 = sadd.s32 %s220, %s22
      %s222 = sadd.s32 %s221, %s23
      %s223 = smul.u32 2, %s222
      %p224 = scmp.lt.s32.totalorder %s223, 7
      %s225 = scalar_select %p224, %s223, 7
      %s226 = smul.addr %s225, 2
      %s227 = smul.addr %s226, 4
      %s228 = scalar_lea.vmem %s0, %s227
      %p229 = pneg %p62
      %p230 = pneg %p59
      %p231 = pneg %p83
      %p232 = pneg %p80
      %p233 = pneg %p115
      %p234 = pneg %p112
      %s235 = smul.u32 %s21, 2
      %s236 = sadd.s32 %s235, %s22
      %s237 = sadd.s32 %s236, %s23
      %s238 = smul.u32 2, %s237
      %p239 = scmp.lt.s32.totalorder %s238, 7
      %s240 = scalar_select %p239, %s238, 7
      %s241 = smul.addr %s240, 4
      %s242 = scalar_lea.vmem %s2, %s241
      %p243 = pneg %p145
      %p244 = pneg %p142
      %s245 = smul.u32 %s21, 2
      %s246 = sadd.s32 %s245, %s22
      %p247 = scmp.lt.s32.totalorder %s246, 3
      %s248 = scalar_select %p247, %s246, 3
      %s249 = scalar_lea.vmem %s3, %s248
      %p250 = pneg %p175
      %p251 = pneg %p172
      %s252 = smul.u32 %s21, 2
      %s253 = sadd.s32 %s252, %s22
      %p254 = scmp.lt.s32.totalorder %s253, 3
      %s255 = scalar_select %p254, %s253, 3
      %s256 = scalar_lea.vmem %s4, %s255
      %s257 = smul.u32 %s21, 2
      %s258 = sadd.s32 %s257, %s22
      %s259 = sadd.s32 %s258, %s23
      %s260 = smul.u32 2, %s259
      %p261 = scmp.lt.s32.totalorder %s260, 7
      %s262 = scalar_select %p261, %s260, 7
      %s263 = smul.addr %s262, 2
      %s264 = smul.addr %s263, 4
      %s265 = scalar_lea.vmem %s0, %s264
      %s266 = smul.u32 %s21, 2
      %s267 = sadd.s32 %s266, %s22
      %s268 = sadd.s32 %s267, %s23
      %s269 = smul.u32 2, %s268
      %s270 = smul.u32 %s21, 2
      %s271 = sadd.s32 %s270, %s22
      %s272 = sadd.s32 %s271, %s23
      %s273 = smul.u32 2, %s272
      %p274 = scmp.lt.s32.totalorder %s273, 7
      %s275 = scalar_select %p274, %s273, 7
      %s276 = smul.addr %s275, 4
      %s277 = scalar_lea.vmem %s2, %s276
      %s278 = smul.u32 %s21, 2
      %s279 = sadd.s32 %s278, %s22
      %s280 = sadd.s32 %s279, %s23
      %s281 = smul.u32 2, %s280
      %s282 = smul.u32 %s21, 2
      %s283 = sadd.s32 %s282, %s22
      %p284 = scmp.lt.s32.totalorder %s283, 3
      %s285 = scalar_select %p284, %s283, 3
      %s286 = scalar_lea.vmem %s3, %s285
      %s287 = smul.u32 %s21, 2
      %s288 = sadd.s32 %s287, %s22
      %s289 = smul.u32 %s21, 2
      %s290 = sadd.s32 %s289, %s22
      %p291 = scmp.lt.s32.totalorder %s290, 3
      %s292 = scalar_select %p291, %s290, 3
      %s293 = scalar_lea.vmem %s4, %s292
      %s294 = smul.u32 %s21, 2
      %s295 = sadd.s32 %s294, %s22
      %v297 = vld [vmem:[%s265] sm:$0xff]
      %v298 = vld [vmem:[%s265 + $0x8] sm:$0xff]
      %v299 = vld [vmem:[%s1] sm:$0xf]
      %v300 = vld [vmem:[%s1 + $0x4] sm:$0xf]
      %v301 = vld [vmem:[%s1 + $0x8] sm:$0xf]
      %v302 = vld [vmem:[%s1 + $0xc] sm:$0xf]
      %v303 = vld [vmem:[%s1 + $0x10] sm:$0xf]
      %v304 = vld [vmem:[%s1 + $0x14] sm:$0xf]
      %v305 = vld [vmem:[%s1 + $0x18] sm:$0xf]
      %v306 = vld [vmem:[%s1 + $0x1c] sm:$0xf]
      %v307 = vld [vmem:[%s1 + $0x20] sm:$0xf]
      %v308 = vld [vmem:[%s1 + $0x24] sm:$0xf]
      %v309 = vld [vmem:[%s1 + $0x28] sm:$0xf]
      %v310 = vld [vmem:[%s1 + $0x2c] sm:$0xf]
      %v311 = vld [vmem:[%s1 + $0x30] sm:$0xf]
      %v312 = vld [vmem:[%s1 + $0x34] sm:$0xf]
      %v313 = vld [vmem:[%s1 + $0x38] sm:$0xf]
      %v314 = vld [vmem:[%s1 + $0x3c] sm:$0xf]
      %v315 = vld [vmem:[%s1 + $0x40] sm:$0xf]
      %v316 = vld [vmem:[%s1 + $0x44] sm:$0xf]
      %v317 = vld [vmem:[%s1 + $0x48] sm:$0xf]
      %v318 = vld [vmem:[%s1 + $0x4c] sm:$0xf]
      %v319 = vld [vmem:[%s1 + $0x50] sm:$0xf]
      %v320 = vld [vmem:[%s1 + $0x54] sm:$0xf]
      %v321 = vld [vmem:[%s1 + $0x58] sm:$0xf]
      %v322 = vld [vmem:[%s1 + $0x5c] sm:$0xf]
      %v323 = vld [vmem:[%s1 + $0x60] sm:$0xf]
      %v324 = vld [vmem:[%s1 + $0x64] sm:$0xf]
      %v325 = vld [vmem:[%s1 + $0x68] sm:$0xf]
      %v326 = vld [vmem:[%s1 + $0x6c] sm:$0xf]
      %v327 = vld [vmem:[%s1 + $0x70] sm:$0xf]
      %v328 = vld [vmem:[%s1 + $0x74] sm:$0xf]
      %v329 = vld [vmem:[%s1 + $0x78] sm:$0xf]
      %v330 = vld [vmem:[%s1 + $0x7c] sm:$0xf]
      %v333 = vunpack.c.l.b16 %v297
      %v334 = vunpack.c.h.b16 %v297
      %v335 = vunpack.c.l.b16 %v298
      %v336 = vunpack.c.h.b16 %v298
      %v337 = vpack.c.b16 %v335, %v333
      %v338 = vpack.c.b16 %v336, %v334
      %v373 = vunpack.c.l.b16 %v299
      %v374 = vunpack.c.l.b16 %v300
      %v375 = vunpack.c.l.b16 %v301
      %v376 = vunpack.c.l.b16 %v302
      %v377 = vunpack.c.l.b16 %v303
      %v378 = vunpack.c.l.b16 %v304
      %v379 = vunpack.c.l.b16 %v305
      %v380 = vunpack.c.l.b16 %v306
      %v381 = vunpack.c.l.b16 %v307
      %v382 = vunpack.c.l.b16 %v308
      %v383 = vunpack.c.l.b16 %v309
      %v384 = vunpack.c.l.b16 %v310
      %v385 = vunpack.c.l.b16 %v311
      %v386 = vunpack.c.l.b16 %v312
      %v387 = vunpack.c.l.b16 %v313
      %v388 = vunpack.c.l.b16 %v314
      %v389 = vunpack.c.l.b16 %v315
      %v390 = vunpack.c.l.b16 %v316
      %v391 = vunpack.c.l.b16 %v317
      %v392 = vunpack.c.l.b16 %v318
      %v393 = vunpack.c.l.b16 %v319
      %v394 = vunpack.c.l.b16 %v320
      %v395 = vunpack.c.l.b16 %v321
      %v396 = vunpack.c.l.b16 %v322
      %v397 = vunpack.c.l.b16 %v323
      %v398 = vunpack.c.l.b16 %v324
      %v399 = vunpack.c.l.b16 %v325
      %v400 = vunpack.c.l.b16 %v326
      %v401 = vunpack.c.l.b16 %v327
      %v402 = vunpack.c.l.b16 %v328
      %v403 = vunpack.c.l.b16 %v329
      %v404 = vunpack.c.l.b16 %v330
      %v405 = vpack.c.b16 %v374, %v373
      %v406 = vpack.c.b16 %v376, %v375
      %v407 = vpack.c.b16 %v378, %v377
      %v408 = vpack.c.b16 %v380, %v379
      %v409 = vpack.c.b16 %v382, %v381
      %v410 = vpack.c.b16 %v384, %v383
      %v411 = vpack.c.b16 %v386, %v385
      %v412 = vpack.c.b16 %v388, %v387
      %v413 = vpack.c.b16 %v390, %v389
      %v414 = vpack.c.b16 %v392, %v391
      %v415 = vpack.c.b16 %v394, %v393
      %v416 = vpack.c.b16 %v396, %v395
      %v417 = vpack.c.b16 %v398, %v397
      %v418 = vpack.c.b16 %v400, %v399
      %v419 = vpack.c.b16 %v402, %v401
      %v420 = vpack.c.b16 %v404, %v403
      %437 = vmatprep.subr.bf16.mxu0 0
      %438 = vmatpush1.bf16.msra.mxu0 %v405
      %439 = vmatprep.subr.bf16.mxu0 0
      %440 = vmatpush1.bf16.msra.mxu0 %v406
      %441 = vmatprep.subr.bf16.mxu0 0
      %442 = vmatpush1.bf16.msra.mxu0 %v407
      %443 = vmatprep.subr.bf16.mxu0 0
      %444 = vmatpush1.bf16.msra.mxu0 %v408
      %445 = vmatprep.subr.bf16.mxu0 0
      %446 = vmatpush1.bf16.msra.mxu0 %v409
      %447 = vmatprep.subr.bf16.mxu0 0
      %448 = vmatpush1.bf16.msra.mxu0 %v410
      %449 = vmatprep.subr.bf16.mxu0 0
      %450 = vmatpush1.bf16.msra.mxu0 %v411
      %451 = vmatprep.subr.bf16.mxu0 0
      %452 = vmatpush1.bf16.msra.mxu0 %v412
      %453 = vmatprep.subr.bf16.mxu0 0
      %454 = vmatpush1.bf16.msra.mxu0 %v413
      %455 = vmatprep.subr.bf16.mxu0 0
      %456 = vmatpush1.bf16.msra.mxu0 %v414
      %457 = vmatprep.subr.bf16.mxu0 0
      %458 = vmatpush1.bf16.msra.mxu0 %v415
      %459 = vmatprep.subr.bf16.mxu0 0
      %460 = vmatpush1.bf16.msra.mxu0 %v416
      %461 = vmatprep.subr.bf16.mxu0 0
      %462 = vmatpush1.bf16.msra.mxu0 %v417
      %463 = vmatprep.subr.bf16.mxu0 0
      %464 = vmatpush1.bf16.msra.mxu0 %v418
      %465 = vmatprep.subr.bf16.mxu0 0
      %466 = vmatpush1.bf16.msra.mxu0 %v419
      %467 = vmatprep.subr.bf16.mxu0 0
      %468 = vmatpush1.bf16.msra.mxu0 %v420
      %469 = vmatprep.mubr.bf16.mxu0 %v338
      %470 = vmatmul.mubr.bf16.gmra.mrb[0].mxu0 %v337
      %v471 = vpop.f32.mrb[0].mxu0
      %v472 = vadd.f32 0.0, %v471
      %v473 = vpop.f32.mrb[0].mxu0
      %v474 = vpop.f32.mrb[0].mxu0
      %v475 = vadd.f32 0.0, %v474
      %v476 = vpop.f32.mrb[0].mxu0
      %477 = vdwg.mxu0
      %v478 = vpack.c.bf16 %v475, %v472
      %v480 = vunpack.c.l.b16 %v478
      %v481 = vunpack.c.h.b16 %v478
      %v482 = vpack.c.b16 %v480, %v480
      %v483 = vpack.c.b16 %v481, %v481
      %486 = vst [vmem:[%s277] sm:$0xf] %v482
      %487 = vst [vmem:[%s277 + $0x4] sm:$0xf] %v483
      %p488 = scmp.eq.s32.totalorder %s23, 0
      // Predicated region
      $region29: #{generative_forward.36} parent=27 // pred_check
        %p489 = pneg %p488
      $region30: #{generative_forward.36} parent=27 // pred_check_branch
        %491 = sbr.rel (%p489) target = $region32
      $region31: #{generative_forward.36} parent=27 // pred_region
        %492 = vst [vmem:[%s286] sm:$0x1] 0.0
        %493 = vst [vmem:[%s293] sm:$0x1] 0.0
      $region32: #{generative_forward.36} parent=27 // pred_fallthru
        _
      %v494 = vld [vmem:[%s286] sm:$0x1]
      %v495 = vadd.f32 %v472, %v475
      %v496 = vrot.slane %v495, 4
      %v497 = vadd.f32 %v495, %v496
      %v498 = vrot.slane %v497, 2
      %v499 = vadd.f32 %v497, %v498
      %v500 = vrot.slane %v499, 1
      %v501 = vadd.f32 %v499, %v500
      %v502 = vadd.f32 %v494, %v501
      %503 = vst [vmem:[%s286] sm:$0x1] %v502
      %v504 = vld [vmem:[%s293] sm:$0x1]
      %v505 = vmul.f32 %v472, %v472
      %v506 = vmul.f32 %v475, %v475
      %v507 = vadd.f32 %v505, %v506
      %v508 = vrot.slane %v507, 4
      %v509 = vadd.f32 %v507, %v508
      %v510 = vrot.slane %v509, 2
      %v511 = vadd.f32 %v509, %v510
      %v512 = vrot.slane %v511, 1
      %v513 = vadd.f32 %v511, %v512
      %v514 = vadd.f32 %v504, %v513
      %515 = vst [vmem:[%s293] sm:$0x1] %v514
      %s516 = smul.u32 %s21, 2
      %s517 = sadd.s32 %s516, %s22
      %s518 = sadd.s32 %s517, %s23
      %s519 = smul.u32 2, %s518
      %p520 = scmp.lt.s32.totalorder %s519, 7
      %s521 = scalar_select %p520, %s519, 7
      %s522 = smul.addr %s521, 4
      %s523 = scalar_lea.vmem %s2, %s522
      %s524 = smul.u32 %s21, 2
      %s525 = sadd.s32 %s524, %s22
      %p526 = scmp.lt.s32.totalorder %s525, 3
      %s527 = scalar_select %p526, %s525, 3
      %s528 = scalar_lea.vmem %s3, %s527
      %s529 = smul.u32 %s21, 2
      %s530 = sadd.s32 %s529, %s22
      %p531 = scmp.lt.s32.totalorder %s530, 3
      %s532 = scalar_select %p531, %s530, 3
      %s533 = scalar_lea.vmem %s4, %s532
      // Predicated region
      $region33: #{generative_forward.36} parent=27 // pred_check
        %p534 = pneg %p112
      $region34: #{generative_forward.36} parent=27 // pred_check_branch
        %536 = sbr.rel (%p534) target = $region36
      $region35: #{generative_forward.36} parent=27 // pred_region
        %s537 = smul.u32 %s21, 2
        %s538 = sadd.s32 %s537, %s22
        %s539 = sadd.s32 %s538, %s23
        %s540 = smul.u32 2, %s539
      $region36: #{generative_forward.36} parent=27 // pred_fallthru
        _
      // Predicated region
      $region37: #{generative_forward.36} parent=27 // pred_check
        %p541 = pneg %p142
      $region38: #{generative_forward.36} parent=27 // pred_check_branch
        %543 = sbr.rel (%p541) target = $region40
      $region39: #{generative_forward.36} parent=27 // pred_region
        %s544 = smul.u32 %s21, 2
        %s545 = sadd.s32 %s544, %s22
      $region40: #{generative_forward.36} parent=27 // pred_fallthru
        _
      // Predicated region
      $region41: #{generative_forward.36} parent=27 // pred_check
        %p546 = pneg %p172
      $region42: #{generative_forward.36} parent=27 // pred_check_branch
        %548 = sbr.rel (%p546) target = $region44
      $region43: #{generative_forward.36} parent=27 // pred_region
        %s549 = smul.u32 %s21, 2
        %s550 = sadd.s32 %s549, %s22
      $region44: #{generative_forward.36} parent=27 // pred_fallthru
        _
    $region28: #{generative_forward.36} parent=5 // pred_fallthru
      _
    %p551 = scmp.le.s32.totalorder 2, %s11
    // Predicated region
    $region45: #{generative_forward.36} parent=5 // pred_check
      %p552 = pneg %p551
    $region46: #{generative_forward.36} parent=5 // pred_check_branch
      %554 = sbr.rel (%p552) target = $region48
    $region47: #{generative_forward.36} parent=5 // pred_region
      %s555 = ssub.s32 %s11, 2
      // Predicated region
      $region49: #{generative_forward.36} parent=47 // pred_check
        %p556 = pneg %p118
      $region50: #{generative_forward.36} parent=47 // pred_check_branch
        %558 = sbr.rel (%p556) target = $region52
      $region51: #{generative_forward.36} parent=47 // pred_region
        %s559 = smul.u32 %s24, 2
        %s560 = sadd.s32 %s559, %s25
        %s561 = sadd.s32 %s560, %s26
        %s562 = smul.u32 2, %s561
        %p563 = scmp.lt.s32.totalorder %s562, 7
        %s564 = scalar_select %p563, %s562, 7
        %s565 = smul.addr %s564, 4
        %s566 = scalar_lea.vmem %s2, %s565
      $region52: #{generative_forward.36} parent=47 // pred_fallthru
        _
      // Predicated region
      $region53: #{generative_forward.36} parent=47 // pred_check
        %p567 = pneg %p148
      $region54: #{generative_forward.36} parent=47 // pred_check_branch
        %569 = sbr.rel (%p567) target = $region56
      $region55: #{generative_forward.36} parent=47 // pred_region
        %s570 = smul.u32 %s24, 2
        %s571 = sadd.s32 %s570, %s25
        %p572 = scmp.lt.s32.totalorder %s571, 3
        %s573 = scalar_select %p572, %s571, 3
        %s574 = scalar_lea.vmem %s3, %s573
      $region56: #{generative_forward.36} parent=47 // pred_fallthru
        _
      // Predicated region
      $region57: #{generative_forward.36} parent=47 // pred_check
        %p575 = pneg %p178
      $region58: #{generative_forward.36} parent=47 // pred_check_branch
        %577 = sbr.rel (%p575) target = $region60
      $region59: #{generative_forward.36} parent=47 // pred_region
        %s578 = smul.u32 %s24, 2
        %s579 = sadd.s32 %s578, %s25
        %p580 = scmp.lt.s32.totalorder %s579, 3
        %s581 = scalar_select %p580, %s579, 3
        %s582 = scalar_lea.vmem %s4, %s581
      $region60: #{generative_forward.36} parent=47 // pred_fallthru
        _
    $region48: #{generative_forward.36} parent=5 // pred_fallthru
      _
  $region6: #{generative_forward.36} parent=0 // loop_footer
    %s15 = sadd.s32 1, %s11
  $region7: #{generative_forward.36} parent=0 // loop_footer_branch
    %10 = sbr.rel target = $region3
  $region8: #{generative_forward.36} parent=0 // loop_exit
    _

// kernel: generative_forward.38
$region0: #{generative_forward.38}
  #allocation0 [shape = 'u32[]', space=smem, size = 0x4, offset = 0x4, fixed_abs, tag = 'smem constant byte address 0x4 - core index']
  #allocation1 [shape = 'u32[144,128]{1,0:T(1,128)}', space=vmem, size = 0x12000, scoped, tag = 'internal scratch']
  %s0 = inlined_call_operand.vmem [shape: bf16[64,384], index: 0, kind: input, shape index: {}]
  %s1 = inlined_call_operand.vmem [shape: bf16[384,128], index: 1, kind: input, shape index: {}]
  %s2 = inlined_call_operand.vmem [shape: bf16[64,128], index: 2, kind: output, shape index: {0}]
  %s3 = inlined_call_operand.vmem [shape: f32[4,1,128], index: 3, kind: output, shape index: {1}]
  %s4 = inlined_call_operand.vmem [shape: f32[4,1,128], index: 4, kind: output, shape index: {2}]
  %5 = xla_tuple %s2, %s3, %s4
  %s6 = sld [smem:[#allocation0]]
  $region61: #{generative_forward.38} parent=0
    _
  %s8 = ssub.s32 1, %s6
  %s9 = scalar_select 0, %s8, %s6
  loop: start=0, step=1, limit=6
  $region2: #{generative_forward.38} parent=0 // loop_pre_header
    _
  $region3: #{generative_forward.38} parent=0 // loop_header
    %s11 = sphi 0, %s15
    %p12 = scmp.ge.s32.totalorder %s11, 6
    %s18 = sphi 0, %s37
    %s19 = sphi 0, %s33
    %s20 = sphi 0, %s29
    %s21 = sphi 0, %s18
    %s22 = sphi 0, %s19
    %s23 = sphi 0, %s20
    %s24 = sphi 0, %s21
    %s25 = sphi 0, %s22
    %s26 = sphi 0, %s23
    %s46 = sphi 0, %s48
    %s49 = sphi 0, %s46
    %s50 = sphi 0, %s49
    %s66 = sphi 0, %s50
    %s70 = sphi 0, %s70
    %s72 = sphi 0, %s70
    %s73 = sphi 0, %s72
    %s87 = sphi 0, %s73
    %s99 = sphi 0, %s101
    %s102 = sphi 0, %s99
    %s103 = sphi 0, %s102
    %s119 = sphi 0, %s103
    %s129 = sphi 0, %s131
    %s132 = sphi 0, %s129
    %s133 = sphi 0, %s132
    %s149 = sphi 0, %s133
    %s159 = sphi 0, %s161
    %s162 = sphi 0, %s159
    %s163 = sphi 0, %s162
    %s179 = sphi 0, %s163
  $region4: #{generative_forward.38} parent=0 // loop_header_branch
    %14 = sbr.rel (%p12) target = $region8
  $region5: #{generative_forward.38} parent=0 // loop_body
    %s16 = ssub.s32 %s11, 1
    %s17 = ssub.s32 %s11, 2
    %s27 = sadd.s32 1, %s20
    %p28 = scmp.ge.s32.totalorder %s27, 1
    %s29 = scalar_select %p28, 0, %s27
    %s30 = sadd.s32 1, %s19
    %s31 = scalar_select %p28, %s30, %s19
    %p32 = scmp.ge.s32.totalorder %s31, 2
    %s33 = scalar_select %p32, 0, %s31
    %s34 = sadd.s32 1, %s18
    %s35 = scalar_select %p32, %s34, %s18
    %p36 = scmp.ge.s32.totalorder %s35, 2
    %s37 = scalar_select %p36, 0, %s35
    %s38 = smul.u32 %s18, 2
    %s39 = sadd.s32 %s38, %s19
    %s40 = sadd.s32 %s39, %s20
    %s41 = smul.u32 %s37, 2
    %s42 = sadd.s32 %s41, %s33
    %s43 = sadd.s32 %s42, %s29
    %s44 = ssub.s32 %s40, %s43
    %p45 = scmp.eq.s32.totalorder %s44, 0
    %s47 = sadd.s32 %s46, 1
    %s48 = scalar_select %p45, %s46, %s47
    %p51 = pneg %p45
    %p52 = scmp.eq.s32.totalorder %s11, 3
    %p53 = por %p51, %p52
    %p54 = scmp.ne.s32.totalorder %s46, %s49
    %p55 = scmp.eq.s32.totalorder %s11, 0
    %p56 = por %p54, %p55
    %p57 = scmp.ne.s32.totalorder %s46, %s49
    %p58 = scmp.eq.s32.totalorder %s16, 3
    %p59 = por %p57, %p58
    %p60 = scmp.ne.s32.totalorder %s49, %s50
    %p61 = scmp.eq.s32.totalorder %s16, 0
    %p62 = por %p60, %p61
    %p63 = scmp.ne.s32.totalorder %s49, %s50
    %p64 = scmp.eq.s32.totalorder %s17, 3
    %p65 = por %p63, %p64
    %p67 = scmp.ne.s32.totalorder %s50, %s66
    %p68 = scmp.eq.s32.totalorder %s17, 0
    %p69 = por %p67, %p68
    %s71 = sadd.s32 %s70, 1
    %p74 = scmp.eq.s32.totalorder %s11, 3
    %p75 = scmp.ne.s32.totalorder %s70, %s72
    %p76 = scmp.eq.s32.totalorder %s11, 0
    %p77 = por %p75, %p76
    %p78 = scmp.ne.s32.totalorder %s70, %s72
    %p79 = scmp.eq.s32.totalorder %s16, 3
    %p80 = por %p78, %p79
    %p81 = scmp.ne.s32.totalorder %s72, %s73
    %p82 = scmp.eq.s32.totalorder %s16, 0
    %p83 = por %p81, %p82
    %p84 = scmp.ne.s32.totalorder %s72, %s73
    %p85 = scmp.eq.s32.totalorder %s17, 3
    %p86 = por %p84, %p85
    %p88 = scmp.ne.s32.totalorder %s73, %s87
    %p89 = scmp.eq.s32.totalorder %s17, 0
    %p90 = por %p88, %p89
    %s91 = smul.u32 %s18, 2
    %s92 = sadd.s32 %s91, %s19
    %s93 = sadd.s32 %s92, %s20
    %s94 = smul.u32 %s37, 2
    %s95 = sadd.s32 %s94, %s33
    %s96 = sadd.s32 %s95, %s29
    %s97 = ssub.s32 %s93, %s96
    %p98 = scmp.eq.s32.totalorder %s97, 0
    %s100 = sadd.s32 %s99, 1
    %s101 = scalar_select %p98, %s99, %s100
    %p104 = pneg %p98
    %p105 = scmp.eq.s32.totalorder %s11, 3
    %p106 = por %p104, %p105
    %p107 = scmp.ne.s32.totalorder %s99, %s102
    %p108 = scmp.eq.s32.totalorder %s11, 0
    %p109 = por %p107, %p108
    %p110 = scmp.ne.s32.totalorder %s99, %s102
    %p111 = scmp.eq.s32.totalorder %s16, 3
    %p112 = por %p110, %p111
    %p113 = scmp.ne.s32.totalorder %s102, %s103
    %p114 = scmp.eq.s32.totalorder %s16, 0
    %p115 = por %p113, %p114
    %p116 = scmp.ne.s32.totalorder %s102, %s103
    %p117 = scmp.eq.s32.totalorder %s17, 3
    %p118 = por %p116, %p117
    %p120 = scmp.ne.s32.totalorder %s103, %s119
    %p121 = scmp.eq.s32.totalorder %s17, 0
    %p122 = por %p120, %p121
    %s123 = smul.u32 %s18, 2
    %s124 = sadd.s32 %s123, %s19
    %s125 = smul.u32 %s37, 2
    %s126 = sadd.s32 %s125, %s33
    %s127 = ssub.s32 %s124, %s126
    %p128 = scmp.eq.s32.totalorder %s127, 0
    %s130 = sadd.s32 %s129, 1
    %s131 = scalar_select %p128, %s129, %s130
    %p134 = pneg %p128
    %p135 = scmp.eq.s32.totalorder %s11, 3
    %p136 = por %p134, %p135
    %p137 = scmp.ne.s32.totalorder %s129, %s132
    %p138 = scmp.eq.s32.totalorder %s11, 0
    %p139 = por %p137, %p138
    %p140 = scmp.ne.s32.totalorder %s129, %s132
    %p141 = scmp.eq.s32.totalorder %s16, 3
    %p142 = por %p140, %p141
    %p143 = scmp.ne.s32.totalorder %s132, %s133
    %p144 = scmp.eq.s32.totalorder %s16, 0
    %p145 = por %p143, %p144
    %p146 = scmp.ne.s32.totalorder %s132, %s133
    %p147 = scmp.eq.s32.totalorder %s17, 3
    %p148 = por %p146, %p147
    %p150 = scmp.ne.s32.totalorder %s133, %s149
    %p151 = scmp.eq.s32.totalorder %s17, 0
    %p152 = por %p150, %p151
    %s153 = smul.u32 %s18, 2
    %s154 = sadd.s32 %s153, %s19
    %s155 = smul.u32 %s37, 2
    %s156 = sadd.s32 %s155, %s33
    %s157 = ssub.s32 %s154, %s156
    %p158 = scmp.eq.s32.totalorder %s157, 0
    %s160 = sadd.s32 %s159, 1
    %s161 = scalar_select %p158, %s159, %s160
    %p164 = pneg %p158
    %p165 = scmp.eq.s32.totalorder %s11, 3
    %p166 = por %p164, %p165
    %p167 = scmp.ne.s32.totalorder %s159, %s162
    %p168 = scmp.eq.s32.totalorder %s11, 0
    %p169 = por %p167, %p168
    %p170 = scmp.ne.s32.totalorder %s159, %s162
    %p171 = scmp.eq.s32.totalorder %s16, 3
    %p172 = por %p170, %p171
    %p173 = scmp.ne.s32.totalorder %s162, %s163
    %p174 = scmp.eq.s32.totalorder %s16, 0
    %p175 = por %p173, %p174
    %p176 = scmp.ne.s32.totalorder %s162, %s163
    %p177 = scmp.eq.s32.totalorder %s17, 3
    %p178 = por %p176, %p177
    %p180 = scmp.ne.s32.totalorder %s163, %s179
    %p181 = scmp.eq.s32.totalorder %s17, 0
    %p182 = por %p180, %p181
    %p183 = scmp.le.s32.totalorder 1, %s11
    %p184 = scmp.lt.s32.totalorder %s11, 5
    %p185 = pnand %p183, %p184
    %p186 = pneg %p185
    // Predicated region
    $region9: #{generative_forward.38} parent=5 // pred_check
      _
    $region10: #{generative_forward.38} parent=5 // pred_check_branch
      %188 = sbr.rel (%p185) target = $region12
    $region11: #{generative_forward.38} parent=5 // pred_region
      %s189 = ssub.s32 %s11, 1
      // Predicated region
      $region13: #{generative_forward.38} parent=11 // pred_check
        %p190 = pneg %p83
      $region14: #{generative_forward.38} parent=11 // pred_check_branch
        %192 = sbr.rel (%p190) target = $region16
      $region15: #{generative_forward.38} parent=11 // pred_region
        _
      $region16: #{generative_forward.38} parent=11 // pred_fallthru
        _
    $region12: #{generative_forward.38} parent=5 // pred_fallthru
      _
    %p193 = scmp.lt.s32.totalorder %s11, 4
    // Predicated region
    $region17: #{generative_forward.38} parent=5 // pred_check
      %p194 = pneg %p193
    $region18: #{generative_forward.38} parent=5 // pred_check_branch
      %196 = sbr.rel (%p194) target = $region20
    $region19: #{generative_forward.38} parent=5 // pred_region
      // Predicated region
      $region21: #{generative_forward.38} parent=19 // pred_check
        %p197 = pneg %p56
      $region22: #{generative_forward.38} parent=19 // pred_check_branch
        %199 = sbr.rel (%p197) target = $region24
      $region23: #{generative_forward.38} parent=19 // pred_region
        %s200 = smul.u32 %s18, 2
        %s201 = sadd.s32 %s200, %s19
        %s202 = sadd.s32 %s201, %s20
        %s203 = smul.u32 2, %s202
        %p204 = scmp.lt.s32.totalorder %s203, 7
        %s205 = scalar_select %p204, %s203, 7
        %s206 = smul.addr %s205, 3
        %s207 = smul.addr %s206, 4
        %s208 = scalar_lea.vmem %s0, %s207
        %s209 = smul.u32 %s18, 2
        %s210 = sadd.s32 %s209, %s19
        %s211 = sadd.s32 %s210, %s20
        %s212 = smul.u32 2, %s211
      $region24: #{generative_forward.38} parent=19 // pred_fallthru
        _
    $region20: #{generative_forward.38} parent=5 // pred_fallthru
      _
    %p213 = scmp.le.s32.totalorder 1, %s11
    %p214 = scmp.lt.s32.totalorder %s11, 5
    %p215 = pnand %p213, %p214
    %p216 = pneg %p215
    // Predicated region
    $region25: #{generative_forward.38} parent=5 // pred_check
      _
    $region26: #{generative_forward.38} parent=5 // pred_check_branch
      %218 = sbr.rel (%p215) target = $region28
    $region27: #{generative_forward.38} parent=5 // pred_region
      %s219 = ssub.s32 %s11, 1
      %s220 = smul.u32 %s21, 2
      %s221 = sadd.s32 %s220, %s22
      %s222 = sadd.s32 %s221, %s23
      %s223 = smul.u32 2, %s222
      %p224 = scmp.lt.s32.totalorder %s223, 7
      %s225 = scalar_select %p224, %s223, 7
      %s226 = smul.addr %s225, 3
      %s227 = smul.addr %s226, 4
      %s228 = scalar_lea.vmem %s0, %s227
      %p229 = pneg %p62
      %p230 = pneg %p59
      %p231 = pneg %p83
      %p232 = pneg %p80
      %p233 = pneg %p115
      %p234 = pneg %p112
      %s235 = smul.u32 %s21, 2
      %s236 = sadd.s32 %s235, %s22
      %s237 = sadd.s32 %s236, %s23
      %s238 = smul.u32 2, %s237
      %p239 = scmp.lt.s32.totalorder %s238, 7
      %s240 = scalar_select %p239, %s238, 7
      %s241 = smul.addr %s240, 4
      %s242 = scalar_lea.vmem %s2, %s241
      %p243 = pneg %p145
      %p244 = pneg %p142
      %s245 = smul.u32 %s21, 2
      %s246 = sadd.s32 %s245, %s22
      %p247 = scmp.lt.s32.totalorder %s246, 3
      %s248 = scalar_select %p247, %s246, 3
      %s249 = scalar_lea.vmem %s3, %s248
      %p250 = pneg %p175
      %p251 = pneg %p172
      %s252 = smul.u32 %s21, 2
      %s253 = sadd.s32 %s252, %s22
      %p254 = scmp.lt.s32.totalorder %s253, 3
      %s255 = scalar_select %p254, %s253, 3
      %s256 = scalar_lea.vmem %s4, %s255
      %s257 = smul.u32 %s21, 2
      %s258 = sadd.s32 %s257, %s22
      %s259 = sadd.s32 %s258, %s23
      %s260 = smul.u32 2, %s259
      %p261 = scmp.lt.s32.totalorder %s260, 7
      %s262 = scalar_select %p261, %s260, 7
      %s263 = smul.addr %s262, 3
      %s264 = smul.addr %s263, 4
      %s265 = scalar_lea.vmem %s0, %s264
      %s266 = smul.u32 %s21, 2
      %s267 = sadd.s32 %s266, %s22
      %s268 = sadd.s32 %s267, %s23
      %s269 = smul.u32 2, %s268
      %s270 = smul.u32 %s21, 2
      %s271 = sadd.s32 %s270, %s22
      %s272 = sadd.s32 %s271, %s23
      %s273 = smul.u32 2, %s272
      %p274 = scmp.lt.s32.totalorder %s273, 7
      %s275 = scalar_select %p274, %s273, 7
      %s276 = smul.addr %s275, 4
      %s277 = scalar_lea.vmem %s2, %s276
      %s278 = smul.u32 %s21, 2
      %s279 = sadd.s32 %s278, %s22
      %s280 = sadd.s32 %s279, %s23
      %s281 = smul.u32 2, %s280
      %s282 = smul.u32 %s21, 2
      %s283 = sadd.s32 %s282, %s22
      %p284 = scmp.lt.s32.totalorder %s283, 3
      %s285 = scalar_select %p284, %s283, 3
      %s286 = scalar_lea.vmem %s3, %s285
      %s287 = smul.u32 %s21, 2
      %s288 = sadd.s32 %s287, %s22
      %s289 = smul.u32 %s21, 2
      %s290 = sadd.s32 %s289, %s22
      %p291 = scmp.lt.s32.totalorder %s290, 3
      %s292 = scalar_select %p291, %s290, 3
      %s293 = scalar_lea.vmem %s4, %s292
      %s294 = smul.u32 %s21, 2
      %s295 = sadd.s32 %s294, %s22
      %v297 = vld [vmem:[%s265] sm:$0xff]
      %v298 = vld [vmem:[%s265 + $0x8] sm:$0xf]
      %v299 = vld [vmem:[%s265 + $0xc] sm:$0xff]
      %v300 = vld [vmem:[%s265 + $0x14] sm:$0xf]
      %v301 = vld [vmem:[%s1] sm:$0xf]
      %v302 = vld [vmem:[%s1 + $0x4] sm:$0xf]
      %v303 = vld [vmem:[%s1 + $0x8] sm:$0xf]
      %v304 = vld [vmem:[%s1 + $0xc] sm:$0xf]
      %v305 = vld [vmem:[%s1 + $0x10] sm:$0xf]
      %v306 = vld [vmem:[%s1 + $0x14] sm:$0xf]
      %v307 = vld [vmem:[%s1 + $0x18] sm:$0xf]
      %v308 = vld [vmem:[%s1 + $0x1c] sm:$0xf]
      %v309 = vld [vmem:[%s1 + $0x20] sm:$0xf]
      %v310 = vld [vmem:[%s1 + $0x24] sm:$0xf]
      %v311 = vld [vmem:[%s1 + $0x28] sm:$0xf]
      %v312 = vld [vmem:[%s1 + $0x2c] sm:$0xf]
      %v313 = vld [vmem:[%s1 + $0x30] sm:$0xf]
      %v314 = vld [vmem:[%s1 + $0x34] sm:$0xf]
      %v315 = vld [vmem:[%s1 + $0x38] sm:$0xf]
      %v316 = vld [vmem:[%s1 + $0x3c] sm:$0xf]
      %v317 = vld [vmem:[%s1 + $0x40] sm:$0xf]
      %v318 = vld [vmem:[%s1 + $0x44] sm:$0xf]
      %v319 = vld [vmem:[%s1 + $0x48] sm:$0xf]
      %v320 = vld [vmem:[%s1 + $0x4c] sm:$0xf]
      %v321 = vld [vmem:[%s1 + $0x50] sm:$0xf]
      %v322 = vld [vmem:[%s1 + $0x54] sm:$0xf]
      %v323 = vld [vmem:[%s1 + $0x58] sm:$0xf]
      %v324 = vld [vmem:[%s1 + $0x5c] sm:$0xf]
      %v325 = vld [vmem:[%s1 + $0x60] sm:$0xf]
      %v326 = vld [vmem:[%s1 + $0x64] sm:$0xf]
      %v327 = vld [vmem:[%s1 + $0x68] sm:$0xf]
      %v328 = vld [vmem:[%s1 + $0x6c] sm:$0xf]
      %v329 = vld [vmem:[%s1 + $0x70] sm:$0xf]
      %v330 = vld [vmem:[%s1 + $0x74] sm:$0xf]
      %v331 = vld [vmem:[%s1 + $0x78] sm:$0xf]
      %v332 = vld [vmem:[%s1 + $0x7c] sm:$0xf]
      %v333 = vld [vmem:[%s1 + $0x80] sm:$0xf]
      %v334 = vld [vmem:[%s1 + $0x84] sm:$0xf]
      %v335 = vld [vmem:[%s1 + $0x88] sm:$0xf]
      %v336 = vld [vmem:[%s1 + $0x8c] sm:$0xf]
      %v337 = vld [vmem:[%s1 + $0x90] sm:$0xf]
      %v338 = vld [vmem:[%s1 + $0x94] sm:$0xf]
      %v339 = vld [vmem:[%s1 + $0x98] sm:$0xf]
      %v340 = vld [vmem:[%s1 + $0x9c] sm:$0xf]
      %v341 = vld [vmem:[%s1 + $0xa0] sm:$0xf]
      %v342 = vld [vmem:[%s1 + $0xa4] sm:$0xf]
      %v343 = vld [vmem:[%s1 + $0xa8] sm:$0xf]
      %v344 = vld [vmem:[%s1 + $0xac] sm:$0xf]
      %v345 = vld [vmem:[%s1 + $0xb0] sm:$0xf]
      %v346 = vld [vmem:[%s1 + $0xb4] sm:$0xf]
      %v347 = vld [vmem:[%s1 + $0xb8] sm:$0xf]
      %v348 = vld [vmem:[%s1 + $0xbc] sm:$0xf]
      %v353 = vunpack.c.l.b16 %v297
      %v354 = vunpack.c.h.b16 %v297
      %v355 = vunpack.c.l.b16 %v298
      %v356 = vunpack.c.l.b16 %v299
      %v357 = vunpack.c.h.b16 %v299
      %v358 = vunpack.c.l.b16 %v300
      %v359 = vpack.c.b16 %v356, %v353
      %v360 = vpack.c.b16 %v357, %v354
      %v361 = vpack.c.b16 %v358, %v355
      %v413 = vunpack.c.l.b16 %v301
      %v414 = vunpack.c.l.b16 %v302
      %v415 = vunpack.c.l.b16 %v303
      %v416 = vunpack.c.l.b16 %v304
      %v417 = vunpack.c.l.b16 %v305
      %v418 = vunpack.c.l.b16 %v306
      %v419 = vunpack.c.l.b16 %v307
      %v420 = vunpack.c.l.b16 %v308
      %v421 = vunpack.c.l.b16 %v309
      %v422 = vunpack.c.l.b16 %v310
      %v423 = vunpack.c.l.b16 %v311
      %v424 = vunpack.c.l.b16 %v312
      %v425 = vunpack.c.l.b16 %v313
      %v426 = vunpack.c.l.b16 %v314
      %v427 = vunpack.c.l.b16 %v315
      %v428 = vunpack.c.l.b16 %v316
      %v429 = vunpack.c.l.b16 %v317
      %v430 = vunpack.c.l.b16 %v318
      %v431 = vunpack.c.l.b16 %v319
      %v432 = vunpack.c.l.b16 %v320
      %v433 = vunpack.c.l.b16 %v321
      %v434 = vunpack.c.l.b16 %v322
      %v435 = vunpack.c.l.b16 %v323
      %v436 = vunpack.c.l.b16 %v324
      %v437 = vunpack.c.l.b16 %v325
      %v438 = vunpack.c.l.b16 %v326
      %v439 = vunpack.c.l.b16 %v327
      %v440 = vunpack.c.l.b16 %v328
      %v441 = vunpack.c.l.b16 %v329
      %v442 = vunpack.c.l.b16 %v330
      %v443 = vunpack.c.l.b16 %v331
      %v444 = vunpack.c.l.b16 %v332
      %v445 = vunpack.c.l.b16 %v333
      %v446 = vunpack.c.l.b16 %v334
      %v447 = vunpack.c.l.b16 %v335
      %v448 = vunpack.c.l.b16 %v336
      %v449 = vunpack.c.l.b16 %v337
      %v450 = vunpack.c.l.b16 %v338
      %v451 = vunpack.c.l.b16 %v339
      %v452 = vunpack.c.l.b16 %v340
      %v453 = vunpack.c.l.b16 %v341
      %v454 = vunpack.c.l.b16 %v342
      %v455 = vunpack.c.l.b16 %v343
      %v456 = vunpack.c.l.b16 %v344
      %v457 = vunpack.c.l.b16 %v345
      %v458 = vunpack.c.l.b16 %v346
      %v459 = vunpack.c.l.b16 %v347
      %v460 = vunpack.c.l.b16 %v348
      %v461 = vpack.c.b16 %v414, %v413
      %v462 = vpack.c.b16 %v416, %v415
      %v463 = vpack.c.b16 %v418, %v417
      %v464 = vpack.c.b16 %v420, %v419
      %v465 = vpack.c.b16 %v422, %v421
      %v466 = vpack.c.b16 %v424, %v423
      %v467 = vpack.c.b16 %v426, %v425
      %v468 = vpack.c.b16 %v428, %v427
      %v469 = vpack.c.b16 %v430, %v429
      %v470 = vpack.c.b16 %v432, %v431
      %v471 = vpack.c.b16 %v434, %v433
      %v472 = vpack.c.b16 %v436, %v435
      %v473 = vpack.c.b16 %v438, %v437
      %v474 = vpack.c.b16 %v440, %v439
      %v475 = vpack.c.b16 %v442, %v441
      %v476 = vpack.c.b16 %v444, %v443
      %v477 = vpack.c.b16 %v446, %v445
      %v478 = vpack.c.b16 %v448, %v447
      %v479 = vpack.c.b16 %v450, %v449
      %v480 = vpack.c.b16 %v452, %v451
      %v481 = vpack.c.b16 %v454, %v453
      %v482 = vpack.c.b16 %v456, %v455
      %v483 = vpack.c.b16 %v458, %v457
      %v484 = vpack.c.b16 %v460, %v459
      %509 = vmatprep.subr.bf16.mxu0 0
      %510 = vmatpush1.bf16.msra.mxu0 %v461
      %511 = vmatprep.subr.bf16.mxu0 0
      %512 = vmatpush1.bf16.msra.mxu0 %v462
      %513 = vmatprep.subr.bf16.mxu0 0
      %514 = vmatpush1.bf16.msra.mxu0 %v463
      %515 = vmatprep.subr.bf16.mxu0 0
      %516 = vmatpush1.bf16.msra.mxu0 %v464
      %517 = vmatprep.subr.bf16.mxu0 0
      %518 = vmatpush1.bf16.msra.mxu0 %v465
      %519 = vmatprep.subr.bf16.mxu0 0
      %520 = vmatpush1.bf16.msra.mxu0 %v466
      %521 = vmatprep.subr.bf16.mxu0 0
      %522 = vmatpush1.bf16.msra.mxu0 %v467
      %523 = vmatprep.subr.bf16.mxu0 0
      %524 = vmatpush1.bf16.msra.mxu0 %v468
      %525 = vmatprep.subr.bf16.mxu0 0
      %526 = vmatpush1.bf16.msra.mxu0 %v469
      %527 = vmatprep.subr.bf16.mxu0 0
      %528 = vmatpush1.bf16.msra.mxu0 %v470
      %529 = vmatprep.subr.bf16.mxu0 0
      %530 = vmatpush1.bf16.msra.mxu0 %v471
      %531 = vmatprep.subr.bf16.mxu0 0
      %532 = vmatpush1.bf16.msra.mxu0 %v472
      %533 = vmatprep.subr.bf16.mxu0 0
      %534 = vmatpush1.bf16.msra.mxu0 %v473
      %535 = vmatprep.subr.bf16.mxu0 0
      %536 = vmatpush1.bf16.msra.mxu0 %v474
      %537 = vmatprep.subr.bf16.mxu0 0
      %538 = vmatpush1.bf16.msra.mxu0 %v475
      %539 = vmatprep.subr.bf16.mxu0 0
      %540 = vmatpush1.bf16.msra.mxu0 %v476
      %541 = vmatprep.mubr.bf16.mxu0 %v360
      %542 = vmatmul.mubr.bf16.gmra.mrb[0].mxu0 %v359
      %v543 = vpop.f32.mrb[0].mxu0
      %v544 = vadd.f32 0.0, %v543
      %v545 = vpop.f32.mrb[0].mxu0
      %v546 = vpop.f32.mrb[0].mxu0
      %v547 = vadd.f32 0.0, %v546
      %v548 = vpop.f32.mrb[0].mxu0
      %549 = vdwg.mxu0
      %550 = vmatprep.subr.bf16.mxu0 0
      %551 = vmatpush1.bf16.msra.mxu0 %v477
      %552 = vmatprep.subr.bf16.mxu0 0
      %553 = vmatpush1.bf16.msra.mxu0 %v478
      %554 = vmatprep.subr.bf16.mxu0 0
      %555 = vmatpush1.bf16.msra.mxu0 %v479
      %556 = vmatprep.subr.bf16.mxu0 0
      %557 = vmatpush1.bf16.msra.mxu0 %v480
      %558 = vmatprep.subr.bf16.mxu0 0
      %559 = vmatpush1.bf16.msra.mxu0 %v481
      %560 = vmatprep.subr.bf16.mxu0 0
      %561 = vmatpush1.bf16.msra.mxu0 %v482
      %562 = vmatprep.subr.bf16.mxu0 0
      %563 = vmatpush1.bf16.msra.mxu0 %v483
      %564 = vmatprep.subr.bf16.mxu0 0
      %565 = vmatpush1.bf16.msra.mxu0 %v484
      %566 = vmatprep.subr.bf16.mxu0 0
      %567 = vmatpush1.bf16.msra.mxu0 0
      %568 = vmatprep.subr.bf16.mxu0 0
      %569 = vmatpush1.bf16.msra.mxu0 0
      %570 = vmatprep.subr.bf16.mxu0 0
      %571 = vmatpush1.bf16.msra.mxu0 0
      %572 = vmatprep.subr.bf16.mxu0 0
      %573 = vmatpush1.bf16.msra.mxu0 0
      %574 = vmatprep.subr.bf16.mxu0 0
      %575 = vmatpush1.bf16.msra.mxu0 0
      %576 = vmatprep.subr.bf16.mxu0 0
      %577 = vmatpush1.bf16.msra.mxu0 0
      %578 = vmatprep.subr.bf16.mxu0 0
      %579 = vmatpush1.bf16.msra.mxu0 0
      %580 = vmatprep.subr.bf16.mxu0 0
      %581 = vmatpush1.bf16.msra.mxu0 0
      %582 = vmatprep.mubr.bf16.mxu0 0
      %583 = vmatmul.mubr.bf16.gmra.mrb[0].mxu0 %v361
      %v584 = vpop.f32.mrb[0].mxu0
      %v585 = vadd.f32 %v544, %v584
      %v586 = vpop.f32.mrb[0].mxu0
      %v587 = vpop.f32.mrb[0].mxu0
      %v588 = vadd.f32 %v547, %v587
      %v589 = vpop.f32.mrb[0].mxu0
      %590 = vdwg.mxu0
      %v591 = vpack.c.bf16 %v588, %v585
      %v593 = vunpack.c.l.b16 %v591
      %v594 = vunpack.c.h.b16 %v591
      %v595 = vpack.c.b16 %v593, %v593
      %v596 = vpack.c.b16 %v594, %v594
      %599 = vst [vmem:[%s277] sm:$0xf] %v595
      %600 = vst [vmem:[%s277 + $0x4] sm:$0xf] %v596
      %p601 = scmp.eq.s32.totalorder %s23, 0
      // Predicated region
      $region29: #{generative_forward.38} parent=27 // pred_check
        %p602 = pneg %p601
      $region30: #{generative_forward.38} parent=27 // pred_check_branch
        %604 = sbr.rel (%p602) target = $region32
      $region31: #{generative_forward.38} parent=27 // pred_region
        %605 = vst [vmem:[%s286] sm:$0x1] 0.0
        %606 = vst [vmem:[%s293] sm:$0x1] 0.0
      $region32: #{generative_forward.38} parent=27 // pred_fallthru
        _
      %v607 = vld [vmem:[%s286] sm:$0x1]
      %v608 = vadd.f32 %v585, %v588
      %v609 = vrot.slane %v608, 4
      %v610 = vadd.f32 %v608, %v609
      %v611 = vrot.slane %v610, 2
      %v612 = vadd.f32 %v610, %v611
      %v613 = vrot.slane %v612, 1
      %v614 = vadd.f32 %v612, %v613
      %v615 = vadd.f32 %v607, %v614
      %616 = vst [vmem:[%s286] sm:$0x1] %v615
      %v617 = vld [vmem:[%s293] sm:$0x1]
      %v618 = vmul.f32 %v585, %v585
      %v619 = vmul.f32 %v588, %v588
      %v620 = vadd.f32 %v618, %v619
      %v621 = vrot.slane %v620, 4
      %v622 = vadd.f32 %v620, %v621
      %v623 = vrot.slane %v622, 2
      %v624 = vadd.f32 %v622, %v623
      %v625 = vrot.slane %v624, 1
      %v626 = vadd.f32 %v624, %v625
      %v627 = vadd.f32 %v617, %v626
      %628 = vst [vmem:[%s293] sm:$0x1] %v627
      %s629 = smul.u32 %s21, 2
      %s630 = sadd.s32 %s629, %s22
      %s631 = sadd.s32 %s630, %s23
      %s632 = smul.u32 2, %s631
      %p633 = scmp.lt.s32.totalorder %s632, 7
      %s634 = scalar_select %p633, %s632, 7
      %s635 = smul.addr %s634, 4
      %s636 = scalar_lea.vmem %s2, %s635
      %s637 = smul.u32 %s21, 2
      %s638 = sadd.s32 %s637, %s22
      %p639 = scmp.lt.s32.totalorder %s638, 3
      %s640 = scalar_select %p639, %s638, 3
      %s641 = scalar_lea.vmem %s3, %s640
      %s642 = smul.u32 %s21, 2
      %s643 = sadd.s32 %s642, %s22
      %p644 = scmp.lt.s32.totalorder %s643, 3
      %s645 = scalar_select %p644, %s643, 3
      %s646 = scalar_lea.vmem %s4, %s645
      // Predicated region
      $region33: #{generative_forward.38} parent=27 // pred_check
        %p647 = pneg %p112
      $region34: #{generative_forward.38} parent=27 // pred_check_branch
        %649 = sbr.rel (%p647) target = $region36
      $region35: #{generative_forward.38} parent=27 // pred_region
        %s650 = smul.u32 %s21, 2
        %s651 = sadd.s32 %s650, %s22
        %s652 = sadd.s32 %s651, %s23
        %s653 = smul.u32 2, %s652
      $region36: #{generative_forward.38} parent=27 // pred_fallthru
        _
      // Predicated region
      $region37: #{generative_forward.38} parent=27 // pred_check
        %p654 = pneg %p142
      $region38: #{generative_forward.38} parent=27 // pred_check_branch
        %656 = sbr.rel (%p654) target = $region40
      $region39: #{generative_forward.38} parent=27 // pred_region
        %s657 = smul.u32 %s21, 2
        %s658 = sadd.s32 %s657, %s22
      $region40: #{generative_forward.38} parent=27 // pred_fallthru
        _
      // Predicated region
      $region41: #{generative_forward.38} parent=27 // pred_check
        %p659 = pneg %p172
      $region42: #{generative_forward.38} parent=27 // pred_check_branch
        %661 = sbr.rel (%p659) target = $region44
      $region43: #{generative_forward.38} parent=27 // pred_region
        %s662 = smul.u32 %s21, 2
        %s663 = sadd.s32 %s662, %s22
      $region44: #{generative_forward.38} parent=27 // pred_fallthru
        _
    $region28: #{generative_forward.38} parent=5 // pred_fallthru
      _
    %p664 = scmp.le.s32.totalorder 2, %s11
    // Predicated region
    $region45: #{generative_forward.38} parent=5 // pred_check
      %p665 = pneg %p664
    $region46: #{generative_forward.38} parent=5 // pred_check_branch
      %667 = sbr.rel (%p665) target = $region48
    $region47: #{generative_forward.38} parent=5 // pred_region
      %s668 = ssub.s32 %s11, 2
      // Predicated region
      $region49: #{generative_forward.38} parent=47 // pred_check
        %p669 = pneg %p118
      $region50: #{generative_forward.38} parent=47 // pred_check_branch
        %671 = sbr.rel (%p669) target = $region52
      $region51: #{generative_forward.38} parent=47 // pred_region
        %s672 = smul.u32 %s24, 2
        %s673 = sadd.s32 %s672, %s25
        %s674 = sadd.s32 %s673, %s26
        %s675 = smul.u32 2, %s674
        %p676 = scmp.lt.s32.totalorder %s675, 7
        %s677 = scalar_select %p676, %s675, 7
        %s678 = smul.addr %s677, 4
        %s679 = scalar_lea.vmem %s2, %s678
      $region52: #{generative_forward.38} parent=47 // pred_fallthru
        _
      // Predicated region
      $region53: #{generative_forward.38} parent=47 // pred_check
        %p680 = pneg %p148
      $region54: #{generative_forward.38} parent=47 // pred_check_branch
        %682 = sbr.rel (%p680) target = $region56
      $region55: #{generative_forward.38} parent=47 // pred_region
        %s683 = smul.u32 %s24, 2
        %s684 = sadd.s32 %s683, %s25
        %p685 = scmp.lt.s32.totalorder %s684, 3
        %s686 = scalar_select %p685, %s684, 3
        %s687 = scalar_lea.vmem %s3, %s686
      $region56: #{generative_forward.38} parent=47 // pred_fallthru
        _
      // Predicated region
      $region57: #{generative_forward.38} parent=47 // pred_check
        %p688 = pneg %p178
      $region58: #{generative_forward.38} parent=47 // pred_check_branch
        %690 = sbr.rel (%p688) target = $region60
      $region59: #{generative_forward.38} parent=47 // pred_region
        %s691 = smul.u32 %s24, 2
        %s692 = sadd.s32 %s691, %s25
        %p693 = scmp.lt.s32.totalorder %s692, 3
        %s694 = scalar_select %p693, %s692, 3
        %s695 = scalar_lea.vmem %s4, %s694
      $region60: #{generative_forward.38} parent=47 // pred_fallthru
        _
    $region48: #{generative_forward.38} parent=5 // pred_fallthru
      _
  $region6: #{generative_forward.38} parent=0 // loop_footer
    %s15 = sadd.s32 1, %s11
  $region7: #{generative_forward.38} parent=0 // loop_footer_branch
    %10 = sbr.rel target = $region3
  $region8: #{generative_forward.38} parent=0 // loop_exit
    _

// kernel: generative_forward.41
$region0: #{generative_forward.41}
  #allocation0 [shape = 'u32[]', space=smem, size = 0x4, offset = 0x4, fixed_abs, tag = 'smem constant byte address 0x4 - core index']
  #allocation1 [shape = 'u32[144,128]{1,0:T(1,128)}', space=vmem, size = 0x12000, scoped, tag = 'internal scratch']
  %s0 = inlined_call_operand.vmem [shape: bf16[64,128], index: 0, kind: input, shape index: {}]
  %s1 = inlined_call_operand.vmem [shape: f32[2,1,128], index: 1, kind: input, shape index: {}]
  %s2 = inlined_call_operand.vmem [shape: f32[2,1,128], index: 2, kind: input, shape index: {}]
  %s3 = inlined_call_operand.vmem [shape: bf16[64,128], index: 3, kind: input, shape index: {}]
  %s4 = inlined_call_operand.vmem [shape: bf16[64,128], index: 4, kind: output, shape index: {}]
  %s5 = sld [smem:[#allocation0]]
  $region49: #{generative_forward.41} parent=0
    _
  %s7 = ssub.s32 1, %s5
  %s8 = scalar_select 0, %s7, %s5
  loop: start=0, step=1, limit=6
  $region2: #{generative_forward.41} parent=0 // loop_pre_header
    _
  $region3: #{generative_forward.41} parent=0 // loop_header
    %s10 = sphi 0, %s14
    %p11 = scmp.ge.s32.totalorder %s10, 6
    %s17 = sphi 0, %s29
    %s18 = sphi 0, %s25
    %s19 = sphi 0, %s17
    %s20 = sphi 0, %s18
    %s21 = sphi 0, %s19
    %s22 = sphi 0, %s20
    %s36 = sphi 0, %s38
    %s39 = sphi 0, %s36
    %s40 = sphi 0, %s39
    %s56 = sphi 0, %s40
    %s62 = sphi 0, %s64
    %s65 = sphi 0, %s62
    %s66 = sphi 0, %s65
    %s82 = sphi 0, %s66
    %s88 = sphi 0, %s90
    %s91 = sphi 0, %s88
    %s92 = sphi 0, %s91
    %s108 = sphi 0, %s92
    %s118 = sphi 0, %s120
    %s121 = sphi 0, %s118
    %s122 = sphi 0, %s121
    %s138 = sphi 0, %s122
    %s148 = sphi 0, %s150
    %s151 = sphi 0, %s148
    %s152 = sphi 0, %s151
    %s168 = sphi 0, %s152
  $region4: #{generative_forward.41} parent=0 // loop_header_branch
    %13 = sbr.rel (%p11) target = $region8
  $region5: #{generative_forward.41} parent=0 // loop_body
    %s15 = ssub.s32 %s10, 1
    %s16 = ssub.s32 %s10, 2
    %s23 = sadd.s32 1, %s18
    %p24 = scmp.ge.s32.totalorder %s23, 2
    %s25 = scalar_select %p24, 0, %s23
    %s26 = sadd.s32 1, %s17
    %s27 = scalar_select %p24, %s26, %s17
    %p28 = scmp.ge.s32.totalorder %s27, 2
    %s29 = scalar_select %p28, 0, %s27
    %s30 = smul.u32 %s17, 2
    %s31 = sadd.s32 %s30, %s18
    %s32 = smul.u32 %s29, 2
    %s33 = sadd.s32 %s32, %s25
    %s34 = ssub.s32 %s31, %s33
    %p35 = scmp.eq.s32.totalorder %s34, 0
    %s37 = sadd.s32 %s36, 1
    %s38 = scalar_select %p35, %s36, %s37
    %p41 = pneg %p35
    %p42 = scmp.eq.s32.totalorder %s10, 3
    %p43 = por %p41, %p42
    %p44 = scmp.ne.s32.totalorder %s36, %s39
    %p45 = scmp.eq.s32.totalorder %s10, 0
    %p46 = por %p44, %p45
    %p47 = scmp.ne.s32.totalorder %s36, %s39
    %p48 = scmp.eq.s32.totalorder %s15, 3
    %p49 = por %p47, %p48
    %p50 = scmp.ne.s32.totalorder %s39, %s40
    %p51 = scmp.eq.s32.totalorder %s15, 0
    %p52 = por %p50, %p51
    %p53 = scmp.ne.s32.totalorder %s39, %s40
    %p54 = scmp.eq.s32.totalorder %s16, 3
    %p55 = por %p53, %p54
    %p57 = scmp.ne.s32.totalorder %s40, %s56
    %p58 = scmp.eq.s32.totalorder %s16, 0
    %p59 = por %p57, %p58
    %s60 = ssub.s32 %s17, %s29
    %p61 = scmp.eq.s32.totalorder %s60, 0
    %s63 = sadd.s32 %s62, 1
    %s64 = scalar_select %p61, %s62, %s63
    %p67 = pneg %p61
    %p68 = scmp.eq.s32.totalorder %s10, 3
    %p69 = por %p67, %p68
    %p70 = scmp.ne.s32.totalorder %s62, %s65
    %p71 = scmp.eq.s32.totalorder %s10, 0
    %p72 = por %p70, %p71
    %p73 = scmp.ne.s32.totalorder %s62, %s65
    %p74 = scmp.eq.s32.totalorder %s15, 3
    %p75 = por %p73, %p74
    %p76 = scmp.ne.s32.totalorder %s65, %s66
    %p77 = scmp.eq.s32.totalorder %s15, 0
    %p78 = por %p76, %p77
    %p79 = scmp.ne.s32.totalorder %s65, %s66
    %p80 = scmp.eq.s32.totalorder %s16, 3
    %p81 = por %p79, %p80
    %p83 = scmp.ne.s32.totalorder %s66, %s82
    %p84 = scmp.eq.s32.totalorder %s16, 0
    %p85 = por %p83, %p84
    %s86 = ssub.s32 %s17, %s29
    %p87 = scmp.eq.s32.totalorder %s86, 0
    %s89 = sadd.s32 %s88, 1
    %s90 = scalar_select %p87, %s88, %s89
    %p93 = pneg %p87
    %p94 = scmp.eq.s32.totalorder %s10, 3
    %p95 = por %p93, %p94
    %p96 = scmp.ne.s32.totalorder %s88, %s91
    %p97 = scmp.eq.s32.totalorder %s10, 0
    %p98 = por %p96, %p97
    %p99 = scmp.ne.s32.totalorder %s88, %s91
    %p100 = scmp.eq.s32.totalorder %s15, 3
    %p101 = por %p99, %p100
    %p102 = scmp.ne.s32.totalorder %s91, %s92
    %p103 = scmp.eq.s32.totalorder %s15, 0
    %p104 = por %p102, %p103
    %p105 = scmp.ne.s32.totalorder %s91, %s92
    %p106 = scmp.eq.s32.totalorder %s16, 3
    %p107 = por %p105, %p106
    %p109 = scmp.ne.s32.totalorder %s92, %s108
    %p110 = scmp.eq.s32.totalorder %s16, 0
    %p111 = por %p109, %p110
    %s112 = smul.u32 %s17, 2
    %s113 = sadd.s32 %s112, %s18
    %s114 = smul.u32 %s29, 2
    %s115 = sadd.s32 %s114, %s25
    %s116 = ssub.s32 %s113, %s115
    %p117 = scmp.eq.s32.totalorder %s116, 0
    %s119 = sadd.s32 %s118, 1
    %s120 = scalar_select %p117, %s118, %s119
    %p123 = pneg %p117
    %p124 = scmp.eq.s32.totalorder %s10, 3
    %p125 = por %p123, %p124
    %p126 = scmp.ne.s32.totalorder %s118, %s121
    %p127 = scmp.eq.s32.totalorder %s10, 0
    %p128 = por %p126, %p127
    %p129 = scmp.ne.s32.totalorder %s118, %s121
    %p130 = scmp.eq.s32.totalorder %s15, 3
    %p131 = por %p129, %p130
    %p132 = scmp.ne.s32.totalorder %s121, %s122
    %p133 = scmp.eq.s32.totalorder %s15, 0
    %p134 = por %p132, %p133
    %p135 = scmp.ne.s32.totalorder %s121, %s122
    %p136 = scmp.eq.s32.totalorder %s16, 3
    %p137 = por %p135, %p136
    %p139 = scmp.ne.s32.totalorder %s122, %s138
    %p140 = scmp.eq.s32.totalorder %s16, 0
    %p141 = por %p139, %p140
    %s142 = smul.u32 %s17, 2
    %s143 = sadd.s32 %s142, %s18
    %s144 = smul.u32 %s29, 2
    %s145 = sadd.s32 %s144, %s25
    %s146 = ssub.s32 %s143, %s145
    %p147 = scmp.eq.s32.totalorder %s146, 0
    %s149 = sadd.s32 %s148, 1
    %s150 = scalar_select %p147, %s148, %s149
    %p153 = pneg %p147
    %p154 = scmp.eq.s32.totalorder %s10, 3
    %p155 = por %p153, %p154
    %p156 = scmp.ne.s32.totalorder %s148, %s151
    %p157 = scmp.eq.s32.totalorder %s10, 0
    %p158 = por %p156, %p157
    %p159 = scmp.ne.s32.totalorder %s148, %s151
    %p160 = scmp.eq.s32.totalorder %s15, 3
    %p161 = por %p159, %p160
    %p162 = scmp.ne.s32.totalorder %s151, %s152
    %p163 = scmp.eq.s32.totalorder %s15, 0
    %p164 = por %p162, %p163
    %p165 = scmp.ne.s32.totalorder %s151, %s152
    %p166 = scmp.eq.s32.totalorder %s16, 3
    %p167 = por %p165, %p166
    %p169 = scmp.ne.s32.totalorder %s152, %s168
    %p170 = scmp.eq.s32.totalorder %s16, 0
    %p171 = por %p169, %p170
    %p172 = scmp.le.s32.totalorder 1, %s10
    %p173 = scmp.lt.s32.totalorder %s10, 5
    %p174 = pnand %p172, %p173
    %p175 = pneg %p174
    // Predicated region
    $region9: #{generative_forward.41} parent=5 // pred_check
      _
    $region10: #{generative_forward.41} parent=5 // pred_check_branch
      %177 = sbr.rel (%p174) target = $region12
    $region11: #{generative_forward.41} parent=5 // pred_region
      %s178 = ssub.s32 %s10, 1
    $region12: #{generative_forward.41} parent=5 // pred_fallthru
      _
    %p179 = scmp.lt.s32.totalorder %s10, 4
    // Predicated region
    $region13: #{generative_forward.41} parent=5 // pred_check
      %p180 = pneg %p179
    $region14: #{generative_forward.41} parent=5 // pred_check_branch
      %182 = sbr.rel (%p180) target = $region16
    $region15: #{generative_forward.41} parent=5 // pred_region
      // Predicated region
      $region17: #{generative_forward.41} parent=15 // pred_check
        %p183 = pneg %p46
      $region18: #{generative_forward.41} parent=15 // pred_check_branch
        %185 = sbr.rel (%p183) target = $region20
      $region19: #{generative_forward.41} parent=15 // pred_region
        %s186 = smul.u32 %s17, 2
        %s187 = sadd.s32 %s186, %s18
        %s188 = smul.u32 2, %s187
        %p189 = scmp.lt.s32.totalorder %s188, 7
        %s190 = scalar_select %p189, %s188, 7
        %s191 = smul.addr %s190, 4
        %s192 = scalar_lea.vmem %s0, %s191
        %s193 = smul.u32 %s17, 2
        %s194 = sadd.s32 %s193, %s18
        %s195 = smul.u32 2, %s194
      $region20: #{generative_forward.41} parent=15 // pred_fallthru
        _
      // Predicated region
      $region21: #{generative_forward.41} parent=15 // pred_check
        %p196 = pneg %p72
      $region22: #{generative_forward.41} parent=15 // pred_check_branch
        %198 = sbr.rel (%p196) target = $region24
      $region23: #{generative_forward.41} parent=15 // pred_region
        %p199 = scmp.lt.s32.totalorder %s17, 1
        %s200 = scalar_select %p199, %s17, 1
        %s201 = scalar_lea.vmem %s1, %s200
      $region24: #{generative_forward.41} parent=15 // pred_fallthru
        _
      // Predicated region
      $region25: #{generative_forward.41} parent=15 // pred_check
        %p202 = pneg %p98
      $region26: #{generative_forward.41} parent=15 // pred_check_branch
        %204 = sbr.rel (%p202) target = $region28
      $region27: #{generative_forward.41} parent=15 // pred_region
        %p205 = scmp.lt.s32.totalorder %s17, 1
        %s206 = scalar_select %p205, %s17, 1
        %s207 = scalar_lea.vmem %s2, %s206
      $region28: #{generative_forward.41} parent=15 // pred_fallthru
        _
      // Predicated region
      $region29: #{generative_forward.41} parent=15 // pred_check
        %p208 = pneg %p128
      $region30: #{generative_forward.41} parent=15 // pred_check_branch
        %210 = sbr.rel (%p208) target = $region32
      $region31: #{generative_forward.41} parent=15 // pred_region
        %s211 = smul.u32 %s17, 2
        %s212 = sadd.s32 %s211, %s18
        %s213 = smul.u32 2, %s212
        %p214 = scmp.lt.s32.totalorder %s213, 7
        %s215 = scalar_select %p214, %s213, 7
        %s216 = smul.addr %s215, 4
        %s217 = scalar_lea.vmem %s3, %s216
        %s218 = smul.u32 %s17, 2
        %s219 = sadd.s32 %s218, %s18
        %s220 = smul.u32 2, %s219
      $region32: #{generative_forward.41} parent=15 // pred_fallthru
        _
    $region16: #{generative_forward.41} parent=5 // pred_fallthru
      _
    %p221 = scmp.le.s32.totalorder 1, %s10
    %p222 = scmp.lt.s32.totalorder %s10, 5
    %p223 = pnand %p221, %p222
    %p224 = pneg %p223
    // Predicated region
    $region33: #{generative_forward.41} parent=5 // pred_check
      _
    $region34: #{generative_forward.41} parent=5 // pred_check_branch
      %226 = sbr.rel (%p223) target = $region36
    $region35: #{generative_forward.41} parent=5 // pred_region
      %s227 = ssub.s32 %s10, 1
      %s228 = smul.u32 %s19, 2
      %s229 = sadd.s32 %s228, %s20
      %s230 = smul.u32 2, %s229
      %p231 = scmp.lt.s32.totalorder %s230, 7
      %s232 = scalar_select %p231, %s230, 7
      %s233 = smul.addr %s232, 4
      %s234 = scalar_lea.vmem %s0, %s233
      %p235 = pneg %p52
      %p236 = pneg %p49
      %p237 = scmp.lt.s32.totalorder %s19, 1
      %s238 = scalar_select %p237, %s19, 1
      %s239 = scalar_lea.vmem %s1, %s238
      %p240 = pneg %p78
      %p241 = pneg %p75
      %p242 = scmp.lt.s32.totalorder %s19, 1
      %s243 = scalar_select %p242, %s19, 1
      %s244 = scalar_lea.vmem %s2, %s243
      %p245 = pneg %p104
      %p246 = pneg %p101
      %s247 = smul.u32 %s19, 2
      %s248 = sadd.s32 %s247, %s20
      %s249 = smul.u32 2, %s248
      %p250 = scmp.lt.s32.totalorder %s249, 7
      %s251 = scalar_select %p250, %s249, 7
      %s252 = smul.addr %s251, 4
      %s253 = scalar_lea.vmem %s3, %s252
      %p254 = pneg %p134
      %p255 = pneg %p131
      %p256 = pneg %p164
      %p257 = pneg %p161
      %s258 = smul.u32 %s19, 2
      %s259 = sadd.s32 %s258, %s20
      %s260 = smul.u32 2, %s259
      %p261 = scmp.lt.s32.totalorder %s260, 7
      %s262 = scalar_select %p261, %s260, 7
      %s263 = smul.addr %s262, 4
      %s264 = scalar_lea.vmem %s4, %s263
      %s265 = smul.u32 %s19, 2
      %s266 = sadd.s32 %s265, %s20
      %s267 = smul.u32 2, %s266
      %p268 = scmp.lt.s32.totalorder %s267, 7
      %s269 = scalar_select %p268, %s267, 7
      %s270 = smul.addr %s269, 4
      %s271 = scalar_lea.vmem %s0, %s270
      %s272 = smul.u32 %s19, 2
      %s273 = sadd.s32 %s272, %s20
      %s274 = smul.u32 2, %s273
      %p275 = scmp.lt.s32.totalorder %s19, 1
      %s276 = scalar_select %p275, %s19, 1
      %s277 = scalar_lea.vmem %s1, %s276
      %p278 = scmp.lt.s32.totalorder %s19, 1
      %s279 = scalar_select %p278, %s19, 1
      %s280 = scalar_lea.vmem %s2, %s279
      %s281 = smul.u32 %s19, 2
      %s282 = sadd.s32 %s281, %s20
      %s283 = smul.u32 2, %s282
      %p284 = scmp.lt.s32.totalorder %s283, 7
      %s285 = scalar_select %p284, %s283, 7
      %s286 = smul.addr %s285, 4
      %s287 = scalar_lea.vmem %s3, %s286
      %s288 = smul.u32 %s19, 2
      %s289 = sadd.s32 %s288, %s20
      %s290 = smul.u32 2, %s289
      %s291 = smul.u32 %s19, 2
      %s292 = sadd.s32 %s291, %s20
      %s293 = smul.u32 2, %s292
      %p294 = scmp.lt.s32.totalorder %s293, 7
      %s295 = scalar_select %p294, %s293, 7
      %s296 = smul.addr %s295, 4
      %s297 = scalar_lea.vmem %s4, %s296
      %s298 = smul.u32 %s19, 2
      %s299 = sadd.s32 %s298, %s20
      %s300 = smul.u32 2, %s299
      %v301 = vld [vmem:[%s277] sm:$0x1]
      %v302 = vmul.f32 %v301, 0.0625
      %v303 = vld [vmem:[%s280] sm:$0x1]
      %v304 = vmul.f32 %v303, 0.0625
      %v305 = vmul.f32 %v302, %v302
      %v306 = vsub.f32 %v304, %v305
      %v307 = vmax.f32 %v306, 0.0
      %v308 = vadd.f32 %v307, 1e-05
      %v309 = vrsqrt.pop %v308
      %v310 = vld [vmem:[%s271] sm:$0xf]
      %v311 = vld [vmem:[%s271 + $0x4] sm:$0xf]
      %v312 = vunpack.c.l.bf16 %v310
      %v313 = vunpack.c.l.bf16 %v311
      %v315 = vlaneseq
      %v316 = vshrl.u32 %v315, 7
      %v317 = vsub.s32 0, %v316
      %v318 = vrot.slane %v302, %v317
      %v320 = vsub.f32 %v312, %v318
      %v321 = vsub.f32 %v313, %v318
      %v323 = vlaneseq
      %v324 = vshrl.u32 %v323, 7
      %v325 = vsub.s32 0, %v324
      %v326 = vrot.slane %v309, %v325
      %v328 = vmul.f32 %v320, %v326
      %v329 = vmul.f32 %v321, %v326
      %vm330 = vcmp.ge.f32.partialorder %v328, 0.0
      %vm331 = vcmp.ge.f32.partialorder %v329, 0.0
      %v332 = vmul.f32 %v328, 0.01
      %v333 = vmul.f32 %v329, 0.01
      %v334 = vsel %vm330, %v328, %v332
      %v335 = vsel %vm331, %v329, %v333
      %v336 = vld [vmem:[%s287] sm:$0xf]
      %v337 = vld [vmem:[%s287 + $0x4] sm:$0xf]
      %v338 = vunpack.c.l.bf16 %v336
      %v339 = vunpack.c.l.bf16 %v337
      %v340 = vadd.f32 %v334, %v338
      %v341 = vadd.f32 %v335, %v339
      %v342 = vpack.c.bf16 %v341, %v340
      %v344 = vunpack.c.l.b16 %v342
      %v345 = vunpack.c.h.b16 %v342
      %v346 = vpack.c.b16 %v344, %v344
      %v347 = vpack.c.b16 %v345, %v345
      %350 = vst [vmem:[%s297] sm:$0xf] %v346
      %351 = vst [vmem:[%s297 + $0x4] sm:$0xf] %v347
      %s352 = smul.u32 %s19, 2
      %s353 = sadd.s32 %s352, %s20
      %s354 = smul.u32 2, %s353
      %p355 = scmp.lt.s32.totalorder %s354, 7
      %s356 = scalar_select %p355, %s354, 7
      %s357 = smul.addr %s356, 4
      %s358 = scalar_lea.vmem %s4, %s357
      // Predicated region
      $region37: #{generative_forward.41} parent=35 // pred_check
        %p359 = pneg %p161
      $region38: #{generative_forward.41} parent=35 // pred_check_branch
        %361 = sbr.rel (%p359) target = $region40
      $region39: #{generative_forward.41} parent=35 // pred_region
        %s362 = smul.u32 %s19, 2
        %s363 = sadd.s32 %s362, %s20
        %s364 = smul.u32 2, %s363
      $region40: #{generative_forward.41} parent=35 // pred_fallthru
        _
    $region36: #{generative_forward.41} parent=5 // pred_fallthru
      _
    %p365 = scmp.le.s32.totalorder 2, %s10
    // Predicated region
    $region41: #{generative_forward.41} parent=5 // pred_check
      %p366 = pneg %p365
    $region42: #{generative_forward.41} parent=5 // pred_check_branch
      %368 = sbr.rel (%p366) target = $region44
    $region43: #{generative_forward.41} parent=5 // pred_region
      %s369 = ssub.s32 %s10, 2
      // Predicated region
      $region45: #{generative_forward.41} parent=43 // pred_check
        %p370 = pneg %p167
      $region46: #{generative_forward.41} parent=43 // pred_check_branch
        %372 = sbr.rel (%p370) target = $region48
      $region47: #{generative_forward.41} parent=43 // pred_region
        %s373 = smul.u32 %s21, 2
        %s374 = sadd.s32 %s373, %s22
        %s375 = smul.u32 2, %s374
        %p376 = scmp.lt.s32.totalorder %s375, 7
        %s377 = scalar_select %p376, %s375, 7
        %s378 = smul.addr %s377, 4
        %s379 = scalar_lea.vmem %s4, %s378
      $region48: #{generative_forward.41} parent=43 // pred_fallthru
        _
    $region44: #{generative_forward.41} parent=5 // pred_fallthru
      _
  $region6: #{generative_forward.41} parent=0 // loop_footer
    %s14 = sadd.s32 1, %s10
  $region7: #{generative_forward.41} parent=0 // loop_footer_branch
    %9 = sbr.rel target = $region3
  $region8: #{generative_forward.41} parent=0 // loop_exit
    _

// kernel: generative_forward.47
$region0: #{generative_forward.47}
  #allocation0 [shape = 'u32[]', space=smem, size = 0x4, offset = 0x4, fixed_abs, tag = 'smem constant byte address 0x4 - core index']
  #allocation1 [shape = 'u32[144,128]{1,0:T(1,128)}', space=vmem, size = 0x12000, scoped, tag = 'internal scratch']
  %s0 = inlined_call_operand.vmem [shape: bf16[64,128], index: 0, kind: input, shape index: {}]
  %s1 = inlined_call_operand.vmem [shape: bf16[128,128], index: 1, kind: input, shape index: {}]
  %s2 = inlined_call_operand.vmem [shape: bf16[64,128], index: 2, kind: output, shape index: {0}]
  %s3 = inlined_call_operand.vmem [shape: f32[4,1,128], index: 3, kind: output, shape index: {1}]
  %s4 = inlined_call_operand.vmem [shape: f32[4,1,128], index: 4, kind: output, shape index: {2}]
  %5 = xla_tuple %s2, %s3, %s4
  %s6 = sld [smem:[#allocation0]]
  $region61: #{generative_forward.47} parent=0
    _
  %s8 = ssub.s32 1, %s6
  %s9 = scalar_select 0, %s8, %s6
  loop: start=0, step=1, limit=6
  $region2: #{generative_forward.47} parent=0 // loop_pre_header
    _
  $region3: #{generative_forward.47} parent=0 // loop_header
    %s11 = sphi 0, %s15
    %p12 = scmp.ge.s32.totalorder %s11, 6
    %s18 = sphi 0, %s37
    %s19 = sphi 0, %s33
    %s20 = sphi 0, %s29
    %s21 = sphi 0, %s18
    %s22 = sphi 0, %s19
    %s23 = sphi 0, %s20
    %s24 = sphi 0, %s21
    %s25 = sphi 0, %s22
    %s26 = sphi 0, %s23
    %s46 = sphi 0, %s48
    %s49 = sphi 0, %s46
    %s50 = sphi 0, %s49
    %s66 = sphi 0, %s50
    %s70 = sphi 0, %s70
    %s72 = sphi 0, %s70
    %s73 = sphi 0, %s72
    %s87 = sphi 0, %s73
    %s99 = sphi 0, %s101
    %s102 = sphi 0, %s99
    %s103 = sphi 0, %s102
    %s119 = sphi 0, %s103
    %s129 = sphi 0, %s131
    %s132 = sphi 0, %s129
    %s133 = sphi 0, %s132
    %s149 = sphi 0, %s133
    %s159 = sphi 0, %s161
    %s162 = sphi 0, %s159
    %s163 = sphi 0, %s162
    %s179 = sphi 0, %s163
  $region4: #{generative_forward.47} parent=0 // loop_header_branch
    %14 = sbr.rel (%p12) target = $region8
  $region5: #{generative_forward.47} parent=0 // loop_body
    %s16 = ssub.s32 %s11, 1
    %s17 = ssub.s32 %s11, 2
    %s27 = sadd.s32 1, %s20
    %p28 = scmp.ge.s32.totalorder %s27, 1
    %s29 = scalar_select %p28, 0, %s27
    %s30 = sadd.s32 1, %s19
    %s31 = scalar_select %p28, %s30, %s19
    %p32 = scmp.ge.s32.totalorder %s31, 2
    %s33 = scalar_select %p32, 0, %s31
    %s34 = sadd.s32 1, %s18
    %s35 = scalar_select %p32, %s34, %s18
    %p36 = scmp.ge.s32.totalorder %s35, 2
    %s37 = scalar_select %p36, 0, %s35
    %s38 = smul.u32 %s18, 2
    %s39 = sadd.s32 %s38, %s19
    %s40 = sadd.s32 %s39, %s20
    %s41 = smul.u32 %s37, 2
    %s42 = sadd.s32 %s41, %s33
    %s43 = sadd.s32 %s42, %s29
    %s44 = ssub.s32 %s40, %s43
    %p45 = scmp.eq.s32.totalorder %s44, 0
    %s47 = sadd.s32 %s46, 1
    %s48 = scalar_select %p45, %s46, %s47
    %p51 = pneg %p45
    %p52 = scmp.eq.s32.totalorder %s11, 3
    %p53 = por %p51, %p52
    %p54 = scmp.ne.s32.totalorder %s46, %s49
    %p55 = scmp.eq.s32.totalorder %s11, 0
    %p56 = por %p54, %p55
    %p57 = scmp.ne.s32.totalorder %s46, %s49
    %p58 = scmp.eq.s32.totalorder %s16, 3
    %p59 = por %p57, %p58
    %p60 = scmp.ne.s32.totalorder %s49, %s50
    %p61 = scmp.eq.s32.totalorder %s16, 0
    %p62 = por %p60, %p61
    %p63 = scmp.ne.s32.totalorder %s49, %s50
    %p64 = scmp.eq.s32.totalorder %s17, 3
    %p65 = por %p63, %p64
    %p67 = scmp.ne.s32.totalorder %s50, %s66
    %p68 = scmp.eq.s32.totalorder %s17, 0
    %p69 = por %p67, %p68
    %s71 = sadd.s32 %s70, 1
    %p74 = scmp.eq.s32.totalorder %s11, 3
    %p75 = scmp.ne.s32.totalorder %s70, %s72
    %p76 = scmp.eq.s32.totalorder %s11, 0
    %p77 = por %p75, %p76
    %p78 = scmp.ne.s32.totalorder %s70, %s72
    %p79 = scmp.eq.s32.totalorder %s16, 3
    %p80 = por %p78, %p79
    %p81 = scmp.ne.s32.totalorder %s72, %s73
    %p82 = scmp.eq.s32.totalorder %s16, 0
    %p83 = por %p81, %p82
    %p84 = scmp.ne.s32.totalorder %s72, %s73
    %p85 = scmp.eq.s32.totalorder %s17, 3
    %p86 = por %p84, %p85
    %p88 = scmp.ne.s32.totalorder %s73, %s87
    %p89 = scmp.eq.s32.totalorder %s17, 0
    %p90 = por %p88, %p89
    %s91 = smul.u32 %s18, 2
    %s92 = sadd.s32 %s91, %s19
    %s93 = sadd.s32 %s92, %s20
    %s94 = smul.u32 %s37, 2
    %s95 = sadd.s32 %s94, %s33
    %s96 = sadd.s32 %s95, %s29
    %s97 = ssub.s32 %s93, %s96
    %p98 = scmp.eq.s32.totalorder %s97, 0
    %s100 = sadd.s32 %s99, 1
    %s101 = scalar_select %p98, %s99, %s100
    %p104 = pneg %p98
    %p105 = scmp.eq.s32.totalorder %s11, 3
    %p106 = por %p104, %p105
    %p107 = scmp.ne.s32.totalorder %s99, %s102
    %p108 = scmp.eq.s32.totalorder %s11, 0
    %p109 = por %p107, %p108
    %p110 = scmp.ne.s32.totalorder %s99, %s102
    %p111 = scmp.eq.s32.totalorder %s16, 3
    %p112 = por %p110, %p111
    %p113 = scmp.ne.s32.totalorder %s102, %s103
    %p114 = scmp.eq.s32.totalorder %s16, 0
    %p115 = por %p113, %p114
    %p116 = scmp.ne.s32.totalorder %s102, %s103
    %p117 = scmp.eq.s32.totalorder %s17, 3
    %p118 = por %p116, %p117
    %p120 = scmp.ne.s32.totalorder %s103, %s119
    %p121 = scmp.eq.s32.totalorder %s17, 0
    %p122 = por %p120, %p121
    %s123 = smul.u32 %s18, 2
    %s124 = sadd.s32 %s123, %s19
    %s125 = smul.u32 %s37, 2
    %s126 = sadd.s32 %s125, %s33
    %s127 = ssub.s32 %s124, %s126
    %p128 = scmp.eq.s32.totalorder %s127, 0
    %s130 = sadd.s32 %s129, 1
    %s131 = scalar_select %p128, %s129, %s130
    %p134 = pneg %p128
    %p135 = scmp.eq.s32.totalorder %s11, 3
    %p136 = por %p134, %p135
    %p137 = scmp.ne.s32.totalorder %s129, %s132
    %p138 = scmp.eq.s32.totalorder %s11, 0
    %p139 = por %p137, %p138
    %p140 = scmp.ne.s32.totalorder %s129, %s132
    %p141 = scmp.eq.s32.totalorder %s16, 3
    %p142 = por %p140, %p141
    %p143 = scmp.ne.s32.totalorder %s132, %s133
    %p144 = scmp.eq.s32.totalorder %s16, 0
    %p145 = por %p143, %p144
    %p146 = scmp.ne.s32.totalorder %s132, %s133
    %p147 = scmp.eq.s32.totalorder %s17, 3
    %p148 = por %p146, %p147
    %p150 = scmp.ne.s32.totalorder %s133, %s149
    %p151 = scmp.eq.s32.totalorder %s17, 0
    %p152 = por %p150, %p151
    %s153 = smul.u32 %s18, 2
    %s154 = sadd.s32 %s153, %s19
    %s155 = smul.u32 %s37, 2
    %s156 = sadd.s32 %s155, %s33
    %s157 = ssub.s32 %s154, %s156
    %p158 = scmp.eq.s32.totalorder %s157, 0
    %s160 = sadd.s32 %s159, 1
    %s161 = scalar_select %p158, %s159, %s160
    %p164 = pneg %p158
    %p165 = scmp.eq.s32.totalorder %s11, 3
    %p166 = por %p164, %p165
    %p167 = scmp.ne.s32.totalorder %s159, %s162
    %p168 = scmp.eq.s32.totalorder %s11, 0
    %p169 = por %p167, %p168
    %p170 = scmp.ne.s32.totalorder %s159, %s162
    %p171 = scmp.eq.s32.totalorder %s16, 3
    %p172 = por %p170, %p171
    %p173 = scmp.ne.s32.totalorder %s162, %s163
    %p174 = scmp.eq.s32.totalorder %s16, 0
    %p175 = por %p173, %p174
    %p176 = scmp.ne.s32.totalorder %s162, %s163
    %p177 = scmp.eq.s32.totalorder %s17, 3
    %p178 = por %p176, %p177
    %p180 = scmp.ne.s32.totalorder %s163, %s179
    %p181 = scmp.eq.s32.totalorder %s17, 0
    %p182 = por %p180, %p181
    %p183 = scmp.le.s32.totalorder 1, %s11
    %p184 = scmp.lt.s32.totalorder %s11, 5
    %p185 = pnand %p183, %p184
    %p186 = pneg %p185
    // Predicated region
    $region9: #{generative_forward.47} parent=5 // pred_check
      _
    $region10: #{generative_forward.47} parent=5 // pred_check_branch
      %188 = sbr.rel (%p185) target = $region12
    $region11: #{generative_forward.47} parent=5 // pred_region
      %s189 = ssub.s32 %s11, 1
      // Predicated region
      $region13: #{generative_forward.47} parent=11 // pred_check
        %p190 = pneg %p83
      $region14: #{generative_forward.47} parent=11 // pred_check_branch
        %192 = sbr.rel (%p190) target = $region16
      $region15: #{generative_forward.47} parent=11 // pred_region
        _
      $region16: #{generative_forward.47} parent=11 // pred_fallthru
        _
    $region12: #{generative_forward.47} parent=5 // pred_fallthru
      _
    %p193 = scmp.lt.s32.totalorder %s11, 4
    // Predicated region
    $region17: #{generative_forward.47} parent=5 // pred_check
      %p194 = pneg %p193
    $region18: #{generative_forward.47} parent=5 // pred_check_branch
      %196 = sbr.rel (%p194) target = $region20
    $region19: #{generative_forward.47} parent=5 // pred_region
      // Predicated region
      $region21: #{generative_forward.47} parent=19 // pred_check
        %p197 = pneg %p56
      $region22: #{generative_forward.47} parent=19 // pred_check_branch
        %199 = sbr.rel (%p197) target = $region24
      $region23: #{generative_forward.47} parent=19 // pred_region
        %s200 = smul.u32 %s18, 2
        %s201 = sadd.s32 %s200, %s19
        %s202 = sadd.s32 %s201, %s20
        %s203 = smul.u32 2, %s202
        %p204 = scmp.lt.s32.totalorder %s203, 7
        %s205 = scalar_select %p204, %s203, 7
        %s206 = smul.addr %s205, 4
        %s207 = scalar_lea.vmem %s0, %s206
        %s208 = smul.u32 %s18, 2
        %s209 = sadd.s32 %s208, %s19
        %s210 = sadd.s32 %s209, %s20
        %s211 = smul.u32 2, %s210
      $region24: #{generative_forward.47} parent=19 // pred_fallthru
        _
    $region20: #{generative_forward.47} parent=5 // pred_fallthru
      _
    %p212 = scmp.le.s32.totalorder 1, %s11
    %p213 = scmp.lt.s32.totalorder %s11, 5
    %p214 = pnand %p212, %p213
    %p215 = pneg %p214
    // Predicated region
    $region25: #{generative_forward.47} parent=5 // pred_check
      _
    $region26: #{generative_forward.47} parent=5 // pred_check_branch
      %217 = sbr.rel (%p214) target = $region28
    $region27: #{generative_forward.47} parent=5 // pred_region
      %s218 = ssub.s32 %s11, 1
      %s219 = smul.u32 %s21, 2
      %s220 = sadd.s32 %s219, %s22
      %s221 = sadd.s32 %s220, %s23
      %s222 = smul.u32 2, %s221
      %p223 = scmp.lt.s32.totalorder %s222, 7
      %s224 = scalar_select %p223, %s222, 7
      %s225 = smul.addr %s224, 4
      %s226 = scalar_lea.vmem %s0, %s225
      %p227 = pneg %p62
      %p228 = pneg %p59
      %p229 = pneg %p83
      %p230 = pneg %p80
      %p231 = pneg %p115
      %p232 = pneg %p112
      %s233 = smul.u32 %s21, 2
      %s234 = sadd.s32 %s233, %s22
      %s235 = sadd.s32 %s234, %s23
      %s236 = smul.u32 2, %s235
      %p237 = scmp.lt.s32.totalorder %s236, 7
      %s238 = scalar_select %p237, %s236, 7
      %s239 = smul.addr %s238, 4
      %s240 = scalar_lea.vmem %s2, %s239
      %p241 = pneg %p145
      %p242 = pneg %p142
      %s243 = smul.u32 %s21, 2
      %s244 = sadd.s32 %s243, %s22
      %p245 = scmp.lt.s32.totalorder %s244, 3
      %s246 = scalar_select %p245, %s244, 3
      %s247 = scalar_lea.vmem %s3, %s246
      %p248 = pneg %p175
      %p249 = pneg %p172
      %s250 = smul.u32 %s21, 2
      %s251 = sadd.s32 %s250, %s22
      %p252 = scmp.lt.s32.totalorder %s251, 3
      %s253 = scalar_select %p252, %s251, 3
      %s254 = scalar_lea.vmem %s4, %s253
      %s255 = smul.u32 %s21, 2
      %s256 = sadd.s32 %s255, %s22
      %s257 = sadd.s32 %s256, %s23
      %s258 = smul.u32 2, %s257
      %p259 = scmp.lt.s32.totalorder %s258, 7
      %s260 = scalar_select %p259, %s258, 7
      %s261 = smul.addr %s260, 4
      %s262 = scalar_lea.vmem %s0, %s261
      %s263 = smul.u32 %s21, 2
      %s264 = sadd.s32 %s263, %s22
      %s265 = sadd.s32 %s264, %s23
      %s266 = smul.u32 2, %s265
      %s267 = smul.u32 %s21, 2
      %s268 = sadd.s32 %s267, %s22
      %s269 = sadd.s32 %s268, %s23
      %s270 = smul.u32 2, %s269
      %p271 = scmp.lt.s32.totalorder %s270, 7
      %s272 = scalar_select %p271, %s270, 7
      %s273 = smul.addr %s272, 4
      %s274 = scalar_lea.vmem %s2, %s273
      %s275 = smul.u32 %s21, 2
      %s276 = sadd.s32 %s275, %s22
      %s277 = sadd.s32 %s276, %s23
      %s278 = smul.u32 2, %s277
      %s279 = smul.u32 %s21, 2
      %s280 = sadd.s32 %s279, %s22
      %p281 = scmp.lt.s32.totalorder %s280, 3
      %s282 = scalar_select %p281, %s280, 3
      %s283 = scalar_lea.vmem %s3, %s282
      %s284 = smul.u32 %s21, 2
      %s285 = sadd.s32 %s284, %s22
      %s286 = smul.u32 %s21, 2
      %s287 = sadd.s32 %s286, %s22
      %p288 = scmp.lt.s32.totalorder %s287, 3
      %s289 = scalar_select %p288, %s287, 3
      %s290 = scalar_lea.vmem %s4, %s289
      %s291 = smul.u32 %s21, 2
      %s292 = sadd.s32 %s291, %s22
      %v294 = vld [vmem:[%s262] sm:$0xf]
      %v295 = vld [vmem:[%s262 + $0x4] sm:$0xf]
      %v296 = vld [vmem:[%s1] sm:$0xf]
      %v297 = vld [vmem:[%s1 + $0x4] sm:$0xf]
      %v298 = vld [vmem:[%s1 + $0x8] sm:$0xf]
      %v299 = vld [vmem:[%s1 + $0xc] sm:$0xf]
      %v300 = vld [vmem:[%s1 + $0x10] sm:$0xf]
      %v301 = vld [vmem:[%s1 + $0x14] sm:$0xf]
      %v302 = vld [vmem:[%s1 + $0x18] sm:$0xf]
      %v303 = vld [vmem:[%s1 + $0x1c] sm:$0xf]
      %v304 = vld [vmem:[%s1 + $0x20] sm:$0xf]
      %v305 = vld [vmem:[%s1 + $0x24] sm:$0xf]
      %v306 = vld [vmem:[%s1 + $0x28] sm:$0xf]
      %v307 = vld [vmem:[%s1 + $0x2c] sm:$0xf]
      %v308 = vld [vmem:[%s1 + $0x30] sm:$0xf]
      %v309 = vld [vmem:[%s1 + $0x34] sm:$0xf]
      %v310 = vld [vmem:[%s1 + $0x38] sm:$0xf]
      %v311 = vld [vmem:[%s1 + $0x3c] sm:$0xf]
      %v314 = vunpack.c.l.b16 %v294
      %v315 = vunpack.c.l.b16 %v295
      %v316 = vpack.c.b16 %v315, %v314
      %v334 = vunpack.c.l.b16 %v296
      %v335 = vunpack.c.l.b16 %v297
      %v336 = vunpack.c.l.b16 %v298
      %v337 = vunpack.c.l.b16 %v299
      %v338 = vunpack.c.l.b16 %v300
      %v339 = vunpack.c.l.b16 %v301
      %v340 = vunpack.c.l.b16 %v302
      %v341 = vunpack.c.l.b16 %v303
      %v342 = vunpack.c.l.b16 %v304
      %v343 = vunpack.c.l.b16 %v305
      %v344 = vunpack.c.l.b16 %v306
      %v345 = vunpack.c.l.b16 %v307
      %v346 = vunpack.c.l.b16 %v308
      %v347 = vunpack.c.l.b16 %v309
      %v348 = vunpack.c.l.b16 %v310
      %v349 = vunpack.c.l.b16 %v311
      %v350 = vpack.c.b16 %v335, %v334
      %v351 = vpack.c.b16 %v337, %v336
      %v352 = vpack.c.b16 %v339, %v338
      %v353 = vpack.c.b16 %v341, %v340
      %v354 = vpack.c.b16 %v343, %v342
      %v355 = vpack.c.b16 %v345, %v344
      %v356 = vpack.c.b16 %v347, %v346
      %v357 = vpack.c.b16 %v349, %v348
      %366 = vmatprep.subr.bf16.mxu0 0
      %367 = vmatpush1.bf16.msra.mxu0 %v350
      %368 = vmatprep.subr.bf16.mxu0 0
      %369 = vmatpush1.bf16.msra.mxu0 %v351
      %370 = vmatprep.subr.bf16.mxu0 0
      %371 = vmatpush1.bf16.msra.mxu0 %v352
      %372 = vmatprep.subr.bf16.mxu0 0
      %373 = vmatpush1.bf16.msra.mxu0 %v353
      %374 = vmatprep.subr.bf16.mxu0 0
      %375 = vmatpush1.bf16.msra.mxu0 %v354
      %376 = vmatprep.subr.bf16.mxu0 0
      %377 = vmatpush1.bf16.msra.mxu0 %v355
      %378 = vmatprep.subr.bf16.mxu0 0
      %379 = vmatpush1.bf16.msra.mxu0 %v356
      %380 = vmatprep.subr.bf16.mxu0 0
      %381 = vmatpush1.bf16.msra.mxu0 %v357
      %382 = vmatprep.subr.bf16.mxu0 0
      %383 = vmatpush1.bf16.msra.mxu0 0
      %384 = vmatprep.subr.bf16.mxu0 0
      %385 = vmatpush1.bf16.msra.mxu0 0
      %386 = vmatprep.subr.bf16.mxu0 0
      %387 = vmatpush1.bf16.msra.mxu0 0
      %388 = vmatprep.subr.bf16.mxu0 0
      %389 = vmatpush1.bf16.msra.mxu0 0
      %390 = vmatprep.subr.bf16.mxu0 0
      %391 = vmatpush1.bf16.msra.mxu0 0
      %392 = vmatprep.subr.bf16.mxu0 0
      %393 = vmatpush1.bf16.msra.mxu0 0
      %394 = vmatprep.subr.bf16.mxu0 0
      %395 = vmatpush1.bf16.msra.mxu0 0
      %396 = vmatprep.subr.bf16.mxu0 0
      %397 = vmatpush1.bf16.msra.mxu0 0
      %398 = vmatprep.mubr.bf16.mxu0 0
      %399 = vmatmul.mubr.bf16.gmra.mrb[0].mxu0 %v316
      %v400 = vpop.f32.mrb[0].mxu0
      %v401 = vadd.f32 0.0, %v400
      %v402 = vpop.f32.mrb[0].mxu0
      %v403 = vpop.f32.mrb[0].mxu0
      %v404 = vadd.f32 0.0, %v403
      %v405 = vpop.f32.mrb[0].mxu0
      %406 = vdwg.mxu0
      %v407 = vpack.c.bf16 %v404, %v401
      %v409 = vunpack.c.l.b16 %v407
      %v410 = vunpack.c.h.b16 %v407
      %v411 = vpack.c.b16 %v409, %v409
      %v412 = vpack.c.b16 %v410, %v410
      %415 = vst [vmem:[%s274] sm:$0xf] %v411
      %416 = vst [vmem:[%s274 + $0x4] sm:$0xf] %v412
      %p417 = scmp.eq.s32.totalorder %s23, 0
      // Predicated region
      $region29: #{generative_forward.47} parent=27 // pred_check
        %p418 = pneg %p417
      $region30: #{generative_forward.47} parent=27 // pred_check_branch
        %420 = sbr.rel (%p418) target = $region32
      $region31: #{generative_forward.47} parent=27 // pred_region
        %421 = vst [vmem:[%s283] sm:$0x1] 0.0
        %422 = vst [vmem:[%s290] sm:$0x1] 0.0
      $region32: #{generative_forward.47} parent=27 // pred_fallthru
        _
      %v423 = vld [vmem:[%s283] sm:$0x1]
      %v424 = vadd.f32 %v401, %v404
      %v425 = vrot.slane %v424, 4
      %v426 = vadd.f32 %v424, %v425
      %v427 = vrot.slane %v426, 2
      %v428 = vadd.f32 %v426, %v427
      %v429 = vrot.slane %v428, 1
      %v430 = vadd.f32 %v428, %v429
      %v431 = vadd.f32 %v423, %v430
      %432 = vst [vmem:[%s283] sm:$0x1] %v431
      %v433 = vld [vmem:[%s290] sm:$0x1]
      %v434 = vmul.f32 %v401, %v401
      %v435 = vmul.f32 %v404, %v404
      %v436 = vadd.f32 %v434, %v435
      %v437 = vrot.slane %v436, 4
      %v438 = vadd.f32 %v436, %v437
      %v439 = vrot.slane %v438, 2
      %v440 = vadd.f32 %v438, %v439
      %v441 = vrot.slane %v440, 1
      %v442 = vadd.f32 %v440, %v441
      %v443 = vadd.f32 %v433, %v442
      %444 = vst [vmem:[%s290] sm:$0x1] %v443
      %s445 = smul.u32 %s21, 2
      %s446 = sadd.s32 %s445, %s22
      %s447 = sadd.s32 %s446, %s23
      %s448 = smul.u32 2, %s447
      %p449 = scmp.lt.s32.totalorder %s448, 7
      %s450 = scalar_select %p449, %s448, 7
      %s451 = smul.addr %s450, 4
      %s452 = scalar_lea.vmem %s2, %s451
      %s453 = smul.u32 %s21, 2
      %s454 = sadd.s32 %s453, %s22
      %p455 = scmp.lt.s32.totalorder %s454, 3
      %s456 = scalar_select %p455, %s454, 3
      %s457 = scalar_lea.vmem %s3, %s456
      %s458 = smul.u32 %s21, 2
      %s459 = sadd.s32 %s458, %s22
      %p460 = scmp.lt.s32.totalorder %s459, 3
      %s461 = scalar_select %p460, %s459, 3
      %s462 = scalar_lea.vmem %s4, %s461
      // Predicated region
      $region33: #{generative_forward.47} parent=27 // pred_check
        %p463 = pneg %p112
      $region34: #{generative_forward.47} parent=27 // pred_check_branch
        %465 = sbr.rel (%p463) target = $region36
      $region35: #{generative_forward.47} parent=27 // pred_region
        %s466 = smul.u32 %s21, 2
        %s467 = sadd.s32 %s466, %s22
        %s468 = sadd.s32 %s467, %s23
        %s469 = smul.u32 2, %s468
      $region36: #{generative_forward.47} parent=27 // pred_fallthru
        _
      // Predicated region
      $region37: #{generative_forward.47} parent=27 // pred_check
        %p470 = pneg %p142
      $region38: #{generative_forward.47} parent=27 // pred_check_branch
        %472 = sbr.rel (%p470) target = $region40
      $region39: #{generative_forward.47} parent=27 // pred_region
        %s473 = smul.u32 %s21, 2
        %s474 = sadd.s32 %s473, %s22
      $region40: #{generative_forward.47} parent=27 // pred_fallthru
        _
      // Predicated region
      $region41: #{generative_forward.47} parent=27 // pred_check
        %p475 = pneg %p172
      $region42: #{generative_forward.47} parent=27 // pred_check_branch
        %477 = sbr.rel (%p475) target = $region44
      $region43: #{generative_forward.47} parent=27 // pred_region
        %s478 = smul.u32 %s21, 2
        %s479 = sadd.s32 %s478, %s22
      $region44: #{generative_forward.47} parent=27 // pred_fallthru
        _
    $region28: #{generative_forward.47} parent=5 // pred_fallthru
      _
    %p480 = scmp.le.s32.totalorder 2, %s11
    // Predicated region
    $region45: #{generative_forward.47} parent=5 // pred_check
      %p481 = pneg %p480
    $region46: #{generative_forward.47} parent=5 // pred_check_branch
      %483 = sbr.rel (%p481) target = $region48
    $region47: #{generative_forward.47} parent=5 // pred_region
      %s484 = ssub.s32 %s11, 2
      // Predicated region
      $region49: #{generative_forward.47} parent=47 // pred_check
        %p485 = pneg %p118
      $region50: #{generative_forward.47} parent=47 // pred_check_branch
        %487 = sbr.rel (%p485) target = $region52
      $region51: #{generative_forward.47} parent=47 // pred_region
        %s488 = smul.u32 %s24, 2
        %s489 = sadd.s32 %s488, %s25
        %s490 = sadd.s32 %s489, %s26
        %s491 = smul.u32 2, %s490
        %p492 = scmp.lt.s32.totalorder %s491, 7
        %s493 = scalar_select %p492, %s491, 7
        %s494 = smul.addr %s493, 4
        %s495 = scalar_lea.vmem %s2, %s494
      $region52: #{generative_forward.47} parent=47 // pred_fallthru
        _
      // Predicated region
      $region53: #{generative_forward.47} parent=47 // pred_check
        %p496 = pneg %p148
      $region54: #{generative_forward.47} parent=47 // pred_check_branch
        %498 = sbr.rel (%p496) target = $region56
      $region55: #{generative_forward.47} parent=47 // pred_region
        %s499 = smul.u32 %s24, 2
        %s500 = sadd.s32 %s499, %s25
        %p501 = scmp.lt.s32.totalorder %s500, 3
        %s502 = scalar_select %p501, %s500, 3
        %s503 = scalar_lea.vmem %s3, %s502
      $region56: #{generative_forward.47} parent=47 // pred_fallthru
        _
      // Predicated region
      $region57: #{generative_forward.47} parent=47 // pred_check
        %p504 = pneg %p178
      $region58: #{generative_forward.47} parent=47 // pred_check_branch
        %506 = sbr.rel (%p504) target = $region60
      $region59: #{generative_forward.47} parent=47 // pred_region
        %s507 = smul.u32 %s24, 2
        %s508 = sadd.s32 %s507, %s25
        %p509 = scmp.lt.s32.totalorder %s508, 3
        %s510 = scalar_select %p509, %s508, 3
        %s511 = scalar_lea.vmem %s4, %s510
      $region60: #{generative_forward.47} parent=47 // pred_fallthru
        _
    $region48: #{generative_forward.47} parent=5 // pred_fallthru
      _
  $region6: #{generative_forward.47} parent=0 // loop_footer
    %s15 = sadd.s32 1, %s11
  $region7: #{generative_forward.47} parent=0 // loop_footer_branch
    %10 = sbr.rel target = $region3
  $region8: #{generative_forward.47} parent=0 // loop_exit
    _

// kernel: generative_forward.53
$region0: #{generative_forward.53}
  #allocation0 [shape = 'u32[]', space=smem, size = 0x4, offset = 0x4, fixed_abs, tag = 'smem constant byte address 0x4 - core index']
  #allocation1 [shape = 'u32[144,128]{1,0:T(1,128)}', space=vmem, size = 0x12000, scoped, tag = 'internal scratch']
  %s0 = inlined_call_operand.vmem [shape: bf16[64,128], index: 0, kind: input, shape index: {}]
  %s1 = inlined_call_operand.vmem [shape: f32[2,1,128], index: 1, kind: input, shape index: {}]
  %s2 = inlined_call_operand.vmem [shape: f32[2,1,128], index: 2, kind: input, shape index: {}]
  %s3 = inlined_call_operand.vmem [shape: bf16[64,128], index: 3, kind: output, shape index: {}]
  %s4 = sld [smem:[#allocation0]]
  $region45: #{generative_forward.53} parent=0
    _
  %s6 = ssub.s32 1, %s4
  %s7 = scalar_select 0, %s6, %s4
  loop: start=0, step=1, limit=6
  $region2: #{generative_forward.53} parent=0 // loop_pre_header
    _
  $region3: #{generative_forward.53} parent=0 // loop_header
    %s9 = sphi 0, %s13
    %p10 = scmp.ge.s32.totalorder %s9, 6
    %s16 = sphi 0, %s28
    %s17 = sphi 0, %s24
    %s18 = sphi 0, %s16
    %s19 = sphi 0, %s17
    %s20 = sphi 0, %s18
    %s21 = sphi 0, %s19
    %s35 = sphi 0, %s37
    %s38 = sphi 0, %s35
    %s39 = sphi 0, %s38
    %s55 = sphi 0, %s39
    %s61 = sphi 0, %s63
    %s64 = sphi 0, %s61
    %s65 = sphi 0, %s64
    %s81 = sphi 0, %s65
    %s87 = sphi 0, %s89
    %s90 = sphi 0, %s87
    %s91 = sphi 0, %s90
    %s107 = sphi 0, %s91
    %s117 = sphi 0, %s119
    %s120 = sphi 0, %s117
    %s121 = sphi 0, %s120
    %s137 = sphi 0, %s121
  $region4: #{generative_forward.53} parent=0 // loop_header_branch
    %12 = sbr.rel (%p10) target = $region8
  $region5: #{generative_forward.53} parent=0 // loop_body
    %s14 = ssub.s32 %s9, 1
    %s15 = ssub.s32 %s9, 2
    %s22 = sadd.s32 1, %s17
    %p23 = scmp.ge.s32.totalorder %s22, 2
    %s24 = scalar_select %p23, 0, %s22
    %s25 = sadd.s32 1, %s16
    %s26 = scalar_select %p23, %s25, %s16
    %p27 = scmp.ge.s32.totalorder %s26, 2
    %s28 = scalar_select %p27, 0, %s26
    %s29 = smul.u32 %s16, 2
    %s30 = sadd.s32 %s29, %s17
    %s31 = smul.u32 %s28, 2
    %s32 = sadd.s32 %s31, %s24
    %s33 = ssub.s32 %s30, %s32
    %p34 = scmp.eq.s32.totalorder %s33, 0
    %s36 = sadd.s32 %s35, 1
    %s37 = scalar_select %p34, %s35, %s36
    %p40 = pneg %p34
    %p41 = scmp.eq.s32.totalorder %s9, 3
    %p42 = por %p40, %p41
    %p43 = scmp.ne.s32.totalorder %s35, %s38
    %p44 = scmp.eq.s32.totalorder %s9, 0
    %p45 = por %p43, %p44
    %p46 = scmp.ne.s32.totalorder %s35, %s38
    %p47 = scmp.eq.s32.totalorder %s14, 3
    %p48 = por %p46, %p47
    %p49 = scmp.ne.s32.totalorder %s38, %s39
    %p50 = scmp.eq.s32.totalorder %s14, 0
    %p51 = por %p49, %p50
    %p52 = scmp.ne.s32.totalorder %s38, %s39
    %p53 = scmp.eq.s32.totalorder %s15, 3
    %p54 = por %p52, %p53
    %p56 = scmp.ne.s32.totalorder %s39, %s55
    %p57 = scmp.eq.s32.totalorder %s15, 0
    %p58 = por %p56, %p57
    %s59 = ssub.s32 %s16, %s28
    %p60 = scmp.eq.s32.totalorder %s59, 0
    %s62 = sadd.s32 %s61, 1
    %s63 = scalar_select %p60, %s61, %s62
    %p66 = pneg %p60
    %p67 = scmp.eq.s32.totalorder %s9, 3
    %p68 = por %p66, %p67
    %p69 = scmp.ne.s32.totalorder %s61, %s64
    %p70 = scmp.eq.s32.totalorder %s9, 0
    %p71 = por %p69, %p70
    %p72 = scmp.ne.s32.totalorder %s61, %s64
    %p73 = scmp.eq.s32.totalorder %s14, 3
    %p74 = por %p72, %p73
    %p75 = scmp.ne.s32.totalorder %s64, %s65
    %p76 = scmp.eq.s32.totalorder %s14, 0
    %p77 = por %p75, %p76
    %p78 = scmp.ne.s32.totalorder %s64, %s65
    %p79 = scmp.eq.s32.totalorder %s15, 3
    %p80 = por %p78, %p79
    %p82 = scmp.ne.s32.totalorder %s65, %s81
    %p83 = scmp.eq.s32.totalorder %s15, 0
    %p84 = por %p82, %p83
    %s85 = ssub.s32 %s16, %s28
    %p86 = scmp.eq.s32.totalorder %s85, 0
    %s88 = sadd.s32 %s87, 1
    %s89 = scalar_select %p86, %s87, %s88
    %p92 = pneg %p86
    %p93 = scmp.eq.s32.totalorder %s9, 3
    %p94 = por %p92, %p93
    %p95 = scmp.ne.s32.totalorder %s87, %s90
    %p96 = scmp.eq.s32.totalorder %s9, 0
    %p97 = por %p95, %p96
    %p98 = scmp.ne.s32.totalorder %s87, %s90
    %p99 = scmp.eq.s32.totalorder %s14, 3
    %p100 = por %p98, %p99
    %p101 = scmp.ne.s32.totalorder %s90, %s91
    %p102 = scmp.eq.s32.totalorder %s14, 0
    %p103 = por %p101, %p102
    %p104 = scmp.ne.s32.totalorder %s90, %s91
    %p105 = scmp.eq.s32.totalorder %s15, 3
    %p106 = por %p104, %p105
    %p108 = scmp.ne.s32.totalorder %s91, %s107
    %p109 = scmp.eq.s32.totalorder %s15, 0
    %p110 = por %p108, %p109
    %s111 = smul.u32 %s16, 2
    %s112 = sadd.s32 %s111, %s17
    %s113 = smul.u32 %s28, 2
    %s114 = sadd.s32 %s113, %s24
    %s115 = ssub.s32 %s112, %s114
    %p116 = scmp.eq.s32.totalorder %s115, 0
    %s118 = sadd.s32 %s117, 1
    %s119 = scalar_select %p116, %s117, %s118
    %p122 = pneg %p116
    %p123 = scmp.eq.s32.totalorder %s9, 3
    %p124 = por %p122, %p123
    %p125 = scmp.ne.s32.totalorder %s117, %s120
    %p126 = scmp.eq.s32.totalorder %s9, 0
    %p127 = por %p125, %p126
    %p128 = scmp.ne.s32.totalorder %s117, %s120
    %p129 = scmp.eq.s32.totalorder %s14, 3
    %p130 = por %p128, %p129
    %p131 = scmp.ne.s32.totalorder %s120, %s121
    %p132 = scmp.eq.s32.totalorder %s14, 0
    %p133 = por %p131, %p132
    %p134 = scmp.ne.s32.totalorder %s120, %s121
    %p135 = scmp.eq.s32.totalorder %s15, 3
    %p136 = por %p134, %p135
    %p138 = scmp.ne.s32.totalorder %s121, %s137
    %p139 = scmp.eq.s32.totalorder %s15, 0
    %p140 = por %p138, %p139
    %p141 = scmp.le.s32.totalorder 1, %s9
    %p142 = scmp.lt.s32.totalorder %s9, 5
    %p143 = pnand %p141, %p142
    %p144 = pneg %p143
    // Predicated region
    $region9: #{generative_forward.53} parent=5 // pred_check
      _
    $region10: #{generative_forward.53} parent=5 // pred_check_branch
      %146 = sbr.rel (%p143) target = $region12
    $region11: #{generative_forward.53} parent=5 // pred_region
      %s147 = ssub.s32 %s9, 1
    $region12: #{generative_forward.53} parent=5 // pred_fallthru
      _
    %p148 = scmp.lt.s32.totalorder %s9, 4
    // Predicated region
    $region13: #{generative_forward.53} parent=5 // pred_check
      %p149 = pneg %p148
    $region14: #{generative_forward.53} parent=5 // pred_check_branch
      %151 = sbr.rel (%p149) target = $region16
    $region15: #{generative_forward.53} parent=5 // pred_region
      // Predicated region
      $region17: #{generative_forward.53} parent=15 // pred_check
        %p152 = pneg %p45
      $region18: #{generative_forward.53} parent=15 // pred_check_branch
        %154 = sbr.rel (%p152) target = $region20
      $region19: #{generative_forward.53} parent=15 // pred_region
        %s155 = smul.u32 %s16, 2
        %s156 = sadd.s32 %s155, %s17
        %s157 = smul.u32 2, %s156
        %p158 = scmp.lt.s32.totalorder %s157, 7
        %s159 = scalar_select %p158, %s157, 7
        %s160 = smul.addr %s159, 4
        %s161 = scalar_lea.vmem %s0, %s160
        %s162 = smul.u32 %s16, 2
        %s163 = sadd.s32 %s162, %s17
        %s164 = smul.u32 2, %s163
      $region20: #{generative_forward.53} parent=15 // pred_fallthru
        _
      // Predicated region
      $region21: #{generative_forward.53} parent=15 // pred_check
        %p165 = pneg %p71
      $region22: #{generative_forward.53} parent=15 // pred_check_branch
        %167 = sbr.rel (%p165) target = $region24
      $region23: #{generative_forward.53} parent=15 // pred_region
        %p168 = scmp.lt.s32.totalorder %s16, 1
        %s169 = scalar_select %p168, %s16, 1
        %s170 = scalar_lea.vmem %s1, %s169
      $region24: #{generative_forward.53} parent=15 // pred_fallthru
        _
      // Predicated region
      $region25: #{generative_forward.53} parent=15 // pred_check
        %p171 = pneg %p97
      $region26: #{generative_forward.53} parent=15 // pred_check_branch
        %173 = sbr.rel (%p171) target = $region28
      $region27: #{generative_forward.53} parent=15 // pred_region
        %p174 = scmp.lt.s32.totalorder %s16, 1
        %s175 = scalar_select %p174, %s16, 1
        %s176 = scalar_lea.vmem %s2, %s175
      $region28: #{generative_forward.53} parent=15 // pred_fallthru
        _
    $region16: #{generative_forward.53} parent=5 // pred_fallthru
      _
    %p177 = scmp.le.s32.totalorder 1, %s9
    %p178 = scmp.lt.s32.totalorder %s9, 5
    %p179 = pnand %p177, %p178
    %p180 = pneg %p179
    // Predicated region
    $region29: #{generative_forward.53} parent=5 // pred_check
      _
    $region30: #{generative_forward.53} parent=5 // pred_check_branch
      %182 = sbr.rel (%p179) target = $region32
    $region31: #{generative_forward.53} parent=5 // pred_region
      %s183 = ssub.s32 %s9, 1
      %s184 = smul.u32 %s18, 2
      %s185 = sadd.s32 %s184, %s19
      %s186 = smul.u32 2, %s185
      %p187 = scmp.lt.s32.totalorder %s186, 7
      %s188 = scalar_select %p187, %s186, 7
      %s189 = smul.addr %s188, 4
      %s190 = scalar_lea.vmem %s0, %s189
      %p191 = pneg %p51
      %p192 = pneg %p48
      %p193 = scmp.lt.s32.totalorder %s18, 1
      %s194 = scalar_select %p193, %s18, 1
      %s195 = scalar_lea.vmem %s1, %s194
      %p196 = pneg %p77
      %p197 = pneg %p74
      %p198 = scmp.lt.s32.totalorder %s18, 1
      %s199 = scalar_select %p198, %s18, 1
      %s200 = scalar_lea.vmem %s2, %s199
      %p201 = pneg %p103
      %p202 = pneg %p100
      %p203 = pneg %p133
      %p204 = pneg %p130
      %s205 = smul.u32 %s18, 2
      %s206 = sadd.s32 %s205, %s19
      %s207 = smul.u32 2, %s206
      %p208 = scmp.lt.s32.totalorder %s207, 7
      %s209 = scalar_select %p208, %s207, 7
      %s210 = smul.addr %s209, 4
      %s211 = scalar_lea.vmem %s3, %s210
      %s212 = smul.u32 %s18, 2
      %s213 = sadd.s32 %s212, %s19
      %s214 = smul.u32 2, %s213
      %p215 = scmp.lt.s32.totalorder %s214, 7
      %s216 = scalar_select %p215, %s214, 7
      %s217 = smul.addr %s216, 4
      %s218 = scalar_lea.vmem %s0, %s217
      %s219 = smul.u32 %s18, 2
      %s220 = sadd.s32 %s219, %s19
      %s221 = smul.u32 2, %s220
      %p222 = scmp.lt.s32.totalorder %s18, 1
      %s223 = scalar_select %p222, %s18, 1
      %s224 = scalar_lea.vmem %s1, %s223
      %p225 = scmp.lt.s32.totalorder %s18, 1
      %s226 = scalar_select %p225, %s18, 1
      %s227 = scalar_lea.vmem %s2, %s226
      %s228 = smul.u32 %s18, 2
      %s229 = sadd.s32 %s228, %s19
      %s230 = smul.u32 2, %s229
      %p231 = scmp.lt.s32.totalorder %s230, 7
      %s232 = scalar_select %p231, %s230, 7
      %s233 = smul.addr %s232, 4
      %s234 = scalar_lea.vmem %s3, %s233
      %s235 = smul.u32 %s18, 2
      %s236 = sadd.s32 %s235, %s19
      %s237 = smul.u32 2, %s236
      %v238 = vld [vmem:[%s224] sm:$0x1]
      %v239 = vmul.f32 %v238, 0.020408163
      %v240 = vld [vmem:[%s227] sm:$0x1]
      %v241 = vmul.f32 %v240, 0.020408163
      %v242 = vmul.f32 %v239, %v239
      %v243 = vsub.f32 %v241, %v242
      %v244 = vmax.f32 %v243, 0.0
      %v245 = vadd.f32 %v244, 1e-05
      %v246 = vrsqrt.pop %v245
      %v247 = vld [vmem:[%s218] sm:$0xf]
      %v248 = vld [vmem:[%s218 + $0x4] sm:$0xf]
      %v249 = vunpack.c.l.bf16 %v247
      %v250 = vunpack.c.l.bf16 %v248
      %v252 = vlaneseq
      %v253 = vshrl.u32 %v252, 7
      %v254 = vsub.s32 0, %v253
      %v255 = vrot.slane %v239, %v254
      %v257 = vsub.f32 %v249, %v255
      %v258 = vsub.f32 %v250, %v255
      %v260 = vlaneseq
      %v261 = vshrl.u32 %v260, 7
      %v262 = vsub.s32 0, %v261
      %v263 = vrot.slane %v246, %v262
      %v265 = vmul.f32 %v257, %v263
      %v266 = vmul.f32 %v258, %v263
      %vm267 = vcmp.ge.f32.partialorder %v265, 0.0
      %vm268 = vcmp.ge.f32.partialorder %v266, 0.0
      %v269 = vmul.f32 %v265, 0.01
      %v270 = vmul.f32 %v266, 0.01
      %v271 = vsel %vm267, %v265, %v269
      %v272 = vsel %vm268, %v266, %v270
      %v273 = vpack.c.bf16 %v272, %v271
      %v275 = vunpack.c.l.b16 %v273
      %v276 = vunpack.c.h.b16 %v273
      %v277 = vpack.c.b16 %v275, %v275
      %v278 = vpack.c.b16 %v276, %v276
      %281 = vst [vmem:[%s234] sm:$0xf] %v277
      %282 = vst [vmem:[%s234 + $0x4] sm:$0xf] %v278
      %s283 = smul.u32 %s18, 2
      %s284 = sadd.s32 %s283, %s19
      %s285 = smul.u32 2, %s284
      %p286 = scmp.lt.s32.totalorder %s285, 7
      %s287 = scalar_select %p286, %s285, 7
      %s288 = smul.addr %s287, 4
      %s289 = scalar_lea.vmem %s3, %s288
      // Predicated region
      $region33: #{generative_forward.53} parent=31 // pred_check
        %p290 = pneg %p130
      $region34: #{generative_forward.53} parent=31 // pred_check_branch
        %292 = sbr.rel (%p290) target = $region36
      $region35: #{generative_forward.53} parent=31 // pred_region
        %s293 = smul.u32 %s18, 2
        %s294 = sadd.s32 %s293, %s19
        %s295 = smul.u32 2, %s294
      $region36: #{generative_forward.53} parent=31 // pred_fallthru
        _
    $region32: #{generative_forward.53} parent=5 // pred_fallthru
      _
    %p296 = scmp.le.s32.totalorder 2, %s9
    // Predicated region
    $region37: #{generative_forward.53} parent=5 // pred_check
      %p297 = pneg %p296
    $region38: #{generative_forward.53} parent=5 // pred_check_branch
      %299 = sbr.rel (%p297) target = $region40
    $region39: #{generative_forward.53} parent=5 // pred_region
      %s300 = ssub.s32 %s9, 2
      // Predicated region
      $region41: #{generative_forward.53} parent=39 // pred_check
        %p301 = pneg %p136
      $region42: #{generative_forward.53} parent=39 // pred_check_branch
        %303 = sbr.rel (%p301) target = $region44
      $region43: #{generative_forward.53} parent=39 // pred_region
        %s304 = smul.u32 %s20, 2
        %s305 = sadd.s32 %s304, %s21
        %s306 = smul.u32 2, %s305
        %p307 = scmp.lt.s32.totalorder %s306, 7
        %s308 = scalar_select %p307, %s306, 7
        %s309 = smul.addr %s308, 4
        %s310 = scalar_lea.vmem %s3, %s309
      $region44: #{generative_forward.53} parent=39 // pred_fallthru
        _
    $region40: #{generative_forward.53} parent=5 // pred_fallthru
      _
  $region6: #{generative_forward.53} parent=0 // loop_footer
    %s13 = sadd.s32 1, %s9
  $region7: #{generative_forward.53} parent=0 // loop_footer_branch
    %8 = sbr.rel target = $region3
  $region8: #{generative_forward.53} parent=0 // loop_exit
    _

// kernel: generative_forward.61
$region0: #{generative_forward.61}
  #allocation0 [shape = 'u32[]', space=smem, size = 0x4, offset = 0x4, fixed_abs, tag = 'smem constant byte address 0x4 - core index']
  #allocation1 [shape = 'u32[144,128]{1,0:T(1,128)}', space=vmem, size = 0x12000, scoped, tag = 'internal scratch']
  %s0 = inlined_call_operand.vmem [shape: bf16[128,128], index: 0, kind: input, shape index: {}]
  %s1 = inlined_call_operand.vmem [shape: f32[2,1,128], index: 1, kind: input, shape index: {}]
  %s2 = inlined_call_operand.vmem [shape: f32[2,1,128], index: 2, kind: input, shape index: {}]
  %s3 = inlined_call_operand.vmem [shape: bf16[128,128], index: 3, kind: output, shape index: {}]
  %s4 = sld [smem:[#allocation0]]
  $region45: #{generative_forward.61} parent=0
    _
  %s6 = ssub.s32 1, %s4
  %s7 = scalar_select 0, %s6, %s4
  loop: start=0, step=1, limit=6
  $region2: #{generative_forward.61} parent=0 // loop_pre_header
    _
  $region3: #{generative_forward.61} parent=0 // loop_header
    %s9 = sphi 0, %s13
    %p10 = scmp.ge.s32.totalorder %s9, 6
    %s16 = sphi 0, %s28
    %s17 = sphi 0, %s24
    %s18 = sphi 0, %s16
    %s19 = sphi 0, %s17
    %s20 = sphi 0, %s18
    %s21 = sphi 0, %s19
    %s35 = sphi 0, %s37
    %s38 = sphi 0, %s35
    %s39 = sphi 0, %s38
    %s55 = sphi 0, %s39
    %s61 = sphi 0, %s63
    %s64 = sphi 0, %s61
    %s65 = sphi 0, %s64
    %s81 = sphi 0, %s65
    %s87 = sphi 0, %s89
    %s90 = sphi 0, %s87
    %s91 = sphi 0, %s90
    %s107 = sphi 0, %s91
    %s117 = sphi 0, %s119
    %s120 = sphi 0, %s117
    %s121 = sphi 0, %s120
    %s137 = sphi 0, %s121
  $region4: #{generative_forward.61} parent=0 // loop_header_branch
    %12 = sbr.rel (%p10) target = $region8
  $region5: #{generative_forward.61} parent=0 // loop_body
    %s14 = ssub.s32 %s9, 1
    %s15 = ssub.s32 %s9, 2
    %s22 = sadd.s32 1, %s17
    %p23 = scmp.ge.s32.totalorder %s22, 2
    %s24 = scalar_select %p23, 0, %s22
    %s25 = sadd.s32 1, %s16
    %s26 = scalar_select %p23, %s25, %s16
    %p27 = scmp.ge.s32.totalorder %s26, 2
    %s28 = scalar_select %p27, 0, %s26
    %s29 = smul.u32 %s16, 2
    %s30 = sadd.s32 %s29, %s17
    %s31 = smul.u32 %s28, 2
    %s32 = sadd.s32 %s31, %s24
    %s33 = ssub.s32 %s30, %s32
    %p34 = scmp.eq.s32.totalorder %s33, 0
    %s36 = sadd.s32 %s35, 1
    %s37 = scalar_select %p34, %s35, %s36
    %p40 = pneg %p34
    %p41 = scmp.eq.s32.totalorder %s9, 3
    %p42 = por %p40, %p41
    %p43 = scmp.ne.s32.totalorder %s35, %s38
    %p44 = scmp.eq.s32.totalorder %s9, 0
    %p45 = por %p43, %p44
    %p46 = scmp.ne.s32.totalorder %s35, %s38
    %p47 = scmp.eq.s32.totalorder %s14, 3
    %p48 = por %p46, %p47
    %p49 = scmp.ne.s32.totalorder %s38, %s39
    %p50 = scmp.eq.s32.totalorder %s14, 0
    %p51 = por %p49, %p50
    %p52 = scmp.ne.s32.totalorder %s38, %s39
    %p53 = scmp.eq.s32.totalorder %s15, 3
    %p54 = por %p52, %p53
    %p56 = scmp.ne.s32.totalorder %s39, %s55
    %p57 = scmp.eq.s32.totalorder %s15, 0
    %p58 = por %p56, %p57
    %s59 = ssub.s32 %s16, %s28
    %p60 = scmp.eq.s32.totalorder %s59, 0
    %s62 = sadd.s32 %s61, 1
    %s63 = scalar_select %p60, %s61, %s62
    %p66 = pneg %p60
    %p67 = scmp.eq.s32.totalorder %s9, 3
    %p68 = por %p66, %p67
    %p69 = scmp.ne.s32.totalorder %s61, %s64
    %p70 = scmp.eq.s32.totalorder %s9, 0
    %p71 = por %p69, %p70
    %p72 = scmp.ne.s32.totalorder %s61, %s64
    %p73 = scmp.eq.s32.totalorder %s14, 3
    %p74 = por %p72, %p73
    %p75 = scmp.ne.s32.totalorder %s64, %s65
    %p76 = scmp.eq.s32.totalorder %s14, 0
    %p77 = por %p75, %p76
    %p78 = scmp.ne.s32.totalorder %s64, %s65
    %p79 = scmp.eq.s32.totalorder %s15, 3
    %p80 = por %p78, %p79
    %p82 = scmp.ne.s32.totalorder %s65, %s81
    %p83 = scmp.eq.s32.totalorder %s15, 0
    %p84 = por %p82, %p83
    %s85 = ssub.s32 %s16, %s28
    %p86 = scmp.eq.s32.totalorder %s85, 0
    %s88 = sadd.s32 %s87, 1
    %s89 = scalar_select %p86, %s87, %s88
    %p92 = pneg %p86
    %p93 = scmp.eq.s32.totalorder %s9, 3
    %p94 = por %p92, %p93
    %p95 = scmp.ne.s32.totalorder %s87, %s90
    %p96 = scmp.eq.s32.totalorder %s9, 0
    %p97 = por %p95, %p96
    %p98 = scmp.ne.s32.totalorder %s87, %s90
    %p99 = scmp.eq.s32.totalorder %s14, 3
    %p100 = por %p98, %p99
    %p101 = scmp.ne.s32.totalorder %s90, %s91
    %p102 = scmp.eq.s32.totalorder %s14, 0
    %p103 = por %p101, %p102
    %p104 = scmp.ne.s32.totalorder %s90, %s91
    %p105 = scmp.eq.s32.totalorder %s15, 3
    %p106 = por %p104, %p105
    %p108 = scmp.ne.s32.totalorder %s91, %s107
    %p109 = scmp.eq.s32.totalorder %s15, 0
    %p110 = por %p108, %p109
    %s111 = smul.u32 %s16, 2
    %s112 = sadd.s32 %s111, %s17
    %s113 = smul.u32 %s28, 2
    %s114 = sadd.s32 %s113, %s24
    %s115 = ssub.s32 %s112, %s114
    %p116 = scmp.eq.s32.totalorder %s115, 0
    %s118 = sadd.s32 %s117, 1
    %s119 = scalar_select %p116, %s117, %s118
    %p122 = pneg %p116
    %p123 = scmp.eq.s32.totalorder %s9, 3
    %p124 = por %p122, %p123
    %p125 = scmp.ne.s32.totalorder %s117, %s120
    %p126 = scmp.eq.s32.totalorder %s9, 0
    %p127 = por %p125, %p126
    %p128 = scmp.ne.s32.totalorder %s117, %s120
    %p129 = scmp.eq.s32.totalorder %s14, 3
    %p130 = por %p128, %p129
    %p131 = scmp.ne.s32.totalorder %s120, %s121
    %p132 = scmp.eq.s32.totalorder %s14, 0
    %p133 = por %p131, %p132
    %p134 = scmp.ne.s32.totalorder %s120, %s121
    %p135 = scmp.eq.s32.totalorder %s15, 3
    %p136 = por %p134, %p135
    %p138 = scmp.ne.s32.totalorder %s121, %s137
    %p139 = scmp.eq.s32.totalorder %s15, 0
    %p140 = por %p138, %p139
    %p141 = scmp.le.s32.totalorder 1, %s9
    %p142 = scmp.lt.s32.totalorder %s9, 5
    %p143 = pnand %p141, %p142
    %p144 = pneg %p143
    // Predicated region
    $region9: #{generative_forward.61} parent=5 // pred_check
      _
    $region10: #{generative_forward.61} parent=5 // pred_check_branch
      %146 = sbr.rel (%p143) target = $region12
    $region11: #{generative_forward.61} parent=5 // pred_region
      %s147 = ssub.s32 %s9, 1
    $region12: #{generative_forward.61} parent=5 // pred_fallthru
      _
    %p148 = scmp.lt.s32.totalorder %s9, 4
    // Predicated region
    $region13: #{generative_forward.61} parent=5 // pred_check
      %p149 = pneg %p148
    $region14: #{generative_forward.61} parent=5 // pred_check_branch
      %151 = sbr.rel (%p149) target = $region16
    $region15: #{generative_forward.61} parent=5 // pred_region
      // Predicated region
      $region17: #{generative_forward.61} parent=15 // pred_check
        %p152 = pneg %p45
      $region18: #{generative_forward.61} parent=15 // pred_check_branch
        %154 = sbr.rel (%p152) target = $region20
      $region19: #{generative_forward.61} parent=15 // pred_region
        %s155 = smul.u32 %s16, 2
        %s156 = sadd.s32 %s155, %s17
        %s157 = smul.u32 4, %s156
        %p158 = scmp.lt.s32.totalorder %s157, 15
        %s159 = scalar_select %p158, %s157, 15
        %s160 = smul.addr %s159, 4
        %s161 = scalar_lea.vmem %s0, %s160
        %s162 = smul.u32 %s16, 2
        %s163 = sadd.s32 %s162, %s17
        %s164 = smul.u32 4, %s163
      $region20: #{generative_forward.61} parent=15 // pred_fallthru
        _
      // Predicated region
      $region21: #{generative_forward.61} parent=15 // pred_check
        %p165 = pneg %p71
      $region22: #{generative_forward.61} parent=15 // pred_check_branch
        %167 = sbr.rel (%p165) target = $region24
      $region23: #{generative_forward.61} parent=15 // pred_region
        %p168 = scmp.lt.s32.totalorder %s16, 1
        %s169 = scalar_select %p168, %s16, 1
        %s170 = scalar_lea.vmem %s1, %s169
      $region24: #{generative_forward.61} parent=15 // pred_fallthru
        _
      // Predicated region
      $region25: #{generative_forward.61} parent=15 // pred_check
        %p171 = pneg %p97
      $region26: #{generative_forward.61} parent=15 // pred_check_branch
        %173 = sbr.rel (%p171) target = $region28
      $region27: #{generative_forward.61} parent=15 // pred_region
        %p174 = scmp.lt.s32.totalorder %s16, 1
        %s175 = scalar_select %p174, %s16, 1
        %s176 = scalar_lea.vmem %s2, %s175
      $region28: #{generative_forward.61} parent=15 // pred_fallthru
        _
    $region16: #{generative_forward.61} parent=5 // pred_fallthru
      _
    %p177 = scmp.le.s32.totalorder 1, %s9
    %p178 = scmp.lt.s32.totalorder %s9, 5
    %p179 = pnand %p177, %p178
    %p180 = pneg %p179
    // Predicated region
    $region29: #{generative_forward.61} parent=5 // pred_check
      _
    $region30: #{generative_forward.61} parent=5 // pred_check_branch
      %182 = sbr.rel (%p179) target = $region32
    $region31: #{generative_forward.61} parent=5 // pred_region
      %s183 = ssub.s32 %s9, 1
      %s184 = smul.u32 %s18, 2
      %s185 = sadd.s32 %s184, %s19
      %s186 = smul.u32 4, %s185
      %p187 = scmp.lt.s32.totalorder %s186, 15
      %s188 = scalar_select %p187, %s186, 15
      %s189 = smul.addr %s188, 4
      %s190 = scalar_lea.vmem %s0, %s189
      %p191 = pneg %p51
      %p192 = pneg %p48
      %p193 = scmp.lt.s32.totalorder %s18, 1
      %s194 = scalar_select %p193, %s18, 1
      %s195 = scalar_lea.vmem %s1, %s194
      %p196 = pneg %p77
      %p197 = pneg %p74
      %p198 = scmp.lt.s32.totalorder %s18, 1
      %s199 = scalar_select %p198, %s18, 1
      %s200 = scalar_lea.vmem %s2, %s199
      %p201 = pneg %p103
      %p202 = pneg %p100
      %p203 = pneg %p133
      %p204 = pneg %p130
      %s205 = smul.u32 %s18, 2
      %s206 = sadd.s32 %s205, %s19
      %s207 = smul.u32 4, %s206
      %p208 = scmp.lt.s32.totalorder %s207, 15
      %s209 = scalar_select %p208, %s207, 15
      %s210 = smul.addr %s209, 4
      %s211 = scalar_lea.vmem %s3, %s210
      %s212 = smul.u32 %s18, 2
      %s213 = sadd.s32 %s212, %s19
      %s214 = smul.u32 4, %s213
      %p215 = scmp.lt.s32.totalorder %s214, 15
      %s216 = scalar_select %p215, %s214, 15
      %s217 = smul.addr %s216, 4
      %s218 = scalar_lea.vmem %s0, %s217
      %s219 = smul.u32 %s18, 2
      %s220 = sadd.s32 %s219, %s19
      %s221 = smul.u32 4, %s220
      %p222 = scmp.lt.s32.totalorder %s18, 1
      %s223 = scalar_select %p222, %s18, 1
      %s224 = scalar_lea.vmem %s1, %s223
      %p225 = scmp.lt.s32.totalorder %s18, 1
      %s226 = scalar_select %p225, %s18, 1
      %s227 = scalar_lea.vmem %s2, %s226
      %s228 = smul.u32 %s18, 2
      %s229 = sadd.s32 %s228, %s19
      %s230 = smul.u32 4, %s229
      %p231 = scmp.lt.s32.totalorder %s230, 15
      %s232 = scalar_select %p231, %s230, 15
      %s233 = smul.addr %s232, 4
      %s234 = scalar_lea.vmem %s3, %s233
      %s235 = smul.u32 %s18, 2
      %s236 = sadd.s32 %s235, %s19
      %s237 = smul.u32 4, %s236
      %v238 = vld [vmem:[%s224] sm:$0x1]
      %v239 = vmul.f32 %v238, 0.00591716
      %v240 = vld [vmem:[%s227] sm:$0x1]
      %v241 = vmul.f32 %v240, 0.00591716
      %v242 = vmul.f32 %v239, %v239
      %v243 = vsub.f32 %v241, %v242
      %v244 = vmax.f32 %v243, 0.0
      %v245 = vadd.f32 %v244, 1e-05
      %v246 = vrsqrt.pop %v245
      %v247 = vld [vmem:[%s218] sm:$0xf]
      %v248 = vld [vmem:[%s218 + $0x4] sm:$0xf]
      %v249 = vld [vmem:[%s218 + $0x8] sm:$0xf]
      %v250 = vld [vmem:[%s218 + $0xc] sm:$0xf]
      %v251 = vunpack.c.l.bf16 %v247
      %v252 = vunpack.c.l.bf16 %v248
      %v253 = vunpack.c.l.bf16 %v249
      %v254 = vunpack.c.l.bf16 %v250
      %v256 = vlaneseq
      %v257 = vshrl.u32 %v256, 7
      %v258 = vsub.s32 0, %v257
      %v259 = vrot.slane %v239, %v258
      %v261 = vsub.f32 %v251, %v259
      %v262 = vsub.f32 %v252, %v259
      %v263 = vsub.f32 %v253, %v259
      %v264 = vsub.f32 %v254, %v259
      %v266 = vlaneseq
      %v267 = vshrl.u32 %v266, 7
      %v268 = vsub.s32 0, %v267
      %v269 = vrot.slane %v246, %v268
      %v271 = vmul.f32 %v261, %v269
      %v272 = vmul.f32 %v262, %v269
      %v273 = vmul.f32 %v263, %v269
      %v274 = vmul.f32 %v264, %v269
      %vm275 = vcmp.ge.f32.partialorder %v271, 0.0
      %vm276 = vcmp.ge.f32.partialorder %v272, 0.0
      %vm277 = vcmp.ge.f32.partialorder %v273, 0.0
      %vm278 = vcmp.ge.f32.partialorder %v274, 0.0
      %v279 = vmul.f32 %v271, 0.01
      %v280 = vmul.f32 %v272, 0.01
      %v281 = vmul.f32 %v273, 0.01
      %v282 = vmul.f32 %v274, 0.01
      %v283 = vsel %vm275, %v271, %v279
      %v284 = vsel %vm276, %v272, %v280
      %v285 = vsel %vm277, %v273, %v281
      %v286 = vsel %vm278, %v274, %v282
      %v287 = vpack.c.bf16 %v284, %v283
      %v288 = vpack.c.bf16 %v286, %v285
      %v291 = vunpack.c.l.b16 %v287
      %v292 = vunpack.c.h.b16 %v287
      %v293 = vunpack.c.l.b16 %v288
      %v294 = vunpack.c.h.b16 %v288
      %v295 = vpack.c.b16 %v291, %v291
      %v296 = vpack.c.b16 %v292, %v292
      %v297 = vpack.c.b16 %v293, %v293
      %v298 = vpack.c.b16 %v294, %v294
      %303 = vst [vmem:[%s234] sm:$0xf] %v295
      %304 = vst [vmem:[%s234 + $0x4] sm:$0xf] %v296
      %305 = vst [vmem:[%s234 + $0x8] sm:$0xf] %v297
      %306 = vst [vmem:[%s234 + $0xc] sm:$0xf] %v298
      %s307 = smul.u32 %s18, 2
      %s308 = sadd.s32 %s307, %s19
      %s309 = smul.u32 4, %s308
      %p310 = scmp.lt.s32.totalorder %s309, 15
      %s311 = scalar_select %p310, %s309, 15
      %s312 = smul.addr %s311, 4
      %s313 = scalar_lea.vmem %s3, %s312
      // Predicated region
      $region33: #{generative_forward.61} parent=31 // pred_check
        %p314 = pneg %p130
      $region34: #{generative_forward.61} parent=31 // pred_check_branch
        %316 = sbr.rel (%p314) target = $region36
      $region35: #{generative_forward.61} parent=31 // pred_region
        %s317 = smul.u32 %s18, 2
        %s318 = sadd.s32 %s317, %s19
        %s319 = smul.u32 4, %s318
      $region36: #{generative_forward.61} parent=31 // pred_fallthru
        _
    $region32: #{generative_forward.61} parent=5 // pred_fallthru
      _
    %p320 = scmp.le.s32.totalorder 2, %s9
    // Predicated region
    $region37: #{generative_forward.61} parent=5 // pred_check
      %p321 = pneg %p320
    $region38: #{generative_forward.61} parent=5 // pred_check_branch
      %323 = sbr.rel (%p321) target = $region40
    $region39: #{generative_forward.61} parent=5 // pred_region
      %s324 = ssub.s32 %s9, 2
      // Predicated region
      $region41: #{generative_forward.61} parent=39 // pred_check
        %p325 = pneg %p136
      $region42: #{generative_forward.61} parent=39 // pred_check_branch
        %327 = sbr.rel (%p325) target = $region44
      $region43: #{generative_forward.61} parent=39 // pred_region
        %s328 = smul.u32 %s20, 2
        %s329 = sadd.s32 %s328, %s21
        %s330 = smul.u32 4, %s329
        %p331 = scmp.lt.s32.totalorder %s330, 15
        %s332 = scalar_select %p331, %s330, 15
        %s333 = smul.addr %s332, 4
        %s334 = scalar_lea.vmem %s3, %s333
      $region44: #{generative_forward.61} parent=39 // pred_fallthru
        _
    $region40: #{generative_forward.61} parent=5 // pred_fallthru
      _
  $region6: #{generative_forward.61} parent=0 // loop_footer
    %s13 = sadd.s32 1, %s9
  $region7: #{generative_forward.61} parent=0 // loop_footer_branch
    %8 = sbr.rel target = $region3
  $region8: #{generative_forward.61} parent=0 // loop_exit
    _

// kernel: generative_forward.63
$region0: #{generative_forward.63}
  #allocation0 [shape = 'u32[]', space=smem, size = 0x4, offset = 0x4, fixed_abs, tag = 'smem constant byte address 0x4 - core index']
  #allocation1 [shape = 'u32[144,128]{1,0:T(1,128)}', space=vmem, size = 0x12000, scoped, tag = 'internal scratch']
  %s0 = inlined_call_operand.vmem [shape: bf16[384,128], index: 0, kind: input, shape index: {}]
  %s1 = inlined_call_operand.vmem [shape: f32[2,1,128], index: 1, kind: input, shape index: {}]
  %s2 = inlined_call_operand.vmem [shape: f32[2,1,128], index: 2, kind: input, shape index: {}]
  %s3 = inlined_call_operand.vmem [shape: f32[384,128], index: 3, kind: output, shape index: {}]
  %s4 = sld [smem:[#allocation0]]
  $region45: #{generative_forward.63} parent=0
    _
  %s6 = ssub.s32 1, %s4
  %s7 = scalar_select 0, %s6, %s4
  loop: start=0, step=1, limit=6
  $region2: #{generative_forward.63} parent=0 // loop_pre_header
    _
  $region3: #{generative_forward.63} parent=0 // loop_header
    %s9 = sphi 0, %s13
    %p10 = scmp.ge.s32.totalorder %s9, 6
    %s16 = sphi 0, %s28
    %s17 = sphi 0, %s24
    %s18 = sphi 0, %s16
    %s19 = sphi 0, %s17
    %s20 = sphi 0, %s18
    %s21 = sphi 0, %s19
    %s35 = sphi 0, %s37
    %s38 = sphi 0, %s35
    %s39 = sphi 0, %s38
    %s55 = sphi 0, %s39
    %s61 = sphi 0, %s63
    %s64 = sphi 0, %s61
    %s65 = sphi 0, %s64
    %s81 = sphi 0, %s65
    %s87 = sphi 0, %s89
    %s90 = sphi 0, %s87
    %s91 = sphi 0, %s90
    %s107 = sphi 0, %s91
    %s117 = sphi 0, %s119
    %s120 = sphi 0, %s117
    %s121 = sphi 0, %s120
    %s137 = sphi 0, %s121
  $region4: #{generative_forward.63} parent=0 // loop_header_branch
    %12 = sbr.rel (%p10) target = $region8
  $region5: #{generative_forward.63} parent=0 // loop_body
    %s14 = ssub.s32 %s9, 1
    %s15 = ssub.s32 %s9, 2
    %s22 = sadd.s32 1, %s17
    %p23 = scmp.ge.s32.totalorder %s22, 2
    %s24 = scalar_select %p23, 0, %s22
    %s25 = sadd.s32 1, %s16
    %s26 = scalar_select %p23, %s25, %s16
    %p27 = scmp.ge.s32.totalorder %s26, 2
    %s28 = scalar_select %p27, 0, %s26
    %s29 = smul.u32 %s16, 2
    %s30 = sadd.s32 %s29, %s17
    %s31 = smul.u32 %s28, 2
    %s32 = sadd.s32 %s31, %s24
    %s33 = ssub.s32 %s30, %s32
    %p34 = scmp.eq.s32.totalorder %s33, 0
    %s36 = sadd.s32 %s35, 1
    %s37 = scalar_select %p34, %s35, %s36
    %p40 = pneg %p34
    %p41 = scmp.eq.s32.totalorder %s9, 3
    %p42 = por %p40, %p41
    %p43 = scmp.ne.s32.totalorder %s35, %s38
    %p44 = scmp.eq.s32.totalorder %s9, 0
    %p45 = por %p43, %p44
    %p46 = scmp.ne.s32.totalorder %s35, %s38
    %p47 = scmp.eq.s32.totalorder %s14, 3
    %p48 = por %p46, %p47
    %p49 = scmp.ne.s32.totalorder %s38, %s39
    %p50 = scmp.eq.s32.totalorder %s14, 0
    %p51 = por %p49, %p50
    %p52 = scmp.ne.s32.totalorder %s38, %s39
    %p53 = scmp.eq.s32.totalorder %s15, 3
    %p54 = por %p52, %p53
    %p56 = scmp.ne.s32.totalorder %s39, %s55
    %p57 = scmp.eq.s32.totalorder %s15, 0
    %p58 = por %p56, %p57
    %s59 = ssub.s32 %s16, %s28
    %p60 = scmp.eq.s32.totalorder %s59, 0
    %s62 = sadd.s32 %s61, 1
    %s63 = scalar_select %p60, %s61, %s62
    %p66 = pneg %p60
    %p67 = scmp.eq.s32.totalorder %s9, 3
    %p68 = por %p66, %p67
    %p69 = scmp.ne.s32.totalorder %s61, %s64
    %p70 = scmp.eq.s32.totalorder %s9, 0
    %p71 = por %p69, %p70
    %p72 = scmp.ne.s32.totalorder %s61, %s64
    %p73 = scmp.eq.s32.totalorder %s14, 3
    %p74 = por %p72, %p73
    %p75 = scmp.ne.s32.totalorder %s64, %s65
    %p76 = scmp.eq.s32.totalorder %s14, 0
    %p77 = por %p75, %p76
    %p78 = scmp.ne.s32.totalorder %s64, %s65
    %p79 = scmp.eq.s32.totalorder %s15, 3
    %p80 = por %p78, %p79
    %p82 = scmp.ne.s32.totalorder %s65, %s81
    %p83 = scmp.eq.s32.totalorder %s15, 0
    %p84 = por %p82, %p83
    %s85 = ssub.s32 %s16, %s28
    %p86 = scmp.eq.s32.totalorder %s85, 0
    %s88 = sadd.s32 %s87, 1
    %s89 = scalar_select %p86, %s87, %s88
    %p92 = pneg %p86
    %p93 = scmp.eq.s32.totalorder %s9, 3
    %p94 = por %p92, %p93
    %p95 = scmp.ne.s32.totalorder %s87, %s90
    %p96 = scmp.eq.s32.totalorder %s9, 0
    %p97 = por %p95, %p96
    %p98 = scmp.ne.s32.totalorder %s87, %s90
    %p99 = scmp.eq.s32.totalorder %s14, 3
    %p100 = por %p98, %p99
    %p101 = scmp.ne.s32.totalorder %s90, %s91
    %p102 = scmp.eq.s32.totalorder %s14, 0
    %p103 = por %p101, %p102
    %p104 = scmp.ne.s32.totalorder %s90, %s91
    %p105 = scmp.eq.s32.totalorder %s15, 3
    %p106 = por %p104, %p105
    %p108 = scmp.ne.s32.totalorder %s91, %s107
    %p109 = scmp.eq.s32.totalorder %s15, 0
    %p110 = por %p108, %p109
    %s111 = smul.u32 %s16, 2
    %s112 = sadd.s32 %s111, %s17
    %s113 = smul.u32 %s28, 2
    %s114 = sadd.s32 %s113, %s24
    %s115 = ssub.s32 %s112, %s114
    %p116 = scmp.eq.s32.totalorder %s115, 0
    %s118 = sadd.s32 %s117, 1
    %s119 = scalar_select %p116, %s117, %s118
    %p122 = pneg %p116
    %p123 = scmp.eq.s32.totalorder %s9, 3
    %p124 = por %p122, %p123
    %p125 = scmp.ne.s32.totalorder %s117, %s120
    %p126 = scmp.eq.s32.totalorder %s9, 0
    %p127 = por %p125, %p126
    %p128 = scmp.ne.s32.totalorder %s117, %s120
    %p129 = scmp.eq.s32.totalorder %s14, 3
    %p130 = por %p128, %p129
    %p131 = scmp.ne.s32.totalorder %s120, %s121
    %p132 = scmp.eq.s32.totalorder %s14, 0
    %p133 = por %p131, %p132
    %p134 = scmp.ne.s32.totalorder %s120, %s121
    %p135 = scmp.eq.s32.totalorder %s15, 3
    %p136 = por %p134, %p135
    %p138 = scmp.ne.s32.totalorder %s121, %s137
    %p139 = scmp.eq.s32.totalorder %s15, 0
    %p140 = por %p138, %p139
    %p141 = scmp.le.s32.totalorder 1, %s9
    %p142 = scmp.lt.s32.totalorder %s9, 5
    %p143 = pnand %p141, %p142
    %p144 = pneg %p143
    // Predicated region
    $region9: #{generative_forward.63} parent=5 // pred_check
      _
    $region10: #{generative_forward.63} parent=5 // pred_check_branch
      %146 = sbr.rel (%p143) target = $region12
    $region11: #{generative_forward.63} parent=5 // pred_region
      %s147 = ssub.s32 %s9, 1
    $region12: #{generative_forward.63} parent=5 // pred_fallthru
      _
    %p148 = scmp.lt.s32.totalorder %s9, 4
    // Predicated region
    $region13: #{generative_forward.63} parent=5 // pred_check
      %p149 = pneg %p148
    $region14: #{generative_forward.63} parent=5 // pred_check_branch
      %151 = sbr.rel (%p149) target = $region16
    $region15: #{generative_forward.63} parent=5 // pred_region
      // Predicated region
      $region17: #{generative_forward.63} parent=15 // pred_check
        %p152 = pneg %p45
      $region18: #{generative_forward.63} parent=15 // pred_check_branch
        %154 = sbr.rel (%p152) target = $region20
      $region19: #{generative_forward.63} parent=15 // pred_region
        %s155 = smul.u32 %s16, 2
        %s156 = sadd.s32 %s155, %s17
        %s157 = smul.u32 12, %s156
        %p158 = scmp.lt.s32.totalorder %s157, 47
        %s159 = scalar_select %p158, %s157, 47
        %s160 = smul.addr %s159, 4
        %s161 = scalar_lea.vmem %s0, %s160
        %s162 = smul.u32 %s16, 2
        %s163 = sadd.s32 %s162, %s17
        %s164 = smul.u32 12, %s163
      $region20: #{generative_forward.63} parent=15 // pred_fallthru
        _
      // Predicated region
      $region21: #{generative_forward.63} parent=15 // pred_check
        %p165 = pneg %p71
      $region22: #{generative_forward.63} parent=15 // pred_check_branch
        %167 = sbr.rel (%p165) target = $region24
      $region23: #{generative_forward.63} parent=15 // pred_region
        %p168 = scmp.lt.s32.totalorder %s16, 1
        %s169 = scalar_select %p168, %s16, 1
        %s170 = scalar_lea.vmem %s1, %s169
      $region24: #{generative_forward.63} parent=15 // pred_fallthru
        _
      // Predicated region
      $region25: #{generative_forward.63} parent=15 // pred_check
        %p171 = pneg %p97
      $region26: #{generative_forward.63} parent=15 // pred_check_branch
        %173 = sbr.rel (%p171) target = $region28
      $region27: #{generative_forward.63} parent=15 // pred_region
        %p174 = scmp.lt.s32.totalorder %s16, 1
        %s175 = scalar_select %p174, %s16, 1
        %s176 = scalar_lea.vmem %s2, %s175
      $region28: #{generative_forward.63} parent=15 // pred_fallthru
        _
    $region16: #{generative_forward.63} parent=5 // pred_fallthru
      _
    %p177 = scmp.le.s32.totalorder 1, %s9
    %p178 = scmp.lt.s32.totalorder %s9, 5
    %p179 = pnand %p177, %p178
    %p180 = pneg %p179
    // Predicated region
    $region29: #{generative_forward.63} parent=5 // pred_check
      _
    $region30: #{generative_forward.63} parent=5 // pred_check_branch
      %182 = sbr.rel (%p179) target = $region32
    $region31: #{generative_forward.63} parent=5 // pred_region
      %s183 = ssub.s32 %s9, 1
      %s184 = smul.u32 %s18, 2
      %s185 = sadd.s32 %s184, %s19
      %s186 = smul.u32 12, %s185
      %p187 = scmp.lt.s32.totalorder %s186, 47
      %s188 = scalar_select %p187, %s186, 47
      %s189 = smul.addr %s188, 4
      %s190 = scalar_lea.vmem %s0, %s189
      %p191 = pneg %p51
      %p192 = pneg %p48
      %p193 = scmp.lt.s32.totalorder %s18, 1
      %s194 = scalar_select %p193, %s18, 1
      %s195 = scalar_lea.vmem %s1, %s194
      %p196 = pneg %p77
      %p197 = pneg %p74
      %p198 = scmp.lt.s32.totalorder %s18, 1
      %s199 = scalar_select %p198, %s18, 1
      %s200 = scalar_lea.vmem %s2, %s199
      %p201 = pneg %p103
      %p202 = pneg %p100
      %p203 = pneg %p133
      %p204 = pneg %p130
      %s205 = smul.u32 %s18, 2
      %s206 = sadd.s32 %s205, %s19
      %s207 = smul.u32 12, %s206
      %p208 = scmp.lt.s32.totalorder %s207, 47
      %s209 = scalar_select %p208, %s207, 47
      %s210 = smul.addr %s209, 8
      %s211 = scalar_lea.vmem %s3, %s210
      %s212 = smul.u32 %s18, 2
      %s213 = sadd.s32 %s212, %s19
      %s214 = smul.u32 12, %s213
      %p215 = scmp.lt.s32.totalorder %s214, 47
      %s216 = scalar_select %p215, %s214, 47
      %s217 = smul.addr %s216, 4
      %s218 = scalar_lea.vmem %s0, %s217
      %s219 = smul.u32 %s18, 2
      %s220 = sadd.s32 %s219, %s19
      %s221 = smul.u32 12, %s220
      %p222 = scmp.lt.s32.totalorder %s18, 1
      %s223 = scalar_select %p222, %s18, 1
      %s224 = scalar_lea.vmem %s1, %s223
      %p225 = scmp.lt.s32.totalorder %s18, 1
      %s226 = scalar_select %p225, %s18, 1
      %s227 = scalar_lea.vmem %s2, %s226
      %s228 = smul.u32 %s18, 2
      %s229 = sadd.s32 %s228, %s19
      %s230 = smul.u32 12, %s229
      %p231 = scmp.lt.s32.totalorder %s230, 47
      %s232 = scalar_select %p231, %s230, 47
      %s233 = smul.addr %s232, 8
      %s234 = scalar_lea.vmem %s3, %s233
      %s235 = smul.u32 %s18, 2
      %s236 = sadd.s32 %s235, %s19
      %s237 = smul.u32 12, %s236
      %v238 = vld [vmem:[%s224] sm:$0x1]
      %v239 = vmul.f32 %v238, 0.00591716
      %v240 = vld [vmem:[%s227] sm:$0x1]
      %v241 = vmul.f32 %v240, 0.00591716
      %v242 = vmul.f32 %v239, %v239
      %v243 = vsub.f32 %v241, %v242
      %v244 = vmax.f32 %v243, 0.0
      %v245 = vadd.f32 %v244, 1e-05
      %v246 = vrsqrt.pop %v245
      %v247 = vld [vmem:[%s218] sm:$0xf]
      %v248 = vld [vmem:[%s218 + $0x4] sm:$0xf]
      %v249 = vld [vmem:[%s218 + $0x8] sm:$0xf]
      %v250 = vld [vmem:[%s218 + $0xc] sm:$0xf]
      %v251 = vld [vmem:[%s218 + $0x10] sm:$0xf]
      %v252 = vld [vmem:[%s218 + $0x14] sm:$0xf]
      %v253 = vld [vmem:[%s218 + $0x18] sm:$0xf]
      %v254 = vld [vmem:[%s218 + $0x1c] sm:$0xf]
      %v255 = vld [vmem:[%s218 + $0x20] sm:$0xf]
      %v256 = vld [vmem:[%s218 + $0x24] sm:$0xf]
      %v257 = vld [vmem:[%s218 + $0x28] sm:$0xf]
      %v258 = vld [vmem:[%s218 + $0x2c] sm:$0xf]
      %v259 = vunpack.c.l.bf16 %v247
      %v260 = vunpack.c.l.bf16 %v248
      %v261 = vunpack.c.l.bf16 %v249
      %v262 = vunpack.c.l.bf16 %v250
      %v263 = vunpack.c.l.bf16 %v251
      %v264 = vunpack.c.l.bf16 %v252
      %v265 = vunpack.c.l.bf16 %v253
      %v266 = vunpack.c.l.bf16 %v254
      %v267 = vunpack.c.l.bf16 %v255
      %v268 = vunpack.c.l.bf16 %v256
      %v269 = vunpack.c.l.bf16 %v257
      %v270 = vunpack.c.l.bf16 %v258
      %v272 = vlaneseq
      %v273 = vshrl.u32 %v272, 7
      %v274 = vsub.s32 0, %v273
      %v275 = vrot.slane %v239, %v274
      %v277 = vsub.f32 %v259, %v275
      %v278 = vsub.f32 %v260, %v275
      %v279 = vsub.f32 %v261, %v275
      %v280 = vsub.f32 %v262, %v275
      %v281 = vsub.f32 %v263, %v275
      %v282 = vsub.f32 %v264, %v275
      %v283 = vsub.f32 %v265, %v275
      %v284 = vsub.f32 %v266, %v275
      %v285 = vsub.f32 %v267, %v275
      %v286 = vsub.f32 %v268, %v275
      %v287 = vsub.f32 %v269, %v275
      %v288 = vsub.f32 %v270, %v275
      %v290 = vlaneseq
      %v291 = vshrl.u32 %v290, 7
      %v292 = vsub.s32 0, %v291
      %v293 = vrot.slane %v246, %v292
      %v295 = vmul.f32 %v277, %v293
      %v296 = vmul.f32 %v278, %v293
      %v297 = vmul.f32 %v279, %v293
      %v298 = vmul.f32 %v280, %v293
      %v299 = vmul.f32 %v281, %v293
      %v300 = vmul.f32 %v282, %v293
      %v301 = vmul.f32 %v283, %v293
      %v302 = vmul.f32 %v284, %v293
      %v303 = vmul.f32 %v285, %v293
      %v304 = vmul.f32 %v286, %v293
      %v305 = vmul.f32 %v287, %v293
      %v306 = vmul.f32 %v288, %v293
      %vm307 = vcmp.ge.f32.partialorder %v295, 0.0
      %vm308 = vcmp.ge.f32.partialorder %v296, 0.0
      %vm309 = vcmp.ge.f32.partialorder %v297, 0.0
      %vm310 = vcmp.ge.f32.partialorder %v298, 0.0
      %vm311 = vcmp.ge.f32.partialorder %v299, 0.0
      %vm312 = vcmp.ge.f32.partialorder %v300, 0.0
      %vm313 = vcmp.ge.f32.partialorder %v301, 0.0
      %vm314 = vcmp.ge.f32.partialorder %v302, 0.0
      %vm315 = vcmp.ge.f32.partialorder %v303, 0.0
      %vm316 = vcmp.ge.f32.partialorder %v304, 0.0
      %vm317 = vcmp.ge.f32.partialorder %v305, 0.0
      %vm318 = vcmp.ge.f32.partialorder %v306, 0.0
      %v319 = vmul.f32 %v295, 0.01
      %v320 = vmul.f32 %v296, 0.01
      %v321 = vmul.f32 %v297, 0.01
      %v322 = vmul.f32 %v298, 0.01
      %v323 = vmul.f32 %v299, 0.01
      %v324 = vmul.f32 %v300, 0.01
      %v325 = vmul.f32 %v301, 0.01
      %v326 = vmul.f32 %v302, 0.01
      %v327 = vmul.f32 %v303, 0.01
      %v328 = vmul.f32 %v304, 0.01
      %v329 = vmul.f32 %v305, 0.01
      %v330 = vmul.f32 %v306, 0.01
      %v331 = vsel %vm307, %v295, %v319
      %v332 = vsel %vm308, %v296, %v320
      %v333 = vsel %vm309, %v297, %v321
      %v334 = vsel %vm310, %v298, %v322
      %v335 = vsel %vm311, %v299, %v323
      %v336 = vsel %vm312, %v300, %v324
      %v337 = vsel %vm313, %v301, %v325
      %v338 = vsel %vm314, %v302, %v326
      %v339 = vsel %vm315, %v303, %v327
      %v340 = vsel %vm316, %v304, %v328
      %v341 = vsel %vm317, %v305, %v329
      %v342 = vsel %vm318, %v306, %v330
      %v343 = vtanh.pop %v331
      %v344 = vtanh.pop %v332
      %v345 = vtanh.pop %v333
      %v346 = vtanh.pop %v334
      %v347 = vtanh.pop %v335
      %v348 = vtanh.pop %v336
      %v349 = vtanh.pop %v337
      %v350 = vtanh.pop %v338
      %v351 = vtanh.pop %v339
      %v352 = vtanh.pop %v340
      %v353 = vtanh.pop %v341
      %v354 = vtanh.pop %v342
      %355 = vst [vmem:[%s234] sm:$0xff] %v343
      %356 = vst [vmem:[%s234 + $0x8] sm:$0xff] %v344
      %357 = vst [vmem:[%s234 + $0x10] sm:$0xff] %v345
      %358 = vst [vmem:[%s234 + $0x18] sm:$0xff] %v346
      %359 = vst [vmem:[%s234 + $0x20] sm:$0xff] %v347
      %360 = vst [vmem:[%s234 + $0x28] sm:$0xff] %v348
      %361 = vst [vmem:[%s234 + $0x30] sm:$0xff] %v349
      %362 = vst [vmem:[%s234 + $0x38] sm:$0xff] %v350
      %363 = vst [vmem:[%s234 + $0x40] sm:$0xff] %v351
      %364 = vst [vmem:[%s234 + $0x48] sm:$0xff] %v352
      %365 = vst [vmem:[%s234 + $0x50] sm:$0xff] %v353
      %366 = vst [vmem:[%s234 + $0x58] sm:$0xff] %v354
      %s367 = smul.u32 %s18, 2
      %s368 = sadd.s32 %s367, %s19
      %s369 = smul.u32 12, %s368
      %p370 = scmp.lt.s32.totalorder %s369, 47
      %s371 = scalar_select %p370, %s369, 47
      %s372 = smul.addr %s371, 8
      %s373 = scalar_lea.vmem %s3, %s372
      // Predicated region
      $region33: #{generative_forward.63} parent=31 // pred_check
        %p374 = pneg %p130
      $region34: #{generative_forward.63} parent=31 // pred_check_branch
        %376 = sbr.rel (%p374) target = $region36
      $region35: #{generative_forward.63} parent=31 // pred_region
        %s377 = smul.u32 %s18, 2
        %s378 = sadd.s32 %s377, %s19
        %s379 = smul.u32 12, %s378
      $region36: #{generative_forward.63} parent=31 // pred_fallthru
        _
    $region32: #{generative_forward.63} parent=5 // pred_fallthru
      _
    %p380 = scmp.le.s32.totalorder 2, %s9
    // Predicated region
    $region37: #{generative_forward.63} parent=5 // pred_check
      %p381 = pneg %p380
    $region38: #{generative_forward.63} parent=5 // pred_check_branch
      %383 = sbr.rel (%p381) target = $region40
    $region39: #{generative_forward.63} parent=5 // pred_region
      %s384 = ssub.s32 %s9, 2
      // Predicated region
      $region41: #{generative_forward.63} parent=39 // pred_check
        %p385 = pneg %p136
      $region42: #{generative_forward.63} parent=39 // pred_check_branch
        %387 = sbr.rel (%p385) target = $region44
      $region43: #{generative_forward.63} parent=39 // pred_region
        %s388 = smul.u32 %s20, 2
        %s389 = sadd.s32 %s388, %s21
        %s390 = smul.u32 12, %s389
        %p391 = scmp.lt.s32.totalorder %s390, 47
        %s392 = scalar_select %p391, %s390, 47
        %s393 = smul.addr %s392, 8
        %s394 = scalar_lea.vmem %s3, %s393
      $region44: #{generative_forward.63} parent=39 // pred_fallthru
        _
    $region40: #{generative_forward.63} parent=5 // pred_fallthru
      _
  $region6: #{generative_forward.63} parent=0 // loop_footer
    %s13 = sadd.s32 1, %s9
  $region7: #{generative_forward.63} parent=0 // loop_footer_branch
    %8 = sbr.rel target = $region3
  $region8: #{generative_forward.63} parent=0 // loop_exit
    _

// kernel: generative_forward.62
$region0: #{generative_forward.62}
  #allocation0 [shape = 'u32[]', space=smem, size = 0x4, offset = 0x4, fixed_abs, tag = 'smem constant byte address 0x4 - core index']
  #allocation1 [shape = 'u32[144,128]{1,0:T(1,128)}', space=vmem, size = 0x12000, scoped, tag = 'internal scratch']
  %s0 = inlined_call_operand.vmem [shape: bf16[384,512], index: 0, kind: input, shape index: {}]
  %s1 = inlined_call_operand.vmem [shape: bf16[512,128], index: 1, kind: input, shape index: {}]
  %s2 = inlined_call_operand.vmem [shape: bf16[384,128], index: 2, kind: output, shape index: {0}]
  %s3 = inlined_call_operand.vmem [shape: f32[4,1,128], index: 3, kind: output, shape index: {1}]
  %s4 = inlined_call_operand.vmem [shape: f32[4,1,128], index: 4, kind: output, shape index: {2}]
  %5 = xla_tuple %s2, %s3, %s4
  %s6 = sld [smem:[#allocation0]]
  $region61: #{generative_forward.62} parent=0
    _
  %s8 = ssub.s32 1, %s6
  %s9 = scalar_select 0, %s8, %s6
  loop: start=0, step=1, limit=6
  $region2: #{generative_forward.62} parent=0 // loop_pre_header
    _
  $region3: #{generative_forward.62} parent=0 // loop_header
    %s11 = sphi 0, %s15
    %p12 = scmp.ge.s32.totalorder %s11, 6
    %s18 = sphi 0, %s37
    %s19 = sphi 0, %s33
    %s20 = sphi 0, %s29
    %s21 = sphi 0, %s18
    %s22 = sphi 0, %s19
    %s23 = sphi 0, %s20
    %s24 = sphi 0, %s21
    %s25 = sphi 0, %s22
    %s26 = sphi 0, %s23
    %s46 = sphi 0, %s48
    %s49 = sphi 0, %s46
    %s50 = sphi 0, %s49
    %s66 = sphi 0, %s50
    %s70 = sphi 0, %s70
    %s72 = sphi 0, %s70
    %s73 = sphi 0, %s72
    %s87 = sphi 0, %s73
    %s99 = sphi 0, %s101
    %s102 = sphi 0, %s99
    %s103 = sphi 0, %s102
    %s119 = sphi 0, %s103
    %s129 = sphi 0, %s131
    %s132 = sphi 0, %s129
    %s133 = sphi 0, %s132
    %s149 = sphi 0, %s133
    %s159 = sphi 0, %s161
    %s162 = sphi 0, %s159
    %s163 = sphi 0, %s162
    %s179 = sphi 0, %s163
  $region4: #{generative_forward.62} parent=0 // loop_header_branch
    %14 = sbr.rel (%p12) target = $region8
  $region5: #{generative_forward.62} parent=0 // loop_body
    %s16 = ssub.s32 %s11, 1
    %s17 = ssub.s32 %s11, 2
    %s27 = sadd.s32 1, %s20
    %p28 = scmp.ge.s32.totalorder %s27, 1
    %s29 = scalar_select %p28, 0, %s27
    %s30 = sadd.s32 1, %s19
    %s31 = scalar_select %p28, %s30, %s19
    %p32 = scmp.ge.s32.totalorder %s31, 2
    %s33 = scalar_select %p32, 0, %s31
    %s34 = sadd.s32 1, %s18
    %s35 = scalar_select %p32, %s34, %s18
    %p36 = scmp.ge.s32.totalorder %s35, 2
    %s37 = scalar_select %p36, 0, %s35
    %s38 = smul.u32 %s18, 2
    %s39 = sadd.s32 %s38, %s19
    %s40 = sadd.s32 %s39, %s20
    %s41 = smul.u32 %s37, 2
    %s42 = sadd.s32 %s41, %s33
    %s43 = sadd.s32 %s42, %s29
    %s44 = ssub.s32 %s40, %s43
    %p45 = scmp.eq.s32.totalorder %s44, 0
    %s47 = sadd.s32 %s46, 1
    %s48 = scalar_select %p45, %s46, %s47
    %p51 = pneg %p45
    %p52 = scmp.eq.s32.totalorder %s11, 3
    %p53 = por %p51, %p52
    %p54 = scmp.ne.s32.totalorder %s46, %s49
    %p55 = scmp.eq.s32.totalorder %s11, 0
    %p56 = por %p54, %p55
    %p57 = scmp.ne.s32.totalorder %s46, %s49
    %p58 = scmp.eq.s32.totalorder %s16, 3
    %p59 = por %p57, %p58
    %p60 = scmp.ne.s32.totalorder %s49, %s50
    %p61 = scmp.eq.s32.totalorder %s16, 0
    %p62 = por %p60, %p61
    %p63 = scmp.ne.s32.totalorder %s49, %s50
    %p64 = scmp.eq.s32.totalorder %s17, 3
    %p65 = por %p63, %p64
    %p67 = scmp.ne.s32.totalorder %s50, %s66
    %p68 = scmp.eq.s32.totalorder %s17, 0
    %p69 = por %p67, %p68
    %s71 = sadd.s32 %s70, 1
    %p74 = scmp.eq.s32.totalorder %s11, 3
    %p75 = scmp.ne.s32.totalorder %s70, %s72
    %p76 = scmp.eq.s32.totalorder %s11, 0
    %p77 = por %p75, %p76
    %p78 = scmp.ne.s32.totalorder %s70, %s72
    %p79 = scmp.eq.s32.totalorder %s16, 3
    %p80 = por %p78, %p79
    %p81 = scmp.ne.s32.totalorder %s72, %s73
    %p82 = scmp.eq.s32.totalorder %s16, 0
    %p83 = por %p81, %p82
    %p84 = scmp.ne.s32.totalorder %s72, %s73
    %p85 = scmp.eq.s32.totalorder %s17, 3
    %p86 = por %p84, %p85
    %p88 = scmp.ne.s32.totalorder %s73, %s87
    %p89 = scmp.eq.s32.totalorder %s17, 0
    %p90 = por %p88, %p89
    %s91 = smul.u32 %s18, 2
    %s92 = sadd.s32 %s91, %s19
    %s93 = sadd.s32 %s92, %s20
    %s94 = smul.u32 %s37, 2
    %s95 = sadd.s32 %s94, %s33
    %s96 = sadd.s32 %s95, %s29
    %s97 = ssub.s32 %s93, %s96
    %p98 = scmp.eq.s32.totalorder %s97, 0
    %s100 = sadd.s32 %s99, 1
    %s101 = scalar_select %p98, %s99, %s100
    %p104 = pneg %p98
    %p105 = scmp.eq.s32.totalorder %s11, 3
    %p106 = por %p104, %p105
    %p107 = scmp.ne.s32.totalorder %s99, %s102
    %p108 = scmp.eq.s32.totalorder %s11, 0
    %p109 = por %p107, %p108
    %p110 = scmp.ne.s32.totalorder %s99, %s102
    %p111 = scmp.eq.s32.totalorder %s16, 3
    %p112 = por %p110, %p111
    %p113 = scmp.ne.s32.totalorder %s102, %s103
    %p114 = scmp.eq.s32.totalorder %s16, 0
    %p115 = por %p113, %p114
    %p116 = scmp.ne.s32.totalorder %s102, %s103
    %p117 = scmp.eq.s32.totalorder %s17, 3
    %p118 = por %p116, %p117
    %p120 = scmp.ne.s32.totalorder %s103, %s119
    %p121 = scmp.eq.s32.totalorder %s17, 0
    %p122 = por %p120, %p121
    %s123 = smul.u32 %s18, 2
    %s124 = sadd.s32 %s123, %s19
    %s125 = smul.u32 %s37, 2
    %s126 = sadd.s32 %s125, %s33
    %s127 = ssub.s32 %s124, %s126
    %p128 = scmp.eq.s32.totalorder %s127, 0
    %s130 = sadd.s32 %s129, 1
    %s131 = scalar_select %p128, %s129, %s130
    %p134 = pneg %p128
    %p135 = scmp.eq.s32.totalorder %s11, 3
    %p136 = por %p134, %p135
    %p137 = scmp.ne.s32.totalorder %s129, %s132
    %p138 = scmp.eq.s32.totalorder %s11, 0
    %p139 = por %p137, %p138
    %p140 = scmp.ne.s32.totalorder %s129, %s132
    %p141 = scmp.eq.s32.totalorder %s16, 3
    %p142 = por %p140, %p141
    %p143 = scmp.ne.s32.totalorder %s132, %s133
    %p144 = scmp.eq.s32.totalorder %s16, 0
    %p145 = por %p143, %p144
    %p146 = scmp.ne.s32.totalorder %s132, %s133
    %p147 = scmp.eq.s32.totalorder %s17, 3
    %p148 = por %p146, %p147
    %p150 = scmp.ne.s32.totalorder %s133, %s149
    %p151 = scmp.eq.s32.totalorder %s17, 0
    %p152 = por %p150, %p151
    %s153 = smul.u32 %s18, 2
    %s154 = sadd.s32 %s153, %s19
    %s155 = smul.u32 %s37, 2
    %s156 = sadd.s32 %s155, %s33
    %s157 = ssub.s32 %s154, %s156
    %p158 = scmp.eq.s32.totalorder %s157, 0
    %s160 = sadd.s32 %s159, 1
    %s161 = scalar_select %p158, %s159, %s160
    %p164 = pneg %p158
    %p165 = scmp.eq.s32.totalorder %s11, 3
    %p166 = por %p164, %p165
    %p167 = scmp.ne.s32.totalorder %s159, %s162
    %p168 = scmp.eq.s32.totalorder %s11, 0
    %p169 = por %p167, %p168
    %p170 = scmp.ne.s32.totalorder %s159, %s162
    %p171 = scmp.eq.s32.totalorder %s16, 3
    %p172 = por %p170, %p171
    %p173 = scmp.ne.s32.totalorder %s162, %s163
    %p174 = scmp.eq.s32.totalorder %s16, 0
    %p175 = por %p173, %p174
    %p176 = scmp.ne.s32.totalorder %s162, %s163
    %p177 = scmp.eq.s32.totalorder %s17, 3
    %p178 = por %p176, %p177
    %p180 = scmp.ne.s32.totalorder %s163, %s179
    %p181 = scmp.eq.s32.totalorder %s17, 0
    %p182 = por %p180, %p181
    %p183 = scmp.le.s32.totalorder 1, %s11
    %p184 = scmp.lt.s32.totalorder %s11, 5
    %p185 = pnand %p183, %p184
    %p186 = pneg %p185
    // Predicated region
    $region9: #{generative_forward.62} parent=5 // pred_check
      _
    $region10: #{generative_forward.62} parent=5 // pred_check_branch
      %188 = sbr.rel (%p185) target = $region12
    $region11: #{generative_forward.62} parent=5 // pred_region
      %s189 = ssub.s32 %s11, 1
      // Predicated region
      $region13: #{generative_forward.62} parent=11 // pred_check
        %p190 = pneg %p83
      $region14: #{generative_forward.62} parent=11 // pred_check_branch
        %192 = sbr.rel (%p190) target = $region16
      $region15: #{generative_forward.62} parent=11 // pred_region
        _
      $region16: #{generative_forward.62} parent=11 // pred_fallthru
        _
    $region12: #{generative_forward.62} parent=5 // pred_fallthru
      _
    %p193 = scmp.lt.s32.totalorder %s11, 4
    // Predicated region
    $region17: #{generative_forward.62} parent=5 // pred_check
      %p194 = pneg %p193
    $region18: #{generative_forward.62} parent=5 // pred_check_branch
      %196 = sbr.rel (%p194) target = $region20
    $region19: #{generative_forward.62} parent=5 // pred_region
      // Predicated region
      $region21: #{generative_forward.62} parent=19 // pred_check
        %p197 = pneg %p56
      $region22: #{generative_forward.62} parent=19 // pred_check_branch
        %199 = sbr.rel (%p197) target = $region24
      $region23: #{generative_forward.62} parent=19 // pred_region
        %s200 = smul.u32 %s18, 2
        %s201 = sadd.s32 %s200, %s19
        %s202 = sadd.s32 %s201, %s20
        %s203 = smul.u32 12, %s202
        %p204 = scmp.lt.s32.totalorder %s203, 47
        %s205 = scalar_select %p204, %s203, 47
        %s206 = smul.addr %s205, 4
        %s207 = smul.addr %s206, 4
        %s208 = scalar_lea.vmem %s0, %s207
        %s209 = smul.u32 %s18, 2
        %s210 = sadd.s32 %s209, %s19
        %s211 = sadd.s32 %s210, %s20
        %s212 = smul.u32 12, %s211
      $region24: #{generative_forward.62} parent=19 // pred_fallthru
        _
    $region20: #{generative_forward.62} parent=5 // pred_fallthru
      _
    %p213 = scmp.le.s32.totalorder 1, %s11
    %p214 = scmp.lt.s32.totalorder %s11, 5
    %p215 = pnand %p213, %p214
    %p216 = pneg %p215
    // Predicated region
    $region25: #{generative_forward.62} parent=5 // pred_check
      _
    $region26: #{generative_forward.62} parent=5 // pred_check_branch
      %218 = sbr.rel (%p215) target = $region28
    $region27: #{generative_forward.62} parent=5 // pred_region
      %s219 = ssub.s32 %s11, 1
      %s220 = smul.u32 %s21, 2
      %s221 = sadd.s32 %s220, %s22
      %s222 = sadd.s32 %s221, %s23
      %s223 = smul.u32 12, %s222
      %p224 = scmp.lt.s32.totalorder %s223, 47
      %s225 = scalar_select %p224, %s223, 47
      %s226 = smul.addr %s225, 4
      %s227 = smul.addr %s226, 4
      %s228 = scalar_lea.vmem %s0, %s227
      %p229 = pneg %p62
      %p230 = pneg %p59
      %p231 = pneg %p83
      %p232 = pneg %p80
      %p233 = pneg %p115
      %p234 = pneg %p112
      %s235 = smul.u32 %s21, 2
      %s236 = sadd.s32 %s235, %s22
      %s237 = sadd.s32 %s236, %s23
      %s238 = smul.u32 12, %s237
      %p239 = scmp.lt.s32.totalorder %s238, 47
      %s240 = scalar_select %p239, %s238, 47
      %s241 = smul.addr %s240, 4
      %s242 = scalar_lea.vmem %s2, %s241
      %p243 = pneg %p145
      %p244 = pneg %p142
      %s245 = smul.u32 %s21, 2
      %s246 = sadd.s32 %s245, %s22
      %p247 = scmp.lt.s32.totalorder %s246, 3
      %s248 = scalar_select %p247, %s246, 3
      %s249 = scalar_lea.vmem %s3, %s248
      %p250 = pneg %p175
      %p251 = pneg %p172
      %s252 = smul.u32 %s21, 2
      %s253 = sadd.s32 %s252, %s22
      %p254 = scmp.lt.s32.totalorder %s253, 3
      %s255 = scalar_select %p254, %s253, 3
      %s256 = scalar_lea.vmem %s4, %s255
      %s257 = smul.u32 %s21, 2
      %s258 = sadd.s32 %s257, %s22
      %s259 = sadd.s32 %s258, %s23
      %s260 = smul.u32 12, %s259
      %p261 = scmp.lt.s32.totalorder %s260, 47
      %s262 = scalar_select %p261, %s260, 47
      %s263 = smul.addr %s262, 4
      %s264 = smul.addr %s263, 4
      %s265 = scalar_lea.vmem %s0, %s264
      %s266 = smul.u32 %s21, 2
      %s267 = sadd.s32 %s266, %s22
      %s268 = sadd.s32 %s267, %s23
      %s269 = smul.u32 12, %s268
      %s270 = smul.u32 %s21, 2
      %s271 = sadd.s32 %s270, %s22
      %s272 = sadd.s32 %s271, %s23
      %s273 = smul.u32 12, %s272
      %p274 = scmp.lt.s32.totalorder %s273, 47
      %s275 = scalar_select %p274, %s273, 47
      %s276 = smul.addr %s275, 4
      %s277 = scalar_lea.vmem %s2, %s276
      %s278 = smul.u32 %s21, 2
      %s279 = sadd.s32 %s278, %s22
      %s280 = sadd.s32 %s279, %s23
      %s281 = smul.u32 12, %s280
      %s282 = smul.u32 %s21, 2
      %s283 = sadd.s32 %s282, %s22
      %p284 = scmp.lt.s32.totalorder %s283, 3
      %s285 = scalar_select %p284, %s283, 3
      %s286 = scalar_lea.vmem %s3, %s285
      %s287 = smul.u32 %s21, 2
      %s288 = sadd.s32 %s287, %s22
      %s289 = smul.u32 %s21, 2
      %s290 = sadd.s32 %s289, %s22
      %p291 = scmp.lt.s32.totalorder %s290, 3
      %s292 = scalar_select %p291, %s290, 3
      %s293 = scalar_lea.vmem %s4, %s292
      %s294 = smul.u32 %s21, 2
      %s295 = sadd.s32 %s294, %s22
      %v297 = vld [vmem:[%s265] sm:$0xff]
      %v298 = vld [vmem:[%s265 + $0x8] sm:$0xff]
      %v299 = vld [vmem:[%s265 + $0x10] sm:$0xff]
      %v300 = vld [vmem:[%s265 + $0x18] sm:$0xff]
      %v301 = vld [vmem:[%s265 + $0x20] sm:$0xff]
      %v302 = vld [vmem:[%s265 + $0x28] sm:$0xff]
      %v303 = vld [vmem:[%s265 + $0x30] sm:$0xff]
      %v304 = vld [vmem:[%s265 + $0x38] sm:$0xff]
      %v305 = vld [vmem:[%s265 + $0x40] sm:$0xff]
      %v306 = vld [vmem:[%s265 + $0x48] sm:$0xff]
      %v307 = vld [vmem:[%s265 + $0x50] sm:$0xff]
      %v308 = vld [vmem:[%s265 + $0x58] sm:$0xff]
      %v309 = vld [vmem:[%s265 + $0x60] sm:$0xff]
      %v310 = vld [vmem:[%s265 + $0x68] sm:$0xff]
      %v311 = vld [vmem:[%s265 + $0x70] sm:$0xff]
      %v312 = vld [vmem:[%s265 + $0x78] sm:$0xff]
      %v313 = vld [vmem:[%s265 + $0x80] sm:$0xff]
      %v314 = vld [vmem:[%s265 + $0x88] sm:$0xff]
      %v315 = vld [vmem:[%s265 + $0x90] sm:$0xff]
      %v316 = vld [vmem:[%s265 + $0x98] sm:$0xff]
      %v317 = vld [vmem:[%s265 + $0xa0] sm:$0xff]
      %v318 = vld [vmem:[%s265 + $0xa8] sm:$0xff]
      %v319 = vld [vmem:[%s265 + $0xb0] sm:$0xff]
      %v320 = vld [vmem:[%s265 + $0xb8] sm:$0xff]
      %v321 = vld [vmem:[%s1] sm:$0xf]
      %v322 = vld [vmem:[%s1 + $0x4] sm:$0xf]
      %v323 = vld [vmem:[%s1 + $0x8] sm:$0xf]
      %v324 = vld [vmem:[%s1 + $0xc] sm:$0xf]
      %v325 = vld [vmem:[%s1 + $0x10] sm:$0xf]
      %v326 = vld [vmem:[%s1 + $0x14] sm:$0xf]
      %v327 = vld [vmem:[%s1 + $0x18] sm:$0xf]
      %v328 = vld [vmem:[%s1 + $0x1c] sm:$0xf]
      %v329 = vld [vmem:[%s1 + $0x20] sm:$0xf]
      %v330 = vld [vmem:[%s1 + $0x24] sm:$0xf]
      %v331 = vld [vmem:[%s1 + $0x28] sm:$0xf]
      %v332 = vld [vmem:[%s1 + $0x2c] sm:$0xf]
      %v333 = vld [vmem:[%s1 + $0x30] sm:$0xf]
      %v334 = vld [vmem:[%s1 + $0x34] sm:$0xf]
      %v335 = vld [vmem:[%s1 + $0x38] sm:$0xf]
      %v336 = vld [vmem:[%s1 + $0x3c] sm:$0xf]
      %v337 = vld [vmem:[%s1 + $0x40] sm:$0xf]
      %v338 = vld [vmem:[%s1 + $0x44] sm:$0xf]
      %v339 = vld [vmem:[%s1 + $0x48] sm:$0xf]
      %v340 = vld [vmem:[%s1 + $0x4c] sm:$0xf]
      %v341 = vld [vmem:[%s1 + $0x50] sm:$0xf]
      %v342 = vld [vmem:[%s1 + $0x54] sm:$0xf]
      %v343 = vld [vmem:[%s1 + $0x58] sm:$0xf]
      %v344 = vld [vmem:[%s1 + $0x5c] sm:$0xf]
      %v345 = vld [vmem:[%s1 + $0x60] sm:$0xf]
      %v346 = vld [vmem:[%s1 + $0x64] sm:$0xf]
      %v347 = vld [vmem:[%s1 + $0x68] sm:$0xf]
      %v348 = vld [vmem:[%s1 + $0x6c] sm:$0xf]
      %v349 = vld [vmem:[%s1 + $0x70] sm:$0xf]
      %v350 = vld [vmem:[%s1 + $0x74] sm:$0xf]
      %v351 = vld [vmem:[%s1 + $0x78] sm:$0xf]
      %v352 = vld [vmem:[%s1 + $0x7c] sm:$0xf]
      %v353 = vld [vmem:[%s1 + $0x80] sm:$0xf]
      %v354 = vld [vmem:[%s1 + $0x84] sm:$0xf]
      %v355 = vld [vmem:[%s1 + $0x88] sm:$0xf]
      %v356 = vld [vmem:[%s1 + $0x8c] sm:$0xf]
      %v357 = vld [vmem:[%s1 + $0x90] sm:$0xf]
      %v358 = vld [vmem:[%s1 + $0x94] sm:$0xf]
      %v359 = vld [vmem:[%s1 + $0x98] sm:$0xf]
      %v360 = vld [vmem:[%s1 + $0x9c] sm:$0xf]
      %v361 = vld [vmem:[%s1 + $0xa0] sm:$0xf]
      %v362 = vld [vmem:[%s1 + $0xa4] sm:$0xf]
      %v363 = vld [vmem:[%s1 + $0xa8] sm:$0xf]
      %v364 = vld [vmem:[%s1 + $0xac] sm:$0xf]
      %v365 = vld [vmem:[%s1 + $0xb0] sm:$0xf]
      %v366 = vld [vmem:[%s1 + $0xb4] sm:$0xf]
      %v367 = vld [vmem:[%s1 + $0xb8] sm:$0xf]
      %v368 = vld [vmem:[%s1 + $0xbc] sm:$0xf]
      %v369 = vld [vmem:[%s1 + $0xc0] sm:$0xf]
      %v370 = vld [vmem:[%s1 + $0xc4] sm:$0xf]
      %v371 = vld [vmem:[%s1 + $0xc8] sm:$0xf]
      %v372 = vld [vmem:[%s1 + $0xcc] sm:$0xf]
      %v373 = vld [vmem:[%s1 + $0xd0] sm:$0xf]
      %v374 = vld [vmem:[%s1 + $0xd4] sm:$0xf]
      %v375 = vld [vmem:[%s1 + $0xd8] sm:$0xf]
      %v376 = vld [vmem:[%s1 + $0xdc] sm:$0xf]
      %v377 = vld [vmem:[%s1 + $0xe0] sm:$0xf]
      %v378 = vld [vmem:[%s1 + $0xe4] sm:$0xf]
      %v379 = vld [vmem:[%s1 + $0xe8] sm:$0xf]
      %v380 = vld [vmem:[%s1 + $0xec] sm:$0xf]
      %v381 = vld [vmem:[%s1 + $0xf0] sm:$0xf]
      %v382 = vld [vmem:[%s1 + $0xf4] sm:$0xf]
      %v383 = vld [vmem:[%s1 + $0xf8] sm:$0xf]
      %v384 = vld [vmem:[%s1 + $0xfc] sm:$0xf]
      %v409 = vunpack.c.l.b16 %v297
      %v410 = vunpack.c.h.b16 %v297
      %v411 = vunpack.c.l.b16 %v298
      %v412 = vunpack.c.h.b16 %v298
      %v413 = vunpack.c.l.b16 %v299
      %v414 = vunpack.c.h.b16 %v299
      %v415 = vunpack.c.l.b16 %v300
      %v416 = vunpack.c.h.b16 %v300
      %v417 = vunpack.c.l.b16 %v301
      %v418 = vunpack.c.h.b16 %v301
      %v419 = vunpack.c.l.b16 %v302
      %v420 = vunpack.c.h.b16 %v302
      %v421 = vunpack.c.l.b16 %v303
      %v422 = vunpack.c.h.b16 %v303
      %v423 = vunpack.c.l.b16 %v304
      %v424 = vunpack.c.h.b16 %v304
      %v425 = vunpack.c.l.b16 %v305
      %v426 = vunpack.c.h.b16 %v305
      %v427 = vunpack.c.l.b16 %v306
      %v428 = vunpack.c.h.b16 %v306
      %v429 = vunpack.c.l.b16 %v307
      %v430 = vunpack.c.h.b16 %v307
      %v431 = vunpack.c.l.b16 %v308
      %v432 = vunpack.c.h.b16 %v308
      %v433 = vunpack.c.l.b16 %v309
      %v434 = vunpack.c.h.b16 %v309
      %v435 = vunpack.c.l.b16 %v310
      %v436 = vunpack.c.h.b16 %v310
      %v437 = vunpack.c.l.b16 %v311
      %v438 = vunpack.c.h.b16 %v311
      %v439 = vunpack.c.l.b16 %v312
      %v440 = vunpack.c.h.b16 %v312
      %v441 = vunpack.c.l.b16 %v313
      %v442 = vunpack.c.h.b16 %v313
      %v443 = vunpack.c.l.b16 %v314
      %v444 = vunpack.c.h.b16 %v314
      %v445 = vunpack.c.l.b16 %v315
      %v446 = vunpack.c.h.b16 %v315
      %v447 = vunpack.c.l.b16 %v316
      %v448 = vunpack.c.h.b16 %v316
      %v449 = vunpack.c.l.b16 %v317
      %v450 = vunpack.c.h.b16 %v317
      %v451 = vunpack.c.l.b16 %v318
      %v452 = vunpack.c.h.b16 %v318
      %v453 = vunpack.c.l.b16 %v319
      %v454 = vunpack.c.h.b16 %v319
      %v455 = vunpack.c.l.b16 %v320
      %v456 = vunpack.c.h.b16 %v320
      %v457 = vpack.c.b16 %v413, %v409
      %v458 = vpack.c.b16 %v414, %v410
      %v459 = vpack.c.b16 %v415, %v411
      %v460 = vpack.c.b16 %v416, %v412
      %v461 = vpack.c.b16 %v421, %v417
      %v462 = vpack.c.b16 %v422, %v418
      %v463 = vpack.c.b16 %v423, %v419
      %v464 = vpack.c.b16 %v424, %v420
      %v465 = vpack.c.b16 %v429, %v425
      %v466 = vpack.c.b16 %v430, %v426
      %v467 = vpack.c.b16 %v431, %v427
      %v468 = vpack.c.b16 %v432, %v428
      %v469 = vpack.c.b16 %v437, %v433
      %v470 = vpack.c.b16 %v438, %v434
      %v471 = vpack.c.b16 %v439, %v435
      %v472 = vpack.c.b16 %v440, %v436
      %v473 = vpack.c.b16 %v445, %v441
      %v474 = vpack.c.b16 %v446, %v442
      %v475 = vpack.c.b16 %v447, %v443
      %v476 = vpack.c.b16 %v448, %v444
      %v477 = vpack.c.b16 %v453, %v449
      %v478 = vpack.c.b16 %v454, %v450
      %v479 = vpack.c.b16 %v455, %v451
      %v480 = vpack.c.b16 %v456, %v452
      %v569 = vunpack.c.l.b16 %v321
      %v570 = vunpack.c.l.b16 %v322
      %v571 = vunpack.c.l.b16 %v323
      %v572 = vunpack.c.l.b16 %v324
      %v573 = vunpack.c.l.b16 %v325
      %v574 = vunpack.c.l.b16 %v326
      %v575 = vunpack.c.l.b16 %v327
      %v576 = vunpack.c.l.b16 %v328
      %v577 = vunpack.c.l.b16 %v329
      %v578 = vunpack.c.l.b16 %v330
      %v579 = vunpack.c.l.b16 %v331
      %v580 = vunpack.c.l.b16 %v332
      %v581 = vunpack.c.l.b16 %v333
      %v582 = vunpack.c.l.b16 %v334
      %v583 = vunpack.c.l.b16 %v335
      %v584 = vunpack.c.l.b16 %v336
      %v585 = vunpack.c.l.b16 %v337
      %v586 = vunpack.c.l.b16 %v338
      %v587 = vunpack.c.l.b16 %v339
      %v588 = vunpack.c.l.b16 %v340
      %v589 = vunpack.c.l.b16 %v341
      %v590 = vunpack.c.l.b16 %v342
      %v591 = vunpack.c.l.b16 %v343
      %v592 = vunpack.c.l.b16 %v344
      %v593 = vunpack.c.l.b16 %v345
      %v594 = vunpack.c.l.b16 %v346
      %v595 = vunpack.c.l.b16 %v347
      %v596 = vunpack.c.l.b16 %v348
      %v597 = vunpack.c.l.b16 %v349
      %v598 = vunpack.c.l.b16 %v350
      %v599 = vunpack.c.l.b16 %v351
      %v600 = vunpack.c.l.b16 %v352
      %v601 = vunpack.c.l.b16 %v353
      %v602 = vunpack.c.l.b16 %v354
      %v603 = vunpack.c.l.b16 %v355
      %v604 = vunpack.c.l.b16 %v356
      %v605 = vunpack.c.l.b16 %v357
      %v606 = vunpack.c.l.b16 %v358
      %v607 = vunpack.c.l.b16 %v359
      %v608 = vunpack.c.l.b16 %v360
      %v609 = vunpack.c.l.b16 %v361
      %v610 = vunpack.c.l.b16 %v362
      %v611 = vunpack.c.l.b16 %v363
      %v612 = vunpack.c.l.b16 %v364
      %v613 = vunpack.c.l.b16 %v365
      %v614 = vunpack.c.l.b16 %v366
      %v615 = vunpack.c.l.b16 %v367
      %v616 = vunpack.c.l.b16 %v368
      %v617 = vunpack.c.l.b16 %v369
      %v618 = vunpack.c.l.b16 %v370
      %v619 = vunpack.c.l.b16 %v371
      %v620 = vunpack.c.l.b16 %v372
      %v621 = vunpack.c.l.b16 %v373
      %v622 = vunpack.c.l.b16 %v374
      %v623 = vunpack.c.l.b16 %v375
      %v624 = vunpack.c.l.b16 %v376
      %v625 = vunpack.c.l.b16 %v377
      %v626 = vunpack.c.l.b16 %v378
      %v627 = vunpack.c.l.b16 %v379
      %v628 = vunpack.c.l.b16 %v380
      %v629 = vunpack.c.l.b16 %v381
      %v630 = vunpack.c.l.b16 %v382
      %v631 = vunpack.c.l.b16 %v383
      %v632 = vunpack.c.l.b16 %v384
      %v633 = vpack.c.b16 %v570, %v569
      %v634 = vpack.c.b16 %v572, %v571
      %v635 = vpack.c.b16 %v574, %v573
      %v636 = vpack.c.b16 %v576, %v575
      %v637 = vpack.c.b16 %v578, %v577
      %v638 = vpack.c.b16 %v580, %v579
      %v639 = vpack.c.b16 %v582, %v581
      %v640 = vpack.c.b16 %v584, %v583
      %v641 = vpack.c.b16 %v586, %v585
      %v642 = vpack.c.b16 %v588, %v587
      %v643 = vpack.c.b16 %v590, %v589
      %v644 = vpack.c.b16 %v592, %v591
      %v645 = vpack.c.b16 %v594, %v593
      %v646 = vpack.c.b16 %v596, %v595
      %v647 = vpack.c.b16 %v598, %v597
      %v648 = vpack.c.b16 %v600, %v599
      %v649 = vpack.c.b16 %v602, %v601
      %v650 = vpack.c.b16 %v604, %v603
      %v651 = vpack.c.b16 %v606, %v605
      %v652 = vpack.c.b16 %v608, %v607
      %v653 = vpack.c.b16 %v610, %v609
      %v654 = vpack.c.b16 %v612, %v611
      %v655 = vpack.c.b16 %v614, %v613
      %v656 = vpack.c.b16 %v616, %v615
      %v657 = vpack.c.b16 %v618, %v617
      %v658 = vpack.c.b16 %v620, %v619
      %v659 = vpack.c.b16 %v622, %v621
      %v660 = vpack.c.b16 %v624, %v623
      %v661 = vpack.c.b16 %v626, %v625
      %v662 = vpack.c.b16 %v628, %v627
      %v663 = vpack.c.b16 %v630, %v629
      %v664 = vpack.c.b16 %v632, %v631
      %697 = vmatprep.subr.bf16.mxu0 0
      %698 = vmatpush1.bf16.msra.mxu0 %v633
      %699 = vmatprep.subr.bf16.mxu0 0
      %700 = vmatpush1.bf16.msra.mxu0 %v634
      %701 = vmatprep.subr.bf16.mxu0 0
      %702 = vmatpush1.bf16.msra.mxu0 %v635
      %703 = vmatprep.subr.bf16.mxu0 0
      %704 = vmatpush1.bf16.msra.mxu0 %v636
      %705 = vmatprep.subr.bf16.mxu0 0
      %706 = vmatpush1.bf16.msra.mxu0 %v637
      %707 = vmatprep.subr.bf16.mxu0 0
      %708 = vmatpush1.bf16.msra.mxu0 %v638
      %709 = vmatprep.subr.bf16.mxu0 0
      %710 = vmatpush1.bf16.msra.mxu0 %v639
      %711 = vmatprep.subr.bf16.mxu0 0
      %712 = vmatpush1.bf16.msra.mxu0 %v640
      %713 = vmatprep.subr.bf16.mxu0 0
      %714 = vmatpush1.bf16.msra.mxu0 %v641
      %715 = vmatprep.subr.bf16.mxu0 0
      %716 = vmatpush1.bf16.msra.mxu0 %v642
      %717 = vmatprep.subr.bf16.mxu0 0
      %718 = vmatpush1.bf16.msra.mxu0 %v643
      %719 = vmatprep.subr.bf16.mxu0 0
      %720 = vmatpush1.bf16.msra.mxu0 %v644
      %721 = vmatprep.subr.bf16.mxu0 0
      %722 = vmatpush1.bf16.msra.mxu0 %v645
      %723 = vmatprep.subr.bf16.mxu0 0
      %724 = vmatpush1.bf16.msra.mxu0 %v646
      %725 = vmatprep.subr.bf16.mxu0 0
      %726 = vmatpush1.bf16.msra.mxu0 %v647
      %727 = vmatprep.subr.bf16.mxu0 0
      %728 = vmatpush1.bf16.msra.mxu0 %v648
      %729 = vmatprep.mubr.bf16.mxu0 %v458
      %730 = vmatmul.mubr.bf16.gmra.mrb[0].mxu0 %v457
      %v731 = vpop.f32.mrb[0].mxu0
      %v732 = vadd.f32 0.0, %v731
      %v733 = vpop.f32.mrb[0].mxu0
      %v734 = vpop.f32.mrb[0].mxu0
      %v735 = vadd.f32 0.0, %v734
      %v736 = vpop.f32.mrb[0].mxu0
      %737 = vmatprep.mubr.bf16.mxu0 %v462
      %738 = vmatmul.mubr.bf16.gmra.mrb[0].mxu0 %v461
      %v739 = vpop.f32.mrb[0].mxu0
      %v740 = vadd.f32 0.0, %v739
      %v741 = vpop.f32.mrb[0].mxu0
      %v742 = vpop.f32.mrb[0].mxu0
      %v743 = vadd.f32 0.0, %v742
      %v744 = vpop.f32.mrb[0].mxu0
      %745 = vmatprep.mubr.bf16.mxu0 %v466
      %746 = vmatmul.mubr.bf16.gmra.mrb[0].mxu0 %v465
      %v747 = vpop.f32.mrb[0].mxu0
      %v748 = vadd.f32 0.0, %v747
      %v749 = vpop.f32.mrb[0].mxu0
      %v750 = vpop.f32.mrb[0].mxu0
      %v751 = vadd.f32 0.0, %v750
      %v752 = vpop.f32.mrb[0].mxu0
      %753 = vmatprep.mubr.bf16.mxu0 %v470
      %754 = vmatmul.mubr.bf16.gmra.mrb[0].mxu0 %v469
      %v755 = vpop.f32.mrb[0].mxu0
      %v756 = vadd.f32 0.0, %v755
      %v757 = vpop.f32.mrb[0].mxu0
      %v758 = vpop.f32.mrb[0].mxu0
      %v759 = vadd.f32 0.0, %v758
      %v760 = vpop.f32.mrb[0].mxu0
      %761 = vmatprep.mubr.bf16.mxu0 %v474
      %762 = vmatmul.mubr.bf16.gmra.mrb[0].mxu0 %v473
      %v763 = vpop.f32.mrb[0].mxu0
      %v764 = vadd.f32 0.0, %v763
      %v765 = vpop.f32.mrb[0].mxu0
      %v766 = vpop.f32.mrb[0].mxu0
      %v767 = vadd.f32 0.0, %v766
      %v768 = vpop.f32.mrb[0].mxu0
      %769 = vmatprep.mubr.bf16.mxu0 %v478
      %770 = vmatmul.mubr.bf16.gmra.mrb[0].mxu0 %v477
      %v771 = vpop.f32.mrb[0].mxu0
      %v772 = vadd.f32 0.0, %v771
      %v773 = vpop.f32.mrb[0].mxu0
      %v774 = vpop.f32.mrb[0].mxu0
      %v775 = vadd.f32 0.0, %v774
      %v776 = vpop.f32.mrb[0].mxu0
      %777 = vdwg.mxu0
      %778 = vmatprep.subr.bf16.mxu0 0
      %779 = vmatpush1.bf16.msra.mxu0 %v649
      %780 = vmatprep.subr.bf16.mxu0 0
      %781 = vmatpush1.bf16.msra.mxu0 %v650
      %782 = vmatprep.subr.bf16.mxu0 0
      %783 = vmatpush1.bf16.msra.mxu0 %v651
      %784 = vmatprep.subr.bf16.mxu0 0
      %785 = vmatpush1.bf16.msra.mxu0 %v652
      %786 = vmatprep.subr.bf16.mxu0 0
      %787 = vmatpush1.bf16.msra.mxu0 %v653
      %788 = vmatprep.subr.bf16.mxu0 0
      %789 = vmatpush1.bf16.msra.mxu0 %v654
      %790 = vmatprep.subr.bf16.mxu0 0
      %791 = vmatpush1.bf16.msra.mxu0 %v655
      %792 = vmatprep.subr.bf16.mxu0 0
      %793 = vmatpush1.bf16.msra.mxu0 %v656
      %794 = vmatprep.subr.bf16.mxu0 0
      %795 = vmatpush1.bf16.msra.mxu0 %v657
      %796 = vmatprep.subr.bf16.mxu0 0
      %797 = vmatpush1.bf16.msra.mxu0 %v658
      %798 = vmatprep.subr.bf16.mxu0 0
      %799 = vmatpush1.bf16.msra.mxu0 %v659
      %800 = vmatprep.subr.bf16.mxu0 0
      %801 = vmatpush1.bf16.msra.mxu0 %v660
      %802 = vmatprep.subr.bf16.mxu0 0
      %803 = vmatpush1.bf16.msra.mxu0 %v661
      %804 = vmatprep.subr.bf16.mxu0 0
      %805 = vmatpush1.bf16.msra.mxu0 %v662
      %806 = vmatprep.subr.bf16.mxu0 0
      %807 = vmatpush1.bf16.msra.mxu0 %v663
      %808 = vmatprep.subr.bf16.mxu0 0
      %809 = vmatpush1.bf16.msra.mxu0 %v664
      %810 = vmatprep.mubr.bf16.mxu0 %v460
      %811 = vmatmul.mubr.bf16.gmra.mrb[0].mxu0 %v459
      %v812 = vpop.f32.mrb[0].mxu0
      %v813 = vadd.f32 %v732, %v812
      %v814 = vpop.f32.mrb[0].mxu0
      %v815 = vpop.f32.mrb[0].mxu0
      %v816 = vadd.f32 %v735, %v815
      %v817 = vpop.f32.mrb[0].mxu0
      %818 = vmatprep.mubr.bf16.mxu0 %v464
      %819 = vmatmul.mubr.bf16.gmra.mrb[0].mxu0 %v463
      %v820 = vpop.f32.mrb[0].mxu0
      %v821 = vadd.f32 %v740, %v820
      %v822 = vpop.f32.mrb[0].mxu0
      %v823 = vpop.f32.mrb[0].mxu0
      %v824 = vadd.f32 %v743, %v823
      %v825 = vpop.f32.mrb[0].mxu0
      %826 = vmatprep.mubr.bf16.mxu0 %v468
      %827 = vmatmul.mubr.bf16.gmra.mrb[0].mxu0 %v467
      %v828 = vpop.f32.mrb[0].mxu0
      %v829 = vadd.f32 %v748, %v828
      %v830 = vpop.f32.mrb[0].mxu0
      %v831 = vpop.f32.mrb[0].mxu0
      %v832 = vadd.f32 %v751, %v831
      %v833 = vpop.f32.mrb[0].mxu0
      %834 = vmatprep.mubr.bf16.mxu0 %v472
      %835 = vmatmul.mubr.bf16.gmra.mrb[0].mxu0 %v471
      %v836 = vpop.f32.mrb[0].mxu0
      %v837 = vadd.f32 %v756, %v836
      %v838 = vpop.f32.mrb[0].mxu0
      %v839 = vpop.f32.mrb[0].mxu0
      %v840 = vadd.f32 %v759, %v839
      %v841 = vpop.f32.mrb[0].mxu0
      %842 = vmatprep.mubr.bf16.mxu0 %v476
      %843 = vmatmul.mubr.bf16.gmra.mrb[0].mxu0 %v475
      %v844 = vpop.f32.mrb[0].mxu0
      %v845 = vadd.f32 %v764, %v844
      %v846 = vpop.f32.mrb[0].mxu0
      %v847 = vpop.f32.mrb[0].mxu0
      %v848 = vadd.f32 %v767, %v847
      %v849 = vpop.f32.mrb[0].mxu0
      %850 = vmatprep.mubr.bf16.mxu0 %v480
      %851 = vmatmul.mubr.bf16.gmra.mrb[0].mxu0 %v479
      %v852 = vpop.f32.mrb[0].mxu0
      %v853 = vadd.f32 %v772, %v852
      %v854 = vpop.f32.mrb[0].mxu0
      %v855 = vpop.f32.mrb[0].mxu0
      %v856 = vadd.f32 %v775, %v855
      %v857 = vpop.f32.mrb[0].mxu0
      %858 = vdwg.mxu0
      %v859 = vpack.c.bf16 %v816, %v813
      %v860 = vpack.c.bf16 %v824, %v821
      %v861 = vpack.c.bf16 %v832, %v829
      %v862 = vpack.c.bf16 %v840, %v837
      %v863 = vpack.c.bf16 %v848, %v845
      %v864 = vpack.c.bf16 %v856, %v853
      %v871 = vunpack.c.l.b16 %v859
      %v872 = vunpack.c.h.b16 %v859
      %v873 = vunpack.c.l.b16 %v860
      %v874 = vunpack.c.h.b16 %v860
      %v875 = vunpack.c.l.b16 %v861
      %v876 = vunpack.c.h.b16 %v861
      %v877 = vunpack.c.l.b16 %v862
      %v878 = vunpack.c.h.b16 %v862
      %v879 = vunpack.c.l.b16 %v863
      %v880 = vunpack.c.h.b16 %v863
      %v881 = vunpack.c.l.b16 %v864
      %v882 = vunpack.c.h.b16 %v864
      %v883 = vpack.c.b16 %v871, %v871
      %v884 = vpack.c.b16 %v872, %v872
      %v885 = vpack.c.b16 %v873, %v873
      %v886 = vpack.c.b16 %v874, %v874
      %v887 = vpack.c.b16 %v875, %v875
      %v888 = vpack.c.b16 %v876, %v876
      %v889 = vpack.c.b16 %v877, %v877
      %v890 = vpack.c.b16 %v878, %v878
      %v891 = vpack.c.b16 %v879, %v879
      %v892 = vpack.c.b16 %v880, %v880
      %v893 = vpack.c.b16 %v881, %v881
      %v894 = vpack.c.b16 %v882, %v882
      %907 = vst [vmem:[%s277] sm:$0xf] %v883
      %908 = vst [vmem:[%s277 + $0x4] sm:$0xf] %v884
      %909 = vst [vmem:[%s277 + $0x8] sm:$0xf] %v885
      %910 = vst [vmem:[%s277 + $0xc] sm:$0xf] %v886
      %911 = vst [vmem:[%s277 + $0x10] sm:$0xf] %v887
      %912 = vst [vmem:[%s277 + $0x14] sm:$0xf] %v888
      %913 = vst [vmem:[%s277 + $0x18] sm:$0xf] %v889
      %914 = vst [vmem:[%s277 + $0x1c] sm:$0xf] %v890
      %915 = vst [vmem:[%s277 + $0x20] sm:$0xf] %v891
      %916 = vst [vmem:[%s277 + $0x24] sm:$0xf] %v892
      %917 = vst [vmem:[%s277 + $0x28] sm:$0xf] %v893
      %918 = vst [vmem:[%s277 + $0x2c] sm:$0xf] %v894
      %p919 = scmp.eq.s32.totalorder %s23, 0
      // Predicated region
      $region29: #{generative_forward.62} parent=27 // pred_check
        %p920 = pneg %p919
      $region30: #{generative_forward.62} parent=27 // pred_check_branch
        %922 = sbr.rel (%p920) target = $region32
      $region31: #{generative_forward.62} parent=27 // pred_region
        %923 = vst [vmem:[%s286] sm:$0x1] 0.0
        %924 = vst [vmem:[%s293] sm:$0x1] 0.0
      $region32: #{generative_forward.62} parent=27 // pred_fallthru
        _
      %v925 = vld [vmem:[%s286] sm:$0x1]
      %v926 = vadd.f32 %v813, %v816
      %v927 = vadd.f32 %v926, %v821
      %v928 = vadd.f32 %v927, %v824
      %v929 = vadd.f32 %v928, %v829
      %v930 = vadd.f32 %v929, %v832
      %v931 = vadd.f32 %v930, %v837
      %v932 = vadd.f32 %v931, %v840
      %v933 = vadd.f32 %v932, %v845
      %v934 = vadd.f32 %v933, %v848
      %v935 = vadd.f32 %v934, %v853
      %v936 = vadd.f32 %v935, %v856
      %v937 = vrot.slane %v936, 4
      %v938 = vadd.f32 %v936, %v937
      %v939 = vrot.slane %v938, 2
      %v940 = vadd.f32 %v938, %v939
      %v941 = vrot.slane %v940, 1
      %v942 = vadd.f32 %v940, %v941
      %v943 = vadd.f32 %v925, %v942
      %944 = vst [vmem:[%s286] sm:$0x1] %v943
      %v945 = vld [vmem:[%s293] sm:$0x1]
      %v946 = vmul.f32 %v813, %v813
      %v947 = vmul.f32 %v816, %v816
      %v948 = vmul.f32 %v821, %v821
      %v949 = vmul.f32 %v824, %v824
      %v950 = vmul.f32 %v829, %v829
      %v951 = vmul.f32 %v832, %v832
      %v952 = vmul.f32 %v837, %v837
      %v953 = vmul.f32 %v840, %v840
      %v954 = vmul.f32 %v845, %v845
      %v955 = vmul.f32 %v848, %v848
      %v956 = vmul.f32 %v853, %v853
      %v957 = vmul.f32 %v856, %v856
      %v958 = vadd.f32 %v946, %v947
      %v959 = vadd.f32 %v958, %v948
      %v960 = vadd.f32 %v959, %v949
      %v961 = vadd.f32 %v960, %v950
      %v962 = vadd.f32 %v961, %v951
      %v963 = vadd.f32 %v962, %v952
      %v964 = vadd.f32 %v963, %v953
      %v965 = vadd.f32 %v964, %v954
      %v966 = vadd.f32 %v965, %v955
      %v967 = vadd.f32 %v966, %v956
      %v968 = vadd.f32 %v967, %v957
      %v969 = vrot.slane %v968, 4
      %v970 = vadd.f32 %v968, %v969
      %v971 = vrot.slane %v970, 2
      %v972 = vadd.f32 %v970, %v971
      %v973 = vrot.slane %v972, 1
      %v974 = vadd.f32 %v972, %v973
      %v975 = vadd.f32 %v945, %v974
      %976 = vst [vmem:[%s293] sm:$0x1] %v975
      %s977 = smul.u32 %s21, 2
      %s978 = sadd.s32 %s977, %s22
      %s979 = sadd.s32 %s978, %s23
      %s980 = smul.u32 12, %s979
      %p981 = scmp.lt.s32.totalorder %s980, 47
      %s982 = scalar_select %p981, %s980, 47
      %s983 = smul.addr %s982, 4
      %s984 = scalar_lea.vmem %s2, %s983
      %s985 = smul.u32 %s21, 2
      %s986 = sadd.s32 %s985, %s22
      %p987 = scmp.lt.s32.totalorder %s986, 3
      %s988 = scalar_select %p987, %s986, 3
      %s989 = scalar_lea.vmem %s3, %s988
      %s990 = smul.u32 %s21, 2
      %s991 = sadd.s32 %s990, %s22
      %p992 = scmp.lt.s32.totalorder %s991, 3
      %s993 = scalar_select %p992, %s991, 3
      %s994 = scalar_lea.vmem %s4, %s993
      // Predicated region
      $region33: #{generative_forward.62} parent=27 // pred_check
        %p995 = pneg %p112
      $region34: #{generative_forward.62} parent=27 // pred_check_branch
        %997 = sbr.rel (%p995) target = $region36
      $region35: #{generative_forward.62} parent=27 // pred_region
        %s998 = smul.u32 %s21, 2
        %s999 = sadd.s32 %s998, %s22
        %s1000 = sadd.s32 %s999, %s23
        %s1001 = smul.u32 12, %s1000
      $region36: #{generative_forward.62} parent=27 // pred_fallthru
        _
      // Predicated region
      $region37: #{generative_forward.62} parent=27 // pred_check
        %p1002 = pneg %p142
      $region38: #{generative_forward.62} parent=27 // pred_check_branch
        %1004 = sbr.rel (%p1002) target = $region40
      $region39: #{generative_forward.62} parent=27 // pred_region
        %s1005 = smul.u32 %s21, 2
        %s1006 = sadd.s32 %s1005, %s22
      $region40: #{generative_forward.62} parent=27 // pred_fallthru
        _
      // Predicated region
      $region41: #{generative_forward.62} parent=27 // pred_check
        %p1007 = pneg %p172
      $region42: #{generative_forward.62} parent=27 // pred_check_branch
        %1009 = sbr.rel (%p1007) target = $region44
      $region43: #{generative_forward.62} parent=27 // pred_region
        %s1010 = smul.u32 %s21, 2
        %s1011 = sadd.s32 %s1010, %s22
      $region44: #{generative_forward.62} parent=27 // pred_fallthru
        _
    $region28: #{generative_forward.62} parent=5 // pred_fallthru
      _
    %p1012 = scmp.le.s32.totalorder 2, %s11
    // Predicated region
    $region45: #{generative_forward.62} parent=5 // pred_check
      %p1013 = pneg %p1012
    $region46: #{generative_forward.62} parent=5 // pred_check_branch
      %1015 = sbr.rel (%p1013) target = $region48
    $region47: #{generative_forward.62} parent=5 // pred_region
      %s1016 = ssub.s32 %s11, 2
      // Predicated region
      $region49: #{generative_forward.62} parent=47 // pred_check
        %p1017 = pneg %p118
      $region50: #{generative_forward.62} parent=47 // pred_check_branch
        %1019 = sbr.rel (%p1017) target = $region52
      $region51: #{generative_forward.62} parent=47 // pred_region
        %s1020 = smul.u32 %s24, 2
        %s1021 = sadd.s32 %s1020, %s25
        %s1022 = sadd.s32 %s1021, %s26
        %s1023 = smul.u32 12, %s1022
        %p1024 = scmp.lt.s32.totalorder %s1023, 47
        %s1025 = scalar_select %p1024, %s1023, 47
        %s1026 = smul.addr %s1025, 4
        %s1027 = scalar_lea.vmem %s2, %s1026
      $region52: #{generative_forward.62} parent=47 // pred_fallthru
        _
      // Predicated region
      $region53: #{generative_forward.62} parent=47 // pred_check
        %p1028 = pneg %p148
      $region54: #{generative_forward.62} parent=47 // pred_check_branch
        %1030 = sbr.rel (%p1028) target = $region56
      $region55: #{generative_forward.62} parent=47 // pred_region
        %s1031 = smul.u32 %s24, 2
        %s1032 = sadd.s32 %s1031, %s25
        %p1033 = scmp.lt.s32.totalorder %s1032, 3
        %s1034 = scalar_select %p1033, %s1032, 3
        %s1035 = scalar_lea.vmem %s3, %s1034
      $region56: #{generative_forward.62} parent=47 // pred_fallthru
        _
      // Predicated region
      $region57: #{generative_forward.62} parent=47 // pred_check
        %p1036 = pneg %p178
      $region58: #{generative_forward.62} parent=47 // pred_check_branch
        %1038 = sbr.rel (%p1036) target = $region60
      $region59: #{generative_forward.62} parent=47 // pred_region
        %s1039 = smul.u32 %s24, 2
        %s1040 = sadd.s32 %s1039, %s25
        %p1041 = scmp.lt.s32.totalorder %s1040, 3
        %s1042 = scalar_select %p1041, %s1040, 3
        %s1043 = scalar_lea.vmem %s4, %s1042
      $region60: #{generative_forward.62} parent=47 // pred_fallthru
        _
    $region48: #{generative_forward.62} parent=5 // pred_fallthru
      _
  $region6: #{generative_forward.62} parent=0 // loop_footer
    %s15 = sadd.s32 1, %s11
  $region7: #{generative_forward.62} parent=0 // loop_footer_branch
    %10 = sbr.rel target = $region3
  $region8: #{generative_forward.62} parent=0 // loop_exit
    _

</llo_original>
